<compile_context>
chip_gen: v7x
topology: tpu7x:2x2x1
jax: 0.10.0
libtpu: 0.0.40
codegen_flags: <defaults>
</compile_context>

<pallas_src>
import math
import functools

import numpy as np
import jax
import jax.numpy as jnp
from jax.experimental import pallas as pl
from jax.experimental.pallas import tpu as pltpu

_HI = jax.lax.Precision.HIGHEST     # used only in the pure-JAX correctness reference
_MATMUL_DTYPE = jnp.bfloat16        # GEMM operand dtype inside the kernel (f32 accumulation)
_OUT_LANES = 128                    # lane-dense packed output width (state || action || pad)


# ----------------------------- shared math helpers -----------------------------

def _layer_norm(x, w, b, eps=1e-5):
    # PyTorch nn.LayerNorm semantics: biased variance, eps inside sqrt; rsqrt -> EUP.
    mu = jnp.mean(x, axis=-1, keepdims=True)
    var = jnp.mean((x - mu) ** 2, axis=-1, keepdims=True)
    return (x - mu) * jax.lax.rsqrt(var + eps) * w + b


def _erf_approx(x):
    # Abramowitz & Stegun 7.1.26, |err| <= 1.5e-7.  Uses only exp + elementwise ops so it is
    # guaranteed to lower inside the Mosaic kernel (no reliance on a lax.erf lowering rule).
    a1, a2, a3, a4, a5 = (0.254829592, -0.284496736, 1.421413741,
                          -1.453152027, 1.061405429)
    p = 0.3275911
    z = jnp.abs(x)
    t = 1.0 / (1.0 + p * z)
    poly = ((((a5 * t + a4) * t + a3) * t + a2) * t + a1) * t
    y = 1.0 - poly * jnp.exp(-z * z)
    return jnp.where(x < 0.0, -y, y)


def _gelu_exact(x, erf=jax.lax.erf):
    # nn.GELU() default = exact erf formulation.
    return 0.5 * x * (1.0 + erf(x * 0.7071067811865476))


# ----------------------------- fused Pallas kernel -----------------------------

def _dt_fused_kernel(n_layers, n_heads,
                     states_ref, actions_ref, goals_ref, temb_ref,
                     pz_ref, ps_ref, pa_ref, pzg_ref, sels_ref, sela_ref, mask_ref,
                     esw_ref, esb_ref, eaw_ref, eab_ref, egw_ref, egb_ref,
                     elnw_ref, elnb_ref,
                     wqkv_ref, bqkv_ref, wph_ref, bp_ref,
                     ln1w_ref, ln1b_ref, w1_ref, b1_ref, w2_ref, b2_ref,
                     ln2w_ref, ln2b_ref,
                     psw_ref, psb_ref, paw_ref, pab_ref,
                     out_ref):
    """Full DecisionTransformer forward for ONE batch block (grid axis = batch blocks)."""
    f32 = jnp.float32
    mmd = _MATMUL_DTYPE

    t_emb = temb_ref[...]                          # (Bb, T, E) f32
    Bb, T, E = t_emb.shape
    S = 3 * T
    H = n_heads
    D = E // H
    scale = 1.0 / math.sqrt(D)

    t_flat = t_emb.reshape(Bb * T, E)
    s_in = states_ref[...].reshape(Bb * T, states_ref.shape[-1]).astype(mmd)
    a_in = actions_ref[...].reshape(Bb * T, actions_ref.shape[-1]).astype(mmd)
    g_in = goals_ref[...].reshape(Bb, goals_ref.shape[-1]).astype(mmd)

    # --- embedding linears (+ timestep add); batch folded into the row/sublane axis ---
    s_emb = jnp.dot(s_in, esw_ref[...], preferred_element_type=f32) + esb_ref[...] + t_flat
    a_emb = jnp.dot(a_in, eaw_ref[...], preferred_element_type=f32) + eab_ref[...] + t_flat
    g_emb = jnp.dot(g_in, egw_ref[...], preferred_element_type=f32) + egb_ref[...]   # (Bb, E)

    # --- interleave (z_t, s_t, a_t) rows via precomputed one-hot constants (exact, f32) ---
    # pzg broadcasts each batch element's single goal embedding over its T z-token rows,
    # pz adds the timestep embedding to the z rows, ps/pa place the state/action rows.
    x = (jnp.dot(pzg_ref[...], g_emb, preferred_element_type=f32)
         + jnp.dot(pz_ref[...], t_flat, preferred_element_type=f32)
         + jnp.dot(ps_ref[...], s_emb, preferred_element_type=f32)
         + jnp.dot(pa_ref[...], a_emb, preferred_element_type=f32))    # (Bb*S, E)
    x = _layer_norm(x, elnw_ref[...], elnb_ref[...])

    mask_bias = mask_ref[...]                      # (S, S) additive causal bias (0 / -1e30)
    dn_qkt = (((1,), (1,)), ((), ()))              # q @ k^T without materializing k.T

    # --- transformer blocks (statically unrolled; n_layers is small) ---
    for l in range(n_layers):
        # fused, lane-dense QKV projection over the whole batch block
        qkv = jnp.dot(x.astype(mmd), wqkv_ref[l], preferred_element_type=f32) + bqkv_ref[l]
        att_parts = []
        for b in range(Bb):
            r0 = b * S
            att_b = None
            for h in range(H):
                qh = qkv[r0:r0 + S, h * D:(h + 1) * D]
                kh = qkv[r0:r0 + S, E + h * D:E + (h + 1) * D]
                vh = qkv[r0:r0 + S, 2 * E + h * D:2 * E + (h + 1) * D]
                sc = jax.lax.dot_general(qh, kh, dn_qkt, preferred_element_type=f32) * scale
                sc = sc + mask_bias
                sc = sc - jnp.max(sc, axis=-1, keepdims=True)
                p = jnp.exp(sc)
                p = p * pl.reciprocal(jnp.sum(p, axis=-1, keepdims=True), approx=True)
                oh = jnp.dot(p, vh, preferred_element_type=f32)                  # (S, D)
                # per-head slice of the out-projection, accumulated in registers
                ph = jnp.dot(oh.astype(mmd), wph_ref[l, h], preferred_element_type=f32)
                att_b = ph if att_b is None else att_b + ph
            att_parts.append(att_b)
        att = att_parts[0] if Bb == 1 else jnp.concatenate(att_parts, axis=0)    # (Bb*S, E)
        att = att + bp_ref[l]
        x = _layer_norm(x + att, ln1w_ref[l], ln1b_ref[l])
        hid = _gelu_exact(jnp.dot(x.astype(mmd), w1_ref[l], preferred_element_type=f32)
                          + b1_ref[l], erf=_erf_approx)
        mlp = jnp.dot(hid.astype(mmd), w2_ref[l], preferred_element_type=f32) + b2_ref[l]
        x = _layer_norm(x + mlp, ln2w_ref[l], ln2b_ref[l])

    # --- de-interleave + packed, lane-dense prediction heads ---
    # state_preds read the action-token rows (3t+2); action_preds read the state-token
    # rows (3t+1), matching the reference module.
    s_tok = jnp.dot(sels_ref[...], x, preferred_element_type=f32)    # (Bb*T, E)
    a_tok = jnp.dot(sela_ref[...], x, preferred_element_type=f32)    # (Bb*T, E)
    sp = jnp.dot(a_tok.astype(mmd), psw_ref[...], preferred_element_type=f32) + psb_ref[...]
    ap = jnp.tanh(jnp.dot(s_tok.astype(mmd), paw_ref[...], preferred_element_type=f32)
                  + pab_ref[...])
    # psw/paw are zero-padded & column-shifted so sp occupies [0:obs), ap occupies
    # [obs:obs+act), and everything else is exactly 0 -> a single 128-lane-dense store.
    out_ref[...] = (sp + ap).reshape(Bb, T, -1).astype(out_ref.dtype)


# ----------------------------- parameter prep (one-time, kernel layout) -----------------------------

def prepare_params(params, n_heads):
    """Repack params into the kernel layout: per-layer weights stacked along a leading layer
    axis, q/k/v fused into one lane-dense (E,3E) weight, out-proj pre-split per head (H,D,E),
    GEMM weights cast to bf16 (biases / LN params stay f32), prediction heads zero-padded and
    packed into one lane-dense (E,128) slab."""
    E = params["embed_state_w"].shape[1]
    H = n_heads
    D = E // H
    mmd = _MATMUL_DTYPE
    blocks = params["blocks"]
    stack = lambda xs: jnp.stack(xs, axis=0)

    obs_dim = params["predict_state_w"].shape[1]
    act_dim = params["predict_action_w"].shape[1]
    out_pad = max(_OUT_LANES, ((obs_dim + act_dim + 127) // 128) * 128)

    psw_pad = jnp.zeros((E, out_pad), jnp.float32).at[:, :obs_dim].set(
        params["predict_state_w"])
    psb_pad = jnp.zeros((1, out_pad), jnp.float32).at[:, :obs_dim].set(
        params["predict_state_b"])
    paw_pad = jnp.zeros((E, out_pad), jnp.float32).at[:, obs_dim:obs_dim + act_dim].set(
        params["predict_action_w"])
    pab_pad = jnp.zeros((1, out_pad), jnp.float32).at[:, obs_dim:obs_dim + act_dim].set(
        params["predict_action_b"])

    return dict(
        embed_state_w=params["embed_state_w"].astype(mmd),
        embed_state_b=params["embed_state_b"],
        embed_action_w=params["embed_action_w"].astype(mmd),
        embed_action_b=params["embed_action_b"],
        embed_goal_w=params["embed_goal_w"].astype(mmd),
        embed_goal_b=params["embed_goal_b"],
        embed_ln_w=params["embed_ln_w"], embed_ln_b=params["embed_ln_b"],
        embed_timestep=params["embed_timestep"],
        wqkv=stack([jnp.concatenate([blk[0], blk[2], blk[4]], axis=1)
                    for blk in blocks]).astype(mmd),                       # (L, E, 3E)
        bqkv=stack([jnp.concatenate([blk[1], blk[3], blk[5]], axis=1)
                    for blk in blocks]),                                    # (L, 1, 3E)
        wph=stack([blk[6].reshape(H, D, E) for blk in blocks]).astype(mmd),  # (L, H, D, E)
        bp=stack([blk[7] for blk in blocks]),
        ln1w=stack([blk[8] for blk in blocks]),
        ln1b=stack([blk[9] for blk in blocks]),
        w1=stack([blk[10] for blk in blocks]).astype(mmd),
        b1=stack([blk[11] for blk in blocks]),
        w2=stack([blk[12] for blk in blocks]).astype(mmd),
        b2=stack([blk[13] for blk in blocks]),
        ln2w=stack([blk[14] for blk in blocks]),
        ln2b=stack([blk[15] for blk in blocks]),
        predict_state_w_pad=psw_pad.astype(mmd), predict_state_b_pad=psb_pad,
        predict_action_w_pad=paw_pad.astype(mmd), predict_action_b_pad=pab_pad,
    )


# ----------------------------- interleave / mask constants -----------------------------

def _interleave_constants(b_blk, T):
    """Exact one-hot interleave / de-interleave matrices and the additive causal mask.
    Built once in the wrapper (numpy) and passed as constant kernel inputs."""
    S = 3 * T
    R, BT = b_blk * S, b_blk * T
    r = np.arange(R)[:, None]
    i = np.arange(BT)[None, :]
    pz = (r == 3 * i).astype(np.float32)          # row 3i   <- z_i (timestep part)
    ps = (r == 3 * i + 1).astype(np.float32)      # row 3i+1 <- s_i
    pa = (r == 3 * i + 2).astype(np.float32)      # row 3i+2 <- a_i
    b_idx = np.arange(b_blk)[None, :]
    # z rows also pick up their own batch element's single goal embedding (broadcast over T)
    pzg = ((r % 3 == 0) & ((r // 3) // T == b_idx)).astype(np.float32)   # (R, b_blk)
    sel_s = np.ascontiguousarray(ps.T)            # state-token rows  -> predict_action input
    sel_a = np.ascontiguousarray(pa.T)            # action-token rows -> predict_state input
    rr = np.arange(S)[:, None]
    cc = np.arange(S)[None, :]
    mask = np.where(cc <= rr, 0.0, -1e30).astype(np.float32)
    return tuple(jnp.asarray(c) for c in (pz, ps, pa, pzg, sel_s, sel_a, mask))


def _pick_batch_block(batch, requested=None):
    if requested is not None:
        assert batch % requested == 0
        return requested
    if batch < 2:
        return batch
    # keep >= 2 grid blocks (v7x megacore) and cap the block to bound VMEM/activation growth
    target = max(1, min(batch // 2, 8))
    while batch % target:
        target -= 1
    return max(target, 1)


# ----------------------------- DecisionTransformer forward (single pallas_call) -----------------------------

def dt_forward(prepped, states, actions, goals, traj_mask, timesteps, n_heads,
               batch_block=None):
    del traj_mask  # only used by slotmae when GOAL_CONDITION is False
    B, T, obs_dim = states.shape
    act_dim = actions.shape[-1]
    goal_dim = goals.shape[-1]
    E = prepped["embed_state_w"].shape[1]
    n_layers = prepped["wqkv"].shape[0]
    out_pad = prepped["predict_state_w_pad"].shape[1]

    b_blk = _pick_batch_block(B, batch_block)
    grid = (B // b_blk,)

    # learned timestep embeddings (plain-JAX gather — the only glue left outside the kernel)
    # TODO(synk): move this gather in-kernel via PrefetchScalarGridSpec + per-row DMAs.
    t_emb = jnp.take(prepped["embed_timestep"], timesteps, axis=0)    # (B, T, E) f32

    consts = _interleave_constants(b_blk, T)

    weight_order = [
        "embed_state_w", "embed_state_b", "embed_action_w", "embed_action_b",
        "embed_goal_w", "embed_goal_b", "embed_ln_w", "embed_ln_b",
        "wqkv", "bqkv", "wph", "bp",
        "ln1w", "ln1b", "w1", "b1", "w2", "b2", "ln2w", "ln2b",
        "predict_state_w_pad", "predict_state_b_pad",
        "predict_action_w_pad", "predict_action_b_pad",
    ]
    weights = [prepped[k] for k in weight_order]

    def batch_spec(tail):
        nd = 1 + len(tail)
        return pl.BlockSpec((b_blk,) + tuple(tail),
                            lambda i, _nd=nd: (i,) + (0,) * (_nd - 1))

    def const_spec(arr):
        zeros = (0,) * arr.ndim
        return pl.BlockSpec(arr.shape, lambda i, _z=zeros: _z)

    in_specs = ([batch_spec((T, obs_dim)),      # states
                 batch_spec((T, act_dim)),      # actions
                 batch_spec((1, goal_dim)),     # goals (single row; broadcast via pzg)
                 batch_spec((T, E))]            # timestep embeddings
                + [const_spec(c) for c in consts]
                + [const_spec(w) for w in weights])
    out_specs = batch_spec((T, out_pad))

    packed = pl.pallas_call(
        functools.partial(_dt_fused_kernel, n_layers, n_heads),
        out_shape=jax.ShapeDtypeStruct((B, T, out_pad), jnp.float32),
        grid=grid,
        in_specs=in_specs,
        out_specs=out_specs,
        compiler_params=pltpu.CompilerParams(
            dimension_semantics=("parallel",),
            vmem_limit_bytes=32 * 1024 * 1024),
    )(states, actions, goals, t_emb, *consts, *weights)

    state_preds = packed[..., :obs_dim]
    action_preds = packed[..., obs_dim:obs_dim + act_dim]
    return state_preds, action_preds, None


# ----------------------------- pure-JAX reference -----------------------------

def _ref_lin(x, w, b):
    return jnp.dot(x, w, precision=_HI) + b


def _ref_block(x, blk, n_heads):
    (wq, bq, wk, bk, wv, bv, wp, bp,
     ln1w, ln1b, w1, b1, w2, b2, ln2w, ln2b) = blk
    B, S, E = x.shape
    D = E // n_heads
    q = _ref_lin(x, wq, bq).reshape(B, S, n_heads, D).transpose(0, 2, 1, 3)
    k = _ref_lin(x, wk, bk).reshape(B, S, n_heads, D).transpose(0, 2, 1, 3)
    v = _ref_lin(x, wv, bv).reshape(B, S, n_heads, D).transpose(0, 2, 1, 3)
    w = jnp.einsum("bhqd,bhkd->bhqk", q, k, precision=_HI) / math.sqrt(D)
    mask = jnp.tril(jnp.ones((S, S), bool))
    w = jnp.where(mask, w, -jnp.inf)
    p = jax.nn.softmax(w, axis=-1)
    att = jnp.einsum("bhqk,bhkd->bhqd", p, v,
                     precision=_HI).transpose(0, 2, 1, 3).reshape(B, S, E)
    att_out = _ref_lin(att, wp, bp)
    x1 = _layer_norm(x + att_out, ln1w, ln1b)
    h = _gelu_exact(_ref_lin(x1, w1, b1))
    x2 = _layer_norm(x1 + _ref_lin(h, w2, b2), ln2w, ln2b)
    return x2


def ref_forward(params, states, actions, goals, traj_mask, timesteps, n_heads):
    del traj_mask
    B, T, _ = states.shape
    E = params["embed_state_w"].shape[1]
    s_emb = _ref_lin(states, params["embed_state_w"], params["embed_state_b"])
    a_emb = _ref_lin(actions, params["embed_action_w"], params["embed_action_b"])
    z_emb = _ref_lin(jnp.repeat(goals, T, axis=1),
                     params["embed_goal_w"], params["embed_goal_b"])
    t_emb = jnp.take(params["embed_timestep"], timesteps, axis=0)
    s_emb, a_emb, z_emb = s_emb + t_emb, a_emb + t_emb, z_emb + t_emb
    x = jnp.stack([z_emb, s_emb, a_emb], axis=2).reshape(B, 3 * T, E)
    x = _layer_norm(x, params["embed_ln_w"], params["embed_ln_b"])
    for blk in params["blocks"]:
        x = _ref_block(x, blk, n_heads)
    x = x.reshape(B, T, 3, E).transpose(0, 2, 1, 3)
    sp = _ref_lin(x[:, 2], params["predict_state_w"], params["predict_state_b"])
    ap = jnp.tanh(_ref_lin(x[:, 1], params["predict_action_w"], params["predict_action_b"]))
    return sp, ap, None


# ----------------------------- parameter init -----------------------------

def init_params(key, obs_dim, act_dim, goal_dim, embed_dim, n_layers, max_ep_len):
    E = embed_dim
    keys = iter(jax.random.split(key, 256))

    def w(shape, scale=0.02):
        return (scale * jax.random.normal(next(keys), shape)).astype(jnp.float32)

    def bias(n):
        return (0.01 * jax.random.normal(next(keys), (1, n))).astype(jnp.float32)

    def ln_pair(n):
        return (1.0 + 0.01 * jax.random.normal(next(keys), (1, n))).astype(jnp.float32), \
               (0.01 * jax.random.normal(next(keys), (1, n))).astype(jnp.float32)

    blocks = []
    for _ in range(n_layers):
        ln1w, ln1b = ln_pair(E)
        ln2w, ln2b = ln_pair(E)
        blocks.append((
            w((E, E)), bias(E),          # q
            w((E, E)), bias(E),          # k
            w((E, E)), bias(E),          # v
            w((E, E)), bias(E),          # proj
            ln1w, ln1b,
            w((E, 4 * E)), bias(4 * E),  # mlp fc1
            w((4 * E, E)), bias(E),      # mlp fc2
            ln2w, ln2b,
        ))

    eln_w, eln_b = ln_pair(E)
    params = dict(
        embed_state_w=w((obs_dim, E)), embed_state_b=bias(E),
        embed_action_w=w((act_dim, E)), embed_action_b=bias(E),
        embed_goal_w=w((goal_dim, E)), embed_goal_b=bias(E),
        embed_timestep=w((max_ep_len, E)),
        embed_ln_w=eln_w, embed_ln_b=eln_b,
        blocks=blocks,
        predict_state_w=w((E, obs_dim)), predict_state_b=bias(obs_dim),
        predict_action_w=w((E, act_dim)), predict_action_b=bias(act_dim),
    )
    return params


# ----------------------------- main -----------------------------

if __name__ == "__main__":
    B, T = 4, 8                 # batch, ctx_size (seq_length == ctx_size)
    obs_dim, act_dim, goal_dim = 11, 3, 5
    embed_dim, n_heads, n_layers = 32, 2, 2
    max_ep_len = 1000

    key = jax.random.PRNGKey(0)
    kp, ks, ka, kg = jax.random.split(key, 4)

    params = init_params(kp, obs_dim, act_dim, goal_dim, embed_dim, n_layers, max_ep_len)
    prepped = prepare_params(params, n_heads)   # one-time kernel-layout weight prep

    states = jax.random.normal(ks, (B, T, obs_dim), jnp.float32)
    actions = jax.random.normal(ka, (B, T, act_dim), jnp.float32)
    goals = jax.random.normal(kg, (B, 1, goal_dim), jnp.float32)
    traj_mask = jnp.ones((B, T), jnp.float32)      # unused (GOAL_CONDITION=True)
    timesteps = jnp.tile(jnp.arange(T, dtype=jnp.int32)[None, :], (B, 1))

    state_preds, action_preds, _ = dt_forward(
        prepped, states, actions, goals, traj_mask, timesteps, n_heads)
    jax.block_until_ready((state_preds, action_preds))

    # correctness check against a high-precision pure-JAX reference of the same math
    sp_ref, ap_ref, _ = ref_forward(
        params, states, actions, goals, traj_mask, timesteps, n_heads)
    assert state_preds.shape == (B, T, obs_dim)
    assert action_preds.shape == (B, T, act_dim)
    # tolerance covers bf16 GEMM operands (f32 accumulation) + approx softmax reciprocal
    assert jnp.allclose(state_preds, sp_ref, atol=1e-2, rtol=1e-2)
    assert jnp.allclose(action_preds, ap_ref, atol=1e-2, rtol=1e-2)

    # TODO(synk): slotmae.encode path (GOAL_CONDITION=False) not implemented — the frozen
    # slotmae submodule is external to this module's own compute.
    print("KERNEL_OK")
</pallas_src>

<mosaic_0001>
module attributes {stable_mosaic.version = 11 : i64} {
  func.func @_dt_fused_kernel(%arg0: i32, %arg1: memref<2x8x11xf32, #tpu.memory_space<vmem>>, %arg2: memref<2x8x3xf32, #tpu.memory_space<vmem>>, %arg3: memref<2x1x5xf32, #tpu.memory_space<vmem>>, %arg4: memref<2x8x32xf32, #tpu.memory_space<vmem>>, %arg5: memref<48x16xf32, #tpu.memory_space<vmem>>, %arg6: memref<48x16xf32, #tpu.memory_space<vmem>>, %arg7: memref<48x16xf32, #tpu.memory_space<vmem>>, %arg8: memref<48x2xf32, #tpu.memory_space<vmem>>, %arg9: memref<16x48xf32, #tpu.memory_space<vmem>>, %arg10: memref<16x48xf32, #tpu.memory_space<vmem>>, %arg11: memref<24x24xf32, #tpu.memory_space<vmem>>, %arg12: memref<11x32xbf16, #tpu.memory_space<vmem>>, %arg13: memref<1x32xf32, #tpu.memory_space<vmem>>, %arg14: memref<3x32xbf16, #tpu.memory_space<vmem>>, %arg15: memref<1x32xf32, #tpu.memory_space<vmem>>, %arg16: memref<5x32xbf16, #tpu.memory_space<vmem>>, %arg17: memref<1x32xf32, #tpu.memory_space<vmem>>, %arg18: memref<1x32xf32, #tpu.memory_space<vmem>>, %arg19: memref<1x32xf32, #tpu.memory_space<vmem>>, %arg20: memref<2x32x96xbf16, #tpu.memory_space<vmem>>, %arg21: memref<2x1x96xf32, #tpu.memory_space<vmem>>, %arg22: memref<2x2x16x32xbf16, #tpu.memory_space<vmem>>, %arg23: memref<2x1x32xf32, #tpu.memory_space<vmem>>, %arg24: memref<2x1x32xf32, #tpu.memory_space<vmem>>, %arg25: memref<2x1x32xf32, #tpu.memory_space<vmem>>, %arg26: memref<2x32x128xbf16, #tpu.memory_space<vmem>>, %arg27: memref<2x1x128xf32, #tpu.memory_space<vmem>>, %arg28: memref<2x128x32xbf16, #tpu.memory_space<vmem>>, %arg29: memref<2x1x32xf32, #tpu.memory_space<vmem>>, %arg30: memref<2x1x32xf32, #tpu.memory_space<vmem>>, %arg31: memref<2x1x32xf32, #tpu.memory_space<vmem>>, %arg32: memref<32x128xbf16, #tpu.memory_space<vmem>>, %arg33: memref<1x128xf32, #tpu.memory_space<vmem>>, %arg34: memref<32x128xbf16, #tpu.memory_space<vmem>>, %arg35: memref<1x128xf32, #tpu.memory_space<vmem>>, %arg36: memref<2x8x128xf32, #tpu.memory_space<vmem>>) attributes {dimension_semantics = [#tpu.dimension_semantics<parallel>], iteration_bounds = array<i64: 2>, scalar_prefetch = 0 : i64, scratch_operands = 0 : i64, tpu.core_type = #tpu.core_type<tc>, window_params = [{transform_indices = @transform_0, window_bounds = array<i64: 2, 8, 11>}, {transform_indices = @transform_1, window_bounds = array<i64: 2, 8, 3>}, {transform_indices = @transform_2, window_bounds = array<i64: 2, 1, 5>}, {transform_indices = @transform_3, window_bounds = array<i64: 2, 8, 32>}, {pipeline_mode = #tpu.pipeline_mode<synchronous>, transform_indices = @transform_4, window_bounds = array<i64: 48, 16>}, {pipeline_mode = #tpu.pipeline_mode<synchronous>, transform_indices = @transform_5, window_bounds = array<i64: 48, 16>}, {pipeline_mode = #tpu.pipeline_mode<synchronous>, transform_indices = @transform_6, window_bounds = array<i64: 48, 16>}, {pipeline_mode = #tpu.pipeline_mode<synchronous>, transform_indices = @transform_7, window_bounds = array<i64: 48, 2>}, {pipeline_mode = #tpu.pipeline_mode<synchronous>, transform_indices = @transform_8, window_bounds = array<i64: 16, 48>}, {pipeline_mode = #tpu.pipeline_mode<synchronous>, transform_indices = @transform_9, window_bounds = array<i64: 16, 48>}, {pipeline_mode = #tpu.pipeline_mode<synchronous>, transform_indices = @transform_10, window_bounds = array<i64: 24, 24>}, {pipeline_mode = #tpu.pipeline_mode<synchronous>, transform_indices = @transform_11, window_bounds = array<i64: 11, 32>}, {pipeline_mode = #tpu.pipeline_mode<synchronous>, transform_indices = @transform_12, window_bounds = array<i64: 1, 32>}, {pipeline_mode = #tpu.pipeline_mode<synchronous>, transform_indices = @transform_13, window_bounds = array<i64: 3, 32>}, {pipeline_mode = #tpu.pipeline_mode<synchronous>, transform_indices = @transform_14, window_bounds = array<i64: 1, 32>}, {pipeline_mode = #tpu.pipeline_mode<synchronous>, transform_indices = @transform_15, window_bounds = array<i64: 5, 32>}, {pipeline_mode = #tpu.pipeline_mode<synchronous>, transform_indices = @transform_16, window_bounds = array<i64: 1, 32>}, {pipeline_mode = #tpu.pipeline_mode<synchronous>, transform_indices = @transform_17, window_bounds = array<i64: 1, 32>}, {pipeline_mode = #tpu.pipeline_mode<synchronous>, transform_indices = @transform_18, window_bounds = array<i64: 1, 32>}, {pipeline_mode = #tpu.pipeline_mode<synchronous>, transform_indices = @transform_19, window_bounds = array<i64: 2, 32, 96>}, {pipeline_mode = #tpu.pipeline_mode<synchronous>, transform_indices = @transform_20, window_bounds = array<i64: 2, 1, 96>}, {pipeline_mode = #tpu.pipeline_mode<synchronous>, transform_indices = @transform_21, window_bounds = array<i64: 2, 2, 16, 32>}, {pipeline_mode = #tpu.pipeline_mode<synchronous>, transform_indices = @transform_22, window_bounds = array<i64: 2, 1, 32>}, {pipeline_mode = #tpu.pipeline_mode<synchronous>, transform_indices = @transform_23, window_bounds = array<i64: 2, 1, 32>}, {pipeline_mode = #tpu.pipeline_mode<synchronous>, transform_indices = @transform_24, window_bounds = array<i64: 2, 1, 32>}, {pipeline_mode = #tpu.pipeline_mode<synchronous>, transform_indices = @transform_25, window_bounds = array<i64: 2, 32, 128>}, {pipeline_mode = #tpu.pipeline_mode<synchronous>, transform_indices = @transform_26, window_bounds = array<i64: 2, 1, 128>}, {pipeline_mode = #tpu.pipeline_mode<synchronous>, transform_indices = @transform_27, window_bounds = array<i64: 2, 128, 32>}, {pipeline_mode = #tpu.pipeline_mode<synchronous>, transform_indices = @transform_28, window_bounds = array<i64: 2, 1, 32>}, {pipeline_mode = #tpu.pipeline_mode<synchronous>, transform_indices = @transform_29, window_bounds = array<i64: 2, 1, 32>}, {pipeline_mode = #tpu.pipeline_mode<synchronous>, transform_indices = @transform_30, window_bounds = array<i64: 2, 1, 32>}, {pipeline_mode = #tpu.pipeline_mode<synchronous>, transform_indices = @transform_31, window_bounds = array<i64: 32, 128>}, {pipeline_mode = #tpu.pipeline_mode<synchronous>, transform_indices = @transform_32, window_bounds = array<i64: 1, 128>}, {pipeline_mode = #tpu.pipeline_mode<synchronous>, transform_indices = @transform_33, window_bounds = array<i64: 32, 128>}, {pipeline_mode = #tpu.pipeline_mode<synchronous>, transform_indices = @transform_34, window_bounds = array<i64: 1, 128>}, {transform_indices = @transform_35, window_bounds = array<i64: 2, 8, 128>}]} {
    %c0 = arith.constant 0 : index
    %c0_0 = arith.constant 0 : index
    %c0_1 = arith.constant 0 : index
    %0 = vector.load %arg4[%c0, %c0_0, %c0_1] : memref<2x8x32xf32, #tpu.memory_space<vmem>>, vector<2x8x32xf32>
    %1 = vector.shape_cast %0 : vector<2x8x32xf32> to vector<16x32xf32>
    %c0_2 = arith.constant 0 : index
    %c0_3 = arith.constant 0 : index
    %c0_4 = arith.constant 0 : index
    %2 = vector.load %arg1[%c0_2, %c0_3, %c0_4] : memref<2x8x11xf32, #tpu.memory_space<vmem>>, vector<2x8x11xf32>
    %3 = vector.shape_cast %2 : vector<2x8x11xf32> to vector<16x11xf32>
    %4 = arith.truncf %3 : vector<16x11xf32> to vector<16x11xbf16>
    %c0_5 = arith.constant 0 : index
    %c0_6 = arith.constant 0 : index
    %c0_7 = arith.constant 0 : index
    %5 = vector.load %arg2[%c0_5, %c0_6, %c0_7] : memref<2x8x3xf32, #tpu.memory_space<vmem>>, vector<2x8x3xf32>
    %6 = vector.shape_cast %5 : vector<2x8x3xf32> to vector<16x3xf32>
    %7 = arith.truncf %6 : vector<16x3xf32> to vector<16x3xbf16>
    %c0_8 = arith.constant 0 : index
    %c0_9 = arith.constant 0 : index
    %c0_10 = arith.constant 0 : index
    %8 = vector.load %arg3[%c0_8, %c0_9, %c0_10] : memref<2x1x5xf32, #tpu.memory_space<vmem>>, vector<2x1x5xf32>
    %9 = vector.shape_cast %8 : vector<2x1x5xf32> to vector<2x5xf32>
    %10 = arith.truncf %9 : vector<2x5xf32> to vector<2x5xbf16>
    %c0_11 = arith.constant 0 : index
    %c0_12 = arith.constant 0 : index
    %11 = vector.load %arg12[%c0_11, %c0_12] : memref<11x32xbf16, #tpu.memory_space<vmem>>, vector<11x32xbf16>
    %cst = arith.constant dense<0.000000e+00> : vector<16x32xf32>
    %12 = tpu.matmul %4, %11, %cst {dimension_numbers = #tpu.dot_dimension_numbers<[1], [0], [0], [1], [0, 0, 1, 1], [], []>} : vector<16x11xbf16>, vector<11x32xbf16>, vector<16x32xf32> -> vector<16x32xf32>
    %c0_13 = arith.constant 0 : index
    %c0_14 = arith.constant 0 : index
    %13 = vector.load %arg13[%c0_13, %c0_14] : memref<1x32xf32, #tpu.memory_space<vmem>>, vector<1x32xf32>
    %14 = vector.broadcast %13 : vector<1x32xf32> to vector<16x32xf32>
    %15 = arith.addf %12, %14 : vector<16x32xf32>
    %16 = arith.addf %15, %1 : vector<16x32xf32>
    %c0_15 = arith.constant 0 : index
    %c0_16 = arith.constant 0 : index
    %17 = vector.load %arg14[%c0_15, %c0_16] : memref<3x32xbf16, #tpu.memory_space<vmem>>, vector<3x32xbf16>
    %cst_17 = arith.constant dense<0.000000e+00> : vector<16x32xf32>
    %18 = tpu.matmul %7, %17, %cst_17 {dimension_numbers = #tpu.dot_dimension_numbers<[1], [0], [0], [1], [0, 0, 1, 1], [], []>} : vector<16x3xbf16>, vector<3x32xbf16>, vector<16x32xf32> -> vector<16x32xf32>
    %c0_18 = arith.constant 0 : index
    %c0_19 = arith.constant 0 : index
    %19 = vector.load %arg15[%c0_18, %c0_19] : memref<1x32xf32, #tpu.memory_space<vmem>>, vector<1x32xf32>
    %20 = vector.broadcast %19 : vector<1x32xf32> to vector<16x32xf32>
    %21 = arith.addf %18, %20 : vector<16x32xf32>
    %22 = arith.addf %21, %1 : vector<16x32xf32>
    %c0_20 = arith.constant 0 : index
    %c0_21 = arith.constant 0 : index
    %23 = vector.load %arg16[%c0_20, %c0_21] : memref<5x32xbf16, #tpu.memory_space<vmem>>, vector<5x32xbf16>
    %cst_22 = arith.constant dense<0.000000e+00> : vector<2x32xf32>
    %24 = tpu.matmul %10, %23, %cst_22 {dimension_numbers = #tpu.dot_dimension_numbers<[1], [0], [0], [1], [0, 0, 1, 1], [], []>} : vector<2x5xbf16>, vector<5x32xbf16>, vector<2x32xf32> -> vector<2x32xf32>
    %c0_23 = arith.constant 0 : index
    %c0_24 = arith.constant 0 : index
    %25 = vector.load %arg17[%c0_23, %c0_24] : memref<1x32xf32, #tpu.memory_space<vmem>>, vector<1x32xf32>
    %26 = vector.broadcast %25 : vector<1x32xf32> to vector<2x32xf32>
    %27 = arith.addf %24, %26 : vector<2x32xf32>
    %c0_25 = arith.constant 0 : index
    %c0_26 = arith.constant 0 : index
    %28 = vector.load %arg8[%c0_25, %c0_26] : memref<48x2xf32, #tpu.memory_space<vmem>>, vector<48x2xf32>
    %cst_27 = arith.constant dense<0.000000e+00> : vector<48x32xf32>
    %29 = tpu.matmul %28, %27, %cst_27 {dimension_numbers = #tpu.dot_dimension_numbers<[1], [0], [0], [1], [0, 0, 1, 1], [], []>} : vector<48x2xf32>, vector<2x32xf32>, vector<48x32xf32> -> vector<48x32xf32>
    %c0_28 = arith.constant 0 : index
    %c0_29 = arith.constant 0 : index
    %30 = vector.load %arg5[%c0_28, %c0_29] : memref<48x16xf32, #tpu.memory_space<vmem>>, vector<48x16xf32>
    %cst_30 = arith.constant dense<0.000000e+00> : vector<48x32xf32>
    %31 = tpu.matmul %30, %1, %cst_30 {dimension_numbers = #tpu.dot_dimension_numbers<[1], [0], [0], [1], [0, 0, 1, 1], [], []>} : vector<48x16xf32>, vector<16x32xf32>, vector<48x32xf32> -> vector<48x32xf32>
    %32 = arith.addf %29, %31 : vector<48x32xf32>
    %c0_31 = arith.constant 0 : index
    %c0_32 = arith.constant 0 : index
    %33 = vector.load %arg6[%c0_31, %c0_32] : memref<48x16xf32, #tpu.memory_space<vmem>>, vector<48x16xf32>
    %cst_33 = arith.constant dense<0.000000e+00> : vector<48x32xf32>
    %34 = tpu.matmul %33, %16, %cst_33 {dimension_numbers = #tpu.dot_dimension_numbers<[1], [0], [0], [1], [0, 0, 1, 1], [], []>} : vector<48x16xf32>, vector<16x32xf32>, vector<48x32xf32> -> vector<48x32xf32>
    %35 = arith.addf %32, %34 : vector<48x32xf32>
    %c0_34 = arith.constant 0 : index
    %c0_35 = arith.constant 0 : index
    %36 = vector.load %arg7[%c0_34, %c0_35] : memref<48x16xf32, #tpu.memory_space<vmem>>, vector<48x16xf32>
    %cst_36 = arith.constant dense<0.000000e+00> : vector<48x32xf32>
    %37 = tpu.matmul %36, %22, %cst_36 {dimension_numbers = #tpu.dot_dimension_numbers<[1], [0], [0], [1], [0, 0, 1, 1], [], []>} : vector<48x16xf32>, vector<16x32xf32>, vector<48x32xf32> -> vector<48x32xf32>
    %38 = arith.addf %35, %37 : vector<48x32xf32>
    %c0_37 = arith.constant 0 : index
    %c0_38 = arith.constant 0 : index
    %39 = vector.load %arg18[%c0_37, %c0_38] : memref<1x32xf32, #tpu.memory_space<vmem>>, vector<1x32xf32>
    %c0_39 = arith.constant 0 : index
    %c0_40 = arith.constant 0 : index
    %40 = vector.load %arg19[%c0_39, %c0_40] : memref<1x32xf32, #tpu.memory_space<vmem>>, vector<1x32xf32>
    %cst_41 = arith.constant dense<0.000000e+00> : vector<48xf32>
    %41 = vector.multi_reduction <add>, %38, %cst_41 [1] : vector<48x32xf32> to vector<48xf32>
    %42 = vector.shape_cast %41 : vector<48xf32> to vector<48x1xf32>
    %cst_42 = arith.constant 3.200000e+01 : f32
    %43 = vector.broadcast %cst_42 : f32 to vector<48x1xf32>
    %44 = arith.divf %42, %43 : vector<48x1xf32>
    %45 = vector.broadcast %44 : vector<48x1xf32> to vector<48x32xf32>
    %46 = arith.subf %38, %45 : vector<48x32xf32>
    %47 = arith.mulf %46, %46 : vector<48x32xf32>
    %cst_43 = arith.constant dense<0.000000e+00> : vector<48xf32>
    %48 = vector.multi_reduction <add>, %47, %cst_43 [1] : vector<48x32xf32> to vector<48xf32>
    %49 = vector.shape_cast %48 : vector<48xf32> to vector<48x1xf32>
    %cst_44 = arith.constant 3.200000e+01 : f32
    %50 = vector.broadcast %cst_44 : f32 to vector<48x1xf32>
    %51 = arith.divf %49, %50 : vector<48x1xf32>
    %52 = vector.broadcast %44 : vector<48x1xf32> to vector<48x32xf32>
    %53 = arith.subf %38, %52 : vector<48x32xf32>
    %cst_45 = arith.constant 9.99999974E-6 : f32
    %54 = vector.broadcast %cst_45 : f32 to vector<48x1xf32>
    %55 = arith.addf %51, %54 : vector<48x1xf32>
    %56 = math.rsqrt %55 : vector<48x1xf32>
    %57 = vector.broadcast %56 : vector<48x1xf32> to vector<48x32xf32>
    %58 = arith.mulf %53, %57 : vector<48x32xf32>
    %59 = vector.broadcast %39 : vector<1x32xf32> to vector<48x32xf32>
    %60 = arith.mulf %58, %59 : vector<48x32xf32>
    %61 = vector.broadcast %40 : vector<1x32xf32> to vector<48x32xf32>
    %62 = arith.addf %60, %61 : vector<48x32xf32>
    %c0_46 = arith.constant 0 : index
    %c0_47 = arith.constant 0 : index
    %63 = vector.load %arg11[%c0_46, %c0_47] : memref<24x24xf32, #tpu.memory_space<vmem>>, vector<24x24xf32>
    %64 = arith.truncf %62 : vector<48x32xf32> to vector<48x32xbf16>
    %c0_48 = arith.constant 0 : index
    %c0_49 = arith.constant 0 : index
    %c0_50 = arith.constant 0 : index
    %65 = vector.load %arg20[%c0_48, %c0_49, %c0_50] : memref<2x32x96xbf16, #tpu.memory_space<vmem>>, vector<1x32x96xbf16>
    %66 = vector.shape_cast %65 : vector<1x32x96xbf16> to vector<32x96xbf16>
    %cst_51 = arith.constant dense<0.000000e+00> : vector<48x96xf32>
    %67 = tpu.matmul %64, %66, %cst_51 {dimension_numbers = #tpu.dot_dimension_numbers<[1], [0], [0], [1], [0, 0, 1, 1], [], []>} : vector<48x32xbf16>, vector<32x96xbf16>, vector<48x96xf32> -> vector<48x96xf32>
    %c0_52 = arith.constant 0 : index
    %c0_53 = arith.constant 0 : index
    %c0_54 = arith.constant 0 : index
    %68 = vector.load %arg21[%c0_52, %c0_53, %c0_54] : memref<2x1x96xf32, #tpu.memory_space<vmem>>, vector<1x1x96xf32>
    %69 = vector.shape_cast %68 : vector<1x1x96xf32> to vector<1x96xf32>
    %70 = vector.broadcast %69 : vector<1x96xf32> to vector<48x96xf32>
    %71 = arith.addf %67, %70 : vector<48x96xf32>
    %72 = vector.extract_strided_slice %71 {offsets = [0, 0], sizes = [24, 16], strides = [1, 1]} : vector<48x96xf32> to vector<24x16xf32>
    %73 = vector.extract_strided_slice %71 {offsets = [0, 32], sizes = [24, 16], strides = [1, 1]} : vector<48x96xf32> to vector<24x16xf32>
    %74 = vector.extract_strided_slice %71 {offsets = [0, 64], sizes = [24, 16], strides = [1, 1]} : vector<48x96xf32> to vector<24x16xf32>
    %cst_55 = arith.constant dense<0.000000e+00> : vector<24x24xf32>
    %75 = tpu.matmul %72, %73, %cst_55 {dimension_numbers = #tpu.dot_dimension_numbers<[1], [1], [0], [0], [0, 0, 1, 0], [], []>} : vector<24x16xf32>, vector<24x16xf32>, vector<24x24xf32> -> vector<24x24xf32>
    %cst_56 = arith.constant 2.500000e-01 : f32
    %76 = vector.broadcast %cst_56 : f32 to vector<24x24xf32>
    %77 = arith.mulf %75, %76 : vector<24x24xf32>
    %78 = arith.addf %77, %63 : vector<24x24xf32>
    %cst_57 = arith.constant dense<0xFF800000> : vector<24xf32>
    %79 = vector.multi_reduction <maximumf>, %78, %cst_57 [1] : vector<24x24xf32> to vector<24xf32>
    %80 = vector.shape_cast %79 : vector<24xf32> to vector<24x1xf32>
    %81 = vector.broadcast %80 : vector<24x1xf32> to vector<24x24xf32>
    %82 = arith.subf %78, %81 : vector<24x24xf32>
    %83 = math.exp %82 : vector<24x24xf32>
    %cst_58 = arith.constant dense<0.000000e+00> : vector<24xf32>
    %84 = vector.multi_reduction <add>, %83, %cst_58 [1] : vector<24x24xf32> to vector<24xf32>
    %85 = vector.shape_cast %84 : vector<24xf32> to vector<24x1xf32>
    %86 = tpu.reciprocal %85 {approx = true} : vector<24x1xf32> -> vector<24x1xf32>
    %87 = vector.broadcast %86 : vector<24x1xf32> to vector<24x24xf32>
    %88 = arith.mulf %83, %87 : vector<24x24xf32>
    %cst_59 = arith.constant dense<0.000000e+00> : vector<24x16xf32>
    %89 = tpu.matmul %88, %74, %cst_59 {dimension_numbers = #tpu.dot_dimension_numbers<[1], [0], [0], [1], [0, 0, 1, 1], [], []>} : vector<24x24xf32>, vector<24x16xf32>, vector<24x16xf32> -> vector<24x16xf32>
    %90 = arith.truncf %89 : vector<24x16xf32> to vector<24x16xbf16>
    %c0_60 = arith.constant 0 : index
    %c0_61 = arith.constant 0 : index
    %c0_62 = arith.constant 0 : index
    %c0_63 = arith.constant 0 : index
    %91 = vector.load %arg22[%c0_60, %c0_61, %c0_62, %c0_63] : memref<2x2x16x32xbf16, #tpu.memory_space<vmem>>, vector<1x1x16x32xbf16>
    %92 = vector.shape_cast %91 : vector<1x1x16x32xbf16> to vector<16x32xbf16>
    %cst_64 = arith.constant dense<0.000000e+00> : vector<24x32xf32>
    %93 = tpu.matmul %90, %92, %cst_64 {dimension_numbers = #tpu.dot_dimension_numbers<[1], [0], [0], [1], [0, 0, 1, 1], [], []>} : vector<24x16xbf16>, vector<16x32xbf16>, vector<24x32xf32> -> vector<24x32xf32>
    %94 = vector.extract_strided_slice %71 {offsets = [0, 16], sizes = [24, 16], strides = [1, 1]} : vector<48x96xf32> to vector<24x16xf32>
    %95 = vector.extract_strided_slice %71 {offsets = [0, 48], sizes = [24, 16], strides = [1, 1]} : vector<48x96xf32> to vector<24x16xf32>
    %96 = vector.extract_strided_slice %71 {offsets = [0, 80], sizes = [24, 16], strides = [1, 1]} : vector<48x96xf32> to vector<24x16xf32>
    %cst_65 = arith.constant dense<0.000000e+00> : vector<24x24xf32>
    %97 = tpu.matmul %94, %95, %cst_65 {dimension_numbers = #tpu.dot_dimension_numbers<[1], [1], [0], [0], [0, 0, 1, 0], [], []>} : vector<24x16xf32>, vector<24x16xf32>, vector<24x24xf32> -> vector<24x24xf32>
    %cst_66 = arith.constant 2.500000e-01 : f32
    %98 = vector.broadcast %cst_66 : f32 to vector<24x24xf32>
    %99 = arith.mulf %97, %98 : vector<24x24xf32>
    %100 = arith.addf %99, %63 : vector<24x24xf32>
    %cst_67 = arith.constant dense<0xFF800000> : vector<24xf32>
    %101 = vector.multi_reduction <maximumf>, %100, %cst_67 [1] : vector<24x24xf32> to vector<24xf32>
    %102 = vector.shape_cast %101 : vector<24xf32> to vector<24x1xf32>
    %103 = vector.broadcast %102 : vector<24x1xf32> to vector<24x24xf32>
    %104 = arith.subf %100, %103 : vector<24x24xf32>
    %105 = math.exp %104 : vector<24x24xf32>
    %cst_68 = arith.constant dense<0.000000e+00> : vector<24xf32>
    %106 = vector.multi_reduction <add>, %105, %cst_68 [1] : vector<24x24xf32> to vector<24xf32>
    %107 = vector.shape_cast %106 : vector<24xf32> to vector<24x1xf32>
    %108 = tpu.reciprocal %107 {approx = true} : vector<24x1xf32> -> vector<24x1xf32>
    %109 = vector.broadcast %108 : vector<24x1xf32> to vector<24x24xf32>
    %110 = arith.mulf %105, %109 : vector<24x24xf32>
    %cst_69 = arith.constant dense<0.000000e+00> : vector<24x16xf32>
    %111 = tpu.matmul %110, %96, %cst_69 {dimension_numbers = #tpu.dot_dimension_numbers<[1], [0], [0], [1], [0, 0, 1, 1], [], []>} : vector<24x24xf32>, vector<24x16xf32>, vector<24x16xf32> -> vector<24x16xf32>
    %112 = arith.truncf %111 : vector<24x16xf32> to vector<24x16xbf16>
    %c0_70 = arith.constant 0 : index
    %c1 = arith.constant 1 : index
    %c0_71 = arith.constant 0 : index
    %c0_72 = arith.constant 0 : index
    %113 = vector.load %arg22[%c0_70, %c1, %c0_71, %c0_72] : memref<2x2x16x32xbf16, #tpu.memory_space<vmem>>, vector<1x1x16x32xbf16>
    %114 = vector.shape_cast %113 : vector<1x1x16x32xbf16> to vector<16x32xbf16>
    %cst_73 = arith.constant dense<0.000000e+00> : vector<24x32xf32>
    %115 = tpu.matmul %112, %114, %cst_73 {dimension_numbers = #tpu.dot_dimension_numbers<[1], [0], [0], [1], [0, 0, 1, 1], [], []>} : vector<24x16xbf16>, vector<16x32xbf16>, vector<24x32xf32> -> vector<24x32xf32>
    %116 = arith.addf %93, %115 : vector<24x32xf32>
    %117 = vector.extract_strided_slice %71 {offsets = [24, 0], sizes = [24, 16], strides = [1, 1]} : vector<48x96xf32> to vector<24x16xf32>
    %118 = vector.extract_strided_slice %71 {offsets = [24, 32], sizes = [24, 16], strides = [1, 1]} : vector<48x96xf32> to vector<24x16xf32>
    %119 = vector.extract_strided_slice %71 {offsets = [24, 64], sizes = [24, 16], strides = [1, 1]} : vector<48x96xf32> to vector<24x16xf32>
    %cst_74 = arith.constant dense<0.000000e+00> : vector<24x24xf32>
    %120 = tpu.matmul %117, %118, %cst_74 {dimension_numbers = #tpu.dot_dimension_numbers<[1], [1], [0], [0], [0, 0, 1, 0], [], []>} : vector<24x16xf32>, vector<24x16xf32>, vector<24x24xf32> -> vector<24x24xf32>
    %cst_75 = arith.constant 2.500000e-01 : f32
    %121 = vector.broadcast %cst_75 : f32 to vector<24x24xf32>
    %122 = arith.mulf %120, %121 : vector<24x24xf32>
    %123 = arith.addf %122, %63 : vector<24x24xf32>
    %cst_76 = arith.constant dense<0xFF800000> : vector<24xf32>
    %124 = vector.multi_reduction <maximumf>, %123, %cst_76 [1] : vector<24x24xf32> to vector<24xf32>
    %125 = vector.shape_cast %124 : vector<24xf32> to vector<24x1xf32>
    %126 = vector.broadcast %125 : vector<24x1xf32> to vector<24x24xf32>
    %127 = arith.subf %123, %126 : vector<24x24xf32>
    %128 = math.exp %127 : vector<24x24xf32>
    %cst_77 = arith.constant dense<0.000000e+00> : vector<24xf32>
    %129 = vector.multi_reduction <add>, %128, %cst_77 [1] : vector<24x24xf32> to vector<24xf32>
    %130 = vector.shape_cast %129 : vector<24xf32> to vector<24x1xf32>
    %131 = tpu.reciprocal %130 {approx = true} : vector<24x1xf32> -> vector<24x1xf32>
    %132 = vector.broadcast %131 : vector<24x1xf32> to vector<24x24xf32>
    %133 = arith.mulf %128, %132 : vector<24x24xf32>
    %cst_78 = arith.constant dense<0.000000e+00> : vector<24x16xf32>
    %134 = tpu.matmul %133, %119, %cst_78 {dimension_numbers = #tpu.dot_dimension_numbers<[1], [0], [0], [1], [0, 0, 1, 1], [], []>} : vector<24x24xf32>, vector<24x16xf32>, vector<24x16xf32> -> vector<24x16xf32>
    %135 = arith.truncf %134 : vector<24x16xf32> to vector<24x16xbf16>
    %c0_79 = arith.constant 0 : index
    %c0_80 = arith.constant 0 : index
    %c0_81 = arith.constant 0 : index
    %c0_82 = arith.constant 0 : index
    %136 = vector.load %arg22[%c0_79, %c0_80, %c0_81, %c0_82] : memref<2x2x16x32xbf16, #tpu.memory_space<vmem>>, vector<1x1x16x32xbf16>
    %137 = vector.shape_cast %136 : vector<1x1x16x32xbf16> to vector<16x32xbf16>
    %cst_83 = arith.constant dense<0.000000e+00> : vector<24x32xf32>
    %138 = tpu.matmul %135, %137, %cst_83 {dimension_numbers = #tpu.dot_dimension_numbers<[1], [0], [0], [1], [0, 0, 1, 1], [], []>} : vector<24x16xbf16>, vector<16x32xbf16>, vector<24x32xf32> -> vector<24x32xf32>
    %139 = vector.extract_strided_slice %71 {offsets = [24, 16], sizes = [24, 16], strides = [1, 1]} : vector<48x96xf32> to vector<24x16xf32>
    %140 = vector.extract_strided_slice %71 {offsets = [24, 48], sizes = [24, 16], strides = [1, 1]} : vector<48x96xf32> to vector<24x16xf32>
    %141 = vector.extract_strided_slice %71 {offsets = [24, 80], sizes = [24, 16], strides = [1, 1]} : vector<48x96xf32> to vector<24x16xf32>
    %cst_84 = arith.constant dense<0.000000e+00> : vector<24x24xf32>
    %142 = tpu.matmul %139, %140, %cst_84 {dimension_numbers = #tpu.dot_dimension_numbers<[1], [1], [0], [0], [0, 0, 1, 0], [], []>} : vector<24x16xf32>, vector<24x16xf32>, vector<24x24xf32> -> vector<24x24xf32>
    %cst_85 = arith.constant 2.500000e-01 : f32
    %143 = vector.broadcast %cst_85 : f32 to vector<24x24xf32>
    %144 = arith.mulf %142, %143 : vector<24x24xf32>
    %145 = arith.addf %144, %63 : vector<24x24xf32>
    %cst_86 = arith.constant dense<0xFF800000> : vector<24xf32>
    %146 = vector.multi_reduction <maximumf>, %145, %cst_86 [1] : vector<24x24xf32> to vector<24xf32>
    %147 = vector.shape_cast %146 : vector<24xf32> to vector<24x1xf32>
    %148 = vector.broadcast %147 : vector<24x1xf32> to vector<24x24xf32>
    %149 = arith.subf %145, %148 : vector<24x24xf32>
    %150 = math.exp %149 : vector<24x24xf32>
    %cst_87 = arith.constant dense<0.000000e+00> : vector<24xf32>
    %151 = vector.multi_reduction <add>, %150, %cst_87 [1] : vector<24x24xf32> to vector<24xf32>
    %152 = vector.shape_cast %151 : vector<24xf32> to vector<24x1xf32>
    %153 = tpu.reciprocal %152 {approx = true} : vector<24x1xf32> -> vector<24x1xf32>
    %154 = vector.broadcast %153 : vector<24x1xf32> to vector<24x24xf32>
    %155 = arith.mulf %150, %154 : vector<24x24xf32>
    %cst_88 = arith.constant dense<0.000000e+00> : vector<24x16xf32>
    %156 = tpu.matmul %155, %141, %cst_88 {dimension_numbers = #tpu.dot_dimension_numbers<[1], [0], [0], [1], [0, 0, 1, 1], [], []>} : vector<24x24xf32>, vector<24x16xf32>, vector<24x16xf32> -> vector<24x16xf32>
    %157 = arith.truncf %156 : vector<24x16xf32> to vector<24x16xbf16>
    %c0_89 = arith.constant 0 : index
    %c1_90 = arith.constant 1 : index
    %c0_91 = arith.constant 0 : index
    %c0_92 = arith.constant 0 : index
    %158 = vector.load %arg22[%c0_89, %c1_90, %c0_91, %c0_92] : memref<2x2x16x32xbf16, #tpu.memory_space<vmem>>, vector<1x1x16x32xbf16>
    %159 = vector.shape_cast %158 : vector<1x1x16x32xbf16> to vector<16x32xbf16>
    %cst_93 = arith.constant dense<0.000000e+00> : vector<24x32xf32>
    %160 = tpu.matmul %157, %159, %cst_93 {dimension_numbers = #tpu.dot_dimension_numbers<[1], [0], [0], [1], [0, 0, 1, 1], [], []>} : vector<24x16xbf16>, vector<16x32xbf16>, vector<24x32xf32> -> vector<24x32xf32>
    %161 = arith.addf %138, %160 : vector<24x32xf32>
    %162 = tpu.concatenate %116, %161 in 0 : vector<24x32xf32>, vector<24x32xf32> -> vector<48x32xf32>
    %c0_94 = arith.constant 0 : index
    %c0_95 = arith.constant 0 : index
    %c0_96 = arith.constant 0 : index
    %163 = vector.load %arg23[%c0_94, %c0_95, %c0_96] : memref<2x1x32xf32, #tpu.memory_space<vmem>>, vector<1x1x32xf32>
    %164 = vector.shape_cast %163 : vector<1x1x32xf32> to vector<1x32xf32>
    %165 = vector.broadcast %164 : vector<1x32xf32> to vector<48x32xf32>
    %166 = arith.addf %162, %165 : vector<48x32xf32>
    %167 = arith.addf %62, %166 : vector<48x32xf32>
    %c0_97 = arith.constant 0 : index
    %c0_98 = arith.constant 0 : index
    %c0_99 = arith.constant 0 : index
    %168 = vector.load %arg24[%c0_97, %c0_98, %c0_99] : memref<2x1x32xf32, #tpu.memory_space<vmem>>, vector<1x1x32xf32>
    %169 = vector.shape_cast %168 : vector<1x1x32xf32> to vector<1x32xf32>
    %c0_100 = arith.constant 0 : index
    %c0_101 = arith.constant 0 : index
    %c0_102 = arith.constant 0 : index
    %170 = vector.load %arg25[%c0_100, %c0_101, %c0_102] : memref<2x1x32xf32, #tpu.memory_space<vmem>>, vector<1x1x32xf32>
    %171 = vector.shape_cast %170 : vector<1x1x32xf32> to vector<1x32xf32>
    %cst_103 = arith.constant dense<0.000000e+00> : vector<48xf32>
    %172 = vector.multi_reduction <add>, %167, %cst_103 [1] : vector<48x32xf32> to vector<48xf32>
    %173 = vector.shape_cast %172 : vector<48xf32> to vector<48x1xf32>
    %cst_104 = arith.constant 3.200000e+01 : f32
    %174 = vector.broadcast %cst_104 : f32 to vector<48x1xf32>
    %175 = arith.divf %173, %174 : vector<48x1xf32>
    %176 = vector.broadcast %175 : vector<48x1xf32> to vector<48x32xf32>
    %177 = arith.subf %167, %176 : vector<48x32xf32>
    %178 = arith.mulf %177, %177 : vector<48x32xf32>
    %cst_105 = arith.constant dense<0.000000e+00> : vector<48xf32>
    %179 = vector.multi_reduction <add>, %178, %cst_105 [1] : vector<48x32xf32> to vector<48xf32>
    %180 = vector.shape_cast %179 : vector<48xf32> to vector<48x1xf32>
    %cst_106 = arith.constant 3.200000e+01 : f32
    %181 = vector.broadcast %cst_106 : f32 to vector<48x1xf32>
    %182 = arith.divf %180, %181 : vector<48x1xf32>
    %183 = vector.broadcast %175 : vector<48x1xf32> to vector<48x32xf32>
    %184 = arith.subf %167, %183 : vector<48x32xf32>
    %cst_107 = arith.constant 9.99999974E-6 : f32
    %185 = vector.broadcast %cst_107 : f32 to vector<48x1xf32>
    %186 = arith.addf %182, %185 : vector<48x1xf32>
    %187 = math.rsqrt %186 : vector<48x1xf32>
    %188 = vector.broadcast %187 : vector<48x1xf32> to vector<48x32xf32>
    %189 = arith.mulf %184, %188 : vector<48x32xf32>
    %190 = vector.broadcast %169 : vector<1x32xf32> to vector<48x32xf32>
    %191 = arith.mulf %189, %190 : vector<48x32xf32>
    %192 = vector.broadcast %171 : vector<1x32xf32> to vector<48x32xf32>
    %193 = arith.addf %191, %192 : vector<48x32xf32>
    %194 = arith.truncf %193 : vector<48x32xf32> to vector<48x32xbf16>
    %c0_108 = arith.constant 0 : index
    %c0_109 = arith.constant 0 : index
    %c0_110 = arith.constant 0 : index
    %195 = vector.load %arg26[%c0_108, %c0_109, %c0_110] : memref<2x32x128xbf16, #tpu.memory_space<vmem>>, vector<1x32x128xbf16>
    %196 = vector.shape_cast %195 : vector<1x32x128xbf16> to vector<32x128xbf16>
    %cst_111 = arith.constant dense<0.000000e+00> : vector<48x128xf32>
    %197 = tpu.matmul %194, %196, %cst_111 {dimension_numbers = #tpu.dot_dimension_numbers<[1], [0], [0], [1], [0, 0, 1, 1], [], []>} : vector<48x32xbf16>, vector<32x128xbf16>, vector<48x128xf32> -> vector<48x128xf32>
    %c0_112 = arith.constant 0 : index
    %c0_113 = arith.constant 0 : index
    %c0_114 = arith.constant 0 : index
    %198 = vector.load %arg27[%c0_112, %c0_113, %c0_114] : memref<2x1x128xf32, #tpu.memory_space<vmem>>, vector<1x1x128xf32>
    %199 = vector.shape_cast %198 : vector<1x1x128xf32> to vector<1x128xf32>
    %200 = vector.broadcast %199 : vector<1x128xf32> to vector<48x128xf32>
    %201 = arith.addf %197, %200 : vector<48x128xf32>
    %cst_115 = arith.constant 5.000000e-01 : f32
    %202 = vector.broadcast %cst_115 : f32 to vector<48x128xf32>
    %203 = arith.mulf %202, %201 : vector<48x128xf32>
    %cst_116 = arith.constant 0.707106769 : f32
    %204 = vector.broadcast %cst_116 : f32 to vector<48x128xf32>
    %205 = arith.mulf %201, %204 : vector<48x128xf32>
    %206 = math.absf %205 : vector<48x128xf32>
    %cst_117 = arith.constant 0.327591091 : f32
    %207 = vector.broadcast %cst_117 : f32 to vector<48x128xf32>
    %208 = arith.mulf %207, %206 : vector<48x128xf32>
    %cst_118 = arith.constant 1.000000e+00 : f32
    %209 = vector.broadcast %cst_118 : f32 to vector<48x128xf32>
    %210 = arith.addf %209, %208 : vector<48x128xf32>
    %cst_119 = arith.constant 1.000000e+00 : f32
    %211 = vector.broadcast %cst_119 : f32 to vector<48x128xf32>
    %212 = arith.divf %211, %210 : vector<48x128xf32>
    %cst_120 = arith.constant 1.06140542 : f32
    %213 = vector.broadcast %cst_120 : f32 to vector<48x128xf32>
    %214 = arith.mulf %213, %212 : vector<48x128xf32>
    %cst_121 = arith.constant -1.45315206 : f32
    %215 = vector.broadcast %cst_121 : f32 to vector<48x128xf32>
    %216 = arith.addf %214, %215 : vector<48x128xf32>
    %217 = arith.mulf %216, %212 : vector<48x128xf32>
    %cst_122 = arith.constant 1.42141378 : f32
    %218 = vector.broadcast %cst_122 : f32 to vector<48x128xf32>
    %219 = arith.addf %217, %218 : vector<48x128xf32>
    %220 = arith.mulf %219, %212 : vector<48x128xf32>
    %cst_123 = arith.constant -0.284496725 : f32
    %221 = vector.broadcast %cst_123 : f32 to vector<48x128xf32>
    %222 = arith.addf %220, %221 : vector<48x128xf32>
    %223 = arith.mulf %222, %212 : vector<48x128xf32>
    %cst_124 = arith.constant 0.254829586 : f32
    %224 = vector.broadcast %cst_124 : f32 to vector<48x128xf32>
    %225 = arith.addf %223, %224 : vector<48x128xf32>
    %226 = arith.mulf %225, %212 : vector<48x128xf32>
    %cst_125 = arith.constant 0.000000e+00 : f32
    %227 = vector.broadcast %cst_125 : f32 to vector<48x128xf32>
    %228 = arith.subf %227, %206 : vector<48x128xf32>
    %229 = arith.mulf %228, %206 : vector<48x128xf32>
    %230 = math.exp %229 : vector<48x128xf32>
    %231 = arith.mulf %226, %230 : vector<48x128xf32>
    %cst_126 = arith.constant 1.000000e+00 : f32
    %232 = vector.broadcast %cst_126 : f32 to vector<48x128xf32>
    %233 = arith.subf %232, %231 : vector<48x128xf32>
    %cst_127 = arith.constant 0.000000e+00 : f32
    %234 = vector.broadcast %cst_127 : f32 to vector<48x128xf32>
    %235 = arith.cmpf olt, %205, %234 : vector<48x128xf32>
    %cst_128 = arith.constant 0.000000e+00 : f32
    %236 = vector.broadcast %cst_128 : f32 to vector<48x128xf32>
    %237 = arith.subf %236, %233 : vector<48x128xf32>
    %238 = arith.select %235, %237, %233 : vector<48x128xi1>, vector<48x128xf32>
    %cst_129 = arith.constant 1.000000e+00 : f32
    %239 = vector.broadcast %cst_129 : f32 to vector<48x128xf32>
    %240 = arith.addf %239, %238 : vector<48x128xf32>
    %241 = arith.mulf %203, %240 : vector<48x128xf32>
    %242 = arith.truncf %241 : vector<48x128xf32> to vector<48x128xbf16>
    %c0_130 = arith.constant 0 : index
    %c0_131 = arith.constant 0 : index
    %c0_132 = arith.constant 0 : index
    %243 = vector.load %arg28[%c0_130, %c0_131, %c0_132] : memref<2x128x32xbf16, #tpu.memory_space<vmem>>, vector<1x128x32xbf16>
    %244 = vector.shape_cast %243 : vector<1x128x32xbf16> to vector<128x32xbf16>
    %cst_133 = arith.constant dense<0.000000e+00> : vector<48x32xf32>
    %245 = tpu.matmul %242, %244, %cst_133 {dimension_numbers = #tpu.dot_dimension_numbers<[1], [0], [0], [1], [0, 0, 1, 1], [], []>} : vector<48x128xbf16>, vector<128x32xbf16>, vector<48x32xf32> -> vector<48x32xf32>
    %c0_134 = arith.constant 0 : index
    %c0_135 = arith.constant 0 : index
    %c0_136 = arith.constant 0 : index
    %246 = vector.load %arg29[%c0_134, %c0_135, %c0_136] : memref<2x1x32xf32, #tpu.memory_space<vmem>>, vector<1x1x32xf32>
    %247 = vector.shape_cast %246 : vector<1x1x32xf32> to vector<1x32xf32>
    %248 = vector.broadcast %247 : vector<1x32xf32> to vector<48x32xf32>
    %249 = arith.addf %245, %248 : vector<48x32xf32>
    %250 = arith.addf %193, %249 : vector<48x32xf32>
    %c0_137 = arith.constant 0 : index
    %c0_138 = arith.constant 0 : index
    %c0_139 = arith.constant 0 : index
    %251 = vector.load %arg30[%c0_137, %c0_138, %c0_139] : memref<2x1x32xf32, #tpu.memory_space<vmem>>, vector<1x1x32xf32>
    %252 = vector.shape_cast %251 : vector<1x1x32xf32> to vector<1x32xf32>
    %c0_140 = arith.constant 0 : index
    %c0_141 = arith.constant 0 : index
    %c0_142 = arith.constant 0 : index
    %253 = vector.load %arg31[%c0_140, %c0_141, %c0_142] : memref<2x1x32xf32, #tpu.memory_space<vmem>>, vector<1x1x32xf32>
    %254 = vector.shape_cast %253 : vector<1x1x32xf32> to vector<1x32xf32>
    %cst_143 = arith.constant dense<0.000000e+00> : vector<48xf32>
    %255 = vector.multi_reduction <add>, %250, %cst_143 [1] : vector<48x32xf32> to vector<48xf32>
    %256 = vector.shape_cast %255 : vector<48xf32> to vector<48x1xf32>
    %cst_144 = arith.constant 3.200000e+01 : f32
    %257 = vector.broadcast %cst_144 : f32 to vector<48x1xf32>
    %258 = arith.divf %256, %257 : vector<48x1xf32>
    %259 = vector.broadcast %258 : vector<48x1xf32> to vector<48x32xf32>
    %260 = arith.subf %250, %259 : vector<48x32xf32>
    %261 = arith.mulf %260, %260 : vector<48x32xf32>
    %cst_145 = arith.constant dense<0.000000e+00> : vector<48xf32>
    %262 = vector.multi_reduction <add>, %261, %cst_145 [1] : vector<48x32xf32> to vector<48xf32>
    %263 = vector.shape_cast %262 : vector<48xf32> to vector<48x1xf32>
    %cst_146 = arith.constant 3.200000e+01 : f32
    %264 = vector.broadcast %cst_146 : f32 to vector<48x1xf32>
    %265 = arith.divf %263, %264 : vector<48x1xf32>
    %266 = vector.broadcast %258 : vector<48x1xf32> to vector<48x32xf32>
    %267 = arith.subf %250, %266 : vector<48x32xf32>
    %cst_147 = arith.constant 9.99999974E-6 : f32
    %268 = vector.broadcast %cst_147 : f32 to vector<48x1xf32>
    %269 = arith.addf %265, %268 : vector<48x1xf32>
    %270 = math.rsqrt %269 : vector<48x1xf32>
    %271 = vector.broadcast %270 : vector<48x1xf32> to vector<48x32xf32>
    %272 = arith.mulf %267, %271 : vector<48x32xf32>
    %273 = vector.broadcast %252 : vector<1x32xf32> to vector<48x32xf32>
    %274 = arith.mulf %272, %273 : vector<48x32xf32>
    %275 = vector.broadcast %254 : vector<1x32xf32> to vector<48x32xf32>
    %276 = arith.addf %274, %275 : vector<48x32xf32>
    %277 = arith.truncf %276 : vector<48x32xf32> to vector<48x32xbf16>
    %c1_148 = arith.constant 1 : index
    %c0_149 = arith.constant 0 : index
    %c0_150 = arith.constant 0 : index
    %278 = vector.load %arg20[%c1_148, %c0_149, %c0_150] : memref<2x32x96xbf16, #tpu.memory_space<vmem>>, vector<1x32x96xbf16>
    %279 = vector.shape_cast %278 : vector<1x32x96xbf16> to vector<32x96xbf16>
    %cst_151 = arith.constant dense<0.000000e+00> : vector<48x96xf32>
    %280 = tpu.matmul %277, %279, %cst_151 {dimension_numbers = #tpu.dot_dimension_numbers<[1], [0], [0], [1], [0, 0, 1, 1], [], []>} : vector<48x32xbf16>, vector<32x96xbf16>, vector<48x96xf32> -> vector<48x96xf32>
    %c1_152 = arith.constant 1 : index
    %c0_153 = arith.constant 0 : index
    %c0_154 = arith.constant 0 : index
    %281 = vector.load %arg21[%c1_152, %c0_153, %c0_154] : memref<2x1x96xf32, #tpu.memory_space<vmem>>, vector<1x1x96xf32>
    %282 = vector.shape_cast %281 : vector<1x1x96xf32> to vector<1x96xf32>
    %283 = vector.broadcast %282 : vector<1x96xf32> to vector<48x96xf32>
    %284 = arith.addf %280, %283 : vector<48x96xf32>
    %285 = vector.extract_strided_slice %284 {offsets = [0, 0], sizes = [24, 16], strides = [1, 1]} : vector<48x96xf32> to vector<24x16xf32>
    %286 = vector.extract_strided_slice %284 {offsets = [0, 32], sizes = [24, 16], strides = [1, 1]} : vector<48x96xf32> to vector<24x16xf32>
    %287 = vector.extract_strided_slice %284 {offsets = [0, 64], sizes = [24, 16], strides = [1, 1]} : vector<48x96xf32> to vector<24x16xf32>
    %cst_155 = arith.constant dense<0.000000e+00> : vector<24x24xf32>
    %288 = tpu.matmul %285, %286, %cst_155 {dimension_numbers = #tpu.dot_dimension_numbers<[1], [1], [0], [0], [0, 0, 1, 0], [], []>} : vector<24x16xf32>, vector<24x16xf32>, vector<24x24xf32> -> vector<24x24xf32>
    %cst_156 = arith.constant 2.500000e-01 : f32
    %289 = vector.broadcast %cst_156 : f32 to vector<24x24xf32>
    %290 = arith.mulf %288, %289 : vector<24x24xf32>
    %291 = arith.addf %290, %63 : vector<24x24xf32>
    %cst_157 = arith.constant dense<0xFF800000> : vector<24xf32>
    %292 = vector.multi_reduction <maximumf>, %291, %cst_157 [1] : vector<24x24xf32> to vector<24xf32>
    %293 = vector.shape_cast %292 : vector<24xf32> to vector<24x1xf32>
    %294 = vector.broadcast %293 : vector<24x1xf32> to vector<24x24xf32>
    %295 = arith.subf %291, %294 : vector<24x24xf32>
    %296 = math.exp %295 : vector<24x24xf32>
    %cst_158 = arith.constant dense<0.000000e+00> : vector<24xf32>
    %297 = vector.multi_reduction <add>, %296, %cst_158 [1] : vector<24x24xf32> to vector<24xf32>
    %298 = vector.shape_cast %297 : vector<24xf32> to vector<24x1xf32>
    %299 = tpu.reciprocal %298 {approx = true} : vector<24x1xf32> -> vector<24x1xf32>
    %300 = vector.broadcast %299 : vector<24x1xf32> to vector<24x24xf32>
    %301 = arith.mulf %296, %300 : vector<24x24xf32>
    %cst_159 = arith.constant dense<0.000000e+00> : vector<24x16xf32>
    %302 = tpu.matmul %301, %287, %cst_159 {dimension_numbers = #tpu.dot_dimension_numbers<[1], [0], [0], [1], [0, 0, 1, 1], [], []>} : vector<24x24xf32>, vector<24x16xf32>, vector<24x16xf32> -> vector<24x16xf32>
    %303 = arith.truncf %302 : vector<24x16xf32> to vector<24x16xbf16>
    %c1_160 = arith.constant 1 : index
    %c0_161 = arith.constant 0 : index
    %c0_162 = arith.constant 0 : index
    %c0_163 = arith.constant 0 : index
    %304 = vector.load %arg22[%c1_160, %c0_161, %c0_162, %c0_163] : memref<2x2x16x32xbf16, #tpu.memory_space<vmem>>, vector<1x1x16x32xbf16>
    %305 = vector.shape_cast %304 : vector<1x1x16x32xbf16> to vector<16x32xbf16>
    %cst_164 = arith.constant dense<0.000000e+00> : vector<24x32xf32>
    %306 = tpu.matmul %303, %305, %cst_164 {dimension_numbers = #tpu.dot_dimension_numbers<[1], [0], [0], [1], [0, 0, 1, 1], [], []>} : vector<24x16xbf16>, vector<16x32xbf16>, vector<24x32xf32> -> vector<24x32xf32>
    %307 = vector.extract_strided_slice %284 {offsets = [0, 16], sizes = [24, 16], strides = [1, 1]} : vector<48x96xf32> to vector<24x16xf32>
    %308 = vector.extract_strided_slice %284 {offsets = [0, 48], sizes = [24, 16], strides = [1, 1]} : vector<48x96xf32> to vector<24x16xf32>
    %309 = vector.extract_strided_slice %284 {offsets = [0, 80], sizes = [24, 16], strides = [1, 1]} : vector<48x96xf32> to vector<24x16xf32>
    %cst_165 = arith.constant dense<0.000000e+00> : vector<24x24xf32>
    %310 = tpu.matmul %307, %308, %cst_165 {dimension_numbers = #tpu.dot_dimension_numbers<[1], [1], [0], [0], [0, 0, 1, 0], [], []>} : vector<24x16xf32>, vector<24x16xf32>, vector<24x24xf32> -> vector<24x24xf32>
    %cst_166 = arith.constant 2.500000e-01 : f32
    %311 = vector.broadcast %cst_166 : f32 to vector<24x24xf32>
    %312 = arith.mulf %310, %311 : vector<24x24xf32>
    %313 = arith.addf %312, %63 : vector<24x24xf32>
    %cst_167 = arith.constant dense<0xFF800000> : vector<24xf32>
    %314 = vector.multi_reduction <maximumf>, %313, %cst_167 [1] : vector<24x24xf32> to vector<24xf32>
    %315 = vector.shape_cast %314 : vector<24xf32> to vector<24x1xf32>
    %316 = vector.broadcast %315 : vector<24x1xf32> to vector<24x24xf32>
    %317 = arith.subf %313, %316 : vector<24x24xf32>
    %318 = math.exp %317 : vector<24x24xf32>
    %cst_168 = arith.constant dense<0.000000e+00> : vector<24xf32>
    %319 = vector.multi_reduction <add>, %318, %cst_168 [1] : vector<24x24xf32> to vector<24xf32>
    %320 = vector.shape_cast %319 : vector<24xf32> to vector<24x1xf32>
    %321 = tpu.reciprocal %320 {approx = true} : vector<24x1xf32> -> vector<24x1xf32>
    %322 = vector.broadcast %321 : vector<24x1xf32> to vector<24x24xf32>
    %323 = arith.mulf %318, %322 : vector<24x24xf32>
    %cst_169 = arith.constant dense<0.000000e+00> : vector<24x16xf32>
    %324 = tpu.matmul %323, %309, %cst_169 {dimension_numbers = #tpu.dot_dimension_numbers<[1], [0], [0], [1], [0, 0, 1, 1], [], []>} : vector<24x24xf32>, vector<24x16xf32>, vector<24x16xf32> -> vector<24x16xf32>
    %325 = arith.truncf %324 : vector<24x16xf32> to vector<24x16xbf16>
    %c1_170 = arith.constant 1 : index
    %c1_171 = arith.constant 1 : index
    %c0_172 = arith.constant 0 : index
    %c0_173 = arith.constant 0 : index
    %326 = vector.load %arg22[%c1_170, %c1_171, %c0_172, %c0_173] : memref<2x2x16x32xbf16, #tpu.memory_space<vmem>>, vector<1x1x16x32xbf16>
    %327 = vector.shape_cast %326 : vector<1x1x16x32xbf16> to vector<16x32xbf16>
    %cst_174 = arith.constant dense<0.000000e+00> : vector<24x32xf32>
    %328 = tpu.matmul %325, %327, %cst_174 {dimension_numbers = #tpu.dot_dimension_numbers<[1], [0], [0], [1], [0, 0, 1, 1], [], []>} : vector<24x16xbf16>, vector<16x32xbf16>, vector<24x32xf32> -> vector<24x32xf32>
    %329 = arith.addf %306, %328 : vector<24x32xf32>
    %330 = vector.extract_strided_slice %284 {offsets = [24, 0], sizes = [24, 16], strides = [1, 1]} : vector<48x96xf32> to vector<24x16xf32>
    %331 = vector.extract_strided_slice %284 {offsets = [24, 32], sizes = [24, 16], strides = [1, 1]} : vector<48x96xf32> to vector<24x16xf32>
    %332 = vector.extract_strided_slice %284 {offsets = [24, 64], sizes = [24, 16], strides = [1, 1]} : vector<48x96xf32> to vector<24x16xf32>
    %cst_175 = arith.constant dense<0.000000e+00> : vector<24x24xf32>
    %333 = tpu.matmul %330, %331, %cst_175 {dimension_numbers = #tpu.dot_dimension_numbers<[1], [1], [0], [0], [0, 0, 1, 0], [], []>} : vector<24x16xf32>, vector<24x16xf32>, vector<24x24xf32> -> vector<24x24xf32>
    %cst_176 = arith.constant 2.500000e-01 : f32
    %334 = vector.broadcast %cst_176 : f32 to vector<24x24xf32>
    %335 = arith.mulf %333, %334 : vector<24x24xf32>
    %336 = arith.addf %335, %63 : vector<24x24xf32>
    %cst_177 = arith.constant dense<0xFF800000> : vector<24xf32>
    %337 = vector.multi_reduction <maximumf>, %336, %cst_177 [1] : vector<24x24xf32> to vector<24xf32>
    %338 = vector.shape_cast %337 : vector<24xf32> to vector<24x1xf32>
    %339 = vector.broadcast %338 : vector<24x1xf32> to vector<24x24xf32>
    %340 = arith.subf %336, %339 : vector<24x24xf32>
    %341 = math.exp %340 : vector<24x24xf32>
    %cst_178 = arith.constant dense<0.000000e+00> : vector<24xf32>
    %342 = vector.multi_reduction <add>, %341, %cst_178 [1] : vector<24x24xf32> to vector<24xf32>
    %343 = vector.shape_cast %342 : vector<24xf32> to vector<24x1xf32>
    %344 = tpu.reciprocal %343 {approx = true} : vector<24x1xf32> -> vector<24x1xf32>
    %345 = vector.broadcast %344 : vector<24x1xf32> to vector<24x24xf32>
    %346 = arith.mulf %341, %345 : vector<24x24xf32>
    %cst_179 = arith.constant dense<0.000000e+00> : vector<24x16xf32>
    %347 = tpu.matmul %346, %332, %cst_179 {dimension_numbers = #tpu.dot_dimension_numbers<[1], [0], [0], [1], [0, 0, 1, 1], [], []>} : vector<24x24xf32>, vector<24x16xf32>, vector<24x16xf32> -> vector<24x16xf32>
    %348 = arith.truncf %347 : vector<24x16xf32> to vector<24x16xbf16>
    %c1_180 = arith.constant 1 : index
    %c0_181 = arith.constant 0 : index
    %c0_182 = arith.constant 0 : index
    %c0_183 = arith.constant 0 : index
    %349 = vector.load %arg22[%c1_180, %c0_181, %c0_182, %c0_183] : memref<2x2x16x32xbf16, #tpu.memory_space<vmem>>, vector<1x1x16x32xbf16>
    %350 = vector.shape_cast %349 : vector<1x1x16x32xbf16> to vector<16x32xbf16>
    %cst_184 = arith.constant dense<0.000000e+00> : vector<24x32xf32>
    %351 = tpu.matmul %348, %350, %cst_184 {dimension_numbers = #tpu.dot_dimension_numbers<[1], [0], [0], [1], [0, 0, 1, 1], [], []>} : vector<24x16xbf16>, vector<16x32xbf16>, vector<24x32xf32> -> vector<24x32xf32>
    %352 = vector.extract_strided_slice %284 {offsets = [24, 16], sizes = [24, 16], strides = [1, 1]} : vector<48x96xf32> to vector<24x16xf32>
    %353 = vector.extract_strided_slice %284 {offsets = [24, 48], sizes = [24, 16], strides = [1, 1]} : vector<48x96xf32> to vector<24x16xf32>
    %354 = vector.extract_strided_slice %284 {offsets = [24, 80], sizes = [24, 16], strides = [1, 1]} : vector<48x96xf32> to vector<24x16xf32>
    %cst_185 = arith.constant dense<0.000000e+00> : vector<24x24xf32>
    %355 = tpu.matmul %352, %353, %cst_185 {dimension_numbers = #tpu.dot_dimension_numbers<[1], [1], [0], [0], [0, 0, 1, 0], [], []>} : vector<24x16xf32>, vector<24x16xf32>, vector<24x24xf32> -> vector<24x24xf32>
    %cst_186 = arith.constant 2.500000e-01 : f32
    %356 = vector.broadcast %cst_186 : f32 to vector<24x24xf32>
    %357 = arith.mulf %355, %356 : vector<24x24xf32>
    %358 = arith.addf %357, %63 : vector<24x24xf32>
    %cst_187 = arith.constant dense<0xFF800000> : vector<24xf32>
    %359 = vector.multi_reduction <maximumf>, %358, %cst_187 [1] : vector<24x24xf32> to vector<24xf32>
    %360 = vector.shape_cast %359 : vector<24xf32> to vector<24x1xf32>
    %361 = vector.broadcast %360 : vector<24x1xf32> to vector<24x24xf32>
    %362 = arith.subf %358, %361 : vector<24x24xf32>
    %363 = math.exp %362 : vector<24x24xf32>
    %cst_188 = arith.constant dense<0.000000e+00> : vector<24xf32>
    %364 = vector.multi_reduction <add>, %363, %cst_188 [1] : vector<24x24xf32> to vector<24xf32>
    %365 = vector.shape_cast %364 : vector<24xf32> to vector<24x1xf32>
    %366 = tpu.reciprocal %365 {approx = true} : vector<24x1xf32> -> vector<24x1xf32>
    %367 = vector.broadcast %366 : vector<24x1xf32> to vector<24x24xf32>
    %368 = arith.mulf %363, %367 : vector<24x24xf32>
    %cst_189 = arith.constant dense<0.000000e+00> : vector<24x16xf32>
    %369 = tpu.matmul %368, %354, %cst_189 {dimension_numbers = #tpu.dot_dimension_numbers<[1], [0], [0], [1], [0, 0, 1, 1], [], []>} : vector<24x24xf32>, vector<24x16xf32>, vector<24x16xf32> -> vector<24x16xf32>
    %370 = arith.truncf %369 : vector<24x16xf32> to vector<24x16xbf16>
    %c1_190 = arith.constant 1 : index
    %c1_191 = arith.constant 1 : index
    %c0_192 = arith.constant 0 : index
    %c0_193 = arith.constant 0 : index
    %371 = vector.load %arg22[%c1_190, %c1_191, %c0_192, %c0_193] : memref<2x2x16x32xbf16, #tpu.memory_space<vmem>>, vector<1x1x16x32xbf16>
    %372 = vector.shape_cast %371 : vector<1x1x16x32xbf16> to vector<16x32xbf16>
    %cst_194 = arith.constant dense<0.000000e+00> : vector<24x32xf32>
    %373 = tpu.matmul %370, %372, %cst_194 {dimension_numbers = #tpu.dot_dimension_numbers<[1], [0], [0], [1], [0, 0, 1, 1], [], []>} : vector<24x16xbf16>, vector<16x32xbf16>, vector<24x32xf32> -> vector<24x32xf32>
    %374 = arith.addf %351, %373 : vector<24x32xf32>
    %375 = tpu.concatenate %329, %374 in 0 : vector<24x32xf32>, vector<24x32xf32> -> vector<48x32xf32>
    %c1_195 = arith.constant 1 : index
    %c0_196 = arith.constant 0 : index
    %c0_197 = arith.constant 0 : index
    %376 = vector.load %arg23[%c1_195, %c0_196, %c0_197] : memref<2x1x32xf32, #tpu.memory_space<vmem>>, vector<1x1x32xf32>
    %377 = vector.shape_cast %376 : vector<1x1x32xf32> to vector<1x32xf32>
    %378 = vector.broadcast %377 : vector<1x32xf32> to vector<48x32xf32>
    %379 = arith.addf %375, %378 : vector<48x32xf32>
    %380 = arith.addf %276, %379 : vector<48x32xf32>
    %c1_198 = arith.constant 1 : index
    %c0_199 = arith.constant 0 : index
    %c0_200 = arith.constant 0 : index
    %381 = vector.load %arg24[%c1_198, %c0_199, %c0_200] : memref<2x1x32xf32, #tpu.memory_space<vmem>>, vector<1x1x32xf32>
    %382 = vector.shape_cast %381 : vector<1x1x32xf32> to vector<1x32xf32>
    %c1_201 = arith.constant 1 : index
    %c0_202 = arith.constant 0 : index
    %c0_203 = arith.constant 0 : index
    %383 = vector.load %arg25[%c1_201, %c0_202, %c0_203] : memref<2x1x32xf32, #tpu.memory_space<vmem>>, vector<1x1x32xf32>
    %384 = vector.shape_cast %383 : vector<1x1x32xf32> to vector<1x32xf32>
    %cst_204 = arith.constant dense<0.000000e+00> : vector<48xf32>
    %385 = vector.multi_reduction <add>, %380, %cst_204 [1] : vector<48x32xf32> to vector<48xf32>
    %386 = vector.shape_cast %385 : vector<48xf32> to vector<48x1xf32>
    %cst_205 = arith.constant 3.200000e+01 : f32
    %387 = vector.broadcast %cst_205 : f32 to vector<48x1xf32>
    %388 = arith.divf %386, %387 : vector<48x1xf32>
    %389 = vector.broadcast %388 : vector<48x1xf32> to vector<48x32xf32>
    %390 = arith.subf %380, %389 : vector<48x32xf32>
    %391 = arith.mulf %390, %390 : vector<48x32xf32>
    %cst_206 = arith.constant dense<0.000000e+00> : vector<48xf32>
    %392 = vector.multi_reduction <add>, %391, %cst_206 [1] : vector<48x32xf32> to vector<48xf32>
    %393 = vector.shape_cast %392 : vector<48xf32> to vector<48x1xf32>
    %cst_207 = arith.constant 3.200000e+01 : f32
    %394 = vector.broadcast %cst_207 : f32 to vector<48x1xf32>
    %395 = arith.divf %393, %394 : vector<48x1xf32>
    %396 = vector.broadcast %388 : vector<48x1xf32> to vector<48x32xf32>
    %397 = arith.subf %380, %396 : vector<48x32xf32>
    %cst_208 = arith.constant 9.99999974E-6 : f32
    %398 = vector.broadcast %cst_208 : f32 to vector<48x1xf32>
    %399 = arith.addf %395, %398 : vector<48x1xf32>
    %400 = math.rsqrt %399 : vector<48x1xf32>
    %401 = vector.broadcast %400 : vector<48x1xf32> to vector<48x32xf32>
    %402 = arith.mulf %397, %401 : vector<48x32xf32>
    %403 = vector.broadcast %382 : vector<1x32xf32> to vector<48x32xf32>
    %404 = arith.mulf %402, %403 : vector<48x32xf32>
    %405 = vector.broadcast %384 : vector<1x32xf32> to vector<48x32xf32>
    %406 = arith.addf %404, %405 : vector<48x32xf32>
    %407 = arith.truncf %406 : vector<48x32xf32> to vector<48x32xbf16>
    %c1_209 = arith.constant 1 : index
    %c0_210 = arith.constant 0 : index
    %c0_211 = arith.constant 0 : index
    %408 = vector.load %arg26[%c1_209, %c0_210, %c0_211] : memref<2x32x128xbf16, #tpu.memory_space<vmem>>, vector<1x32x128xbf16>
    %409 = vector.shape_cast %408 : vector<1x32x128xbf16> to vector<32x128xbf16>
    %cst_212 = arith.constant dense<0.000000e+00> : vector<48x128xf32>
    %410 = tpu.matmul %407, %409, %cst_212 {dimension_numbers = #tpu.dot_dimension_numbers<[1], [0], [0], [1], [0, 0, 1, 1], [], []>} : vector<48x32xbf16>, vector<32x128xbf16>, vector<48x128xf32> -> vector<48x128xf32>
    %c1_213 = arith.constant 1 : index
    %c0_214 = arith.constant 0 : index
    %c0_215 = arith.constant 0 : index
    %411 = vector.load %arg27[%c1_213, %c0_214, %c0_215] : memref<2x1x128xf32, #tpu.memory_space<vmem>>, vector<1x1x128xf32>
    %412 = vector.shape_cast %411 : vector<1x1x128xf32> to vector<1x128xf32>
    %413 = vector.broadcast %412 : vector<1x128xf32> to vector<48x128xf32>
    %414 = arith.addf %410, %413 : vector<48x128xf32>
    %cst_216 = arith.constant 5.000000e-01 : f32
    %415 = vector.broadcast %cst_216 : f32 to vector<48x128xf32>
    %416 = arith.mulf %415, %414 : vector<48x128xf32>
    %cst_217 = arith.constant 0.707106769 : f32
    %417 = vector.broadcast %cst_217 : f32 to vector<48x128xf32>
    %418 = arith.mulf %414, %417 : vector<48x128xf32>
    %419 = math.absf %418 : vector<48x128xf32>
    %cst_218 = arith.constant 0.327591091 : f32
    %420 = vector.broadcast %cst_218 : f32 to vector<48x128xf32>
    %421 = arith.mulf %420, %419 : vector<48x128xf32>
    %cst_219 = arith.constant 1.000000e+00 : f32
    %422 = vector.broadcast %cst_219 : f32 to vector<48x128xf32>
    %423 = arith.addf %422, %421 : vector<48x128xf32>
    %cst_220 = arith.constant 1.000000e+00 : f32
    %424 = vector.broadcast %cst_220 : f32 to vector<48x128xf32>
    %425 = arith.divf %424, %423 : vector<48x128xf32>
    %cst_221 = arith.constant 1.06140542 : f32
    %426 = vector.broadcast %cst_221 : f32 to vector<48x128xf32>
    %427 = arith.mulf %426, %425 : vector<48x128xf32>
    %cst_222 = arith.constant -1.45315206 : f32
    %428 = vector.broadcast %cst_222 : f32 to vector<48x128xf32>
    %429 = arith.addf %427, %428 : vector<48x128xf32>
    %430 = arith.mulf %429, %425 : vector<48x128xf32>
    %cst_223 = arith.constant 1.42141378 : f32
    %431 = vector.broadcast %cst_223 : f32 to vector<48x128xf32>
    %432 = arith.addf %430, %431 : vector<48x128xf32>
    %433 = arith.mulf %432, %425 : vector<48x128xf32>
    %cst_224 = arith.constant -0.284496725 : f32
    %434 = vector.broadcast %cst_224 : f32 to vector<48x128xf32>
    %435 = arith.addf %433, %434 : vector<48x128xf32>
    %436 = arith.mulf %435, %425 : vector<48x128xf32>
    %cst_225 = arith.constant 0.254829586 : f32
    %437 = vector.broadcast %cst_225 : f32 to vector<48x128xf32>
    %438 = arith.addf %436, %437 : vector<48x128xf32>
    %439 = arith.mulf %438, %425 : vector<48x128xf32>
    %cst_226 = arith.constant 0.000000e+00 : f32
    %440 = vector.broadcast %cst_226 : f32 to vector<48x128xf32>
    %441 = arith.subf %440, %419 : vector<48x128xf32>
    %442 = arith.mulf %441, %419 : vector<48x128xf32>
    %443 = math.exp %442 : vector<48x128xf32>
    %444 = arith.mulf %439, %443 : vector<48x128xf32>
    %cst_227 = arith.constant 1.000000e+00 : f32
    %445 = vector.broadcast %cst_227 : f32 to vector<48x128xf32>
    %446 = arith.subf %445, %444 : vector<48x128xf32>
    %cst_228 = arith.constant 0.000000e+00 : f32
    %447 = vector.broadcast %cst_228 : f32 to vector<48x128xf32>
    %448 = arith.cmpf olt, %418, %447 : vector<48x128xf32>
    %cst_229 = arith.constant 0.000000e+00 : f32
    %449 = vector.broadcast %cst_229 : f32 to vector<48x128xf32>
    %450 = arith.subf %449, %446 : vector<48x128xf32>
    %451 = arith.select %448, %450, %446 : vector<48x128xi1>, vector<48x128xf32>
    %cst_230 = arith.constant 1.000000e+00 : f32
    %452 = vector.broadcast %cst_230 : f32 to vector<48x128xf32>
    %453 = arith.addf %452, %451 : vector<48x128xf32>
    %454 = arith.mulf %416, %453 : vector<48x128xf32>
    %455 = arith.truncf %454 : vector<48x128xf32> to vector<48x128xbf16>
    %c1_231 = arith.constant 1 : index
    %c0_232 = arith.constant 0 : index
    %c0_233 = arith.constant 0 : index
    %456 = vector.load %arg28[%c1_231, %c0_232, %c0_233] : memref<2x128x32xbf16, #tpu.memory_space<vmem>>, vector<1x128x32xbf16>
    %457 = vector.shape_cast %456 : vector<1x128x32xbf16> to vector<128x32xbf16>
    %cst_234 = arith.constant dense<0.000000e+00> : vector<48x32xf32>
    %458 = tpu.matmul %455, %457, %cst_234 {dimension_numbers = #tpu.dot_dimension_numbers<[1], [0], [0], [1], [0, 0, 1, 1], [], []>} : vector<48x128xbf16>, vector<128x32xbf16>, vector<48x32xf32> -> vector<48x32xf32>
    %c1_235 = arith.constant 1 : index
    %c0_236 = arith.constant 0 : index
    %c0_237 = arith.constant 0 : index
    %459 = vector.load %arg29[%c1_235, %c0_236, %c0_237] : memref<2x1x32xf32, #tpu.memory_space<vmem>>, vector<1x1x32xf32>
    %460 = vector.shape_cast %459 : vector<1x1x32xf32> to vector<1x32xf32>
    %461 = vector.broadcast %460 : vector<1x32xf32> to vector<48x32xf32>
    %462 = arith.addf %458, %461 : vector<48x32xf32>
    %463 = arith.addf %406, %462 : vector<48x32xf32>
    %c1_238 = arith.constant 1 : index
    %c0_239 = arith.constant 0 : index
    %c0_240 = arith.constant 0 : index
    %464 = vector.load %arg30[%c1_238, %c0_239, %c0_240] : memref<2x1x32xf32, #tpu.memory_space<vmem>>, vector<1x1x32xf32>
    %465 = vector.shape_cast %464 : vector<1x1x32xf32> to vector<1x32xf32>
    %c1_241 = arith.constant 1 : index
    %c0_242 = arith.constant 0 : index
    %c0_243 = arith.constant 0 : index
    %466 = vector.load %arg31[%c1_241, %c0_242, %c0_243] : memref<2x1x32xf32, #tpu.memory_space<vmem>>, vector<1x1x32xf32>
    %467 = vector.shape_cast %466 : vector<1x1x32xf32> to vector<1x32xf32>
    %cst_244 = arith.constant dense<0.000000e+00> : vector<48xf32>
    %468 = vector.multi_reduction <add>, %463, %cst_244 [1] : vector<48x32xf32> to vector<48xf32>
    %469 = vector.shape_cast %468 : vector<48xf32> to vector<48x1xf32>
    %cst_245 = arith.constant 3.200000e+01 : f32
    %470 = vector.broadcast %cst_245 : f32 to vector<48x1xf32>
    %471 = arith.divf %469, %470 : vector<48x1xf32>
    %472 = vector.broadcast %471 : vector<48x1xf32> to vector<48x32xf32>
    %473 = arith.subf %463, %472 : vector<48x32xf32>
    %474 = arith.mulf %473, %473 : vector<48x32xf32>
    %cst_246 = arith.constant dense<0.000000e+00> : vector<48xf32>
    %475 = vector.multi_reduction <add>, %474, %cst_246 [1] : vector<48x32xf32> to vector<48xf32>
    %476 = vector.shape_cast %475 : vector<48xf32> to vector<48x1xf32>
    %cst_247 = arith.constant 3.200000e+01 : f32
    %477 = vector.broadcast %cst_247 : f32 to vector<48x1xf32>
    %478 = arith.divf %476, %477 : vector<48x1xf32>
    %479 = vector.broadcast %471 : vector<48x1xf32> to vector<48x32xf32>
    %480 = arith.subf %463, %479 : vector<48x32xf32>
    %cst_248 = arith.constant 9.99999974E-6 : f32
    %481 = vector.broadcast %cst_248 : f32 to vector<48x1xf32>
    %482 = arith.addf %478, %481 : vector<48x1xf32>
    %483 = math.rsqrt %482 : vector<48x1xf32>
    %484 = vector.broadcast %483 : vector<48x1xf32> to vector<48x32xf32>
    %485 = arith.mulf %480, %484 : vector<48x32xf32>
    %486 = vector.broadcast %465 : vector<1x32xf32> to vector<48x32xf32>
    %487 = arith.mulf %485, %486 : vector<48x32xf32>
    %488 = vector.broadcast %467 : vector<1x32xf32> to vector<48x32xf32>
    %489 = arith.addf %487, %488 : vector<48x32xf32>
    %c0_249 = arith.constant 0 : index
    %c0_250 = arith.constant 0 : index
    %490 = vector.load %arg9[%c0_249, %c0_250] : memref<16x48xf32, #tpu.memory_space<vmem>>, vector<16x48xf32>
    %cst_251 = arith.constant dense<0.000000e+00> : vector<16x32xf32>
    %491 = tpu.matmul %490, %489, %cst_251 {dimension_numbers = #tpu.dot_dimension_numbers<[1], [0], [0], [1], [0, 0, 1, 1], [], []>} : vector<16x48xf32>, vector<48x32xf32>, vector<16x32xf32> -> vector<16x32xf32>
    %c0_252 = arith.constant 0 : index
    %c0_253 = arith.constant 0 : index
    %492 = vector.load %arg10[%c0_252, %c0_253] : memref<16x48xf32, #tpu.memory_space<vmem>>, vector<16x48xf32>
    %cst_254 = arith.constant dense<0.000000e+00> : vector<16x32xf32>
    %493 = tpu.matmul %492, %489, %cst_254 {dimension_numbers = #tpu.dot_dimension_numbers<[1], [0], [0], [1], [0, 0, 1, 1], [], []>} : vector<16x48xf32>, vector<48x32xf32>, vector<16x32xf32> -> vector<16x32xf32>
    %494 = arith.truncf %493 : vector<16x32xf32> to vector<16x32xbf16>
    %c0_255 = arith.constant 0 : index
    %c0_256 = arith.constant 0 : index
    %495 = vector.load %arg32[%c0_255, %c0_256] : memref<32x128xbf16, #tpu.memory_space<vmem>>, vector<32x128xbf16>
    %cst_257 = arith.constant dense<0.000000e+00> : vector<16x128xf32>
    %496 = tpu.matmul %494, %495, %cst_257 {dimension_numbers = #tpu.dot_dimension_numbers<[1], [0], [0], [1], [0, 0, 1, 1], [], []>} : vector<16x32xbf16>, vector<32x128xbf16>, vector<16x128xf32> -> vector<16x128xf32>
    %c0_258 = arith.constant 0 : index
    %c0_259 = arith.constant 0 : index
    %497 = vector.load %arg33[%c0_258, %c0_259] : memref<1x128xf32, #tpu.memory_space<vmem>>, vector<1x128xf32>
    %498 = vector.broadcast %497 : vector<1x128xf32> to vector<16x128xf32>
    %499 = arith.addf %496, %498 : vector<16x128xf32>
    %500 = arith.truncf %491 : vector<16x32xf32> to vector<16x32xbf16>
    %c0_260 = arith.constant 0 : index
    %c0_261 = arith.constant 0 : index
    %501 = vector.load %arg34[%c0_260, %c0_261] : memref<32x128xbf16, #tpu.memory_space<vmem>>, vector<32x128xbf16>
    %cst_262 = arith.constant dense<0.000000e+00> : vector<16x128xf32>
    %502 = tpu.matmul %500, %501, %cst_262 {dimension_numbers = #tpu.dot_dimension_numbers<[1], [0], [0], [1], [0, 0, 1, 1], [], []>} : vector<16x32xbf16>, vector<32x128xbf16>, vector<16x128xf32> -> vector<16x128xf32>
    %c0_263 = arith.constant 0 : index
    %c0_264 = arith.constant 0 : index
    %503 = vector.load %arg35[%c0_263, %c0_264] : memref<1x128xf32, #tpu.memory_space<vmem>>, vector<1x128xf32>
    %504 = vector.broadcast %503 : vector<1x128xf32> to vector<16x128xf32>
    %505 = arith.addf %502, %504 : vector<16x128xf32>
    %506 = math.tanh %505 : vector<16x128xf32>
    %507 = arith.addf %499, %506 : vector<16x128xf32>
    %508 = vector.shape_cast %507 : vector<16x128xf32> to vector<2x8x128xf32>
    %c0_265 = arith.constant 0 : index
    %c0_266 = arith.constant 0 : index
    %c0_267 = arith.constant 0 : index
    %509 = vector.load %arg36[%c0_265, %c0_266, %c0_267] : memref<2x8x128xf32, #tpu.memory_space<vmem>>, vector<2x8x128xf32>
    tpu.vector_store %arg36[%c0_265, %c0_266, %c0_267], %508 {strides = array<i32>} : memref<2x8x128xf32, #tpu.memory_space<vmem>>, vector<2x8x128xf32>,
    return
  }
  func.func @transform_0(%arg0: i32) -> (i32, i32, i32) {
    %c0_i32 = arith.constant 0 : i32
    %c0_i32_0 = arith.constant 0 : i32
    %c0_i32_1 = arith.constant 0 : i32
    return %arg0, %c0_i32, %c0_i32_0 : i32, i32, i32
  }
  func.func @transform_1(%arg0: i32) -> (i32, i32, i32) {
    %c0_i32 = arith.constant 0 : i32
    %c0_i32_0 = arith.constant 0 : i32
    %c0_i32_1 = arith.constant 0 : i32
    return %arg0, %c0_i32, %c0_i32_0 : i32, i32, i32
  }
  func.func @transform_2(%arg0: i32) -> (i32, i32, i32) {
    %c0_i32 = arith.constant 0 : i32
    %c0_i32_0 = arith.constant 0 : i32
    %c0_i32_1 = arith.constant 0 : i32
    return %arg0, %c0_i32, %c0_i32_0 : i32, i32, i32
  }
  func.func @transform_3(%arg0: i32) -> (i32, i32, i32) {
    %c0_i32 = arith.constant 0 : i32
    %c0_i32_0 = arith.constant 0 : i32
    %c0_i32_1 = arith.constant 0 : i32
    return %arg0, %c0_i32, %c0_i32_0 : i32, i32, i32
  }
  func.func @transform_4(%arg0: i32) -> (i32, i32) {
    %c0_i32 = arith.constant 0 : i32
    %c0_i32_0 = arith.constant 0 : i32
    %c0_i32_1 = arith.constant 0 : i32
    return %c0_i32, %c0_i32_0 : i32, i32
  }
  func.func @transform_5(%arg0: i32) -> (i32, i32) {
    %c0_i32 = arith.constant 0 : i32
    %c0_i32_0 = arith.constant 0 : i32
    %c0_i32_1 = arith.constant 0 : i32
    return %c0_i32, %c0_i32_0 : i32, i32
  }
  func.func @transform_6(%arg0: i32) -> (i32, i32) {
    %c0_i32 = arith.constant 0 : i32
    %c0_i32_0 = arith.constant 0 : i32
    %c0_i32_1 = arith.constant 0 : i32
    return %c0_i32, %c0_i32_0 : i32, i32
  }
  func.func @transform_7(%arg0: i32) -> (i32, i32) {
    %c0_i32 = arith.constant 0 : i32
    %c0_i32_0 = arith.constant 0 : i32
    %c0_i32_1 = arith.constant 0 : i32
    return %c0_i32, %c0_i32_0 : i32, i32
  }
  func.func @transform_8(%arg0: i32) -> (i32, i32) {
    %c0_i32 = arith.constant 0 : i32
    %c0_i32_0 = arith.constant 0 : i32
    %c0_i32_1 = arith.constant 0 : i32
    return %c0_i32, %c0_i32_0 : i32, i32
  }
  func.func @transform_9(%arg0: i32) -> (i32, i32) {
    %c0_i32 = arith.constant 0 : i32
    %c0_i32_0 = arith.constant 0 : i32
    %c0_i32_1 = arith.constant 0 : i32
    return %c0_i32, %c0_i32_0 : i32, i32
  }
  func.func @transform_10(%arg0: i32) -> (i32, i32) {
    %c0_i32 = arith.constant 0 : i32
    %c0_i32_0 = arith.constant 0 : i32
    %c0_i32_1 = arith.constant 0 : i32
    return %c0_i32, %c0_i32_0 : i32, i32
  }
  func.func @transform_11(%arg0: i32) -> (i32, i32) {
    %c0_i32 = arith.constant 0 : i32
    %c0_i32_0 = arith.constant 0 : i32
    %c0_i32_1 = arith.constant 0 : i32
    return %c0_i32, %c0_i32_0 : i32, i32
  }
  func.func @transform_12(%arg0: i32) -> (i32, i32) {
    %c0_i32 = arith.constant 0 : i32
    %c0_i32_0 = arith.constant 0 : i32
    %c0_i32_1 = arith.constant 0 : i32
    return %c0_i32, %c0_i32_0 : i32, i32
  }
  func.func @transform_13(%arg0: i32) -> (i32, i32) {
    %c0_i32 = arith.constant 0 : i32
    %c0_i32_0 = arith.constant 0 : i32
    %c0_i32_1 = arith.constant 0 : i32
    return %c0_i32, %c0_i32_0 : i32, i32
  }
  func.func @transform_14(%arg0: i32) -> (i32, i32) {
    %c0_i32 = arith.constant 0 : i32
    %c0_i32_0 = arith.constant 0 : i32
    %c0_i32_1 = arith.constant 0 : i32
    return %c0_i32, %c0_i32_0 : i32, i32
  }
  func.func @transform_15(%arg0: i32) -> (i32, i32) {
    %c0_i32 = arith.constant 0 : i32
    %c0_i32_0 = arith.constant 0 : i32
    %c0_i32_1 = arith.constant 0 : i32
    return %c0_i32, %c0_i32_0 : i32, i32
  }
  func.func @transform_16(%arg0: i32) -> (i32, i32) {
    %c0_i32 = arith.constant 0 : i32
    %c0_i32_0 = arith.constant 0 : i32
    %c0_i32_1 = arith.constant 0 : i32
    return %c0_i32, %c0_i32_0 : i32, i32
  }
  func.func @transform_17(%arg0: i32) -> (i32, i32) {
    %c0_i32 = arith.constant 0 : i32
    %c0_i32_0 = arith.constant 0 : i32
    %c0_i32_1 = arith.constant 0 : i32
    return %c0_i32, %c0_i32_0 : i32, i32
  }
  func.func @transform_18(%arg0: i32) -> (i32, i32) {
    %c0_i32 = arith.constant 0 : i32
    %c0_i32_0 = arith.constant 0 : i32
    %c0_i32_1 = arith.constant 0 : i32
    return %c0_i32, %c0_i32_0 : i32, i32
  }
  func.func @transform_19(%arg0: i32) -> (i32, i32, i32) {
    %c0_i32 = arith.constant 0 : i32
    %c0_i32_0 = arith.constant 0 : i32
    %c0_i32_1 = arith.constant 0 : i32
    %c0_i32_2 = arith.constant 0 : i32
    return %c0_i32, %c0_i32_0, %c0_i32_1 : i32, i32, i32
  }
  func.func @transform_20(%arg0: i32) -> (i32, i32, i32) {
    %c0_i32 = arith.constant 0 : i32
    %c0_i32_0 = arith.constant 0 : i32
    %c0_i32_1 = arith.constant 0 : i32
    %c0_i32_2 = arith.constant 0 : i32
    return %c0_i32, %c0_i32_0, %c0_i32_1 : i32, i32, i32
  }
  func.func @transform_21(%arg0: i32) -> (i32, i32, i32, i32) {
    %c0_i32 = arith.constant 0 : i32
    %c0_i32_0 = arith.constant 0 : i32
    %c0_i32_1 = arith.constant 0 : i32
    %c0_i32_2 = arith.constant 0 : i32
    %c0_i32_3 = arith.constant 0 : i32
    return %c0_i32, %c0_i32_0, %c0_i32_1, %c0_i32_2 : i32, i32, i32, i32
  }
  func.func @transform_22(%arg0: i32) -> (i32, i32, i32) {
    %c0_i32 = arith.constant 0 : i32
    %c0_i32_0 = arith.constant 0 : i32
    %c0_i32_1 = arith.constant 0 : i32
    %c0_i32_2 = arith.constant 0 : i32
    return %c0_i32, %c0_i32_0, %c0_i32_1 : i32, i32, i32
  }
  func.func @transform_23(%arg0: i32) -> (i32, i32, i32) {
    %c0_i32 = arith.constant 0 : i32
    %c0_i32_0 = arith.constant 0 : i32
    %c0_i32_1 = arith.constant 0 : i32
    %c0_i32_2 = arith.constant 0 : i32
    return %c0_i32, %c0_i32_0, %c0_i32_1 : i32, i32, i32
  }
  func.func @transform_24(%arg0: i32) -> (i32, i32, i32) {
    %c0_i32 = arith.constant 0 : i32
    %c0_i32_0 = arith.constant 0 : i32
    %c0_i32_1 = arith.constant 0 : i32
    %c0_i32_2 = arith.constant 0 : i32
    return %c0_i32, %c0_i32_0, %c0_i32_1 : i32, i32, i32
  }
  func.func @transform_25(%arg0: i32) -> (i32, i32, i32) {
    %c0_i32 = arith.constant 0 : i32
    %c0_i32_0 = arith.constant 0 : i32
    %c0_i32_1 = arith.constant 0 : i32
    %c0_i32_2 = arith.constant 0 : i32
    return %c0_i32, %c0_i32_0, %c0_i32_1 : i32, i32, i32
  }
  func.func @transform_26(%arg0: i32) -> (i32, i32, i32) {
    %c0_i32 = arith.constant 0 : i32
    %c0_i32_0 = arith.constant 0 : i32
    %c0_i32_1 = arith.constant 0 : i32
    %c0_i32_2 = arith.constant 0 : i32
    return %c0_i32, %c0_i32_0, %c0_i32_1 : i32, i32, i32
  }
  func.func @transform_27(%arg0: i32) -> (i32, i32, i32) {
    %c0_i32 = arith.constant 0 : i32
    %c0_i32_0 = arith.constant 0 : i32
    %c0_i32_1 = arith.constant 0 : i32
    %c0_i32_2 = arith.constant 0 : i32
    return %c0_i32, %c0_i32_0, %c0_i32_1 : i32, i32, i32
  }
  func.func @transform_28(%arg0: i32) -> (i32, i32, i32) {
    %c0_i32 = arith.constant 0 : i32
    %c0_i32_0 = arith.constant 0 : i32
    %c0_i32_1 = arith.constant 0 : i32
    %c0_i32_2 = arith.constant 0 : i32
    return %c0_i32, %c0_i32_0, %c0_i32_1 : i32, i32, i32
  }
  func.func @transform_29(%arg0: i32) -> (i32, i32, i32) {
    %c0_i32 = arith.constant 0 : i32
    %c0_i32_0 = arith.constant 0 : i32
    %c0_i32_1 = arith.constant 0 : i32
    %c0_i32_2 = arith.constant 0 : i32
    return %c0_i32, %c0_i32_0, %c0_i32_1 : i32, i32, i32
  }
  func.func @transform_30(%arg0: i32) -> (i32, i32, i32) {
    %c0_i32 = arith.constant 0 : i32
    %c0_i32_0 = arith.constant 0 : i32
    %c0_i32_1 = arith.constant 0 : i32
    %c0_i32_2 = arith.constant 0 : i32
    return %c0_i32, %c0_i32_0, %c0_i32_1 : i32, i32, i32
  }
  func.func @transform_31(%arg0: i32) -> (i32, i32) {
    %c0_i32 = arith.constant 0 : i32
    %c0_i32_0 = arith.constant 0 : i32
    %c0_i32_1 = arith.constant 0 : i32
    return %c0_i32, %c0_i32_0 : i32, i32
  }
  func.func @transform_32(%arg0: i32) -> (i32, i32) {
    %c0_i32 = arith.constant 0 : i32
    %c0_i32_0 = arith.constant 0 : i32
    %c0_i32_1 = arith.constant 0 : i32
    return %c0_i32, %c0_i32_0 : i32, i32
  }
  func.func @transform_33(%arg0: i32) -> (i32, i32) {
    %c0_i32 = arith.constant 0 : i32
    %c0_i32_0 = arith.constant 0 : i32
    %c0_i32_1 = arith.constant 0 : i32
    return %c0_i32, %c0_i32_0 : i32, i32
  }
  func.func @transform_34(%arg0: i32) -> (i32, i32) {
    %c0_i32 = arith.constant 0 : i32
    %c0_i32_0 = arith.constant 0 : i32
    %c0_i32_1 = arith.constant 0 : i32
    return %c0_i32, %c0_i32_0 : i32, i32
  }
  func.func @transform_35(%arg0: i32) -> (i32, i32, i32) {
    %c0_i32 = arith.constant 0 : i32
    %c0_i32_0 = arith.constant 0 : i32
    %c0_i32_1 = arith.constant 0 : i32
    return %arg0, %c0_i32, %c0_i32_0 : i32, i32, i32
  }
}

</mosaic_0001>

<llo_original>
// kernel: tpu_custom_call.1
$region0: #{tpu_custom_call.1}
  #allocation0 [shape = 'u32[]', space=smem, size = 0x4, offset = 0x4, fixed_abs, tag = 'smem constant byte address 0x4 - core index']
  #allocation1 [shape = 'u32[144,128]{1,0:T(1,128)}', space=vmem, size = 0x12000, scoped, tag = 'internal scratch']
  %s0 = inlined_call_operand.smem [shape: u32[36], index: -1, kind: input, shape index: {}]
  %s1 = sld [smem:[%s0]]
  %s2 = scalar_lea.smem %s0, 1
  %s3 = sld [smem:[%s2]]
  %s4 = scalar_lea.smem %s0, 2
  %s5 = sld [smem:[%s4]]
  %s6 = scalar_lea.smem %s0, 3
  %s7 = sld [smem:[%s6]]
  %s8 = scalar_lea.smem %s0, 4
  %s9 = sld [smem:[%s8]]
  %s10 = scalar_lea.smem %s0, 5
  %s11 = sld [smem:[%s10]]
  %s12 = scalar_lea.smem %s0, 6
  %s13 = sld [smem:[%s12]]
  %s14 = scalar_lea.smem %s0, 7
  %s15 = sld [smem:[%s14]]
  %s16 = scalar_lea.smem %s0, 8
  %s17 = sld [smem:[%s16]]
  %s18 = scalar_lea.smem %s0, 9
  %s19 = sld [smem:[%s18]]
  %s20 = scalar_lea.smem %s0, 10
  %s21 = sld [smem:[%s20]]
  %s22 = scalar_lea.smem %s0, 11
  %s23 = sld [smem:[%s22]]
  %s24 = scalar_lea.smem %s0, 12
  %s25 = sld [smem:[%s24]]
  %s26 = scalar_lea.smem %s0, 13
  %s27 = sld [smem:[%s26]]
  %s28 = scalar_lea.smem %s0, 14
  %s29 = sld [smem:[%s28]]
  %s30 = scalar_lea.smem %s0, 15
  %s31 = sld [smem:[%s30]]
  %s32 = scalar_lea.smem %s0, 16
  %s33 = sld [smem:[%s32]]
  %s34 = scalar_lea.smem %s0, 17
  %s35 = sld [smem:[%s34]]
  %s36 = scalar_lea.smem %s0, 18
  %s37 = sld [smem:[%s36]]
  %s38 = scalar_lea.smem %s0, 19
  %s39 = sld [smem:[%s38]]
  %s40 = scalar_lea.smem %s0, 20
  %s41 = sld [smem:[%s40]]
  %s42 = scalar_lea.smem %s0, 21
  %s43 = sld [smem:[%s42]]
  %s44 = scalar_lea.smem %s0, 22
  %s45 = sld [smem:[%s44]]
  %s46 = scalar_lea.smem %s0, 23
  %s47 = sld [smem:[%s46]]
  %s48 = scalar_lea.smem %s0, 24
  %s49 = sld [smem:[%s48]]
  %s50 = scalar_lea.smem %s0, 25
  %s51 = sld [smem:[%s50]]
  %s52 = scalar_lea.smem %s0, 26
  %s53 = sld [smem:[%s52]]
  %s54 = scalar_lea.smem %s0, 27
  %s55 = sld [smem:[%s54]]
  %s56 = scalar_lea.smem %s0, 28
  %s57 = sld [smem:[%s56]]
  %s58 = scalar_lea.smem %s0, 29
  %s59 = sld [smem:[%s58]]
  %s60 = scalar_lea.smem %s0, 30
  %s61 = sld [smem:[%s60]]
  %s62 = scalar_lea.smem %s0, 31
  %s63 = sld [smem:[%s62]]
  %s64 = scalar_lea.smem %s0, 32
  %s65 = sld [smem:[%s64]]
  %s66 = scalar_lea.smem %s0, 33
  %s67 = sld [smem:[%s66]]
  %s68 = scalar_lea.smem %s0, 34
  %s69 = sld [smem:[%s68]]
  %s70 = scalar_lea.smem %s0, 35
  %s71 = sld [smem:[%s70]]
  %s72 = sld [smem:[#allocation0]]
  $region173: #{tpu_custom_call.1} parent=0
    _
  %s74 = ssub.s32 1, %s72
  %s75 = scalar_select 0, %s74, %s72
  $region1: #{tpu_custom_call.1} parent=0
    #allocation2 [shape = 'u8[16384]{0}', space=vmem, size = 0x4000, scoped, tag = 'output window, operand 0']
    #allocation3 [shape = 's32[2]{0}', space=sflag, size = 0x8, scoped, tag = 'scoped memory for tpu_custom_call.1']
    %76 = vsyncpa [#allocation3], 0
    %s77 = scalar_lea.sflag [#allocation3], 1
    %78 = vsyncpa %s77, 0
    loop: start=0, step=1, limit=4
    $region2: #{tpu_custom_call.1} parent=1 // loop_pre_header
      _
    $region3: #{tpu_custom_call.1} parent=1 // loop_header
      %s80 = sphi 0, %s84
      %p81 = scmp.ge.s32.totalorder %s80, 4
      %s90 = sphi 0, %s92
      %s93 = sphi 0, %s90
      %s94 = sphi 0, %s93
      %s110 = sphi 0, %s94
      %s116 = sphi 0, %s118
      %s119 = sphi 0, %s116
      %s120 = sphi 0, %s119
      %s136 = sphi 0, %s120
      %s142 = sphi 0, %s144
      %s145 = sphi 0, %s142
      %s146 = sphi 0, %s145
      %s162 = sphi 0, %s146
      %s168 = sphi 0, %s170
      %s171 = sphi 0, %s168
      %s172 = sphi 0, %s171
      %s188 = sphi 0, %s172
      %s192 = sphi 0, %s192
      %s194 = sphi 0, %s192
      %s195 = sphi 0, %s194
      %s209 = sphi 0, %s195
      %s213 = sphi 0, %s213
      %s215 = sphi 0, %s213
      %s216 = sphi 0, %s215
      %s230 = sphi 0, %s216
      %s234 = sphi 0, %s234
      %s236 = sphi 0, %s234
      %s237 = sphi 0, %s236
      %s251 = sphi 0, %s237
      %s255 = sphi 0, %s255
      %s257 = sphi 0, %s255
      %s258 = sphi 0, %s257
      %s272 = sphi 0, %s258
      %s276 = sphi 0, %s276
      %s278 = sphi 0, %s276
      %s279 = sphi 0, %s278
      %s293 = sphi 0, %s279
      %s297 = sphi 0, %s297
      %s299 = sphi 0, %s297
      %s300 = sphi 0, %s299
      %s314 = sphi 0, %s300
      %s318 = sphi 0, %s318
      %s320 = sphi 0, %s318
      %s321 = sphi 0, %s320
      %s335 = sphi 0, %s321
      %s339 = sphi 0, %s339
      %s341 = sphi 0, %s339
      %s342 = sphi 0, %s341
      %s356 = sphi 0, %s342
      %s360 = sphi 0, %s360
      %s362 = sphi 0, %s360
      %s363 = sphi 0, %s362
      %s377 = sphi 0, %s363
      %s381 = sphi 0, %s381
      %s383 = sphi 0, %s381
      %s384 = sphi 0, %s383
      %s398 = sphi 0, %s384
      %s402 = sphi 0, %s402
      %s404 = sphi 0, %s402
      %s405 = sphi 0, %s404
      %s419 = sphi 0, %s405
      %s423 = sphi 0, %s423
      %s425 = sphi 0, %s423
      %s426 = sphi 0, %s425
      %s440 = sphi 0, %s426
      %s444 = sphi 0, %s444
      %s446 = sphi 0, %s444
      %s447 = sphi 0, %s446
      %s461 = sphi 0, %s447
      %s465 = sphi 0, %s465
      %s467 = sphi 0, %s465
      %s468 = sphi 0, %s467
      %s482 = sphi 0, %s468
      %s486 = sphi 0, %s486
      %s488 = sphi 0, %s486
      %s489 = sphi 0, %s488
      %s503 = sphi 0, %s489
      %s507 = sphi 0, %s507
      %s509 = sphi 0, %s507
      %s510 = sphi 0, %s509
      %s524 = sphi 0, %s510
      %s528 = sphi 0, %s528
      %s530 = sphi 0, %s528
      %s531 = sphi 0, %s530
      %s545 = sphi 0, %s531
      %s549 = sphi 0, %s549
      %s551 = sphi 0, %s549
      %s552 = sphi 0, %s551
      %s566 = sphi 0, %s552
      %s570 = sphi 0, %s570
      %s572 = sphi 0, %s570
      %s573 = sphi 0, %s572
      %s587 = sphi 0, %s573
      %s591 = sphi 0, %s591
      %s593 = sphi 0, %s591
      %s594 = sphi 0, %s593
      %s608 = sphi 0, %s594
      %s612 = sphi 0, %s612
      %s614 = sphi 0, %s612
      %s615 = sphi 0, %s614
      %s629 = sphi 0, %s615
      %s633 = sphi 0, %s633
      %s635 = sphi 0, %s633
      %s636 = sphi 0, %s635
      %s650 = sphi 0, %s636
      %s654 = sphi 0, %s654
      %s656 = sphi 0, %s654
      %s657 = sphi 0, %s656
      %s671 = sphi 0, %s657
      %s675 = sphi 0, %s675
      %s677 = sphi 0, %s675
      %s678 = sphi 0, %s677
      %s692 = sphi 0, %s678
      %s696 = sphi 0, %s696
      %s698 = sphi 0, %s696
      %s699 = sphi 0, %s698
      %s713 = sphi 0, %s699
      %s717 = sphi 0, %s717
      %s719 = sphi 0, %s717
      %s720 = sphi 0, %s719
      %s734 = sphi 0, %s720
      %s738 = sphi 0, %s738
      %s740 = sphi 0, %s738
      %s741 = sphi 0, %s740
      %s755 = sphi 0, %s741
      %s759 = sphi 0, %s759
      %s761 = sphi 0, %s759
      %s762 = sphi 0, %s761
      %s776 = sphi 0, %s762
      %s780 = sphi 0, %s780
      %s782 = sphi 0, %s780
      %s783 = sphi 0, %s782
      %s797 = sphi 0, %s783
      %s801 = sphi 0, %s801
      %s803 = sphi 0, %s801
      %s804 = sphi 0, %s803
      %s818 = sphi 0, %s804
      %s822 = sphi 0, %s822
      %s824 = sphi 0, %s822
      %s825 = sphi 0, %s824
      %s839 = sphi 0, %s825
      %s845 = sphi 0, %s847
      %s848 = sphi 0, %s845
      %s849 = sphi 0, %s848
      %s865 = sphi 0, %s849
    $region4: #{tpu_custom_call.1} parent=1 // loop_header_branch
      %83 = sbr.rel (%p81) target = $region8
    $region5: #{tpu_custom_call.1} parent=1 // loop_body
      %s85 = ssub.s32 %s80, 1
      %s86 = ssub.s32 %s80, 2
      %s87 = sadd.s32 %s80, 1
      %s88 = ssub.s32 %s80, %s87
      %p89 = scmp.eq.s32.totalorder %s88, 0
      %s91 = sadd.s32 %s90, 1
      %s92 = scalar_select %p89, %s90, %s91
      %p95 = pneg %p89
      %p96 = scmp.eq.s32.totalorder %s80, 1
      %p97 = por %p95, %p96
      %p98 = scmp.ne.s32.totalorder %s90, %s93
      %p99 = scmp.eq.s32.totalorder %s80, 0
      %p100 = por %p98, %p99
      %p101 = scmp.ne.s32.totalorder %s90, %s93
      %p102 = scmp.eq.s32.totalorder %s85, 1
      %p103 = por %p101, %p102
      %p104 = scmp.ne.s32.totalorder %s93, %s94
      %p105 = scmp.eq.s32.totalorder %s85, 0
      %p106 = por %p104, %p105
      %p107 = scmp.ne.s32.totalorder %s93, %s94
      %p108 = scmp.eq.s32.totalorder %s86, 1
      %p109 = por %p107, %p108
      %p111 = scmp.ne.s32.totalorder %s94, %s110
      %p112 = scmp.eq.s32.totalorder %s86, 0
      %p113 = por %p111, %p112
      %s114 = ssub.s32 %s80, %s87
      %p115 = scmp.eq.s32.totalorder %s114, 0
      %s117 = sadd.s32 %s116, 1
      %s118 = scalar_select %p115, %s116, %s117
      %p121 = pneg %p115
      %p122 = scmp.eq.s32.totalorder %s80, 1
      %p123 = por %p121, %p122
      %p124 = scmp.ne.s32.totalorder %s116, %s119
      %p125 = scmp.eq.s32.totalorder %s80, 0
      %p126 = por %p124, %p125
      %p127 = scmp.ne.s32.totalorder %s116, %s119
      %p128 = scmp.eq.s32.totalorder %s85, 1
      %p129 = por %p127, %p128
      %p130 = scmp.ne.s32.totalorder %s119, %s120
      %p131 = scmp.eq.s32.totalorder %s85, 0
      %p132 = por %p130, %p131
      %p133 = scmp.ne.s32.totalorder %s119, %s120
      %p134 = scmp.eq.s32.totalorder %s86, 1
      %p135 = por %p133, %p134
      %p137 = scmp.ne.s32.totalorder %s120, %s136
      %p138 = scmp.eq.s32.totalorder %s86, 0
      %p139 = por %p137, %p138
      %s140 = ssub.s32 %s80, %s87
      %p141 = scmp.eq.s32.totalorder %s140, 0
      %s143 = sadd.s32 %s142, 1
      %s144 = scalar_select %p141, %s142, %s143
      %p147 = pneg %p141
      %p148 = scmp.eq.s32.totalorder %s80, 1
      %p149 = por %p147, %p148
      %p150 = scmp.ne.s32.totalorder %s142, %s145
      %p151 = scmp.eq.s32.totalorder %s80, 0
      %p152 = por %p150, %p151
      %p153 = scmp.ne.s32.totalorder %s142, %s145
      %p154 = scmp.eq.s32.totalorder %s85, 1
      %p155 = por %p153, %p154
      %p156 = scmp.ne.s32.totalorder %s145, %s146
      %p157 = scmp.eq.s32.totalorder %s85, 0
      %p158 = por %p156, %p157
      %p159 = scmp.ne.s32.totalorder %s145, %s146
      %p160 = scmp.eq.s32.totalorder %s86, 1
      %p161 = por %p159, %p160
      %p163 = scmp.ne.s32.totalorder %s146, %s162
      %p164 = scmp.eq.s32.totalorder %s86, 0
      %p165 = por %p163, %p164
      %s166 = ssub.s32 %s80, %s87
      %p167 = scmp.eq.s32.totalorder %s166, 0
      %s169 = sadd.s32 %s168, 1
      %s170 = scalar_select %p167, %s168, %s169
      %p173 = pneg %p167
      %p174 = scmp.eq.s32.totalorder %s80, 1
      %p175 = por %p173, %p174
      %p176 = scmp.ne.s32.totalorder %s168, %s171
      %p177 = scmp.eq.s32.totalorder %s80, 0
      %p178 = por %p176, %p177
      %p179 = scmp.ne.s32.totalorder %s168, %s171
      %p180 = scmp.eq.s32.totalorder %s85, 1
      %p181 = por %p179, %p180
      %p182 = scmp.ne.s32.totalorder %s171, %s172
      %p183 = scmp.eq.s32.totalorder %s85, 0
      %p184 = por %p182, %p183
      %p185 = scmp.ne.s32.totalorder %s171, %s172
      %p186 = scmp.eq.s32.totalorder %s86, 1
      %p187 = por %p185, %p186
      %p189 = scmp.ne.s32.totalorder %s172, %s188
      %p190 = scmp.eq.s32.totalorder %s86, 0
      %p191 = por %p189, %p190
      %s193 = sadd.s32 %s192, 1
      %p196 = scmp.eq.s32.totalorder %s80, 1
      %p197 = scmp.ne.s32.totalorder %s192, %s194
      %p198 = scmp.eq.s32.totalorder %s80, 0
      %p199 = por %p197, %p198
      %p200 = scmp.ne.s32.totalorder %s192, %s194
      %p201 = scmp.eq.s32.totalorder %s85, 1
      %p202 = por %p200, %p201
      %p203 = scmp.ne.s32.totalorder %s194, %s195
      %p204 = scmp.eq.s32.totalorder %s85, 0
      %p205 = por %p203, %p204
      %p206 = scmp.ne.s32.totalorder %s194, %s195
      %p207 = scmp.eq.s32.totalorder %s86, 1
      %p208 = por %p206, %p207
      %p210 = scmp.ne.s32.totalorder %s195, %s209
      %p211 = scmp.eq.s32.totalorder %s86, 0
      %p212 = por %p210, %p211
      %s214 = sadd.s32 %s213, 1
      %p217 = scmp.eq.s32.totalorder %s80, 1
      %p218 = scmp.ne.s32.totalorder %s213, %s215
      %p219 = scmp.eq.s32.totalorder %s80, 0
      %p220 = por %p218, %p219
      %p221 = scmp.ne.s32.totalorder %s213, %s215
      %p222 = scmp.eq.s32.totalorder %s85, 1
      %p223 = por %p221, %p222
      %p224 = scmp.ne.s32.totalorder %s215, %s216
      %p225 = scmp.eq.s32.totalorder %s85, 0
      %p226 = por %p224, %p225
      %p227 = scmp.ne.s32.totalorder %s215, %s216
      %p228 = scmp.eq.s32.totalorder %s86, 1
      %p229 = por %p227, %p228
      %p231 = scmp.ne.s32.totalorder %s216, %s230
      %p232 = scmp.eq.s32.totalorder %s86, 0
      %p233 = por %p231, %p232
      %s235 = sadd.s32 %s234, 1
      %p238 = scmp.eq.s32.totalorder %s80, 1
      %p239 = scmp.ne.s32.totalorder %s234, %s236
      %p240 = scmp.eq.s32.totalorder %s80, 0
      %p241 = por %p239, %p240
      %p242 = scmp.ne.s32.totalorder %s234, %s236
      %p243 = scmp.eq.s32.totalorder %s85, 1
      %p244 = por %p242, %p243
      %p245 = scmp.ne.s32.totalorder %s236, %s237
      %p246 = scmp.eq.s32.totalorder %s85, 0
      %p247 = por %p245, %p246
      %p248 = scmp.ne.s32.totalorder %s236, %s237
      %p249 = scmp.eq.s32.totalorder %s86, 1
      %p250 = por %p248, %p249
      %p252 = scmp.ne.s32.totalorder %s237, %s251
      %p253 = scmp.eq.s32.totalorder %s86, 0
      %p254 = por %p252, %p253
      %s256 = sadd.s32 %s255, 1
      %p259 = scmp.eq.s32.totalorder %s80, 1
      %p260 = scmp.ne.s32.totalorder %s255, %s257
      %p261 = scmp.eq.s32.totalorder %s80, 0
      %p262 = por %p260, %p261
      %p263 = scmp.ne.s32.totalorder %s255, %s257
      %p264 = scmp.eq.s32.totalorder %s85, 1
      %p265 = por %p263, %p264
      %p266 = scmp.ne.s32.totalorder %s257, %s258
      %p267 = scmp.eq.s32.totalorder %s85, 0
      %p268 = por %p266, %p267
      %p269 = scmp.ne.s32.totalorder %s257, %s258
      %p270 = scmp.eq.s32.totalorder %s86, 1
      %p271 = por %p269, %p270
      %p273 = scmp.ne.s32.totalorder %s258, %s272
      %p274 = scmp.eq.s32.totalorder %s86, 0
      %p275 = por %p273, %p274
      %s277 = sadd.s32 %s276, 1
      %p280 = scmp.eq.s32.totalorder %s80, 1
      %p281 = scmp.ne.s32.totalorder %s276, %s278
      %p282 = scmp.eq.s32.totalorder %s80, 0
      %p283 = por %p281, %p282
      %p284 = scmp.ne.s32.totalorder %s276, %s278
      %p285 = scmp.eq.s32.totalorder %s85, 1
      %p286 = por %p284, %p285
      %p287 = scmp.ne.s32.totalorder %s278, %s279
      %p288 = scmp.eq.s32.totalorder %s85, 0
      %p289 = por %p287, %p288
      %p290 = scmp.ne.s32.totalorder %s278, %s279
      %p291 = scmp.eq.s32.totalorder %s86, 1
      %p292 = por %p290, %p291
      %p294 = scmp.ne.s32.totalorder %s279, %s293
      %p295 = scmp.eq.s32.totalorder %s86, 0
      %p296 = por %p294, %p295
      %s298 = sadd.s32 %s297, 1
      %p301 = scmp.eq.s32.totalorder %s80, 1
      %p302 = scmp.ne.s32.totalorder %s297, %s299
      %p303 = scmp.eq.s32.totalorder %s80, 0
      %p304 = por %p302, %p303
      %p305 = scmp.ne.s32.totalorder %s297, %s299
      %p306 = scmp.eq.s32.totalorder %s85, 1
      %p307 = por %p305, %p306
      %p308 = scmp.ne.s32.totalorder %s299, %s300
      %p309 = scmp.eq.s32.totalorder %s85, 0
      %p310 = por %p308, %p309
      %p311 = scmp.ne.s32.totalorder %s299, %s300
      %p312 = scmp.eq.s32.totalorder %s86, 1
      %p313 = por %p311, %p312
      %p315 = scmp.ne.s32.totalorder %s300, %s314
      %p316 = scmp.eq.s32.totalorder %s86, 0
      %p317 = por %p315, %p316
      %s319 = sadd.s32 %s318, 1
      %p322 = scmp.eq.s32.totalorder %s80, 1
      %p323 = scmp.ne.s32.totalorder %s318, %s320
      %p324 = scmp.eq.s32.totalorder %s80, 0
      %p325 = por %p323, %p324
      %p326 = scmp.ne.s32.totalorder %s318, %s320
      %p327 = scmp.eq.s32.totalorder %s85, 1
      %p328 = por %p326, %p327
      %p329 = scmp.ne.s32.totalorder %s320, %s321
      %p330 = scmp.eq.s32.totalorder %s85, 0
      %p331 = por %p329, %p330
      %p332 = scmp.ne.s32.totalorder %s320, %s321
      %p333 = scmp.eq.s32.totalorder %s86, 1
      %p334 = por %p332, %p333
      %p336 = scmp.ne.s32.totalorder %s321, %s335
      %p337 = scmp.eq.s32.totalorder %s86, 0
      %p338 = por %p336, %p337
      %s340 = sadd.s32 %s339, 1
      %p343 = scmp.eq.s32.totalorder %s80, 1
      %p344 = scmp.ne.s32.totalorder %s339, %s341
      %p345 = scmp.eq.s32.totalorder %s80, 0
      %p346 = por %p344, %p345
      %p347 = scmp.ne.s32.totalorder %s339, %s341
      %p348 = scmp.eq.s32.totalorder %s85, 1
      %p349 = por %p347, %p348
      %p350 = scmp.ne.s32.totalorder %s341, %s342
      %p351 = scmp.eq.s32.totalorder %s85, 0
      %p352 = por %p350, %p351
      %p353 = scmp.ne.s32.totalorder %s341, %s342
      %p354 = scmp.eq.s32.totalorder %s86, 1
      %p355 = por %p353, %p354
      %p357 = scmp.ne.s32.totalorder %s342, %s356
      %p358 = scmp.eq.s32.totalorder %s86, 0
      %p359 = por %p357, %p358
      %s361 = sadd.s32 %s360, 1
      %p364 = scmp.eq.s32.totalorder %s80, 1
      %p365 = scmp.ne.s32.totalorder %s360, %s362
      %p366 = scmp.eq.s32.totalorder %s80, 0
      %p367 = por %p365, %p366
      %p368 = scmp.ne.s32.totalorder %s360, %s362
      %p369 = scmp.eq.s32.totalorder %s85, 1
      %p370 = por %p368, %p369
      %p371 = scmp.ne.s32.totalorder %s362, %s363
      %p372 = scmp.eq.s32.totalorder %s85, 0
      %p373 = por %p371, %p372
      %p374 = scmp.ne.s32.totalorder %s362, %s363
      %p375 = scmp.eq.s32.totalorder %s86, 1
      %p376 = por %p374, %p375
      %p378 = scmp.ne.s32.totalorder %s363, %s377
      %p379 = scmp.eq.s32.totalorder %s86, 0
      %p380 = por %p378, %p379
      %s382 = sadd.s32 %s381, 1
      %p385 = scmp.eq.s32.totalorder %s80, 1
      %p386 = scmp.ne.s32.totalorder %s381, %s383
      %p387 = scmp.eq.s32.totalorder %s80, 0
      %p388 = por %p386, %p387
      %p389 = scmp.ne.s32.totalorder %s381, %s383
      %p390 = scmp.eq.s32.totalorder %s85, 1
      %p391 = por %p389, %p390
      %p392 = scmp.ne.s32.totalorder %s383, %s384
      %p393 = scmp.eq.s32.totalorder %s85, 0
      %p394 = por %p392, %p393
      %p395 = scmp.ne.s32.totalorder %s383, %s384
      %p396 = scmp.eq.s32.totalorder %s86, 1
      %p397 = por %p395, %p396
      %p399 = scmp.ne.s32.totalorder %s384, %s398
      %p400 = scmp.eq.s32.totalorder %s86, 0
      %p401 = por %p399, %p400
      %s403 = sadd.s32 %s402, 1
      %p406 = scmp.eq.s32.totalorder %s80, 1
      %p407 = scmp.ne.s32.totalorder %s402, %s404
      %p408 = scmp.eq.s32.totalorder %s80, 0
      %p409 = por %p407, %p408
      %p410 = scmp.ne.s32.totalorder %s402, %s404
      %p411 = scmp.eq.s32.totalorder %s85, 1
      %p412 = por %p410, %p411
      %p413 = scmp.ne.s32.totalorder %s404, %s405
      %p414 = scmp.eq.s32.totalorder %s85, 0
      %p415 = por %p413, %p414
      %p416 = scmp.ne.s32.totalorder %s404, %s405
      %p417 = scmp.eq.s32.totalorder %s86, 1
      %p418 = por %p416, %p417
      %p420 = scmp.ne.s32.totalorder %s405, %s419
      %p421 = scmp.eq.s32.totalorder %s86, 0
      %p422 = por %p420, %p421
      %s424 = sadd.s32 %s423, 1
      %p427 = scmp.eq.s32.totalorder %s80, 1
      %p428 = scmp.ne.s32.totalorder %s423, %s425
      %p429 = scmp.eq.s32.totalorder %s80, 0
      %p430 = por %p428, %p429
      %p431 = scmp.ne.s32.totalorder %s423, %s425
      %p432 = scmp.eq.s32.totalorder %s85, 1
      %p433 = por %p431, %p432
      %p434 = scmp.ne.s32.totalorder %s425, %s426
      %p435 = scmp.eq.s32.totalorder %s85, 0
      %p436 = por %p434, %p435
      %p437 = scmp.ne.s32.totalorder %s425, %s426
      %p438 = scmp.eq.s32.totalorder %s86, 1
      %p439 = por %p437, %p438
      %p441 = scmp.ne.s32.totalorder %s426, %s440
      %p442 = scmp.eq.s32.totalorder %s86, 0
      %p443 = por %p441, %p442
      %s445 = sadd.s32 %s444, 1
      %p448 = scmp.eq.s32.totalorder %s80, 1
      %p449 = scmp.ne.s32.totalorder %s444, %s446
      %p450 = scmp.eq.s32.totalorder %s80, 0
      %p451 = por %p449, %p450
      %p452 = scmp.ne.s32.totalorder %s444, %s446
      %p453 = scmp.eq.s32.totalorder %s85, 1
      %p454 = por %p452, %p453
      %p455 = scmp.ne.s32.totalorder %s446, %s447
      %p456 = scmp.eq.s32.totalorder %s85, 0
      %p457 = por %p455, %p456
      %p458 = scmp.ne.s32.totalorder %s446, %s447
      %p459 = scmp.eq.s32.totalorder %s86, 1
      %p460 = por %p458, %p459
      %p462 = scmp.ne.s32.totalorder %s447, %s461
      %p463 = scmp.eq.s32.totalorder %s86, 0
      %p464 = por %p462, %p463
      %s466 = sadd.s32 %s465, 1
      %p469 = scmp.eq.s32.totalorder %s80, 1
      %p470 = scmp.ne.s32.totalorder %s465, %s467
      %p471 = scmp.eq.s32.totalorder %s80, 0
      %p472 = por %p470, %p471
      %p473 = scmp.ne.s32.totalorder %s465, %s467
      %p474 = scmp.eq.s32.totalorder %s85, 1
      %p475 = por %p473, %p474
      %p476 = scmp.ne.s32.totalorder %s467, %s468
      %p477 = scmp.eq.s32.totalorder %s85, 0
      %p478 = por %p476, %p477
      %p479 = scmp.ne.s32.totalorder %s467, %s468
      %p480 = scmp.eq.s32.totalorder %s86, 1
      %p481 = por %p479, %p480
      %p483 = scmp.ne.s32.totalorder %s468, %s482
      %p484 = scmp.eq.s32.totalorder %s86, 0
      %p485 = por %p483, %p484
      %s487 = sadd.s32 %s486, 1
      %p490 = scmp.eq.s32.totalorder %s80, 1
      %p491 = scmp.ne.s32.totalorder %s486, %s488
      %p492 = scmp.eq.s32.totalorder %s80, 0
      %p493 = por %p491, %p492
      %p494 = scmp.ne.s32.totalorder %s486, %s488
      %p495 = scmp.eq.s32.totalorder %s85, 1
      %p496 = por %p494, %p495
      %p497 = scmp.ne.s32.totalorder %s488, %s489
      %p498 = scmp.eq.s32.totalorder %s85, 0
      %p499 = por %p497, %p498
      %p500 = scmp.ne.s32.totalorder %s488, %s489
      %p501 = scmp.eq.s32.totalorder %s86, 1
      %p502 = por %p500, %p501
      %p504 = scmp.ne.s32.totalorder %s489, %s503
      %p505 = scmp.eq.s32.totalorder %s86, 0
      %p506 = por %p504, %p505
      %s508 = sadd.s32 %s507, 1
      %p511 = scmp.eq.s32.totalorder %s80, 1
      %p512 = scmp.ne.s32.totalorder %s507, %s509
      %p513 = scmp.eq.s32.totalorder %s80, 0
      %p514 = por %p512, %p513
      %p515 = scmp.ne.s32.totalorder %s507, %s509
      %p516 = scmp.eq.s32.totalorder %s85, 1
      %p517 = por %p515, %p516
      %p518 = scmp.ne.s32.totalorder %s509, %s510
      %p519 = scmp.eq.s32.totalorder %s85, 0
      %p520 = por %p518, %p519
      %p521 = scmp.ne.s32.totalorder %s509, %s510
      %p522 = scmp.eq.s32.totalorder %s86, 1
      %p523 = por %p521, %p522
      %p525 = scmp.ne.s32.totalorder %s510, %s524
      %p526 = scmp.eq.s32.totalorder %s86, 0
      %p527 = por %p525, %p526
      %s529 = sadd.s32 %s528, 1
      %p532 = scmp.eq.s32.totalorder %s80, 1
      %p533 = scmp.ne.s32.totalorder %s528, %s530
      %p534 = scmp.eq.s32.totalorder %s80, 0
      %p535 = por %p533, %p534
      %p536 = scmp.ne.s32.totalorder %s528, %s530
      %p537 = scmp.eq.s32.totalorder %s85, 1
      %p538 = por %p536, %p537
      %p539 = scmp.ne.s32.totalorder %s530, %s531
      %p540 = scmp.eq.s32.totalorder %s85, 0
      %p541 = por %p539, %p540
      %p542 = scmp.ne.s32.totalorder %s530, %s531
      %p543 = scmp.eq.s32.totalorder %s86, 1
      %p544 = por %p542, %p543
      %p546 = scmp.ne.s32.totalorder %s531, %s545
      %p547 = scmp.eq.s32.totalorder %s86, 0
      %p548 = por %p546, %p547
      %s550 = sadd.s32 %s549, 1
      %p553 = scmp.eq.s32.totalorder %s80, 1
      %p554 = scmp.ne.s32.totalorder %s549, %s551
      %p555 = scmp.eq.s32.totalorder %s80, 0
      %p556 = por %p554, %p555
      %p557 = scmp.ne.s32.totalorder %s549, %s551
      %p558 = scmp.eq.s32.totalorder %s85, 1
      %p559 = por %p557, %p558
      %p560 = scmp.ne.s32.totalorder %s551, %s552
      %p561 = scmp.eq.s32.totalorder %s85, 0
      %p562 = por %p560, %p561
      %p563 = scmp.ne.s32.totalorder %s551, %s552
      %p564 = scmp.eq.s32.totalorder %s86, 1
      %p565 = por %p563, %p564
      %p567 = scmp.ne.s32.totalorder %s552, %s566
      %p568 = scmp.eq.s32.totalorder %s86, 0
      %p569 = por %p567, %p568
      %s571 = sadd.s32 %s570, 1
      %p574 = scmp.eq.s32.totalorder %s80, 1
      %p575 = scmp.ne.s32.totalorder %s570, %s572
      %p576 = scmp.eq.s32.totalorder %s80, 0
      %p577 = por %p575, %p576
      %p578 = scmp.ne.s32.totalorder %s570, %s572
      %p579 = scmp.eq.s32.totalorder %s85, 1
      %p580 = por %p578, %p579
      %p581 = scmp.ne.s32.totalorder %s572, %s573
      %p582 = scmp.eq.s32.totalorder %s85, 0
      %p583 = por %p581, %p582
      %p584 = scmp.ne.s32.totalorder %s572, %s573
      %p585 = scmp.eq.s32.totalorder %s86, 1
      %p586 = por %p584, %p585
      %p588 = scmp.ne.s32.totalorder %s573, %s587
      %p589 = scmp.eq.s32.totalorder %s86, 0
      %p590 = por %p588, %p589
      %s592 = sadd.s32 %s591, 1
      %p595 = scmp.eq.s32.totalorder %s80, 1
      %p596 = scmp.ne.s32.totalorder %s591, %s593
      %p597 = scmp.eq.s32.totalorder %s80, 0
      %p598 = por %p596, %p597
      %p599 = scmp.ne.s32.totalorder %s591, %s593
      %p600 = scmp.eq.s32.totalorder %s85, 1
      %p601 = por %p599, %p600
      %p602 = scmp.ne.s32.totalorder %s593, %s594
      %p603 = scmp.eq.s32.totalorder %s85, 0
      %p604 = por %p602, %p603
      %p605 = scmp.ne.s32.totalorder %s593, %s594
      %p606 = scmp.eq.s32.totalorder %s86, 1
      %p607 = por %p605, %p606
      %p609 = scmp.ne.s32.totalorder %s594, %s608
      %p610 = scmp.eq.s32.totalorder %s86, 0
      %p611 = por %p609, %p610
      %s613 = sadd.s32 %s612, 1
      %p616 = scmp.eq.s32.totalorder %s80, 1
      %p617 = scmp.ne.s32.totalorder %s612, %s614
      %p618 = scmp.eq.s32.totalorder %s80, 0
      %p619 = por %p617, %p618
      %p620 = scmp.ne.s32.totalorder %s612, %s614
      %p621 = scmp.eq.s32.totalorder %s85, 1
      %p622 = por %p620, %p621
      %p623 = scmp.ne.s32.totalorder %s614, %s615
      %p624 = scmp.eq.s32.totalorder %s85, 0
      %p625 = por %p623, %p624
      %p626 = scmp.ne.s32.totalorder %s614, %s615
      %p627 = scmp.eq.s32.totalorder %s86, 1
      %p628 = por %p626, %p627
      %p630 = scmp.ne.s32.totalorder %s615, %s629
      %p631 = scmp.eq.s32.totalorder %s86, 0
      %p632 = por %p630, %p631
      %s634 = sadd.s32 %s633, 1
      %p637 = scmp.eq.s32.totalorder %s80, 1
      %p638 = scmp.ne.s32.totalorder %s633, %s635
      %p639 = scmp.eq.s32.totalorder %s80, 0
      %p640 = por %p638, %p639
      %p641 = scmp.ne.s32.totalorder %s633, %s635
      %p642 = scmp.eq.s32.totalorder %s85, 1
      %p643 = por %p641, %p642
      %p644 = scmp.ne.s32.totalorder %s635, %s636
      %p645 = scmp.eq.s32.totalorder %s85, 0
      %p646 = por %p644, %p645
      %p647 = scmp.ne.s32.totalorder %s635, %s636
      %p648 = scmp.eq.s32.totalorder %s86, 1
      %p649 = por %p647, %p648
      %p651 = scmp.ne.s32.totalorder %s636, %s650
      %p652 = scmp.eq.s32.totalorder %s86, 0
      %p653 = por %p651, %p652
      %s655 = sadd.s32 %s654, 1
      %p658 = scmp.eq.s32.totalorder %s80, 1
      %p659 = scmp.ne.s32.totalorder %s654, %s656
      %p660 = scmp.eq.s32.totalorder %s80, 0
      %p661 = por %p659, %p660
      %p662 = scmp.ne.s32.totalorder %s654, %s656
      %p663 = scmp.eq.s32.totalorder %s85, 1
      %p664 = por %p662, %p663
      %p665 = scmp.ne.s32.totalorder %s656, %s657
      %p666 = scmp.eq.s32.totalorder %s85, 0
      %p667 = por %p665, %p666
      %p668 = scmp.ne.s32.totalorder %s656, %s657
      %p669 = scmp.eq.s32.totalorder %s86, 1
      %p670 = por %p668, %p669
      %p672 = scmp.ne.s32.totalorder %s657, %s671
      %p673 = scmp.eq.s32.totalorder %s86, 0
      %p674 = por %p672, %p673
      %s676 = sadd.s32 %s675, 1
      %p679 = scmp.eq.s32.totalorder %s80, 1
      %p680 = scmp.ne.s32.totalorder %s675, %s677
      %p681 = scmp.eq.s32.totalorder %s80, 0
      %p682 = por %p680, %p681
      %p683 = scmp.ne.s32.totalorder %s675, %s677
      %p684 = scmp.eq.s32.totalorder %s85, 1
      %p685 = por %p683, %p684
      %p686 = scmp.ne.s32.totalorder %s677, %s678
      %p687 = scmp.eq.s32.totalorder %s85, 0
      %p688 = por %p686, %p687
      %p689 = scmp.ne.s32.totalorder %s677, %s678
      %p690 = scmp.eq.s32.totalorder %s86, 1
      %p691 = por %p689, %p690
      %p693 = scmp.ne.s32.totalorder %s678, %s692
      %p694 = scmp.eq.s32.totalorder %s86, 0
      %p695 = por %p693, %p694
      %s697 = sadd.s32 %s696, 1
      %p700 = scmp.eq.s32.totalorder %s80, 1
      %p701 = scmp.ne.s32.totalorder %s696, %s698
      %p702 = scmp.eq.s32.totalorder %s80, 0
      %p703 = por %p701, %p702
      %p704 = scmp.ne.s32.totalorder %s696, %s698
      %p705 = scmp.eq.s32.totalorder %s85, 1
      %p706 = por %p704, %p705
      %p707 = scmp.ne.s32.totalorder %s698, %s699
      %p708 = scmp.eq.s32.totalorder %s85, 0
      %p709 = por %p707, %p708
      %p710 = scmp.ne.s32.totalorder %s698, %s699
      %p711 = scmp.eq.s32.totalorder %s86, 1
      %p712 = por %p710, %p711
      %p714 = scmp.ne.s32.totalorder %s699, %s713
      %p715 = scmp.eq.s32.totalorder %s86, 0
      %p716 = por %p714, %p715
      %s718 = sadd.s32 %s717, 1
      %p721 = scmp.eq.s32.totalorder %s80, 1
      %p722 = scmp.ne.s32.totalorder %s717, %s719
      %p723 = scmp.eq.s32.totalorder %s80, 0
      %p724 = por %p722, %p723
      %p725 = scmp.ne.s32.totalorder %s717, %s719
      %p726 = scmp.eq.s32.totalorder %s85, 1
      %p727 = por %p725, %p726
      %p728 = scmp.ne.s32.totalorder %s719, %s720
      %p729 = scmp.eq.s32.totalorder %s85, 0
      %p730 = por %p728, %p729
      %p731 = scmp.ne.s32.totalorder %s719, %s720
      %p732 = scmp.eq.s32.totalorder %s86, 1
      %p733 = por %p731, %p732
      %p735 = scmp.ne.s32.totalorder %s720, %s734
      %p736 = scmp.eq.s32.totalorder %s86, 0
      %p737 = por %p735, %p736
      %s739 = sadd.s32 %s738, 1
      %p742 = scmp.eq.s32.totalorder %s80, 1
      %p743 = scmp.ne.s32.totalorder %s738, %s740
      %p744 = scmp.eq.s32.totalorder %s80, 0
      %p745 = por %p743, %p744
      %p746 = scmp.ne.s32.totalorder %s738, %s740
      %p747 = scmp.eq.s32.totalorder %s85, 1
      %p748 = por %p746, %p747
      %p749 = scmp.ne.s32.totalorder %s740, %s741
      %p750 = scmp.eq.s32.totalorder %s85, 0
      %p751 = por %p749, %p750
      %p752 = scmp.ne.s32.totalorder %s740, %s741
      %p753 = scmp.eq.s32.totalorder %s86, 1
      %p754 = por %p752, %p753
      %p756 = scmp.ne.s32.totalorder %s741, %s755
      %p757 = scmp.eq.s32.totalorder %s86, 0
      %p758 = por %p756, %p757
      %s760 = sadd.s32 %s759, 1
      %p763 = scmp.eq.s32.totalorder %s80, 1
      %p764 = scmp.ne.s32.totalorder %s759, %s761
      %p765 = scmp.eq.s32.totalorder %s80, 0
      %p766 = por %p764, %p765
      %p767 = scmp.ne.s32.totalorder %s759, %s761
      %p768 = scmp.eq.s32.totalorder %s85, 1
      %p769 = por %p767, %p768
      %p770 = scmp.ne.s32.totalorder %s761, %s762
      %p771 = scmp.eq.s32.totalorder %s85, 0
      %p772 = por %p770, %p771
      %p773 = scmp.ne.s32.totalorder %s761, %s762
      %p774 = scmp.eq.s32.totalorder %s86, 1
      %p775 = por %p773, %p774
      %p777 = scmp.ne.s32.totalorder %s762, %s776
      %p778 = scmp.eq.s32.totalorder %s86, 0
      %p779 = por %p777, %p778
      %s781 = sadd.s32 %s780, 1
      %p784 = scmp.eq.s32.totalorder %s80, 1
      %p785 = scmp.ne.s32.totalorder %s780, %s782
      %p786 = scmp.eq.s32.totalorder %s80, 0
      %p787 = por %p785, %p786
      %p788 = scmp.ne.s32.totalorder %s780, %s782
      %p789 = scmp.eq.s32.totalorder %s85, 1
      %p790 = por %p788, %p789
      %p791 = scmp.ne.s32.totalorder %s782, %s783
      %p792 = scmp.eq.s32.totalorder %s85, 0
      %p793 = por %p791, %p792
      %p794 = scmp.ne.s32.totalorder %s782, %s783
      %p795 = scmp.eq.s32.totalorder %s86, 1
      %p796 = por %p794, %p795
      %p798 = scmp.ne.s32.totalorder %s783, %s797
      %p799 = scmp.eq.s32.totalorder %s86, 0
      %p800 = por %p798, %p799
      %s802 = sadd.s32 %s801, 1
      %p805 = scmp.eq.s32.totalorder %s80, 1
      %p806 = scmp.ne.s32.totalorder %s801, %s803
      %p807 = scmp.eq.s32.totalorder %s80, 0
      %p808 = por %p806, %p807
      %p809 = scmp.ne.s32.totalorder %s801, %s803
      %p810 = scmp.eq.s32.totalorder %s85, 1
      %p811 = por %p809, %p810
      %p812 = scmp.ne.s32.totalorder %s803, %s804
      %p813 = scmp.eq.s32.totalorder %s85, 0
      %p814 = por %p812, %p813
      %p815 = scmp.ne.s32.totalorder %s803, %s804
      %p816 = scmp.eq.s32.totalorder %s86, 1
      %p817 = por %p815, %p816
      %p819 = scmp.ne.s32.totalorder %s804, %s818
      %p820 = scmp.eq.s32.totalorder %s86, 0
      %p821 = por %p819, %p820
      %s823 = sadd.s32 %s822, 1
      %p826 = scmp.eq.s32.totalorder %s80, 1
      %p827 = scmp.ne.s32.totalorder %s822, %s824
      %p828 = scmp.eq.s32.totalorder %s80, 0
      %p829 = por %p827, %p828
      %p830 = scmp.ne.s32.totalorder %s822, %s824
      %p831 = scmp.eq.s32.totalorder %s85, 1
      %p832 = por %p830, %p831
      %p833 = scmp.ne.s32.totalorder %s824, %s825
      %p834 = scmp.eq.s32.totalorder %s85, 0
      %p835 = por %p833, %p834
      %p836 = scmp.ne.s32.totalorder %s824, %s825
      %p837 = scmp.eq.s32.totalorder %s86, 1
      %p838 = por %p836, %p837
      %p840 = scmp.ne.s32.totalorder %s825, %s839
      %p841 = scmp.eq.s32.totalorder %s86, 0
      %p842 = por %p840, %p841
      %s843 = ssub.s32 %s80, %s87
      %p844 = scmp.eq.s32.totalorder %s843, 0
      %s846 = sadd.s32 %s845, 1
      %s847 = scalar_select %p844, %s845, %s846
      %p850 = pneg %p844
      %p851 = scmp.eq.s32.totalorder %s80, 1
      %p852 = por %p850, %p851
      %p853 = scmp.ne.s32.totalorder %s845, %s848
      %p854 = scmp.eq.s32.totalorder %s80, 0
      %p855 = por %p853, %p854
      %p856 = scmp.ne.s32.totalorder %s845, %s848
      %p857 = scmp.eq.s32.totalorder %s85, 1
      %p858 = por %p856, %p857
      %p859 = scmp.ne.s32.totalorder %s848, %s849
      %p860 = scmp.eq.s32.totalorder %s85, 0
      %p861 = por %p859, %p860
      %p862 = scmp.ne.s32.totalorder %s848, %s849
      %p863 = scmp.eq.s32.totalorder %s86, 1
      %p864 = por %p862, %p863
      %p866 = scmp.ne.s32.totalorder %s849, %s865
      %p867 = scmp.eq.s32.totalorder %s86, 0
      %p868 = por %p866, %p867
      %p869 = scmp.le.s32.totalorder 1, %s80
      %p870 = scmp.lt.s32.totalorder %s80, 3
      %p871 = pnand %p869, %p870
      %p872 = pneg %p871
      // Predicated region
      $region9: #{tpu_custom_call.1} parent=5 // pred_check
        _
      $region10: #{tpu_custom_call.1} parent=5 // pred_check_branch
        %874 = sbr.rel (%p871) target = $region12
      $region11: #{tpu_custom_call.1} parent=5 // pred_region
        %s875 = ssub.s32 %s80, 1
        // Predicated region
        $region13: #{tpu_custom_call.1} parent=11 // pred_check
          %p876 = pneg %p205
        $region14: #{tpu_custom_call.1} parent=11 // pred_check_branch
          %878 = sbr.rel (%p876) target = $region16
        $region15: #{tpu_custom_call.1} parent=11 // pred_region
          _
        $region16: #{tpu_custom_call.1} parent=11 // pred_fallthru
          _
        // Predicated region
        $region17: #{tpu_custom_call.1} parent=11 // pred_check
          %p879 = pneg %p226
        $region18: #{tpu_custom_call.1} parent=11 // pred_check_branch
          %881 = sbr.rel (%p879) target = $region20
        $region19: #{tpu_custom_call.1} parent=11 // pred_region
          _
        $region20: #{tpu_custom_call.1} parent=11 // pred_fallthru
          _
        // Predicated region
        $region21: #{tpu_custom_call.1} parent=11 // pred_check
          %p882 = pneg %p247
        $region22: #{tpu_custom_call.1} parent=11 // pred_check_branch
          %884 = sbr.rel (%p882) target = $region24
        $region23: #{tpu_custom_call.1} parent=11 // pred_region
          _
        $region24: #{tpu_custom_call.1} parent=11 // pred_fallthru
          _
        // Predicated region
        $region25: #{tpu_custom_call.1} parent=11 // pred_check
          %p885 = pneg %p268
        $region26: #{tpu_custom_call.1} parent=11 // pred_check_branch
          %887 = sbr.rel (%p885) target = $region28
        $region27: #{tpu_custom_call.1} parent=11 // pred_region
          _
        $region28: #{tpu_custom_call.1} parent=11 // pred_fallthru
          _
        // Predicated region
        $region29: #{tpu_custom_call.1} parent=11 // pred_check
          %p888 = pneg %p289
        $region30: #{tpu_custom_call.1} parent=11 // pred_check_branch
          %890 = sbr.rel (%p888) target = $region32
        $region31: #{tpu_custom_call.1} parent=11 // pred_region
          _
        $region32: #{tpu_custom_call.1} parent=11 // pred_fallthru
          _
        // Predicated region
        $region33: #{tpu_custom_call.1} parent=11 // pred_check
          %p891 = pneg %p310
        $region34: #{tpu_custom_call.1} parent=11 // pred_check_branch
          %893 = sbr.rel (%p891) target = $region36
        $region35: #{tpu_custom_call.1} parent=11 // pred_region
          _
        $region36: #{tpu_custom_call.1} parent=11 // pred_fallthru
          _
        // Predicated region
        $region37: #{tpu_custom_call.1} parent=11 // pred_check
          %p894 = pneg %p331
        $region38: #{tpu_custom_call.1} parent=11 // pred_check_branch
          %896 = sbr.rel (%p894) target = $region40
        $region39: #{tpu_custom_call.1} parent=11 // pred_region
          _
        $region40: #{tpu_custom_call.1} parent=11 // pred_fallthru
          _
        // Predicated region
        $region41: #{tpu_custom_call.1} parent=11 // pred_check
          %p897 = pneg %p352
        $region42: #{tpu_custom_call.1} parent=11 // pred_check_branch
          %899 = sbr.rel (%p897) target = $region44
        $region43: #{tpu_custom_call.1} parent=11 // pred_region
          _
        $region44: #{tpu_custom_call.1} parent=11 // pred_fallthru
          _
        // Predicated region
        $region45: #{tpu_custom_call.1} parent=11 // pred_check
          %p900 = pneg %p373
        $region46: #{tpu_custom_call.1} parent=11 // pred_check_branch
          %902 = sbr.rel (%p900) target = $region48
        $region47: #{tpu_custom_call.1} parent=11 // pred_region
          _
        $region48: #{tpu_custom_call.1} parent=11 // pred_fallthru
          _
        // Predicated region
        $region49: #{tpu_custom_call.1} parent=11 // pred_check
          %p903 = pneg %p394
        $region50: #{tpu_custom_call.1} parent=11 // pred_check_branch
          %905 = sbr.rel (%p903) target = $region52
        $region51: #{tpu_custom_call.1} parent=11 // pred_region
          _
        $region52: #{tpu_custom_call.1} parent=11 // pred_fallthru
          _
        // Predicated region
        $region53: #{tpu_custom_call.1} parent=11 // pred_check
          %p906 = pneg %p415
        $region54: #{tpu_custom_call.1} parent=11 // pred_check_branch
          %908 = sbr.rel (%p906) target = $region56
        $region55: #{tpu_custom_call.1} parent=11 // pred_region
          _
        $region56: #{tpu_custom_call.1} parent=11 // pred_fallthru
          _
        // Predicated region
        $region57: #{tpu_custom_call.1} parent=11 // pred_check
          %p909 = pneg %p436
        $region58: #{tpu_custom_call.1} parent=11 // pred_check_branch
          %911 = sbr.rel (%p909) target = $region60
        $region59: #{tpu_custom_call.1} parent=11 // pred_region
          _
        $region60: #{tpu_custom_call.1} parent=11 // pred_fallthru
          _
        // Predicated region
        $region61: #{tpu_custom_call.1} parent=11 // pred_check
          %p912 = pneg %p457
        $region62: #{tpu_custom_call.1} parent=11 // pred_check_branch
          %914 = sbr.rel (%p912) target = $region64
        $region63: #{tpu_custom_call.1} parent=11 // pred_region
          _
        $region64: #{tpu_custom_call.1} parent=11 // pred_fallthru
          _
        // Predicated region
        $region65: #{tpu_custom_call.1} parent=11 // pred_check
          %p915 = pneg %p478
        $region66: #{tpu_custom_call.1} parent=11 // pred_check_branch
          %917 = sbr.rel (%p915) target = $region68
        $region67: #{tpu_custom_call.1} parent=11 // pred_region
          _
        $region68: #{tpu_custom_call.1} parent=11 // pred_fallthru
          _
        // Predicated region
        $region69: #{tpu_custom_call.1} parent=11 // pred_check
          %p918 = pneg %p499
        $region70: #{tpu_custom_call.1} parent=11 // pred_check_branch
          %920 = sbr.rel (%p918) target = $region72
        $region71: #{tpu_custom_call.1} parent=11 // pred_region
          _
        $region72: #{tpu_custom_call.1} parent=11 // pred_fallthru
          _
        // Predicated region
        $region73: #{tpu_custom_call.1} parent=11 // pred_check
          %p921 = pneg %p520
        $region74: #{tpu_custom_call.1} parent=11 // pred_check_branch
          %923 = sbr.rel (%p921) target = $region76
        $region75: #{tpu_custom_call.1} parent=11 // pred_region
          _
        $region76: #{tpu_custom_call.1} parent=11 // pred_fallthru
          _
        // Predicated region
        $region77: #{tpu_custom_call.1} parent=11 // pred_check
          %p924 = pneg %p541
        $region78: #{tpu_custom_call.1} parent=11 // pred_check_branch
          %926 = sbr.rel (%p924) target = $region80
        $region79: #{tpu_custom_call.1} parent=11 // pred_region
          _
        $region80: #{tpu_custom_call.1} parent=11 // pred_fallthru
          _
        // Predicated region
        $region81: #{tpu_custom_call.1} parent=11 // pred_check
          %p927 = pneg %p562
        $region82: #{tpu_custom_call.1} parent=11 // pred_check_branch
          %929 = sbr.rel (%p927) target = $region84
        $region83: #{tpu_custom_call.1} parent=11 // pred_region
          _
        $region84: #{tpu_custom_call.1} parent=11 // pred_fallthru
          _
        // Predicated region
        $region85: #{tpu_custom_call.1} parent=11 // pred_check
          %p930 = pneg %p583
        $region86: #{tpu_custom_call.1} parent=11 // pred_check_branch
          %932 = sbr.rel (%p930) target = $region88
        $region87: #{tpu_custom_call.1} parent=11 // pred_region
          _
        $region88: #{tpu_custom_call.1} parent=11 // pred_fallthru
          _
        // Predicated region
        $region89: #{tpu_custom_call.1} parent=11 // pred_check
          %p933 = pneg %p604
        $region90: #{tpu_custom_call.1} parent=11 // pred_check_branch
          %935 = sbr.rel (%p933) target = $region92
        $region91: #{tpu_custom_call.1} parent=11 // pred_region
          _
        $region92: #{tpu_custom_call.1} parent=11 // pred_fallthru
          _
        // Predicated region
        $region93: #{tpu_custom_call.1} parent=11 // pred_check
          %p936 = pneg %p625
        $region94: #{tpu_custom_call.1} parent=11 // pred_check_branch
          %938 = sbr.rel (%p936) target = $region96
        $region95: #{tpu_custom_call.1} parent=11 // pred_region
          _
        $region96: #{tpu_custom_call.1} parent=11 // pred_fallthru
          _
        // Predicated region
        $region97: #{tpu_custom_call.1} parent=11 // pred_check
          %p939 = pneg %p646
        $region98: #{tpu_custom_call.1} parent=11 // pred_check_branch
          %941 = sbr.rel (%p939) target = $region100
        $region99: #{tpu_custom_call.1} parent=11 // pred_region
          _
        $region100: #{tpu_custom_call.1} parent=11 // pred_fallthru
          _
        // Predicated region
        $region101: #{tpu_custom_call.1} parent=11 // pred_check
          %p942 = pneg %p667
        $region102: #{tpu_custom_call.1} parent=11 // pred_check_branch
          %944 = sbr.rel (%p942) target = $region104
        $region103: #{tpu_custom_call.1} parent=11 // pred_region
          _
        $region104: #{tpu_custom_call.1} parent=11 // pred_fallthru
          _
        // Predicated region
        $region105: #{tpu_custom_call.1} parent=11 // pred_check
          %p945 = pneg %p688
        $region106: #{tpu_custom_call.1} parent=11 // pred_check_branch
          %947 = sbr.rel (%p945) target = $region108
        $region107: #{tpu_custom_call.1} parent=11 // pred_region
          _
        $region108: #{tpu_custom_call.1} parent=11 // pred_fallthru
          _
        // Predicated region
        $region109: #{tpu_custom_call.1} parent=11 // pred_check
          %p948 = pneg %p709
        $region110: #{tpu_custom_call.1} parent=11 // pred_check_branch
          %950 = sbr.rel (%p948) target = $region112
        $region111: #{tpu_custom_call.1} parent=11 // pred_region
          _
        $region112: #{tpu_custom_call.1} parent=11 // pred_fallthru
          _
        // Predicated region
        $region113: #{tpu_custom_call.1} parent=11 // pred_check
          %p951 = pneg %p730
        $region114: #{tpu_custom_call.1} parent=11 // pred_check_branch
          %953 = sbr.rel (%p951) target = $region116
        $region115: #{tpu_custom_call.1} parent=11 // pred_region
          _
        $region116: #{tpu_custom_call.1} parent=11 // pred_fallthru
          _
        // Predicated region
        $region117: #{tpu_custom_call.1} parent=11 // pred_check
          %p954 = pneg %p751
        $region118: #{tpu_custom_call.1} parent=11 // pred_check_branch
          %956 = sbr.rel (%p954) target = $region120
        $region119: #{tpu_custom_call.1} parent=11 // pred_region
          _
        $region120: #{tpu_custom_call.1} parent=11 // pred_fallthru
          _
        // Predicated region
        $region121: #{tpu_custom_call.1} parent=11 // pred_check
          %p957 = pneg %p772
        $region122: #{tpu_custom_call.1} parent=11 // pred_check_branch
          %959 = sbr.rel (%p957) target = $region124
        $region123: #{tpu_custom_call.1} parent=11 // pred_region
          _
        $region124: #{tpu_custom_call.1} parent=11 // pred_fallthru
          _
        // Predicated region
        $region125: #{tpu_custom_call.1} parent=11 // pred_check
          %p960 = pneg %p793
        $region126: #{tpu_custom_call.1} parent=11 // pred_check_branch
          %962 = sbr.rel (%p960) target = $region128
        $region127: #{tpu_custom_call.1} parent=11 // pred_region
          _
        $region128: #{tpu_custom_call.1} parent=11 // pred_fallthru
          _
        // Predicated region
        $region129: #{tpu_custom_call.1} parent=11 // pred_check
          %p963 = pneg %p814
        $region130: #{tpu_custom_call.1} parent=11 // pred_check_branch
          %965 = sbr.rel (%p963) target = $region132
        $region131: #{tpu_custom_call.1} parent=11 // pred_region
          _
        $region132: #{tpu_custom_call.1} parent=11 // pred_fallthru
          _
        // Predicated region
        $region133: #{tpu_custom_call.1} parent=11 // pred_check
          %p966 = pneg %p835
        $region134: #{tpu_custom_call.1} parent=11 // pred_check_branch
          %968 = sbr.rel (%p966) target = $region136
        $region135: #{tpu_custom_call.1} parent=11 // pred_region
          _
        $region136: #{tpu_custom_call.1} parent=11 // pred_fallthru
          _
      $region12: #{tpu_custom_call.1} parent=5 // pred_fallthru
        _
      %p969 = scmp.lt.s32.totalorder %s80, 2
      // Predicated region
      $region137: #{tpu_custom_call.1} parent=5 // pred_check
        %p970 = pneg %p969
      $region138: #{tpu_custom_call.1} parent=5 // pred_check_branch
        %972 = sbr.rel (%p970) target = $region140
      $region139: #{tpu_custom_call.1} parent=5 // pred_region
        // Predicated region
        $region141: #{tpu_custom_call.1} parent=139 // pred_check
          %p973 = pneg %p100
        $region142: #{tpu_custom_call.1} parent=139 // pred_check_branch
          %975 = sbr.rel (%p973) target = $region144
        $region143: #{tpu_custom_call.1} parent=139 // pred_region
          %s976 = smul.u32 2, %s80
          %p977 = scmp.lt.s32.totalorder %s976, 3
          %s978 = scalar_select %p977, %s976, 3
          %s979 = smul.addr %s978, 8
          %s980 = scalar_lea.vmem %s1, %s979
          %s981 = smul.u32 2, %s80
        $region144: #{tpu_custom_call.1} parent=139 // pred_fallthru
          _
        // Predicated region
        $region145: #{tpu_custom_call.1} parent=139 // pred_check
          %p982 = pneg %p126
        $region146: #{tpu_custom_call.1} parent=139 // pred_check_branch
          %984 = sbr.rel (%p982) target = $region148
        $region147: #{tpu_custom_call.1} parent=139 // pred_region
          %s985 = smul.u32 2, %s80
          %p986 = scmp.lt.s32.totalorder %s985, 3
          %s987 = scalar_select %p986, %s985, 3
          %s988 = smul.addr %s987, 8
          %s989 = scalar_lea.vmem %s3, %s988
          %s990 = smul.u32 2, %s80
        $region148: #{tpu_custom_call.1} parent=139 // pred_fallthru
          _
        // Predicated region
        $region149: #{tpu_custom_call.1} parent=139 // pred_check
          %p991 = pneg %p152
        $region150: #{tpu_custom_call.1} parent=139 // pred_check_branch
          %993 = sbr.rel (%p991) target = $region152
        $region151: #{tpu_custom_call.1} parent=139 // pred_region
          %s994 = smul.u32 2, %s80
          %p995 = scmp.lt.s32.totalorder %s994, 3
          %s996 = scalar_select %p995, %s994, 3
          %s997 = scalar_lea.vmem %s5, %s996
          %s998 = smul.u32 2, %s80
        $region152: #{tpu_custom_call.1} parent=139 // pred_fallthru
          _
        // Predicated region
        $region153: #{tpu_custom_call.1} parent=139 // pred_check
          %p999 = pneg %p178
        $region154: #{tpu_custom_call.1} parent=139 // pred_check_branch
          %1001 = sbr.rel (%p999) target = $region156
        $region155: #{tpu_custom_call.1} parent=139 // pred_region
          %s1002 = smul.u32 2, %s80
          %p1003 = scmp.lt.s32.totalorder %s1002, 3
          %s1004 = scalar_select %p1003, %s1002, 3
          %s1005 = smul.addr %s1004, 8
          %s1006 = scalar_lea.vmem %s7, %s1005
          %s1007 = smul.u32 2, %s80
        $region156: #{tpu_custom_call.1} parent=139 // pred_fallthru
          _
      $region140: #{tpu_custom_call.1} parent=5 // pred_fallthru
        _
      %p1008 = scmp.le.s32.totalorder 1, %s80
      %p1009 = scmp.lt.s32.totalorder %s80, 3
      %p1010 = pnand %p1008, %p1009
      %p1011 = pneg %p1010
      // Predicated region
      $region157: #{tpu_custom_call.1} parent=5 // pred_check
        _
      $region158: #{tpu_custom_call.1} parent=5 // pred_check_branch
        %1013 = sbr.rel (%p1010) target = $region160
      $region159: #{tpu_custom_call.1} parent=5 // pred_region
        %s1014 = ssub.s32 %s80, 1
        %s1015 = smul.u32 2, %s85
        %p1016 = scmp.lt.s32.totalorder %s1015, 3
        %s1017 = scalar_select %p1016, %s1015, 3
        %s1018 = smul.addr %s1017, 8
        %s1019 = scalar_lea.vmem %s1, %s1018
        %p1020 = pneg %p106
        %p1021 = pneg %p103
        %s1022 = smul.u32 2, %s85
        %p1023 = scmp.lt.s32.totalorder %s1022, 3
        %s1024 = scalar_select %p1023, %s1022, 3
        %s1025 = smul.addr %s1024, 8
        %s1026 = scalar_lea.vmem %s3, %s1025
        %p1027 = pneg %p132
        %p1028 = pneg %p129
        %s1029 = smul.u32 2, %s85
        %p1030 = scmp.lt.s32.totalorder %s1029, 3
        %s1031 = scalar_select %p1030, %s1029, 3
        %s1032 = scalar_lea.vmem %s5, %s1031
        %p1033 = pneg %p158
        %p1034 = pneg %p155
        %s1035 = smul.u32 2, %s85
        %p1036 = scmp.lt.s32.totalorder %s1035, 3
        %s1037 = scalar_select %p1036, %s1035, 3
        %s1038 = smul.addr %s1037, 8
        %s1039 = scalar_lea.vmem %s7, %s1038
        %p1040 = pneg %p184
        %p1041 = pneg %p181
        %p1042 = pneg %p205
        %p1043 = pneg %p202
        %p1044 = pneg %p226
        %p1045 = pneg %p223
        %p1046 = pneg %p247
        %p1047 = pneg %p244
        %p1048 = pneg %p268
        %p1049 = pneg %p265
        %p1050 = pneg %p289
        %p1051 = pneg %p286
        %p1052 = pneg %p310
        %p1053 = pneg %p307
        %p1054 = pneg %p331
        %p1055 = pneg %p328
        %p1056 = pneg %p352
        %p1057 = pneg %p349
        %p1058 = pneg %p373
        %p1059 = pneg %p370
        %p1060 = pneg %p394
        %p1061 = pneg %p391
        %p1062 = pneg %p415
        %p1063 = pneg %p412
        %p1064 = pneg %p436
        %p1065 = pneg %p433
        %p1066 = pneg %p457
        %p1067 = pneg %p454
        %p1068 = pneg %p478
        %p1069 = pneg %p475
        %p1070 = pneg %p499
        %p1071 = pneg %p496
        %p1072 = pneg %p520
        %p1073 = pneg %p517
        %p1074 = pneg %p541
        %p1075 = pneg %p538
        %p1076 = pneg %p562
        %p1077 = pneg %p559
        %p1078 = pneg %p583
        %p1079 = pneg %p580
        %p1080 = pneg %p604
        %p1081 = pneg %p601
        %p1082 = pneg %p625
        %p1083 = pneg %p622
        %p1084 = pneg %p646
        %p1085 = pneg %p643
        %p1086 = pneg %p667
        %p1087 = pneg %p664
        %p1088 = pneg %p688
        %p1089 = pneg %p685
        %p1090 = pneg %p709
        %p1091 = pneg %p706
        %p1092 = pneg %p730
        %p1093 = pneg %p727
        %p1094 = pneg %p751
        %p1095 = pneg %p748
        %p1096 = pneg %p772
        %p1097 = pneg %p769
        %p1098 = pneg %p793
        %p1099 = pneg %p790
        %p1100 = pneg %p814
        %p1101 = pneg %p811
        %p1102 = pneg %p835
        %p1103 = pneg %p832
        %p1104 = pneg %p861
        %p1105 = pneg %p858
        %s1106 = sand.u32 %s848, 1
        %s1107 = scalar_lea.sflag [#allocation3], %s1106
        %s1108 = sand.u32 %s848, 1
        %s1109 = smul.addr %s1108, 16
        %s1110 = scalar_lea.vmem [#allocation2], %s1109
        %s1111 = smul.u32 2, %s85
        %p1112 = scmp.lt.s32.totalorder %s1111, 3
        %s1113 = scalar_select %p1112, %s1111, 3
        %s1114 = smul.addr %s1113, 8
        %s1115 = scalar_lea.vmem %s1, %s1114
        %s1116 = smul.u32 2, %s85
        %s1117 = smul.u32 2, %s85
        %p1118 = scmp.lt.s32.totalorder %s1117, 3
        %s1119 = scalar_select %p1118, %s1117, 3
        %s1120 = smul.addr %s1119, 8
        %s1121 = scalar_lea.vmem %s3, %s1120
        %s1122 = smul.u32 2, %s85
        %s1123 = smul.u32 2, %s85
        %p1124 = scmp.lt.s32.totalorder %s1123, 3
        %s1125 = scalar_select %p1124, %s1123, 3
        %s1126 = scalar_lea.vmem %s5, %s1125
        %s1127 = smul.u32 2, %s85
        %s1128 = smul.u32 2, %s85
        %p1129 = scmp.lt.s32.totalorder %s1128, 3
        %s1130 = scalar_select %p1129, %s1128, 3
        %s1131 = smul.addr %s1130, 8
        %s1132 = scalar_lea.vmem %s7, %s1131
        %s1133 = smul.u32 2, %s85
        %s1134 = smul.u32 2, %s85
        %v1136 = vld [vmem:[%s1132] sm:$0xff]
        %v1137 = vld [vmem:[%s1132 + $0x8] sm:$0xff]
        %v1138 = vld [vmem:[%s1115] sm:$0xff]
        %v1139 = vld [vmem:[%s1115 + $0x8] sm:$0xff]
        %v1140 = vpack.c.bf16 %v1139, %v1138
        %v1141 = vld [vmem:[%s1121] sm:$0xff]
        %v1142 = vld [vmem:[%s1121 + $0x8] sm:$0xff]
        %v1143 = vpack.c.bf16 %v1142, %v1141
        %v1144 = vld [vmem:[%s1126] sm:$0x1]
        %v1145 = vld [vmem:[%s1126 + $0x1] sm:$0x1]
        %v1146 = vpack.c.bf16 %v1144, %v1144
        %v1147 = vpack.c.bf16 %v1145, %v1145
        %v1148 = vld [vmem:[%s23] sm:$0xf]
        %v1149 = vld [vmem:[%s23 + $0x4] sm:$0x3]
        %v1150 = vld [vmem:[%s25] sm:$0x1]
        %v1152 = vlaneseq
        %v1153 = vshrl.u32 %v1152, 7
        %v1154 = vsub.s32 0, %v1153
        %v1155 = vrot.slane %v1150, %v1154
        %v1159 = vunpack.c.l.b16 %v1148
        %v1160 = vunpack.c.l.b16 %v1149
        %v1161 = vpack.c.b16 %v1160, %v1159
        %vm1162 = vcmask 89088
        %v1164 = vsel %vm1162, %v1140, 0
        %vm1166 = vcmask 1044480
        %vm1167 = vcmask 1045504
        %v1168 = vsel %vm1166, 4294967295, 65535
        %v1169 = vsel %vm1167, %v1168, 0
        %v1171 = vand.u32 %v1161, %v1169
        %1173 = vmatprep.subr.bf16.mxu0 0
        %1174 = vmatpush1.bf16.msra.mxu0 %v1171
        %1175 = vmatprep.subr.bf16.mxu0 0
        %1176 = vmatpush1.bf16.msra.mxu0 0
        %1177 = vmatprep.subr.bf16.mxu0 0
        %1178 = vmatpush1.bf16.msra.mxu0 0
        %1179 = vmatprep.subr.bf16.mxu0 0
        %1180 = vmatpush1.bf16.msra.mxu0 0
        %1181 = vmatprep.subr.bf16.mxu0 0
        %1182 = vmatpush1.bf16.msra.mxu0 0
        %1183 = vmatprep.subr.bf16.mxu0 0
        %1184 = vmatpush1.bf16.msra.mxu0 0
        %1185 = vmatprep.subr.bf16.mxu0 0
        %1186 = vmatpush1.bf16.msra.mxu0 0
        %1187 = vmatprep.subr.bf16.mxu0 0
        %1188 = vmatpush1.bf16.msra.mxu0 0
        %1189 = vmatprep.subr.bf16.mxu0 0
        %1190 = vmatpush1.bf16.msra.mxu0 0
        %1191 = vmatprep.subr.bf16.mxu0 0
        %1192 = vmatpush1.bf16.msra.mxu0 0
        %1193 = vmatprep.subr.bf16.mxu0 0
        %1194 = vmatpush1.bf16.msra.mxu0 0
        %1195 = vmatprep.subr.bf16.mxu0 0
        %1196 = vmatpush1.bf16.msra.mxu0 0
        %1197 = vmatprep.subr.bf16.mxu0 0
        %1198 = vmatpush1.bf16.msra.mxu0 0
        %1199 = vmatprep.subr.bf16.mxu0 0
        %1200 = vmatpush1.bf16.msra.mxu0 0
        %1201 = vmatprep.subr.bf16.mxu0 0
        %1202 = vmatpush1.bf16.msra.mxu0 0
        %1203 = vmatprep.subr.bf16.mxu0 0
        %1204 = vmatpush1.bf16.msra.mxu0 0
        %1205 = vmatprep.mubr.bf16.mxu0 0
        %1206 = vmatmul.mubr.bf16.gmra.mrb[0].mxu0 %v1164
        %v1207 = vpop.f32.mrb[0].mxu0
        %v1208 = vadd.f32 %v1155, %v1207
        %v1209 = vpop.f32.mrb[0].mxu0
        %v1210 = vpop.f32.mrb[0].mxu0
        %v1211 = vadd.f32 %v1155, %v1210
        %v1212 = vpop.f32.mrb[0].mxu0
        %1213 = vdwg.mxu0
        %v1214 = vadd.f32 %v1208, %v1136
        %v1215 = vadd.f32 %v1211, %v1137
        %v1216 = vld [vmem:[%s27] sm:$0x3]
        %v1217 = vld [vmem:[%s29] sm:$0x1]
        %v1219 = vlaneseq
        %v1220 = vshrl.u32 %v1219, 7
        %v1221 = vsub.s32 0, %v1220
        %v1222 = vrot.slane %v1217, %v1221
        %vm1224 = vcmask 23552
        %v1226 = vsel %vm1224, %v1143, 0
        %vm1228 = vcmask 1040384
        %vm1229 = vcmask 1041408
        %v1230 = vsel %vm1228, 4294967295, 65535
        %v1231 = vsel %vm1229, %v1230, 0
        %v1233 = vand.u32 %v1216, %v1231
        %1235 = vmatprep.subr.bf16.mxu0 0
        %1236 = vmatpush1.bf16.msra.mxu0 %v1233
        %1237 = vmatprep.subr.bf16.mxu0 0
        %1238 = vmatpush1.bf16.msra.mxu0 0
        %1239 = vmatprep.subr.bf16.mxu0 0
        %1240 = vmatpush1.bf16.msra.mxu0 0
        %1241 = vmatprep.subr.bf16.mxu0 0
        %1242 = vmatpush1.bf16.msra.mxu0 0
        %1243 = vmatprep.subr.bf16.mxu0 0
        %1244 = vmatpush1.bf16.msra.mxu0 0
        %1245 = vmatprep.subr.bf16.mxu0 0
        %1246 = vmatpush1.bf16.msra.mxu0 0
        %1247 = vmatprep.subr.bf16.mxu0 0
        %1248 = vmatpush1.bf16.msra.mxu0 0
        %1249 = vmatprep.subr.bf16.mxu0 0
        %1250 = vmatpush1.bf16.msra.mxu0 0
        %1251 = vmatprep.subr.bf16.mxu0 0
        %1252 = vmatpush1.bf16.msra.mxu0 0
        %1253 = vmatprep.subr.bf16.mxu0 0
        %1254 = vmatpush1.bf16.msra.mxu0 0
        %1255 = vmatprep.subr.bf16.mxu0 0
        %1256 = vmatpush1.bf16.msra.mxu0 0
        %1257 = vmatprep.subr.bf16.mxu0 0
        %1258 = vmatpush1.bf16.msra.mxu0 0
        %1259 = vmatprep.subr.bf16.mxu0 0
        %1260 = vmatpush1.bf16.msra.mxu0 0
        %1261 = vmatprep.subr.bf16.mxu0 0
        %1262 = vmatpush1.bf16.msra.mxu0 0
        %1263 = vmatprep.subr.bf16.mxu0 0
        %1264 = vmatpush1.bf16.msra.mxu0 0
        %1265 = vmatprep.subr.bf16.mxu0 0
        %1266 = vmatpush1.bf16.msra.mxu0 0
        %1267 = vmatprep.mubr.bf16.mxu0 0
        %1268 = vmatmul.mubr.bf16.gmra.mrb[0].mxu0 %v1226
        %v1269 = vpop.f32.mrb[0].mxu0
        %v1270 = vadd.f32 %v1222, %v1269
        %v1271 = vpop.f32.mrb[0].mxu0
        %v1272 = vpop.f32.mrb[0].mxu0
        %v1273 = vadd.f32 %v1222, %v1272
        %v1274 = vpop.f32.mrb[0].mxu0
        %1275 = vdwg.mxu0
        %v1276 = vadd.f32 %v1270, %v1136
        %v1277 = vadd.f32 %v1273, %v1137
        %v1278 = vld [vmem:[%s31] sm:$0x7]
        %v1279 = vld [vmem:[%s33] sm:$0x1]
        %v1281 = vlaneseq
        %v1282 = vshrl.u32 %v1281, 7
        %v1283 = vsub.s32 0, %v1282
        %v1284 = vrot.slane %v1279, %v1283
        %v1288 = vunpack.c.l.b16 %v1146
        %v1289 = vunpack.c.l.b16 %v1147
        %v1290 = vrot.slane %v1289, 7
        %vm1291 = vcmask 1041409
        %v1292 = vsel %vm1291, %v1290, %v1288
        %v1293 = vpack.c.b16 %v1292, %v1292
        %vm1294 = vcmask 39936
        %v1296 = vsel %vm1294, %v1293, 0
        %vm1298 = vcmask 1042432
        %v1299 = vsel %vm1229, 4294967295, 65535
        %v1300 = vsel %vm1298, %v1299, 0
        %v1302 = vand.u32 %v1278, %v1300
        %1304 = vmatprep.subr.bf16.mxu0 0
        %1305 = vmatpush1.bf16.msra.mxu0 %v1302
        %1306 = vmatprep.subr.bf16.mxu0 0
        %1307 = vmatpush1.bf16.msra.mxu0 0
        %1308 = vmatprep.subr.bf16.mxu0 0
        %1309 = vmatpush1.bf16.msra.mxu0 0
        %1310 = vmatprep.subr.bf16.mxu0 0
        %1311 = vmatpush1.bf16.msra.mxu0 0
        %1312 = vmatprep.subr.bf16.mxu0 0
        %1313 = vmatpush1.bf16.msra.mxu0 0
        %1314 = vmatprep.subr.bf16.mxu0 0
        %1315 = vmatpush1.bf16.msra.mxu0 0
        %1316 = vmatprep.subr.bf16.mxu0 0
        %1317 = vmatpush1.bf16.msra.mxu0 0
        %1318 = vmatprep.subr.bf16.mxu0 0
        %1319 = vmatpush1.bf16.msra.mxu0 0
        %1320 = vmatprep.subr.bf16.mxu0 0
        %1321 = vmatpush1.bf16.msra.mxu0 0
        %1322 = vmatprep.subr.bf16.mxu0 0
        %1323 = vmatpush1.bf16.msra.mxu0 0
        %1324 = vmatprep.subr.bf16.mxu0 0
        %1325 = vmatpush1.bf16.msra.mxu0 0
        %1326 = vmatprep.subr.bf16.mxu0 0
        %1327 = vmatpush1.bf16.msra.mxu0 0
        %1328 = vmatprep.subr.bf16.mxu0 0
        %1329 = vmatpush1.bf16.msra.mxu0 0
        %1330 = vmatprep.subr.bf16.mxu0 0
        %1331 = vmatpush1.bf16.msra.mxu0 0
        %1332 = vmatprep.subr.bf16.mxu0 0
        %1333 = vmatpush1.bf16.msra.mxu0 0
        %1334 = vmatprep.subr.bf16.mxu0 0
        %1335 = vmatpush1.bf16.msra.mxu0 0
        %1336 = vmatprep.mubr.bf16.mxu0 0
        %1337 = vmatmul.mubr.bf16.gmra.mrb[0].mxu0 %v1296
        %v1338 = vpop.f32.mrb[0].mxu0
        %v1339 = vadd.f32 %v1284, %v1338
        %v1340 = vpop.f32.mrb[0].mxu0
        %v1341 = vpop.f32.mrb[0].mxu0
        %v1342 = vpop.f32.mrb[0].mxu0
        %1343 = vdwg.mxu0
        %v1344 = vld [vmem:[%s15] sm:$0xff]
        %v1345 = vld [vmem:[%s15 + $0x8] sm:$0xff]
        %v1346 = vld [vmem:[%s15 + $0x10] sm:$0xff]
        %v1347 = vld [vmem:[%s15 + $0x18] sm:$0xff]
        %v1348 = vld [vmem:[%s15 + $0x20] sm:$0xff]
        %v1349 = vld [vmem:[%s15 + $0x28] sm:$0xff]
        %v1350 = vld [vmem:[%s9] sm:$0xff]
        %v1351 = vld [vmem:[%s9 + $0x8] sm:$0xff]
        %v1352 = vld [vmem:[%s9 + $0x10] sm:$0xff]
        %v1353 = vld [vmem:[%s9 + $0x18] sm:$0xff]
        %v1354 = vld [vmem:[%s9 + $0x20] sm:$0xff]
        %v1355 = vld [vmem:[%s9 + $0x28] sm:$0xff]
        %vm1356 = vcmask 130048
        %v1358 = vsel %vm1356, %v1350, 0
        %v1361 = vsel %vm1356, %v1351, 0
        %v1364 = vsel %vm1356, %v1352, 0
        %v1367 = vsel %vm1356, %v1353, 0
        %v1370 = vsel %vm1356, %v1354, 0
        %v1373 = vsel %vm1356, %v1355, 0
        %1375 = vmatprep.subr.mxu0 0.0
        %1376 = vmatpush1.msra.mxu0 %v1136
        %1377 = vmatprep.subr.mxu0 0.0
        %1378 = vmatpush1.msra.mxu0 %v1137
        %1379 = vmatprep.subr.mxu0 0.0
        %1380 = vmatpush1.msra.mxu0 0.0
        %1381 = vmatprep.subr.mxu0 0.0
        %1382 = vmatpush1.msra.mxu0 0.0
        %1383 = vmatprep.subr.mxu0 0.0
        %1384 = vmatpush1.msra.mxu0 0.0
        %1385 = vmatprep.subr.mxu0 0.0
        %1386 = vmatpush1.msra.mxu0 0.0
        %1387 = vmatprep.subr.mxu0 0.0
        %1388 = vmatpush1.msra.mxu0 0.0
        %1389 = vmatprep.subr.mxu0 0.0
        %1390 = vmatpush1.msra.mxu0 0.0
        %1391 = vmatprep.subr.mxu0 0.0
        %1392 = vmatpush1.msra.mxu0 0.0
        %1393 = vmatprep.subr.mxu0 0.0
        %1394 = vmatpush1.msra.mxu0 0.0
        %1395 = vmatprep.subr.mxu0 0.0
        %1396 = vmatpush1.msra.mxu0 0.0
        %1397 = vmatprep.subr.mxu0 0.0
        %1398 = vmatpush1.msra.mxu0 0.0
        %1399 = vmatprep.subr.mxu0 0.0
        %1400 = vmatpush1.msra.mxu0 0.0
        %1401 = vmatprep.subr.mxu0 0.0
        %1402 = vmatpush1.msra.mxu0 0.0
        %1403 = vmatprep.subr.mxu0 0.0
        %1404 = vmatpush1.msra.mxu0 0.0
        %1405 = vmatprep.subr.mxu0 0.0
        %1406 = vmatpush1.msra.mxu0 0.0
        %1407 = vmatprep.subr.mxu0 0.0
        %1408 = vmatpush1.msra.mxu0 0.0
        %1409 = vmatprep.subr.mxu0 0.0
        %1410 = vmatpush1.msra.mxu0 0.0
        %1411 = vmatprep.subr.mxu0 0.0
        %1412 = vmatpush1.msra.mxu0 0.0
        %1413 = vmatprep.subr.mxu0 0.0
        %1414 = vmatpush1.msra.mxu0 0.0
        %1415 = vmatprep.subr.mxu0 0.0
        %1416 = vmatpush1.msra.mxu0 0.0
        %1417 = vmatprep.subr.mxu0 0.0
        %1418 = vmatpush1.msra.mxu0 0.0
        %1419 = vmatprep.subr.mxu0 0.0
        %1420 = vmatpush1.msra.mxu0 0.0
        %1421 = vmatprep.subr.mxu0 0.0
        %1422 = vmatpush1.msra.mxu0 0.0
        %1423 = vmatprep.subr.mxu0 0.0
        %1424 = vmatpush1.msra.mxu0 0.0
        %1425 = vmatprep.subr.mxu0 0.0
        %1426 = vmatpush1.msra.mxu0 0.0
        %1427 = vmatprep.subr.mxu0 0.0
        %1428 = vmatpush1.msra.mxu0 0.0
        %1429 = vmatprep.subr.mxu0 0.0
        %1430 = vmatpush1.msra.mxu0 0.0
        %1431 = vmatprep.subr.mxu0 0.0
        %1432 = vmatpush1.msra.mxu0 0.0
        %1433 = vmatprep.subr.mxu0 0.0
        %1434 = vmatpush1.msra.mxu0 0.0
        %1435 = vmatprep.subr.mxu0 0.0
        %1436 = vmatpush1.msra.mxu0 0.0
        %1437 = vmatprep.subr.mxu0 0.0
        %1438 = vmatpush1.msra.mxu0 0.0
        %1439 = vmatprep.mubr.f32.mxu0 0.0
        %1440 = vmatmul.mubr.f32.gmra.mrb[0].mxu0 %v1358
        %v1441 = vpop.f32.mrb[0].mxu0
        %v1442 = vadd.f32 0.0, %v1441
        %v1443 = vpop.f32.mrb[0].mxu0
        %1444 = vmatprep.mubr.f32.mxu0 0.0
        %1445 = vmatmul.mubr.f32.gmra.mrb[0].mxu0 %v1361
        %v1446 = vpop.f32.mrb[0].mxu0
        %v1447 = vadd.f32 0.0, %v1446
        %v1448 = vpop.f32.mrb[0].mxu0
        %1449 = vmatprep.mubr.f32.mxu0 0.0
        %1450 = vmatmul.mubr.f32.gmra.mrb[0].mxu0 %v1364
        %v1451 = vpop.f32.mrb[0].mxu0
        %v1452 = vadd.f32 0.0, %v1451
        %v1453 = vpop.f32.mrb[0].mxu0
        %1454 = vmatprep.mubr.f32.mxu0 0.0
        %1455 = vmatmul.mubr.f32.gmra.mrb[0].mxu0 %v1367
        %v1456 = vpop.f32.mrb[0].mxu0
        %v1457 = vadd.f32 0.0, %v1456
        %v1458 = vpop.f32.mrb[0].mxu0
        %1459 = vmatprep.mubr.f32.mxu0 0.0
        %1460 = vmatmul.mubr.f32.gmra.mrb[0].mxu0 %v1370
        %v1461 = vpop.f32.mrb[0].mxu0
        %v1462 = vadd.f32 0.0, %v1461
        %v1463 = vpop.f32.mrb[0].mxu0
        %1464 = vmatprep.mubr.f32.mxu0 0.0
        %1465 = vmatmul.mubr.f32.gmra.mrb[0].mxu0 %v1373
        %v1466 = vpop.f32.mrb[0].mxu0
        %v1467 = vadd.f32 0.0, %v1466
        %v1468 = vpop.f32.mrb[0].mxu0
        %1469 = vdwg.mxu0
        %vm1470 = vcmask 15360
        %v1472 = vsel %vm1470, %v1344, 0
        %v1475 = vsel %vm1470, %v1345, 0
        %v1478 = vsel %vm1470, %v1346, 0
        %v1481 = vsel %vm1470, %v1347, 0
        %v1484 = vsel %vm1470, %v1348, 0
        %v1487 = vsel %vm1470, %v1349, 0
        %v1490 = vsel %vm1229, %v1339, 0
        %1492 = vmatprep.subr.mxu0 0.0
        %1493 = vmatpush1.msra.mxu0 %v1490
        %1494 = vmatprep.subr.mxu0 0.0
        %1495 = vmatpush1.msra.mxu0 0.0
        %1496 = vmatprep.subr.mxu0 0.0
        %1497 = vmatpush1.msra.mxu0 0.0
        %1498 = vmatprep.subr.mxu0 0.0
        %1499 = vmatpush1.msra.mxu0 0.0
        %1500 = vmatprep.subr.mxu0 0.0
        %1501 = vmatpush1.msra.mxu0 0.0
        %1502 = vmatprep.subr.mxu0 0.0
        %1503 = vmatpush1.msra.mxu0 0.0
        %1504 = vmatprep.subr.mxu0 0.0
        %1505 = vmatpush1.msra.mxu0 0.0
        %1506 = vmatprep.subr.mxu0 0.0
        %1507 = vmatpush1.msra.mxu0 0.0
        %1508 = vmatprep.subr.mxu0 0.0
        %1509 = vmatpush1.msra.mxu0 0.0
        %1510 = vmatprep.subr.mxu0 0.0
        %1511 = vmatpush1.msra.mxu0 0.0
        %1512 = vmatprep.subr.mxu0 0.0
        %1513 = vmatpush1.msra.mxu0 0.0
        %1514 = vmatprep.subr.mxu0 0.0
        %1515 = vmatpush1.msra.mxu0 0.0
        %1516 = vmatprep.subr.mxu0 0.0
        %1517 = vmatpush1.msra.mxu0 0.0
        %1518 = vmatprep.subr.mxu0 0.0
        %1519 = vmatpush1.msra.mxu0 0.0
        %1520 = vmatprep.subr.mxu0 0.0
        %1521 = vmatpush1.msra.mxu0 0.0
        %1522 = vmatprep.subr.mxu0 0.0
        %1523 = vmatpush1.msra.mxu0 0.0
        %1524 = vmatprep.subr.mxu0 0.0
        %1525 = vmatpush1.msra.mxu0 0.0
        %1526 = vmatprep.subr.mxu0 0.0
        %1527 = vmatpush1.msra.mxu0 0.0
        %1528 = vmatprep.subr.mxu0 0.0
        %1529 = vmatpush1.msra.mxu0 0.0
        %1530 = vmatprep.subr.mxu0 0.0
        %1531 = vmatpush1.msra.mxu0 0.0
        %1532 = vmatprep.subr.mxu0 0.0
        %1533 = vmatpush1.msra.mxu0 0.0
        %1534 = vmatprep.subr.mxu0 0.0
        %1535 = vmatpush1.msra.mxu0 0.0
        %1536 = vmatprep.subr.mxu0 0.0
        %1537 = vmatpush1.msra.mxu0 0.0
        %1538 = vmatprep.subr.mxu0 0.0
        %1539 = vmatpush1.msra.mxu0 0.0
        %1540 = vmatprep.subr.mxu0 0.0
        %1541 = vmatpush1.msra.mxu0 0.0
        %1542 = vmatprep.subr.mxu0 0.0
        %1543 = vmatpush1.msra.mxu0 0.0
        %1544 = vmatprep.subr.mxu0 0.0
        %1545 = vmatpush1.msra.mxu0 0.0
        %1546 = vmatprep.subr.mxu0 0.0
        %1547 = vmatpush1.msra.mxu0 0.0
        %1548 = vmatprep.subr.mxu0 0.0
        %1549 = vmatpush1.msra.mxu0 0.0
        %1550 = vmatprep.subr.mxu0 0.0
        %1551 = vmatpush1.msra.mxu0 0.0
        %1552 = vmatprep.subr.mxu0 0.0
        %1553 = vmatpush1.msra.mxu0 0.0
        %1554 = vmatprep.subr.mxu0 0.0
        %1555 = vmatpush1.msra.mxu0 0.0
        %1556 = vmatprep.mubr.f32.mxu0 0.0
        %1557 = vmatmul.mubr.f32.gmra.mrb[0].mxu0 %v1472
        %v1558 = vpop.f32.mrb[0].mxu0
        %v1559 = vadd.f32 %v1442, %v1558
        %v1560 = vpop.f32.mrb[0].mxu0
        %1561 = vmatprep.mubr.f32.mxu0 0.0
        %1562 = vmatmul.mubr.f32.gmra.mrb[0].mxu0 %v1475
        %v1563 = vpop.f32.mrb[0].mxu0
        %v1564 = vadd.f32 %v1447, %v1563
        %v1565 = vpop.f32.mrb[0].mxu0
        %1566 = vmatprep.mubr.f32.mxu0 0.0
        %1567 = vmatmul.mubr.f32.gmra.mrb[0].mxu0 %v1478
        %v1568 = vpop.f32.mrb[0].mxu0
        %v1569 = vadd.f32 %v1452, %v1568
        %v1570 = vpop.f32.mrb[0].mxu0
        %1571 = vmatprep.mubr.f32.mxu0 0.0
        %1572 = vmatmul.mubr.f32.gmra.mrb[0].mxu0 %v1481
        %v1573 = vpop.f32.mrb[0].mxu0
        %v1574 = vadd.f32 %v1457, %v1573
        %v1575 = vpop.f32.mrb[0].mxu0
        %1576 = vmatprep.mubr.f32.mxu0 0.0
        %1577 = vmatmul.mubr.f32.gmra.mrb[0].mxu0 %v1484
        %v1578 = vpop.f32.mrb[0].mxu0
        %v1579 = vadd.f32 %v1462, %v1578
        %v1580 = vpop.f32.mrb[0].mxu0
        %1581 = vmatprep.mubr.f32.mxu0 0.0
        %1582 = vmatmul.mubr.f32.gmra.mrb[0].mxu0 %v1487
        %v1583 = vpop.f32.mrb[0].mxu0
        %v1584 = vadd.f32 %v1467, %v1583
        %v1585 = vpop.f32.mrb[0].mxu0
        %1586 = vdwg.mxu0
        %v1587 = vld [vmem:[%s11] sm:$0xff]
        %v1588 = vld [vmem:[%s11 + $0x8] sm:$0xff]
        %v1589 = vld [vmem:[%s11 + $0x10] sm:$0xff]
        %v1590 = vld [vmem:[%s11 + $0x18] sm:$0xff]
        %v1591 = vld [vmem:[%s11 + $0x20] sm:$0xff]
        %v1592 = vld [vmem:[%s11 + $0x28] sm:$0xff]
        %v1594 = vsel %vm1356, %v1587, 0
        %v1597 = vsel %vm1356, %v1588, 0
        %v1600 = vsel %vm1356, %v1589, 0
        %v1603 = vsel %vm1356, %v1590, 0
        %v1606 = vsel %vm1356, %v1591, 0
        %v1609 = vsel %vm1356, %v1592, 0
        %1611 = vmatprep.subr.mxu0 0.0
        %1612 = vmatpush1.msra.mxu0 %v1214
        %1613 = vmatprep.subr.mxu0 0.0
        %1614 = vmatpush1.msra.mxu0 %v1215
        %1615 = vmatprep.subr.mxu0 0.0
        %1616 = vmatpush1.msra.mxu0 0.0
        %1617 = vmatprep.subr.mxu0 0.0
        %1618 = vmatpush1.msra.mxu0 0.0
        %1619 = vmatprep.subr.mxu0 0.0
        %1620 = vmatpush1.msra.mxu0 0.0
        %1621 = vmatprep.subr.mxu0 0.0
        %1622 = vmatpush1.msra.mxu0 0.0
        %1623 = vmatprep.subr.mxu0 0.0
        %1624 = vmatpush1.msra.mxu0 0.0
        %1625 = vmatprep.subr.mxu0 0.0
        %1626 = vmatpush1.msra.mxu0 0.0
        %1627 = vmatprep.subr.mxu0 0.0
        %1628 = vmatpush1.msra.mxu0 0.0
        %1629 = vmatprep.subr.mxu0 0.0
        %1630 = vmatpush1.msra.mxu0 0.0
        %1631 = vmatprep.subr.mxu0 0.0
        %1632 = vmatpush1.msra.mxu0 0.0
        %1633 = vmatprep.subr.mxu0 0.0
        %1634 = vmatpush1.msra.mxu0 0.0
        %1635 = vmatprep.subr.mxu0 0.0
        %1636 = vmatpush1.msra.mxu0 0.0
        %1637 = vmatprep.subr.mxu0 0.0
        %1638 = vmatpush1.msra.mxu0 0.0
        %1639 = vmatprep.subr.mxu0 0.0
        %1640 = vmatpush1.msra.mxu0 0.0
        %1641 = vmatprep.subr.mxu0 0.0
        %1642 = vmatpush1.msra.mxu0 0.0
        %1643 = vmatprep.subr.mxu0 0.0
        %1644 = vmatpush1.msra.mxu0 0.0
        %1645 = vmatprep.subr.mxu0 0.0
        %1646 = vmatpush1.msra.mxu0 0.0
        %1647 = vmatprep.subr.mxu0 0.0
        %1648 = vmatpush1.msra.mxu0 0.0
        %1649 = vmatprep.subr.mxu0 0.0
        %1650 = vmatpush1.msra.mxu0 0.0
        %1651 = vmatprep.subr.mxu0 0.0
        %1652 = vmatpush1.msra.mxu0 0.0
        %1653 = vmatprep.subr.mxu0 0.0
        %1654 = vmatpush1.msra.mxu0 0.0
        %1655 = vmatprep.subr.mxu0 0.0
        %1656 = vmatpush1.msra.mxu0 0.0
        %1657 = vmatprep.subr.mxu0 0.0
        %1658 = vmatpush1.msra.mxu0 0.0
        %1659 = vmatprep.subr.mxu0 0.0
        %1660 = vmatpush1.msra.mxu0 0.0
        %1661 = vmatprep.subr.mxu0 0.0
        %1662 = vmatpush1.msra.mxu0 0.0
        %1663 = vmatprep.subr.mxu0 0.0
        %1664 = vmatpush1.msra.mxu0 0.0
        %1665 = vmatprep.subr.mxu0 0.0
        %1666 = vmatpush1.msra.mxu0 0.0
        %1667 = vmatprep.subr.mxu0 0.0
        %1668 = vmatpush1.msra.mxu0 0.0
        %1669 = vmatprep.subr.mxu0 0.0
        %1670 = vmatpush1.msra.mxu0 0.0
        %1671 = vmatprep.subr.mxu0 0.0
        %1672 = vmatpush1.msra.mxu0 0.0
        %1673 = vmatprep.subr.mxu0 0.0
        %1674 = vmatpush1.msra.mxu0 0.0
        %1675 = vmatprep.mubr.f32.mxu0 0.0
        %1676 = vmatmul.mubr.f32.gmra.mrb[0].mxu0 %v1594
        %v1677 = vpop.f32.mrb[0].mxu0
        %v1678 = vadd.f32 0.0, %v1677
        %v1679 = vpop.f32.mrb[0].mxu0
        %1680 = vmatprep.mubr.f32.mxu0 0.0
        %1681 = vmatmul.mubr.f32.gmra.mrb[0].mxu0 %v1597
        %v1682 = vpop.f32.mrb[0].mxu0
        %v1683 = vadd.f32 0.0, %v1682
        %v1684 = vpop.f32.mrb[0].mxu0
        %1685 = vmatprep.mubr.f32.mxu0 0.0
        %1686 = vmatmul.mubr.f32.gmra.mrb[0].mxu0 %v1600
        %v1687 = vpop.f32.mrb[0].mxu0
        %v1688 = vadd.f32 0.0, %v1687
        %v1689 = vpop.f32.mrb[0].mxu0
        %1690 = vmatprep.mubr.f32.mxu0 0.0
        %1691 = vmatmul.mubr.f32.gmra.mrb[0].mxu0 %v1603
        %v1692 = vpop.f32.mrb[0].mxu0
        %v1693 = vadd.f32 0.0, %v1692
        %v1694 = vpop.f32.mrb[0].mxu0
        %1695 = vmatprep.mubr.f32.mxu0 0.0
        %1696 = vmatmul.mubr.f32.gmra.mrb[0].mxu0 %v1606
        %v1697 = vpop.f32.mrb[0].mxu0
        %v1698 = vadd.f32 0.0, %v1697
        %v1699 = vpop.f32.mrb[0].mxu0
        %1700 = vmatprep.mubr.f32.mxu0 0.0
        %1701 = vmatmul.mubr.f32.gmra.mrb[0].mxu0 %v1609
        %v1702 = vpop.f32.mrb[0].mxu0
        %v1703 = vadd.f32 0.0, %v1702
        %v1704 = vpop.f32.mrb[0].mxu0
        %1705 = vdwg.mxu0
        %v1706 = vadd.f32 %v1559, %v1678
        %v1707 = vadd.f32 %v1564, %v1683
        %v1708 = vadd.f32 %v1569, %v1688
        %v1709 = vadd.f32 %v1574, %v1693
        %v1710 = vadd.f32 %v1579, %v1698
        %v1711 = vadd.f32 %v1584, %v1703
        %v1712 = vld [vmem:[%s13] sm:$0xff]
        %v1713 = vld [vmem:[%s13 + $0x8] sm:$0xff]
        %v1714 = vld [vmem:[%s13 + $0x10] sm:$0xff]
        %v1715 = vld [vmem:[%s13 + $0x18] sm:$0xff]
        %v1716 = vld [vmem:[%s13 + $0x20] sm:$0xff]
        %v1717 = vld [vmem:[%s13 + $0x28] sm:$0xff]
        %v1719 = vsel %vm1356, %v1712, 0
        %v1722 = vsel %vm1356, %v1713, 0
        %v1725 = vsel %vm1356, %v1714, 0
        %v1728 = vsel %vm1356, %v1715, 0
        %v1731 = vsel %vm1356, %v1716, 0
        %v1734 = vsel %vm1356, %v1717, 0
        %1736 = vmatprep.subr.mxu0 0.0
        %1737 = vmatpush1.msra.mxu0 %v1276
        %1738 = vmatprep.subr.mxu0 0.0
        %1739 = vmatpush1.msra.mxu0 %v1277
        %1740 = vmatprep.subr.mxu0 0.0
        %1741 = vmatpush1.msra.mxu0 0.0
        %1742 = vmatprep.subr.mxu0 0.0
        %1743 = vmatpush1.msra.mxu0 0.0
        %1744 = vmatprep.subr.mxu0 0.0
        %1745 = vmatpush1.msra.mxu0 0.0
        %1746 = vmatprep.subr.mxu0 0.0
        %1747 = vmatpush1.msra.mxu0 0.0
        %1748 = vmatprep.subr.mxu0 0.0
        %1749 = vmatpush1.msra.mxu0 0.0
        %1750 = vmatprep.subr.mxu0 0.0
        %1751 = vmatpush1.msra.mxu0 0.0
        %1752 = vmatprep.subr.mxu0 0.0
        %1753 = vmatpush1.msra.mxu0 0.0
        %1754 = vmatprep.subr.mxu0 0.0
        %1755 = vmatpush1.msra.mxu0 0.0
        %1756 = vmatprep.subr.mxu0 0.0
        %1757 = vmatpush1.msra.mxu0 0.0
        %1758 = vmatprep.subr.mxu0 0.0
        %1759 = vmatpush1.msra.mxu0 0.0
        %1760 = vmatprep.subr.mxu0 0.0
        %1761 = vmatpush1.msra.mxu0 0.0
        %1762 = vmatprep.subr.mxu0 0.0
        %1763 = vmatpush1.msra.mxu0 0.0
        %1764 = vmatprep.subr.mxu0 0.0
        %1765 = vmatpush1.msra.mxu0 0.0
        %1766 = vmatprep.subr.mxu0 0.0
        %1767 = vmatpush1.msra.mxu0 0.0
        %1768 = vmatprep.subr.mxu0 0.0
        %1769 = vmatpush1.msra.mxu0 0.0
        %1770 = vmatprep.subr.mxu0 0.0
        %1771 = vmatpush1.msra.mxu0 0.0
        %1772 = vmatprep.subr.mxu0 0.0
        %1773 = vmatpush1.msra.mxu0 0.0
        %1774 = vmatprep.subr.mxu0 0.0
        %1775 = vmatpush1.msra.mxu0 0.0
        %1776 = vmatprep.subr.mxu0 0.0
        %1777 = vmatpush1.msra.mxu0 0.0
        %1778 = vmatprep.subr.mxu0 0.0
        %1779 = vmatpush1.msra.mxu0 0.0
        %1780 = vmatprep.subr.mxu0 0.0
        %1781 = vmatpush1.msra.mxu0 0.0
        %1782 = vmatprep.subr.mxu0 0.0
        %1783 = vmatpush1.msra.mxu0 0.0
        %1784 = vmatprep.subr.mxu0 0.0
        %1785 = vmatpush1.msra.mxu0 0.0
        %1786 = vmatprep.subr.mxu0 0.0
        %1787 = vmatpush1.msra.mxu0 0.0
        %1788 = vmatprep.subr.mxu0 0.0
        %1789 = vmatpush1.msra.mxu0 0.0
        %1790 = vmatprep.subr.mxu0 0.0
        %1791 = vmatpush1.msra.mxu0 0.0
        %1792 = vmatprep.subr.mxu0 0.0
        %1793 = vmatpush1.msra.mxu0 0.0
        %1794 = vmatprep.subr.mxu0 0.0
        %1795 = vmatpush1.msra.mxu0 0.0
        %1796 = vmatprep.subr.mxu0 0.0
        %1797 = vmatpush1.msra.mxu0 0.0
        %1798 = vmatprep.subr.mxu0 0.0
        %1799 = vmatpush1.msra.mxu0 0.0
        %1800 = vmatprep.mubr.f32.mxu0 0.0
        %1801 = vmatmul.mubr.f32.gmra.mrb[0].mxu0 %v1719
        %v1802 = vpop.f32.mrb[0].mxu0
        %v1803 = vadd.f32 0.0, %v1802
        %v1804 = vpop.f32.mrb[0].mxu0
        %1805 = vmatprep.mubr.f32.mxu0 0.0
        %1806 = vmatmul.mubr.f32.gmra.mrb[0].mxu0 %v1722
        %v1807 = vpop.f32.mrb[0].mxu0
        %v1808 = vadd.f32 0.0, %v1807
        %v1809 = vpop.f32.mrb[0].mxu0
        %1810 = vmatprep.mubr.f32.mxu0 0.0
        %1811 = vmatmul.mubr.f32.gmra.mrb[0].mxu0 %v1725
        %v1812 = vpop.f32.mrb[0].mxu0
        %v1813 = vadd.f32 0.0, %v1812
        %v1814 = vpop.f32.mrb[0].mxu0
        %1815 = vmatprep.mubr.f32.mxu0 0.0
        %1816 = vmatmul.mubr.f32.gmra.mrb[0].mxu0 %v1728
        %v1817 = vpop.f32.mrb[0].mxu0
        %v1818 = vadd.f32 0.0, %v1817
        %v1819 = vpop.f32.mrb[0].mxu0
        %1820 = vmatprep.mubr.f32.mxu0 0.0
        %1821 = vmatmul.mubr.f32.gmra.mrb[0].mxu0 %v1731
        %v1822 = vpop.f32.mrb[0].mxu0
        %v1823 = vadd.f32 0.0, %v1822
        %v1824 = vpop.f32.mrb[0].mxu0
        %1825 = vmatprep.mubr.f32.mxu0 0.0
        %1826 = vmatmul.mubr.f32.gmra.mrb[0].mxu0 %v1734
        %v1827 = vpop.f32.mrb[0].mxu0
        %v1828 = vadd.f32 0.0, %v1827
        %v1829 = vpop.f32.mrb[0].mxu0
        %1830 = vdwg.mxu0
        %v1831 = vadd.f32 %v1706, %v1803
        %v1832 = vadd.f32 %v1707, %v1808
        %v1833 = vadd.f32 %v1708, %v1813
        %v1834 = vadd.f32 %v1709, %v1818
        %v1835 = vadd.f32 %v1710, %v1823
        %v1836 = vadd.f32 %v1711, %v1828
        %v1837 = vld [vmem:[%s35] sm:$0x1]
        %v1838 = vld [vmem:[%s37] sm:$0x1]
        %vm1839 = vcmask 261120
        %v1840 = vsel %vm1839, %v1831, 0.0
        %1841 = vadd.xlane.f32.xlu0 %v1840
        %v1842 = vpop.xlane.xlu0 %1841
        %v1843 = vsel %vm1839, %v1832, 0.0
        %1844 = vadd.xlane.f32.xlu0 %v1843
        %v1845 = vpop.xlane.xlu0 %1844
        %v1846 = vsel %vm1839, %v1833, 0.0
        %1847 = vadd.xlane.f32.xlu0 %v1846
        %v1848 = vpop.xlane.xlu0 %1847
        %v1849 = vsel %vm1839, %v1834, 0.0
        %1850 = vadd.xlane.f32.xlu0 %v1849
        %v1851 = vpop.xlane.xlu0 %1850
        %v1852 = vsel %vm1839, %v1835, 0.0
        %1853 = vadd.xlane.f32.xlu0 %v1852
        %v1854 = vpop.xlane.xlu0 %1853
        %v1855 = vsel %vm1839, %v1836, 0.0
        %1856 = vadd.xlane.f32.xlu0 %v1855
        %v1857 = vpop.xlane.xlu0 %1856
        %v1858 = vrcp.pop 32.0
        %v1859 = vmul.f32 %v1842, %v1858
        %v1860 = vmul.f32 %v1845, %v1858
        %v1861 = vmul.f32 %v1848, %v1858
        %v1862 = vmul.f32 %v1851, %v1858
        %v1863 = vmul.f32 %v1854, %v1858
        %v1864 = vmul.f32 %v1857, %v1858
        %v1865 = vsub.f32 %v1831, %v1859
        %v1866 = vsub.f32 %v1832, %v1860
        %v1867 = vsub.f32 %v1833, %v1861
        %v1868 = vsub.f32 %v1834, %v1862
        %v1869 = vsub.f32 %v1835, %v1863
        %v1870 = vsub.f32 %v1836, %v1864
        %v1871 = vmul.f32 %v1865, %v1865
        %v1872 = vmul.f32 %v1866, %v1866
        %v1873 = vmul.f32 %v1867, %v1867
        %v1874 = vmul.f32 %v1868, %v1868
        %v1875 = vmul.f32 %v1869, %v1869
        %v1876 = vmul.f32 %v1870, %v1870
        %v1877 = vsel %vm1839, %v1871, 0.0
        %1878 = vadd.xlane.f32.xlu0 %v1877
        %v1879 = vpop.xlane.xlu0 %1878
        %v1880 = vsel %vm1839, %v1872, 0.0
        %1881 = vadd.xlane.f32.xlu0 %v1880
        %v1882 = vpop.xlane.xlu0 %1881
        %v1883 = vsel %vm1839, %v1873, 0.0
        %1884 = vadd.xlane.f32.xlu0 %v1883
        %v1885 = vpop.xlane.xlu0 %1884
        %v1886 = vsel %vm1839, %v1874, 0.0
        %1887 = vadd.xlane.f32.xlu0 %v1886
        %v1888 = vpop.xlane.xlu0 %1887
        %v1889 = vsel %vm1839, %v1875, 0.0
        %1890 = vadd.xlane.f32.xlu0 %v1889
        %v1891 = vpop.xlane.xlu0 %1890
        %v1892 = vsel %vm1839, %v1876, 0.0
        %1893 = vadd.xlane.f32.xlu0 %v1892
        %v1894 = vpop.xlane.xlu0 %1893
        %v1895 = vmul.f32 %v1879, %v1858
        %v1896 = vmul.f32 %v1882, %v1858
        %v1897 = vmul.f32 %v1885, %v1858
        %v1898 = vmul.f32 %v1888, %v1858
        %v1899 = vmul.f32 %v1891, %v1858
        %v1900 = vmul.f32 %v1894, %v1858
        %v1901 = vadd.f32 %v1895, 1e-05
        %v1902 = vadd.f32 %v1896, 1e-05
        %v1903 = vadd.f32 %v1897, 1e-05
        %v1904 = vadd.f32 %v1898, 1e-05
        %v1905 = vadd.f32 %v1899, 1e-05
        %v1906 = vadd.f32 %v1900, 1e-05
        %v1907 = vrsqrt.pop %v1901
        %v1908 = vrsqrt.pop %v1902
        %v1909 = vrsqrt.pop %v1903
        %v1910 = vrsqrt.pop %v1904
        %v1911 = vrsqrt.pop %v1905
        %v1912 = vrsqrt.pop %v1906
        %v1913 = vmul.f32 %v1865, %v1907
        %v1914 = vmul.f32 %v1866, %v1908
        %v1915 = vmul.f32 %v1867, %v1909
        %v1916 = vmul.f32 %v1868, %v1910
        %v1917 = vmul.f32 %v1869, %v1911
        %v1918 = vmul.f32 %v1870, %v1912
        %v1920 = vlaneseq
        %v1921 = vshrl.u32 %v1920, 7
        %v1922 = vsub.s32 0, %v1921
        %v1923 = vrot.slane %v1837, %v1922
        %v1925 = vmul.f32 %v1913, %v1923
        %v1926 = vmul.f32 %v1914, %v1923
        %v1927 = vmul.f32 %v1915, %v1923
        %v1928 = vmul.f32 %v1916, %v1923
        %v1929 = vmul.f32 %v1917, %v1923
        %v1930 = vmul.f32 %v1918, %v1923
        %v1932 = vlaneseq
        %v1933 = vshrl.u32 %v1932, 7
        %v1934 = vsub.s32 0, %v1933
        %v1935 = vrot.slane %v1838, %v1934
        %v1937 = vadd.f32 %v1925, %v1935
        %v1938 = vadd.f32 %v1926, %v1935
        %v1939 = vadd.f32 %v1927, %v1935
        %v1940 = vadd.f32 %v1928, %v1935
        %v1941 = vadd.f32 %v1929, %v1935
        %v1942 = vadd.f32 %v1930, %v1935
        %v1943 = vld [vmem:[%s21] sm:$0xff]
        %v1944 = vld [vmem:[%s21 + $0x8] sm:$0xff]
        %v1945 = vld [vmem:[%s21 + $0x10] sm:$0xff]
        %v1946 = vpack.c.bf16 %v1938, %v1937
        %v1947 = vpack.c.bf16 %v1940, %v1939
        %v1948 = vpack.c.bf16 %v1942, %v1941
        %v1949 = vld [vmem:[%s39] sm:$0xf]
        %v1950 = vld [vmem:[%s39 + $0x4] sm:$0xf]
        %v1951 = vld [vmem:[%s39 + $0x8] sm:$0xf]
        %v1952 = vld [vmem:[%s39 + $0xc] sm:$0xf]
        %v1953 = vld [vmem:[%s41] sm:$0x1]
        %v1955 = vlaneseq
        %v1956 = vshrl.u32 %v1955, 7
        %v1957 = vsub.s32 0, %v1956
        %v1958 = vrot.slane %v1953, %v1957
        %v1964 = vunpack.c.l.b16 %v1949
        %v1965 = vunpack.c.l.b16 %v1950
        %v1966 = vunpack.c.l.b16 %v1951
        %v1967 = vunpack.c.l.b16 %v1952
        %v1968 = vpack.c.b16 %v1965, %v1964
        %v1969 = vpack.c.b16 %v1967, %v1966
        %v1973 = vsel %vm1839, %v1946, 0
        %v1976 = vsel %vm1839, %v1947, 0
        %v1979 = vsel %vm1839, %v1948, 0
        %1981 = vmatprep.subr.bf16.mxu0 0
        %1982 = vmatpush1.bf16.msra.mxu0 %v1968
        %1983 = vmatprep.subr.bf16.mxu0 0
        %1984 = vmatpush1.bf16.msra.mxu0 %v1969
        %1985 = vmatprep.subr.bf16.mxu0 0
        %1986 = vmatpush1.bf16.msra.mxu0 0
        %1987 = vmatprep.subr.bf16.mxu0 0
        %1988 = vmatpush1.bf16.msra.mxu0 0
        %1989 = vmatprep.subr.bf16.mxu0 0
        %1990 = vmatpush1.bf16.msra.mxu0 0
        %1991 = vmatprep.subr.bf16.mxu0 0
        %1992 = vmatpush1.bf16.msra.mxu0 0
        %1993 = vmatprep.subr.bf16.mxu0 0
        %1994 = vmatpush1.bf16.msra.mxu0 0
        %1995 = vmatprep.subr.bf16.mxu0 0
        %1996 = vmatpush1.bf16.msra.mxu0 0
        %1997 = vmatprep.subr.bf16.mxu0 0
        %1998 = vmatpush1.bf16.msra.mxu0 0
        %1999 = vmatprep.subr.bf16.mxu0 0
        %2000 = vmatpush1.bf16.msra.mxu0 0
        %2001 = vmatprep.subr.bf16.mxu0 0
        %2002 = vmatpush1.bf16.msra.mxu0 0
        %2003 = vmatprep.subr.bf16.mxu0 0
        %2004 = vmatpush1.bf16.msra.mxu0 0
        %2005 = vmatprep.subr.bf16.mxu0 0
        %2006 = vmatpush1.bf16.msra.mxu0 0
        %2007 = vmatprep.subr.bf16.mxu0 0
        %2008 = vmatpush1.bf16.msra.mxu0 0
        %2009 = vmatprep.subr.bf16.mxu0 0
        %2010 = vmatpush1.bf16.msra.mxu0 0
        %2011 = vmatprep.subr.bf16.mxu0 0
        %2012 = vmatpush1.bf16.msra.mxu0 0
        %2013 = vmatprep.mubr.bf16.mxu0 0
        %2014 = vmatmul.mubr.bf16.gmra.mrb[0].mxu0 %v1973
        %v2015 = vpop.f32.mrb[0].mxu0
        %v2016 = vadd.f32 %v1958, %v2015
        %v2017 = vpop.f32.mrb[0].mxu0
        %v2018 = vpop.f32.mrb[0].mxu0
        %v2019 = vadd.f32 %v1958, %v2018
        %v2020 = vpop.f32.mrb[0].mxu0
        %2021 = vmatprep.mubr.bf16.mxu0 0
        %2022 = vmatmul.mubr.bf16.gmra.mrb[0].mxu0 %v1976
        %v2023 = vpop.f32.mrb[0].mxu0
        %v2024 = vadd.f32 %v1958, %v2023
        %v2025 = vpop.f32.mrb[0].mxu0
        %v2026 = vpop.f32.mrb[0].mxu0
        %v2027 = vadd.f32 %v1958, %v2026
        %v2028 = vpop.f32.mrb[0].mxu0
        %2029 = vmatprep.mubr.bf16.mxu0 0
        %2030 = vmatmul.mubr.bf16.gmra.mrb[0].mxu0 %v1979
        %v2031 = vpop.f32.mrb[0].mxu0
        %v2032 = vadd.f32 %v1958, %v2031
        %v2033 = vpop.f32.mrb[0].mxu0
        %v2034 = vpop.f32.mrb[0].mxu0
        %v2035 = vadd.f32 %v1958, %v2034
        %v2036 = vpop.f32.mrb[0].mxu0
        %2037 = vdwg.mxu0
        %2041 = vrot.lane.b32.xlu0 %v2016, 96
        %v2042 = vpop.permute.xlu0 %2041
        %2043 = vrot.lane.b32.xlu0 %v2019, 96
        %v2044 = vpop.permute.xlu0 %2043
        %2045 = vrot.lane.b32.xlu0 %v2024, 96
        %v2046 = vpop.permute.xlu0 %2045
        %v2047 = vsel %vm1356, %v2016, 0
        %v2049 = vsel %vm1356, %v2019, 0
        %v2051 = vsel %vm1356, %v2024, 0
        %v2053 = vsel %vm1356, %v2042, 0
        %v2055 = vsel %vm1356, %v2044, 0
        %v2057 = vsel %vm1356, %v2046, 0
        %2059 = vmatprep.subr.mxu0 0.0
        %2060 = vmatpush1.xpose.msra.mxu0 %v2053
        %2061 = vmatprep.subr.mxu0 0.0
        %2062 = vmatpush1.xpose.msra.mxu0 %v2055
        %2063 = vmatprep.subr.mxu0 0.0
        %2064 = vmatpush1.xpose.msra.mxu0 %v2057
        %2065 = vmatprep.subr.mxu0 0.0
        %2066 = vmatpush1.xpose.msra.mxu0 0.0
        %2067 = vmatprep.subr.mxu0 0.0
        %2068 = vmatpush1.xpose.msra.mxu0 0.0
        %2069 = vmatprep.subr.mxu0 0.0
        %2070 = vmatpush1.xpose.msra.mxu0 0.0
        %2071 = vmatprep.subr.mxu0 0.0
        %2072 = vmatpush1.xpose.msra.mxu0 0.0
        %2073 = vmatprep.subr.mxu0 0.0
        %2074 = vmatpush1.xpose.msra.mxu0 0.0
        %2075 = vmatprep.subr.mxu0 0.0
        %2076 = vmatpush1.xpose.msra.mxu0 0.0
        %2077 = vmatprep.subr.mxu0 0.0
        %2078 = vmatpush1.xpose.msra.mxu0 0.0
        %2079 = vmatprep.subr.mxu0 0.0
        %2080 = vmatpush1.xpose.msra.mxu0 0.0
        %2081 = vmatprep.subr.mxu0 0.0
        %2082 = vmatpush1.xpose.msra.mxu0 0.0
        %2083 = vmatprep.subr.mxu0 0.0
        %2084 = vmatpush1.xpose.msra.mxu0 0.0
        %2085 = vmatprep.subr.mxu0 0.0
        %2086 = vmatpush1.xpose.msra.mxu0 0.0
        %2087 = vmatprep.subr.mxu0 0.0
        %2088 = vmatpush1.xpose.msra.mxu0 0.0
        %2089 = vmatprep.subr.mxu0 0.0
        %2090 = vmatpush1.xpose.msra.mxu0 0.0
        %2091 = vmatprep.subr.mxu0 0.0
        %2092 = vmatpush1.xpose.msra.mxu0 0.0
        %2093 = vmatprep.subr.mxu0 0.0
        %2094 = vmatpush1.xpose.msra.mxu0 0.0
        %2095 = vmatprep.subr.mxu0 0.0
        %2096 = vmatpush1.xpose.msra.mxu0 0.0
        %2097 = vmatprep.subr.mxu0 0.0
        %2098 = vmatpush1.xpose.msra.mxu0 0.0
        %2099 = vmatprep.subr.mxu0 0.0
        %2100 = vmatpush1.xpose.msra.mxu0 0.0
        %2101 = vmatprep.subr.mxu0 0.0
        %2102 = vmatpush1.xpose.msra.mxu0 0.0
        %2103 = vmatprep.subr.mxu0 0.0
        %2104 = vmatpush1.xpose.msra.mxu0 0.0
        %2105 = vmatprep.subr.mxu0 0.0
        %2106 = vmatpush1.xpose.msra.mxu0 0.0
        %2107 = vmatprep.subr.mxu0 0.0
        %2108 = vmatpush1.xpose.msra.mxu0 0.0
        %2109 = vmatprep.subr.mxu0 0.0
        %2110 = vmatpush1.xpose.msra.mxu0 0.0
        %2111 = vmatprep.subr.mxu0 0.0
        %2112 = vmatpush1.xpose.msra.mxu0 0.0
        %2113 = vmatprep.subr.mxu0 0.0
        %2114 = vmatpush1.xpose.msra.mxu0 0.0
        %2115 = vmatprep.subr.mxu0 0.0
        %2116 = vmatpush1.xpose.msra.mxu0 0.0
        %2117 = vmatprep.subr.mxu0 0.0
        %2118 = vmatpush1.xpose.msra.mxu0 0.0
        %2119 = vmatprep.subr.mxu0 0.0
        %2120 = vmatpush1.xpose.msra.mxu0 0.0
        %2121 = vmatprep.subr.mxu0 0.0
        %2122 = vmatpush1.xpose.msra.mxu0 0.0
        %2123 = vmatprep.mubr.f32.mxu0 0.0
        %2124 = vmatmul.mubr.f32.gmra.mrb[0].mxu0 %v2047
        %v2125 = vpop.f32.mrb[0].mxu0
        %v2126 = vadd.f32 0.0, %v2125
        %v2127 = vpop.f32.mrb[0].mxu0
        %2128 = vmatprep.mubr.f32.mxu0 0.0
        %2129 = vmatmul.mubr.f32.gmra.mrb[0].mxu0 %v2049
        %v2130 = vpop.f32.mrb[0].mxu0
        %v2131 = vadd.f32 0.0, %v2130
        %v2132 = vpop.f32.mrb[0].mxu0
        %2133 = vmatprep.mubr.f32.mxu0 0.0
        %2134 = vmatmul.mubr.f32.gmra.mrb[0].mxu0 %v2051
        %v2135 = vpop.f32.mrb[0].mxu0
        %v2136 = vadd.f32 0.0, %v2135
        %v2137 = vpop.f32.mrb[0].mxu0
        %2138 = vdwg.mxu0
        %v2139 = vmul.f32 %v2126, 0.25
        %v2140 = vmul.f32 %v2131, 0.25
        %v2141 = vmul.f32 %v2136, 0.25
        %v2142 = vadd.f32 %v2139, %v1943
        %v2143 = vadd.f32 %v2140, %v1944
        %v2144 = vadd.f32 %v2141, %v1945
        %vm2145 = vcmask 195584
        %v2146 = vsel %vm2145, %v2142, -inf
        %2147 = vmax.xlane.f32.xlu0 %v2146
        %v2148 = vpop.xlane.xlu0 %2147
        %v2149 = vsel %vm2145, %v2143, -inf
        %2150 = vmax.xlane.f32.xlu0 %v2149
        %v2151 = vpop.xlane.xlu0 %2150
        %v2152 = vsel %vm2145, %v2144, -inf
        %2153 = vmax.xlane.f32.xlu0 %v2152
        %v2154 = vpop.xlane.xlu0 %2153
        %v2155 = vsub.f32 %v2142, %v2148
        %v2156 = vsub.f32 %v2143, %v2151
        %v2157 = vsub.f32 %v2144, %v2154
        %v2158 = vmul.f32 %v2155, 1.442695
        %v2159 = vpow.pop %v2158
        %v2160 = vmul.f32 %v2156, 1.442695
        %v2161 = vpow.pop %v2160
        %v2162 = vmul.f32 %v2157, 1.442695
        %v2163 = vpow.pop %v2162
        %v2164 = vsel %vm2145, %v2159, 0.0
        %2165 = vadd.xlane.f32.xlu0 %v2164
        %v2166 = vpop.xlane.xlu0 %2165
        %v2167 = vsel %vm2145, %v2161, 0.0
        %2168 = vadd.xlane.f32.xlu0 %v2167
        %v2169 = vpop.xlane.xlu0 %2168
        %v2170 = vsel %vm2145, %v2163, 0.0
        %2171 = vadd.xlane.f32.xlu0 %v2170
        %v2172 = vpop.xlane.xlu0 %2171
        %v2173 = vrcp.pop %v2166
        %v2174 = vrcp.pop %v2169
        %v2175 = vrcp.pop %v2172
        %v2176 = vmul.f32 %v2159, %v2173
        %v2177 = vmul.f32 %v2161, %v2174
        %v2178 = vmul.f32 %v2163, %v2175
        %2179 = vrot.lane.b32.xlu0 %v2016, 64
        %v2180 = vpop.permute.xlu0 %2179
        %2181 = vrot.lane.b32.xlu0 %v2019, 64
        %v2182 = vpop.permute.xlu0 %2181
        %2183 = vrot.lane.b32.xlu0 %v2024, 64
        %v2184 = vpop.permute.xlu0 %2183
        %v2189 = vsel %vm2145, %v2176, 0
        %v2192 = vsel %vm2145, %v2177, 0
        %v2195 = vsel %vm2145, %v2178, 0
        %2197 = vmatprep.subr.mxu0 0.0
        %2198 = vmatpush1.msra.mxu0 %v2180
        %2199 = vmatprep.subr.mxu0 0.0
        %2200 = vmatpush1.msra.mxu0 %v2182
        %2201 = vmatprep.subr.mxu0 0.0
        %2202 = vmatpush1.msra.mxu0 %v2184
        %2203 = vmatprep.subr.mxu0 0.0
        %2204 = vmatpush1.msra.mxu0 0.0
        %2205 = vmatprep.subr.mxu0 0.0
        %2206 = vmatpush1.msra.mxu0 0.0
        %2207 = vmatprep.subr.mxu0 0.0
        %2208 = vmatpush1.msra.mxu0 0.0
        %2209 = vmatprep.subr.mxu0 0.0
        %2210 = vmatpush1.msra.mxu0 0.0
        %2211 = vmatprep.subr.mxu0 0.0
        %2212 = vmatpush1.msra.mxu0 0.0
        %2213 = vmatprep.subr.mxu0 0.0
        %2214 = vmatpush1.msra.mxu0 0.0
        %2215 = vmatprep.subr.mxu0 0.0
        %2216 = vmatpush1.msra.mxu0 0.0
        %2217 = vmatprep.subr.mxu0 0.0
        %2218 = vmatpush1.msra.mxu0 0.0
        %2219 = vmatprep.subr.mxu0 0.0
        %2220 = vmatpush1.msra.mxu0 0.0
        %2221 = vmatprep.subr.mxu0 0.0
        %2222 = vmatpush1.msra.mxu0 0.0
        %2223 = vmatprep.subr.mxu0 0.0
        %2224 = vmatpush1.msra.mxu0 0.0
        %2225 = vmatprep.subr.mxu0 0.0
        %2226 = vmatpush1.msra.mxu0 0.0
        %2227 = vmatprep.subr.mxu0 0.0
        %2228 = vmatpush1.msra.mxu0 0.0
        %2229 = vmatprep.subr.mxu0 0.0
        %2230 = vmatpush1.msra.mxu0 0.0
        %2231 = vmatprep.subr.mxu0 0.0
        %2232 = vmatpush1.msra.mxu0 0.0
        %2233 = vmatprep.subr.mxu0 0.0
        %2234 = vmatpush1.msra.mxu0 0.0
        %2235 = vmatprep.subr.mxu0 0.0
        %2236 = vmatpush1.msra.mxu0 0.0
        %2237 = vmatprep.subr.mxu0 0.0
        %2238 = vmatpush1.msra.mxu0 0.0
        %2239 = vmatprep.subr.mxu0 0.0
        %2240 = vmatpush1.msra.mxu0 0.0
        %2241 = vmatprep.subr.mxu0 0.0
        %2242 = vmatpush1.msra.mxu0 0.0
        %2243 = vmatprep.subr.mxu0 0.0
        %2244 = vmatpush1.msra.mxu0 0.0
        %2245 = vmatprep.subr.mxu0 0.0
        %2246 = vmatpush1.msra.mxu0 0.0
        %2247 = vmatprep.subr.mxu0 0.0
        %2248 = vmatpush1.msra.mxu0 0.0
        %2249 = vmatprep.subr.mxu0 0.0
        %2250 = vmatpush1.msra.mxu0 0.0
        %2251 = vmatprep.subr.mxu0 0.0
        %2252 = vmatpush1.msra.mxu0 0.0
        %2253 = vmatprep.subr.mxu0 0.0
        %2254 = vmatpush1.msra.mxu0 0.0
        %2255 = vmatprep.subr.mxu0 0.0
        %2256 = vmatpush1.msra.mxu0 0.0
        %2257 = vmatprep.subr.mxu0 0.0
        %2258 = vmatpush1.msra.mxu0 0.0
        %2259 = vmatprep.subr.mxu0 0.0
        %2260 = vmatpush1.msra.mxu0 0.0
        %2261 = vmatprep.mubr.f32.mxu0 0.0
        %2262 = vmatmul.mubr.f32.gmra.mrb[0].mxu0 %v2189
        %v2263 = vpop.f32.mrb[0].mxu0
        %v2264 = vadd.f32 0.0, %v2263
        %v2265 = vpop.f32.mrb[0].mxu0
        %2266 = vmatprep.mubr.f32.mxu0 0.0
        %2267 = vmatmul.mubr.f32.gmra.mrb[0].mxu0 %v2192
        %v2268 = vpop.f32.mrb[0].mxu0
        %v2269 = vadd.f32 0.0, %v2268
        %v2270 = vpop.f32.mrb[0].mxu0
        %2271 = vmatprep.mubr.f32.mxu0 0.0
        %2272 = vmatmul.mubr.f32.gmra.mrb[0].mxu0 %v2195
        %v2273 = vpop.f32.mrb[0].mxu0
        %v2274 = vadd.f32 0.0, %v2273
        %v2275 = vpop.f32.mrb[0].mxu0
        %2276 = vdwg.mxu0
        %v2277 = vpack.c.bf16 %v2269, %v2264
        %v2278 = vpack.c.bf16 %v2274, %v2274
        %v2279 = vld [vmem:[%s43] sm:$0xf]
        %v2280 = vld [vmem:[%s43 + $0x4] sm:$0xf]
        %2281 = vrot.lane.b32.xlu0 %v2016, 112
        %v2282 = vpop.permute.xlu0 %2281
        %2283 = vrot.lane.b32.xlu0 %v2019, 112
        %v2284 = vpop.permute.xlu0 %2283
        %2285 = vrot.lane.b32.xlu0 %v2024, 112
        %v2286 = vpop.permute.xlu0 %2285
        %2287 = vrot.lane.b32.xlu0 %v2016, 80
        %v2288 = vpop.permute.xlu0 %2287
        %2289 = vrot.lane.b32.xlu0 %v2019, 80
        %v2290 = vpop.permute.xlu0 %2289
        %2291 = vrot.lane.b32.xlu0 %v2024, 80
        %v2292 = vpop.permute.xlu0 %2291
        %v2293 = vsel %vm1356, %v2282, 0
        %v2295 = vsel %vm1356, %v2284, 0
        %v2297 = vsel %vm1356, %v2286, 0
        %v2299 = vsel %vm1356, %v2288, 0
        %v2301 = vsel %vm1356, %v2290, 0
        %v2303 = vsel %vm1356, %v2292, 0
        %2305 = vmatprep.subr.mxu0 0.0
        %2306 = vmatpush1.xpose.msra.mxu0 %v2299
        %2307 = vmatprep.subr.mxu0 0.0
        %2308 = vmatpush1.xpose.msra.mxu0 %v2301
        %2309 = vmatprep.subr.mxu0 0.0
        %2310 = vmatpush1.xpose.msra.mxu0 %v2303
        %2311 = vmatprep.subr.mxu0 0.0
        %2312 = vmatpush1.xpose.msra.mxu0 0.0
        %2313 = vmatprep.subr.mxu0 0.0
        %2314 = vmatpush1.xpose.msra.mxu0 0.0
        %2315 = vmatprep.subr.mxu0 0.0
        %2316 = vmatpush1.xpose.msra.mxu0 0.0
        %2317 = vmatprep.subr.mxu0 0.0
        %2318 = vmatpush1.xpose.msra.mxu0 0.0
        %2319 = vmatprep.subr.mxu0 0.0
        %2320 = vmatpush1.xpose.msra.mxu0 0.0
        %2321 = vmatprep.subr.mxu0 0.0
        %2322 = vmatpush1.xpose.msra.mxu0 0.0
        %2323 = vmatprep.subr.mxu0 0.0
        %2324 = vmatpush1.xpose.msra.mxu0 0.0
        %2325 = vmatprep.subr.mxu0 0.0
        %2326 = vmatpush1.xpose.msra.mxu0 0.0
        %2327 = vmatprep.subr.mxu0 0.0
        %2328 = vmatpush1.xpose.msra.mxu0 0.0
        %2329 = vmatprep.subr.mxu0 0.0
        %2330 = vmatpush1.xpose.msra.mxu0 0.0
        %2331 = vmatprep.subr.mxu0 0.0
        %2332 = vmatpush1.xpose.msra.mxu0 0.0
        %2333 = vmatprep.subr.mxu0 0.0
        %2334 = vmatpush1.xpose.msra.mxu0 0.0
        %2335 = vmatprep.subr.mxu0 0.0
        %2336 = vmatpush1.xpose.msra.mxu0 0.0
        %2337 = vmatprep.subr.mxu0 0.0
        %2338 = vmatpush1.xpose.msra.mxu0 0.0
        %2339 = vmatprep.subr.mxu0 0.0
        %2340 = vmatpush1.xpose.msra.mxu0 0.0
        %2341 = vmatprep.subr.mxu0 0.0
        %2342 = vmatpush1.xpose.msra.mxu0 0.0
        %2343 = vmatprep.subr.mxu0 0.0
        %2344 = vmatpush1.xpose.msra.mxu0 0.0
        %2345 = vmatprep.subr.mxu0 0.0
        %2346 = vmatpush1.xpose.msra.mxu0 0.0
        %2347 = vmatprep.subr.mxu0 0.0
        %2348 = vmatpush1.xpose.msra.mxu0 0.0
        %2349 = vmatprep.subr.mxu0 0.0
        %2350 = vmatpush1.xpose.msra.mxu0 0.0
        %2351 = vmatprep.subr.mxu0 0.0
        %2352 = vmatpush1.xpose.msra.mxu0 0.0
        %2353 = vmatprep.subr.mxu0 0.0
        %2354 = vmatpush1.xpose.msra.mxu0 0.0
        %2355 = vmatprep.subr.mxu0 0.0
        %2356 = vmatpush1.xpose.msra.mxu0 0.0
        %2357 = vmatprep.subr.mxu0 0.0
        %2358 = vmatpush1.xpose.msra.mxu0 0.0
        %2359 = vmatprep.subr.mxu0 0.0
        %2360 = vmatpush1.xpose.msra.mxu0 0.0
        %2361 = vmatprep.subr.mxu0 0.0
        %2362 = vmatpush1.xpose.msra.mxu0 0.0
        %2363 = vmatprep.subr.mxu0 0.0
        %2364 = vmatpush1.xpose.msra.mxu0 0.0
        %2365 = vmatprep.subr.mxu0 0.0
        %2366 = vmatpush1.xpose.msra.mxu0 0.0
        %2367 = vmatprep.subr.mxu0 0.0
        %2368 = vmatpush1.xpose.msra.mxu0 0.0
        %2369 = vmatprep.mubr.f32.mxu0 0.0
        %2370 = vmatmul.mubr.f32.gmra.mrb[0].mxu0 %v2293
        %v2371 = vpop.f32.mrb[0].mxu0
        %v2372 = vadd.f32 0.0, %v2371
        %v2373 = vpop.f32.mrb[0].mxu0
        %2374 = vmatprep.mubr.f32.mxu0 0.0
        %2375 = vmatmul.mubr.f32.gmra.mrb[0].mxu0 %v2295
        %v2376 = vpop.f32.mrb[0].mxu0
        %v2377 = vadd.f32 0.0, %v2376
        %v2378 = vpop.f32.mrb[0].mxu0
        %2379 = vmatprep.mubr.f32.mxu0 0.0
        %2380 = vmatmul.mubr.f32.gmra.mrb[0].mxu0 %v2297
        %v2381 = vpop.f32.mrb[0].mxu0
        %v2382 = vadd.f32 0.0, %v2381
        %v2383 = vpop.f32.mrb[0].mxu0
        %2384 = vdwg.mxu0
        %v2385 = vmul.f32 %v2372, 0.25
        %v2386 = vmul.f32 %v2377, 0.25
        %v2387 = vmul.f32 %v2382, 0.25
        %v2388 = vadd.f32 %v2385, %v1943
        %v2389 = vadd.f32 %v2386, %v1944
        %v2390 = vadd.f32 %v2387, %v1945
        %v2391 = vsel %vm2145, %v2388, -inf
        %2392 = vmax.xlane.f32.xlu0 %v2391
        %v2393 = vpop.xlane.xlu0 %2392
        %v2394 = vsel %vm2145, %v2389, -inf
        %2395 = vmax.xlane.f32.xlu0 %v2394
        %v2396 = vpop.xlane.xlu0 %2395
        %v2397 = vsel %vm2145, %v2390, -inf
        %2398 = vmax.xlane.f32.xlu0 %v2397
        %v2399 = vpop.xlane.xlu0 %2398
        %v2400 = vsub.f32 %v2388, %v2393
        %v2401 = vsub.f32 %v2389, %v2396
        %v2402 = vsub.f32 %v2390, %v2399
        %v2403 = vmul.f32 %v2400, 1.442695
        %v2404 = vpow.pop %v2403
        %v2405 = vmul.f32 %v2401, 1.442695
        %v2406 = vpow.pop %v2405
        %v2407 = vmul.f32 %v2402, 1.442695
        %v2408 = vpow.pop %v2407
        %v2409 = vsel %vm2145, %v2404, 0.0
        %2410 = vadd.xlane.f32.xlu0 %v2409
        %v2411 = vpop.xlane.xlu0 %2410
        %v2412 = vsel %vm2145, %v2406, 0.0
        %2413 = vadd.xlane.f32.xlu0 %v2412
        %v2414 = vpop.xlane.xlu0 %2413
        %v2415 = vsel %vm2145, %v2408, 0.0
        %2416 = vadd.xlane.f32.xlu0 %v2415
        %v2417 = vpop.xlane.xlu0 %2416
        %v2418 = vrcp.pop %v2411
        %v2419 = vrcp.pop %v2414
        %v2420 = vrcp.pop %v2417
        %v2421 = vmul.f32 %v2404, %v2418
        %v2422 = vmul.f32 %v2406, %v2419
        %v2423 = vmul.f32 %v2408, %v2420
        %2424 = vrot.lane.b32.xlu0 %v2016, 48
        %v2425 = vpop.permute.xlu0 %2424
        %2426 = vrot.lane.b32.xlu0 %v2019, 48
        %v2427 = vpop.permute.xlu0 %2426
        %2428 = vrot.lane.b32.xlu0 %v2024, 48
        %v2429 = vpop.permute.xlu0 %2428
        %v2434 = vsel %vm2145, %v2421, 0
        %v2437 = vsel %vm2145, %v2422, 0
        %v2440 = vsel %vm2145, %v2423, 0
        %2442 = vmatprep.subr.mxu0 0.0
        %2443 = vmatpush1.msra.mxu0 %v2425
        %2444 = vmatprep.subr.mxu0 0.0
        %2445 = vmatpush1.msra.mxu0 %v2427
        %2446 = vmatprep.subr.mxu0 0.0
        %2447 = vmatpush1.msra.mxu0 %v2429
        %2448 = vmatprep.subr.mxu0 0.0
        %2449 = vmatpush1.msra.mxu0 0.0
        %2450 = vmatprep.subr.mxu0 0.0
        %2451 = vmatpush1.msra.mxu0 0.0
        %2452 = vmatprep.subr.mxu0 0.0
        %2453 = vmatpush1.msra.mxu0 0.0
        %2454 = vmatprep.subr.mxu0 0.0
        %2455 = vmatpush1.msra.mxu0 0.0
        %2456 = vmatprep.subr.mxu0 0.0
        %2457 = vmatpush1.msra.mxu0 0.0
        %2458 = vmatprep.subr.mxu0 0.0
        %2459 = vmatpush1.msra.mxu0 0.0
        %2460 = vmatprep.subr.mxu0 0.0
        %2461 = vmatpush1.msra.mxu0 0.0
        %2462 = vmatprep.subr.mxu0 0.0
        %2463 = vmatpush1.msra.mxu0 0.0
        %2464 = vmatprep.subr.mxu0 0.0
        %2465 = vmatpush1.msra.mxu0 0.0
        %2466 = vmatprep.subr.mxu0 0.0
        %2467 = vmatpush1.msra.mxu0 0.0
        %2468 = vmatprep.subr.mxu0 0.0
        %2469 = vmatpush1.msra.mxu0 0.0
        %2470 = vmatprep.subr.mxu0 0.0
        %2471 = vmatpush1.msra.mxu0 0.0
        %2472 = vmatprep.subr.mxu0 0.0
        %2473 = vmatpush1.msra.mxu0 0.0
        %2474 = vmatprep.subr.mxu0 0.0
        %2475 = vmatpush1.msra.mxu0 0.0
        %2476 = vmatprep.subr.mxu0 0.0
        %2477 = vmatpush1.msra.mxu0 0.0
        %2478 = vmatprep.subr.mxu0 0.0
        %2479 = vmatpush1.msra.mxu0 0.0
        %2480 = vmatprep.subr.mxu0 0.0
        %2481 = vmatpush1.msra.mxu0 0.0
        %2482 = vmatprep.subr.mxu0 0.0
        %2483 = vmatpush1.msra.mxu0 0.0
        %2484 = vmatprep.subr.mxu0 0.0
        %2485 = vmatpush1.msra.mxu0 0.0
        %2486 = vmatprep.subr.mxu0 0.0
        %2487 = vmatpush1.msra.mxu0 0.0
        %2488 = vmatprep.subr.mxu0 0.0
        %2489 = vmatpush1.msra.mxu0 0.0
        %2490 = vmatprep.subr.mxu0 0.0
        %2491 = vmatpush1.msra.mxu0 0.0
        %2492 = vmatprep.subr.mxu0 0.0
        %2493 = vmatpush1.msra.mxu0 0.0
        %2494 = vmatprep.subr.mxu0 0.0
        %2495 = vmatpush1.msra.mxu0 0.0
        %2496 = vmatprep.subr.mxu0 0.0
        %2497 = vmatpush1.msra.mxu0 0.0
        %2498 = vmatprep.subr.mxu0 0.0
        %2499 = vmatpush1.msra.mxu0 0.0
        %2500 = vmatprep.subr.mxu0 0.0
        %2501 = vmatpush1.msra.mxu0 0.0
        %2502 = vmatprep.subr.mxu0 0.0
        %2503 = vmatpush1.msra.mxu0 0.0
        %2504 = vmatprep.subr.mxu0 0.0
        %2505 = vmatpush1.msra.mxu0 0.0
        %2506 = vmatprep.mubr.f32.mxu0 0.0
        %2507 = vmatmul.mubr.f32.gmra.mrb[0].mxu0 %v2434
        %v2508 = vpop.f32.mrb[0].mxu0
        %v2509 = vadd.f32 0.0, %v2508
        %v2510 = vpop.f32.mrb[0].mxu0
        %2511 = vmatprep.mubr.f32.mxu0 0.0
        %2512 = vmatmul.mubr.f32.gmra.mrb[0].mxu0 %v2437
        %v2513 = vpop.f32.mrb[0].mxu0
        %v2514 = vadd.f32 0.0, %v2513
        %v2515 = vpop.f32.mrb[0].mxu0
        %2516 = vmatprep.mubr.f32.mxu0 0.0
        %2517 = vmatmul.mubr.f32.gmra.mrb[0].mxu0 %v2440
        %v2518 = vpop.f32.mrb[0].mxu0
        %v2519 = vadd.f32 0.0, %v2518
        %v2520 = vpop.f32.mrb[0].mxu0
        %2521 = vdwg.mxu0
        %v2522 = vpack.c.bf16 %v2514, %v2509
        %v2523 = vpack.c.bf16 %v2519, %v2519
        %s2524 = scalar_lea.vmem %s43, 8
        %v2525 = vld [vmem:[%s2524] sm:$0xf]
        %v2526 = vld [vmem:[%s2524 + $0x4] sm:$0xf]
        %v2529 = vunpack.c.l.b16 %v2525
        %v2530 = vunpack.c.l.b16 %v2526
        %v2531 = vpack.c.b16 %v2530, %v2529
        %v2534 = vsel %vm1356, %v2522, 0
        %v2537 = vsel %vm1356, %v2523, 0
        %2539 = vmatprep.subr.bf16.mxu0 0
        %2540 = vmatpush1.bf16.msra.mxu0 %v2531
        %2541 = vmatprep.subr.bf16.mxu0 0
        %2542 = vmatpush1.bf16.msra.mxu0 0
        %2543 = vmatprep.subr.bf16.mxu0 0
        %2544 = vmatpush1.bf16.msra.mxu0 0
        %2545 = vmatprep.subr.bf16.mxu0 0
        %2546 = vmatpush1.bf16.msra.mxu0 0
        %2547 = vmatprep.subr.bf16.mxu0 0
        %2548 = vmatpush1.bf16.msra.mxu0 0
        %2549 = vmatprep.subr.bf16.mxu0 0
        %2550 = vmatpush1.bf16.msra.mxu0 0
        %2551 = vmatprep.subr.bf16.mxu0 0
        %2552 = vmatpush1.bf16.msra.mxu0 0
        %2553 = vmatprep.subr.bf16.mxu0 0
        %2554 = vmatpush1.bf16.msra.mxu0 0
        %2555 = vmatprep.subr.bf16.mxu0 0
        %2556 = vmatpush1.bf16.msra.mxu0 0
        %2557 = vmatprep.subr.bf16.mxu0 0
        %2558 = vmatpush1.bf16.msra.mxu0 0
        %2559 = vmatprep.subr.bf16.mxu0 0
        %2560 = vmatpush1.bf16.msra.mxu0 0
        %2561 = vmatprep.subr.bf16.mxu0 0
        %2562 = vmatpush1.bf16.msra.mxu0 0
        %2563 = vmatprep.subr.bf16.mxu0 0
        %2564 = vmatpush1.bf16.msra.mxu0 0
        %2565 = vmatprep.subr.bf16.mxu0 0
        %2566 = vmatpush1.bf16.msra.mxu0 0
        %2567 = vmatprep.subr.bf16.mxu0 0
        %2568 = vmatpush1.bf16.msra.mxu0 0
        %2569 = vmatprep.subr.bf16.mxu0 0
        %2570 = vmatpush1.bf16.msra.mxu0 0
        %2571 = vmatprep.mubr.bf16.mxu0 0
        %2572 = vmatmul.mubr.bf16.gmra.mrb[0].mxu0 %v2534
        %v2573 = vpop.f32.mrb[0].mxu0
        %v2574 = vadd.f32 0.0, %v2573
        %v2575 = vpop.f32.mrb[0].mxu0
        %v2576 = vpop.f32.mrb[0].mxu0
        %v2577 = vadd.f32 0.0, %v2576
        %v2578 = vpop.f32.mrb[0].mxu0
        %2579 = vmatprep.mubr.bf16.mxu0 0
        %2580 = vmatmul.mubr.bf16.gmra.mrb[0].mxu0 %v2537
        %v2581 = vpop.f32.mrb[0].mxu0
        %v2582 = vadd.f32 0.0, %v2581
        %v2583 = vpop.f32.mrb[0].mxu0
        %v2584 = vpop.f32.mrb[0].mxu0
        %v2585 = vpop.f32.mrb[0].mxu0
        %2586 = vdwg.mxu0
        %v2589 = vunpack.c.l.b16 %v2279
        %v2590 = vunpack.c.l.b16 %v2280
        %v2591 = vpack.c.b16 %v2590, %v2589
        %v2594 = vsel %vm1356, %v2277, 0
        %v2597 = vsel %vm1356, %v2278, 0
        %2599 = vmatprep.subr.bf16.mxu0 0
        %2600 = vmatpush1.bf16.msra.mxu0 %v2591
        %2601 = vmatprep.subr.bf16.mxu0 0
        %2602 = vmatpush1.bf16.msra.mxu0 0
        %2603 = vmatprep.subr.bf16.mxu0 0
        %2604 = vmatpush1.bf16.msra.mxu0 0
        %2605 = vmatprep.subr.bf16.mxu0 0
        %2606 = vmatpush1.bf16.msra.mxu0 0
        %2607 = vmatprep.subr.bf16.mxu0 0
        %2608 = vmatpush1.bf16.msra.mxu0 0
        %2609 = vmatprep.subr.bf16.mxu0 0
        %2610 = vmatpush1.bf16.msra.mxu0 0
        %2611 = vmatprep.subr.bf16.mxu0 0
        %2612 = vmatpush1.bf16.msra.mxu0 0
        %2613 = vmatprep.subr.bf16.mxu0 0
        %2614 = vmatpush1.bf16.msra.mxu0 0
        %2615 = vmatprep.subr.bf16.mxu0 0
        %2616 = vmatpush1.bf16.msra.mxu0 0
        %2617 = vmatprep.subr.bf16.mxu0 0
        %2618 = vmatpush1.bf16.msra.mxu0 0
        %2619 = vmatprep.subr.bf16.mxu0 0
        %2620 = vmatpush1.bf16.msra.mxu0 0
        %2621 = vmatprep.subr.bf16.mxu0 0
        %2622 = vmatpush1.bf16.msra.mxu0 0
        %2623 = vmatprep.subr.bf16.mxu0 0
        %2624 = vmatpush1.bf16.msra.mxu0 0
        %2625 = vmatprep.subr.bf16.mxu0 0
        %2626 = vmatpush1.bf16.msra.mxu0 0
        %2627 = vmatprep.subr.bf16.mxu0 0
        %2628 = vmatpush1.bf16.msra.mxu0 0
        %2629 = vmatprep.subr.bf16.mxu0 0
        %2630 = vmatpush1.bf16.msra.mxu0 0
        %2631 = vmatprep.mubr.bf16.mxu0 0
        %2632 = vmatmul.mubr.bf16.gmra.mrb[0].mxu0 %v2594
        %v2633 = vpop.f32.mrb[0].mxu0
        %v2634 = vadd.f32 %v2574, %v2633
        %v2635 = vpop.f32.mrb[0].mxu0
        %v2636 = vpop.f32.mrb[0].mxu0
        %v2637 = vadd.f32 %v2577, %v2636
        %v2638 = vpop.f32.mrb[0].mxu0
        %2639 = vmatprep.mubr.bf16.mxu0 0
        %2640 = vmatmul.mubr.bf16.gmra.mrb[0].mxu0 %v2597
        %v2641 = vpop.f32.mrb[0].mxu0
        %v2642 = vadd.f32 %v2582, %v2641
        %v2643 = vpop.f32.mrb[0].mxu0
        %v2644 = vpop.f32.mrb[0].mxu0
        %v2645 = vpop.f32.mrb[0].mxu0
        %2646 = vdwg.mxu0
        %2650 = vrot.lane.b32.xlu0 %v2027, 96
        %v2651 = vpop.permute.xlu0 %2650
        %2652 = vrot.lane.b32.xlu0 %v2032, 96
        %v2653 = vpop.permute.xlu0 %2652
        %2654 = vrot.lane.b32.xlu0 %v2035, 96
        %v2655 = vpop.permute.xlu0 %2654
        %v2656 = vsel %vm1356, %v2027, 0
        %v2658 = vsel %vm1356, %v2032, 0
        %v2660 = vsel %vm1356, %v2035, 0
        %v2662 = vsel %vm1356, %v2651, 0
        %v2664 = vsel %vm1356, %v2653, 0
        %v2666 = vsel %vm1356, %v2655, 0
        %2668 = vmatprep.subr.mxu0 0.0
        %2669 = vmatpush1.xpose.msra.mxu0 %v2662
        %2670 = vmatprep.subr.mxu0 0.0
        %2671 = vmatpush1.xpose.msra.mxu0 %v2664
        %2672 = vmatprep.subr.mxu0 0.0
        %2673 = vmatpush1.xpose.msra.mxu0 %v2666
        %2674 = vmatprep.subr.mxu0 0.0
        %2675 = vmatpush1.xpose.msra.mxu0 0.0
        %2676 = vmatprep.subr.mxu0 0.0
        %2677 = vmatpush1.xpose.msra.mxu0 0.0
        %2678 = vmatprep.subr.mxu0 0.0
        %2679 = vmatpush1.xpose.msra.mxu0 0.0
        %2680 = vmatprep.subr.mxu0 0.0
        %2681 = vmatpush1.xpose.msra.mxu0 0.0
        %2682 = vmatprep.subr.mxu0 0.0
        %2683 = vmatpush1.xpose.msra.mxu0 0.0
        %2684 = vmatprep.subr.mxu0 0.0
        %2685 = vmatpush1.xpose.msra.mxu0 0.0
        %2686 = vmatprep.subr.mxu0 0.0
        %2687 = vmatpush1.xpose.msra.mxu0 0.0
        %2688 = vmatprep.subr.mxu0 0.0
        %2689 = vmatpush1.xpose.msra.mxu0 0.0
        %2690 = vmatprep.subr.mxu0 0.0
        %2691 = vmatpush1.xpose.msra.mxu0 0.0
        %2692 = vmatprep.subr.mxu0 0.0
        %2693 = vmatpush1.xpose.msra.mxu0 0.0
        %2694 = vmatprep.subr.mxu0 0.0
        %2695 = vmatpush1.xpose.msra.mxu0 0.0
        %2696 = vmatprep.subr.mxu0 0.0
        %2697 = vmatpush1.xpose.msra.mxu0 0.0
        %2698 = vmatprep.subr.mxu0 0.0
        %2699 = vmatpush1.xpose.msra.mxu0 0.0
        %2700 = vmatprep.subr.mxu0 0.0
        %2701 = vmatpush1.xpose.msra.mxu0 0.0
        %2702 = vmatprep.subr.mxu0 0.0
        %2703 = vmatpush1.xpose.msra.mxu0 0.0
        %2704 = vmatprep.subr.mxu0 0.0
        %2705 = vmatpush1.xpose.msra.mxu0 0.0
        %2706 = vmatprep.subr.mxu0 0.0
        %2707 = vmatpush1.xpose.msra.mxu0 0.0
        %2708 = vmatprep.subr.mxu0 0.0
        %2709 = vmatpush1.xpose.msra.mxu0 0.0
        %2710 = vmatprep.subr.mxu0 0.0
        %2711 = vmatpush1.xpose.msra.mxu0 0.0
        %2712 = vmatprep.subr.mxu0 0.0
        %2713 = vmatpush1.xpose.msra.mxu0 0.0
        %2714 = vmatprep.subr.mxu0 0.0
        %2715 = vmatpush1.xpose.msra.mxu0 0.0
        %2716 = vmatprep.subr.mxu0 0.0
        %2717 = vmatpush1.xpose.msra.mxu0 0.0
        %2718 = vmatprep.subr.mxu0 0.0
        %2719 = vmatpush1.xpose.msra.mxu0 0.0
        %2720 = vmatprep.subr.mxu0 0.0
        %2721 = vmatpush1.xpose.msra.mxu0 0.0
        %2722 = vmatprep.subr.mxu0 0.0
        %2723 = vmatpush1.xpose.msra.mxu0 0.0
        %2724 = vmatprep.subr.mxu0 0.0
        %2725 = vmatpush1.xpose.msra.mxu0 0.0
        %2726 = vmatprep.subr.mxu0 0.0
        %2727 = vmatpush1.xpose.msra.mxu0 0.0
        %2728 = vmatprep.subr.mxu0 0.0
        %2729 = vmatpush1.xpose.msra.mxu0 0.0
        %2730 = vmatprep.subr.mxu0 0.0
        %2731 = vmatpush1.xpose.msra.mxu0 0.0
        %2732 = vmatprep.mubr.f32.mxu0 0.0
        %2733 = vmatmul.mubr.f32.gmra.mrb[0].mxu0 %v2656
        %v2734 = vpop.f32.mrb[0].mxu0
        %v2735 = vadd.f32 0.0, %v2734
        %v2736 = vpop.f32.mrb[0].mxu0
        %2737 = vmatprep.mubr.f32.mxu0 0.0
        %2738 = vmatmul.mubr.f32.gmra.mrb[0].mxu0 %v2658
        %v2739 = vpop.f32.mrb[0].mxu0
        %v2740 = vadd.f32 0.0, %v2739
        %v2741 = vpop.f32.mrb[0].mxu0
        %2742 = vmatprep.mubr.f32.mxu0 0.0
        %2743 = vmatmul.mubr.f32.gmra.mrb[0].mxu0 %v2660
        %v2744 = vpop.f32.mrb[0].mxu0
        %v2745 = vadd.f32 0.0, %v2744
        %v2746 = vpop.f32.mrb[0].mxu0
        %2747 = vdwg.mxu0
        %v2748 = vmul.f32 %v2735, 0.25
        %v2749 = vmul.f32 %v2740, 0.25
        %v2750 = vmul.f32 %v2745, 0.25
        %v2751 = vadd.f32 %v2748, %v1943
        %v2752 = vadd.f32 %v2749, %v1944
        %v2753 = vadd.f32 %v2750, %v1945
        %v2754 = vsel %vm2145, %v2751, -inf
        %2755 = vmax.xlane.f32.xlu0 %v2754
        %v2756 = vpop.xlane.xlu0 %2755
        %v2757 = vsel %vm2145, %v2752, -inf
        %2758 = vmax.xlane.f32.xlu0 %v2757
        %v2759 = vpop.xlane.xlu0 %2758
        %v2760 = vsel %vm2145, %v2753, -inf
        %2761 = vmax.xlane.f32.xlu0 %v2760
        %v2762 = vpop.xlane.xlu0 %2761
        %v2763 = vsub.f32 %v2751, %v2756
        %v2764 = vsub.f32 %v2752, %v2759
        %v2765 = vsub.f32 %v2753, %v2762
        %v2766 = vmul.f32 %v2763, 1.442695
        %v2767 = vpow.pop %v2766
        %v2768 = vmul.f32 %v2764, 1.442695
        %v2769 = vpow.pop %v2768
        %v2770 = vmul.f32 %v2765, 1.442695
        %v2771 = vpow.pop %v2770
        %v2772 = vsel %vm2145, %v2767, 0.0
        %2773 = vadd.xlane.f32.xlu0 %v2772
        %v2774 = vpop.xlane.xlu0 %2773
        %v2775 = vsel %vm2145, %v2769, 0.0
        %2776 = vadd.xlane.f32.xlu0 %v2775
        %v2777 = vpop.xlane.xlu0 %2776
        %v2778 = vsel %vm2145, %v2771, 0.0
        %2779 = vadd.xlane.f32.xlu0 %v2778
        %v2780 = vpop.xlane.xlu0 %2779
        %v2781 = vrcp.pop %v2774
        %v2782 = vrcp.pop %v2777
        %v2783 = vrcp.pop %v2780
        %v2784 = vmul.f32 %v2767, %v2781
        %v2785 = vmul.f32 %v2769, %v2782
        %v2786 = vmul.f32 %v2771, %v2783
        %2787 = vrot.lane.b32.xlu0 %v2027, 64
        %v2788 = vpop.permute.xlu0 %2787
        %2789 = vrot.lane.b32.xlu0 %v2032, 64
        %v2790 = vpop.permute.xlu0 %2789
        %2791 = vrot.lane.b32.xlu0 %v2035, 64
        %v2792 = vpop.permute.xlu0 %2791
        %v2797 = vsel %vm2145, %v2784, 0
        %v2800 = vsel %vm2145, %v2785, 0
        %v2803 = vsel %vm2145, %v2786, 0
        %2805 = vmatprep.subr.mxu0 0.0
        %2806 = vmatpush1.msra.mxu0 %v2788
        %2807 = vmatprep.subr.mxu0 0.0
        %2808 = vmatpush1.msra.mxu0 %v2790
        %2809 = vmatprep.subr.mxu0 0.0
        %2810 = vmatpush1.msra.mxu0 %v2792
        %2811 = vmatprep.subr.mxu0 0.0
        %2812 = vmatpush1.msra.mxu0 0.0
        %2813 = vmatprep.subr.mxu0 0.0
        %2814 = vmatpush1.msra.mxu0 0.0
        %2815 = vmatprep.subr.mxu0 0.0
        %2816 = vmatpush1.msra.mxu0 0.0
        %2817 = vmatprep.subr.mxu0 0.0
        %2818 = vmatpush1.msra.mxu0 0.0
        %2819 = vmatprep.subr.mxu0 0.0
        %2820 = vmatpush1.msra.mxu0 0.0
        %2821 = vmatprep.subr.mxu0 0.0
        %2822 = vmatpush1.msra.mxu0 0.0
        %2823 = vmatprep.subr.mxu0 0.0
        %2824 = vmatpush1.msra.mxu0 0.0
        %2825 = vmatprep.subr.mxu0 0.0
        %2826 = vmatpush1.msra.mxu0 0.0
        %2827 = vmatprep.subr.mxu0 0.0
        %2828 = vmatpush1.msra.mxu0 0.0
        %2829 = vmatprep.subr.mxu0 0.0
        %2830 = vmatpush1.msra.mxu0 0.0
        %2831 = vmatprep.subr.mxu0 0.0
        %2832 = vmatpush1.msra.mxu0 0.0
        %2833 = vmatprep.subr.mxu0 0.0
        %2834 = vmatpush1.msra.mxu0 0.0
        %2835 = vmatprep.subr.mxu0 0.0
        %2836 = vmatpush1.msra.mxu0 0.0
        %2837 = vmatprep.subr.mxu0 0.0
        %2838 = vmatpush1.msra.mxu0 0.0
        %2839 = vmatprep.subr.mxu0 0.0
        %2840 = vmatpush1.msra.mxu0 0.0
        %2841 = vmatprep.subr.mxu0 0.0
        %2842 = vmatpush1.msra.mxu0 0.0
        %2843 = vmatprep.subr.mxu0 0.0
        %2844 = vmatpush1.msra.mxu0 0.0
        %2845 = vmatprep.subr.mxu0 0.0
        %2846 = vmatpush1.msra.mxu0 0.0
        %2847 = vmatprep.subr.mxu0 0.0
        %2848 = vmatpush1.msra.mxu0 0.0
        %2849 = vmatprep.subr.mxu0 0.0
        %2850 = vmatpush1.msra.mxu0 0.0
        %2851 = vmatprep.subr.mxu0 0.0
        %2852 = vmatpush1.msra.mxu0 0.0
        %2853 = vmatprep.subr.mxu0 0.0
        %2854 = vmatpush1.msra.mxu0 0.0
        %2855 = vmatprep.subr.mxu0 0.0
        %2856 = vmatpush1.msra.mxu0 0.0
        %2857 = vmatprep.subr.mxu0 0.0
        %2858 = vmatpush1.msra.mxu0 0.0
        %2859 = vmatprep.subr.mxu0 0.0
        %2860 = vmatpush1.msra.mxu0 0.0
        %2861 = vmatprep.subr.mxu0 0.0
        %2862 = vmatpush1.msra.mxu0 0.0
        %2863 = vmatprep.subr.mxu0 0.0
        %2864 = vmatpush1.msra.mxu0 0.0
        %2865 = vmatprep.subr.mxu0 0.0
        %2866 = vmatpush1.msra.mxu0 0.0
        %2867 = vmatprep.subr.mxu0 0.0
        %2868 = vmatpush1.msra.mxu0 0.0
        %2869 = vmatprep.mubr.f32.mxu0 0.0
        %2870 = vmatmul.mubr.f32.gmra.mrb[0].mxu0 %v2797
        %v2871 = vpop.f32.mrb[0].mxu0
        %v2872 = vadd.f32 0.0, %v2871
        %v2873 = vpop.f32.mrb[0].mxu0
        %2874 = vmatprep.mubr.f32.mxu0 0.0
        %2875 = vmatmul.mubr.f32.gmra.mrb[0].mxu0 %v2800
        %v2876 = vpop.f32.mrb[0].mxu0
        %v2877 = vadd.f32 0.0, %v2876
        %v2878 = vpop.f32.mrb[0].mxu0
        %2879 = vmatprep.mubr.f32.mxu0 0.0
        %2880 = vmatmul.mubr.f32.gmra.mrb[0].mxu0 %v2803
        %v2881 = vpop.f32.mrb[0].mxu0
        %v2882 = vadd.f32 0.0, %v2881
        %v2883 = vpop.f32.mrb[0].mxu0
        %2884 = vdwg.mxu0
        %v2885 = vpack.c.bf16 %v2877, %v2872
        %v2886 = vpack.c.bf16 %v2882, %v2882
        %2887 = vrot.lane.b32.xlu0 %v2027, 112
        %v2888 = vpop.permute.xlu0 %2887
        %2889 = vrot.lane.b32.xlu0 %v2032, 112
        %v2890 = vpop.permute.xlu0 %2889
        %2891 = vrot.lane.b32.xlu0 %v2035, 112
        %v2892 = vpop.permute.xlu0 %2891
        %2893 = vrot.lane.b32.xlu0 %v2027, 80
        %v2894 = vpop.permute.xlu0 %2893
        %2895 = vrot.lane.b32.xlu0 %v2032, 80
        %v2896 = vpop.permute.xlu0 %2895
        %2897 = vrot.lane.b32.xlu0 %v2035, 80
        %v2898 = vpop.permute.xlu0 %2897
        %v2899 = vsel %vm1356, %v2888, 0
        %v2901 = vsel %vm1356, %v2890, 0
        %v2903 = vsel %vm1356, %v2892, 0
        %v2905 = vsel %vm1356, %v2894, 0
        %v2907 = vsel %vm1356, %v2896, 0
        %v2909 = vsel %vm1356, %v2898, 0
        %2911 = vmatprep.subr.mxu0 0.0
        %2912 = vmatpush1.xpose.msra.mxu0 %v2905
        %2913 = vmatprep.subr.mxu0 0.0
        %2914 = vmatpush1.xpose.msra.mxu0 %v2907
        %2915 = vmatprep.subr.mxu0 0.0
        %2916 = vmatpush1.xpose.msra.mxu0 %v2909
        %2917 = vmatprep.subr.mxu0 0.0
        %2918 = vmatpush1.xpose.msra.mxu0 0.0
        %2919 = vmatprep.subr.mxu0 0.0
        %2920 = vmatpush1.xpose.msra.mxu0 0.0
        %2921 = vmatprep.subr.mxu0 0.0
        %2922 = vmatpush1.xpose.msra.mxu0 0.0
        %2923 = vmatprep.subr.mxu0 0.0
        %2924 = vmatpush1.xpose.msra.mxu0 0.0
        %2925 = vmatprep.subr.mxu0 0.0
        %2926 = vmatpush1.xpose.msra.mxu0 0.0
        %2927 = vmatprep.subr.mxu0 0.0
        %2928 = vmatpush1.xpose.msra.mxu0 0.0
        %2929 = vmatprep.subr.mxu0 0.0
        %2930 = vmatpush1.xpose.msra.mxu0 0.0
        %2931 = vmatprep.subr.mxu0 0.0
        %2932 = vmatpush1.xpose.msra.mxu0 0.0
        %2933 = vmatprep.subr.mxu0 0.0
        %2934 = vmatpush1.xpose.msra.mxu0 0.0
        %2935 = vmatprep.subr.mxu0 0.0
        %2936 = vmatpush1.xpose.msra.mxu0 0.0
        %2937 = vmatprep.subr.mxu0 0.0
        %2938 = vmatpush1.xpose.msra.mxu0 0.0
        %2939 = vmatprep.subr.mxu0 0.0
        %2940 = vmatpush1.xpose.msra.mxu0 0.0
        %2941 = vmatprep.subr.mxu0 0.0
        %2942 = vmatpush1.xpose.msra.mxu0 0.0
        %2943 = vmatprep.subr.mxu0 0.0
        %2944 = vmatpush1.xpose.msra.mxu0 0.0
        %2945 = vmatprep.subr.mxu0 0.0
        %2946 = vmatpush1.xpose.msra.mxu0 0.0
        %2947 = vmatprep.subr.mxu0 0.0
        %2948 = vmatpush1.xpose.msra.mxu0 0.0
        %2949 = vmatprep.subr.mxu0 0.0
        %2950 = vmatpush1.xpose.msra.mxu0 0.0
        %2951 = vmatprep.subr.mxu0 0.0
        %2952 = vmatpush1.xpose.msra.mxu0 0.0
        %2953 = vmatprep.subr.mxu0 0.0
        %2954 = vmatpush1.xpose.msra.mxu0 0.0
        %2955 = vmatprep.subr.mxu0 0.0
        %2956 = vmatpush1.xpose.msra.mxu0 0.0
        %2957 = vmatprep.subr.mxu0 0.0
        %2958 = vmatpush1.xpose.msra.mxu0 0.0
        %2959 = vmatprep.subr.mxu0 0.0
        %2960 = vmatpush1.xpose.msra.mxu0 0.0
        %2961 = vmatprep.subr.mxu0 0.0
        %2962 = vmatpush1.xpose.msra.mxu0 0.0
        %2963 = vmatprep.subr.mxu0 0.0
        %2964 = vmatpush1.xpose.msra.mxu0 0.0
        %2965 = vmatprep.subr.mxu0 0.0
        %2966 = vmatpush1.xpose.msra.mxu0 0.0
        %2967 = vmatprep.subr.mxu0 0.0
        %2968 = vmatpush1.xpose.msra.mxu0 0.0
        %2969 = vmatprep.subr.mxu0 0.0
        %2970 = vmatpush1.xpose.msra.mxu0 0.0
        %2971 = vmatprep.subr.mxu0 0.0
        %2972 = vmatpush1.xpose.msra.mxu0 0.0
        %2973 = vmatprep.subr.mxu0 0.0
        %2974 = vmatpush1.xpose.msra.mxu0 0.0
        %2975 = vmatprep.mubr.f32.mxu0 0.0
        %2976 = vmatmul.mubr.f32.gmra.mrb[0].mxu0 %v2899
        %v2977 = vpop.f32.mrb[0].mxu0
        %v2978 = vadd.f32 0.0, %v2977
        %v2979 = vpop.f32.mrb[0].mxu0
        %2980 = vmatprep.mubr.f32.mxu0 0.0
        %2981 = vmatmul.mubr.f32.gmra.mrb[0].mxu0 %v2901
        %v2982 = vpop.f32.mrb[0].mxu0
        %v2983 = vadd.f32 0.0, %v2982
        %v2984 = vpop.f32.mrb[0].mxu0
        %2985 = vmatprep.mubr.f32.mxu0 0.0
        %2986 = vmatmul.mubr.f32.gmra.mrb[0].mxu0 %v2903
        %v2987 = vpop.f32.mrb[0].mxu0
        %v2988 = vadd.f32 0.0, %v2987
        %v2989 = vpop.f32.mrb[0].mxu0
        %2990 = vdwg.mxu0
        %v2991 = vmul.f32 %v2978, 0.25
        %v2992 = vmul.f32 %v2983, 0.25
        %v2993 = vmul.f32 %v2988, 0.25
        %v2994 = vadd.f32 %v2991, %v1943
        %v2995 = vadd.f32 %v2992, %v1944
        %v2996 = vadd.f32 %v2993, %v1945
        %v2997 = vsel %vm2145, %v2994, -inf
        %2998 = vmax.xlane.f32.xlu0 %v2997
        %v2999 = vpop.xlane.xlu0 %2998
        %v3000 = vsel %vm2145, %v2995, -inf
        %3001 = vmax.xlane.f32.xlu0 %v3000
        %v3002 = vpop.xlane.xlu0 %3001
        %v3003 = vsel %vm2145, %v2996, -inf
        %3004 = vmax.xlane.f32.xlu0 %v3003
        %v3005 = vpop.xlane.xlu0 %3004
        %v3006 = vsub.f32 %v2994, %v2999
        %v3007 = vsub.f32 %v2995, %v3002
        %v3008 = vsub.f32 %v2996, %v3005
        %v3009 = vmul.f32 %v3006, 1.442695
        %v3010 = vpow.pop %v3009
        %v3011 = vmul.f32 %v3007, 1.442695
        %v3012 = vpow.pop %v3011
        %v3013 = vmul.f32 %v3008, 1.442695
        %v3014 = vpow.pop %v3013
        %v3015 = vsel %vm2145, %v3010, 0.0
        %3016 = vadd.xlane.f32.xlu0 %v3015
        %v3017 = vpop.xlane.xlu0 %3016
        %v3018 = vsel %vm2145, %v3012, 0.0
        %3019 = vadd.xlane.f32.xlu0 %v3018
        %v3020 = vpop.xlane.xlu0 %3019
        %v3021 = vsel %vm2145, %v3014, 0.0
        %3022 = vadd.xlane.f32.xlu0 %v3021
        %v3023 = vpop.xlane.xlu0 %3022
        %v3024 = vrcp.pop %v3017
        %v3025 = vrcp.pop %v3020
        %v3026 = vrcp.pop %v3023
        %v3027 = vmul.f32 %v3010, %v3024
        %v3028 = vmul.f32 %v3012, %v3025
        %v3029 = vmul.f32 %v3014, %v3026
        %3030 = vrot.lane.b32.xlu0 %v2027, 48
        %v3031 = vpop.permute.xlu0 %3030
        %3032 = vrot.lane.b32.xlu0 %v2032, 48
        %v3033 = vpop.permute.xlu0 %3032
        %3034 = vrot.lane.b32.xlu0 %v2035, 48
        %v3035 = vpop.permute.xlu0 %3034
        %v3040 = vsel %vm2145, %v3027, 0
        %v3043 = vsel %vm2145, %v3028, 0
        %v3046 = vsel %vm2145, %v3029, 0
        %3048 = vmatprep.subr.mxu0 0.0
        %3049 = vmatpush1.msra.mxu0 %v3031
        %3050 = vmatprep.subr.mxu0 0.0
        %3051 = vmatpush1.msra.mxu0 %v3033
        %3052 = vmatprep.subr.mxu0 0.0
        %3053 = vmatpush1.msra.mxu0 %v3035
        %3054 = vmatprep.subr.mxu0 0.0
        %3055 = vmatpush1.msra.mxu0 0.0
        %3056 = vmatprep.subr.mxu0 0.0
        %3057 = vmatpush1.msra.mxu0 0.0
        %3058 = vmatprep.subr.mxu0 0.0
        %3059 = vmatpush1.msra.mxu0 0.0
        %3060 = vmatprep.subr.mxu0 0.0
        %3061 = vmatpush1.msra.mxu0 0.0
        %3062 = vmatprep.subr.mxu0 0.0
        %3063 = vmatpush1.msra.mxu0 0.0
        %3064 = vmatprep.subr.mxu0 0.0
        %3065 = vmatpush1.msra.mxu0 0.0
        %3066 = vmatprep.subr.mxu0 0.0
        %3067 = vmatpush1.msra.mxu0 0.0
        %3068 = vmatprep.subr.mxu0 0.0
        %3069 = vmatpush1.msra.mxu0 0.0
        %3070 = vmatprep.subr.mxu0 0.0
        %3071 = vmatpush1.msra.mxu0 0.0
        %3072 = vmatprep.subr.mxu0 0.0
        %3073 = vmatpush1.msra.mxu0 0.0
        %3074 = vmatprep.subr.mxu0 0.0
        %3075 = vmatpush1.msra.mxu0 0.0
        %3076 = vmatprep.subr.mxu0 0.0
        %3077 = vmatpush1.msra.mxu0 0.0
        %3078 = vmatprep.subr.mxu0 0.0
        %3079 = vmatpush1.msra.mxu0 0.0
        %3080 = vmatprep.subr.mxu0 0.0
        %3081 = vmatpush1.msra.mxu0 0.0
        %3082 = vmatprep.subr.mxu0 0.0
        %3083 = vmatpush1.msra.mxu0 0.0
        %3084 = vmatprep.subr.mxu0 0.0
        %3085 = vmatpush1.msra.mxu0 0.0
        %3086 = vmatprep.subr.mxu0 0.0
        %3087 = vmatpush1.msra.mxu0 0.0
        %3088 = vmatprep.subr.mxu0 0.0
        %3089 = vmatpush1.msra.mxu0 0.0
        %3090 = vmatprep.subr.mxu0 0.0
        %3091 = vmatpush1.msra.mxu0 0.0
        %3092 = vmatprep.subr.mxu0 0.0
        %3093 = vmatpush1.msra.mxu0 0.0
        %3094 = vmatprep.subr.mxu0 0.0
        %3095 = vmatpush1.msra.mxu0 0.0
        %3096 = vmatprep.subr.mxu0 0.0
        %3097 = vmatpush1.msra.mxu0 0.0
        %3098 = vmatprep.subr.mxu0 0.0
        %3099 = vmatpush1.msra.mxu0 0.0
        %3100 = vmatprep.subr.mxu0 0.0
        %3101 = vmatpush1.msra.mxu0 0.0
        %3102 = vmatprep.subr.mxu0 0.0
        %3103 = vmatpush1.msra.mxu0 0.0
        %3104 = vmatprep.subr.mxu0 0.0
        %3105 = vmatpush1.msra.mxu0 0.0
        %3106 = vmatprep.subr.mxu0 0.0
        %3107 = vmatpush1.msra.mxu0 0.0
        %3108 = vmatprep.subr.mxu0 0.0
        %3109 = vmatpush1.msra.mxu0 0.0
        %3110 = vmatprep.subr.mxu0 0.0
        %3111 = vmatpush1.msra.mxu0 0.0
        %3112 = vmatprep.mubr.f32.mxu0 0.0
        %3113 = vmatmul.mubr.f32.gmra.mrb[0].mxu0 %v3040
        %v3114 = vpop.f32.mrb[0].mxu0
        %v3115 = vadd.f32 0.0, %v3114
        %v3116 = vpop.f32.mrb[0].mxu0
        %3117 = vmatprep.mubr.f32.mxu0 0.0
        %3118 = vmatmul.mubr.f32.gmra.mrb[0].mxu0 %v3043
        %v3119 = vpop.f32.mrb[0].mxu0
        %v3120 = vadd.f32 0.0, %v3119
        %v3121 = vpop.f32.mrb[0].mxu0
        %3122 = vmatprep.mubr.f32.mxu0 0.0
        %3123 = vmatmul.mubr.f32.gmra.mrb[0].mxu0 %v3046
        %v3124 = vpop.f32.mrb[0].mxu0
        %v3125 = vadd.f32 0.0, %v3124
        %v3126 = vpop.f32.mrb[0].mxu0
        %3127 = vdwg.mxu0
        %v3128 = vpack.c.bf16 %v3120, %v3115
        %v3129 = vpack.c.bf16 %v3125, %v3125
        %v3131 = vsel %vm1356, %v3128, 0
        %v3134 = vsel %vm1356, %v3129, 0
        %3136 = vmatprep.subr.bf16.mxu0 0
        %3137 = vmatpush1.bf16.msra.mxu0 %v2531
        %3138 = vmatprep.subr.bf16.mxu0 0
        %3139 = vmatpush1.bf16.msra.mxu0 0
        %3140 = vmatprep.subr.bf16.mxu0 0
        %3141 = vmatpush1.bf16.msra.mxu0 0
        %3142 = vmatprep.subr.bf16.mxu0 0
        %3143 = vmatpush1.bf16.msra.mxu0 0
        %3144 = vmatprep.subr.bf16.mxu0 0
        %3145 = vmatpush1.bf16.msra.mxu0 0
        %3146 = vmatprep.subr.bf16.mxu0 0
        %3147 = vmatpush1.bf16.msra.mxu0 0
        %3148 = vmatprep.subr.bf16.mxu0 0
        %3149 = vmatpush1.bf16.msra.mxu0 0
        %3150 = vmatprep.subr.bf16.mxu0 0
        %3151 = vmatpush1.bf16.msra.mxu0 0
        %3152 = vmatprep.subr.bf16.mxu0 0
        %3153 = vmatpush1.bf16.msra.mxu0 0
        %3154 = vmatprep.subr.bf16.mxu0 0
        %3155 = vmatpush1.bf16.msra.mxu0 0
        %3156 = vmatprep.subr.bf16.mxu0 0
        %3157 = vmatpush1.bf16.msra.mxu0 0
        %3158 = vmatprep.subr.bf16.mxu0 0
        %3159 = vmatpush1.bf16.msra.mxu0 0
        %3160 = vmatprep.subr.bf16.mxu0 0
        %3161 = vmatpush1.bf16.msra.mxu0 0
        %3162 = vmatprep.subr.bf16.mxu0 0
        %3163 = vmatpush1.bf16.msra.mxu0 0
        %3164 = vmatprep.subr.bf16.mxu0 0
        %3165 = vmatpush1.bf16.msra.mxu0 0
        %3166 = vmatprep.subr.bf16.mxu0 0
        %3167 = vmatpush1.bf16.msra.mxu0 0
        %3168 = vmatprep.mubr.bf16.mxu0 0
        %3169 = vmatmul.mubr.bf16.gmra.mrb[0].mxu0 %v3131
        %v3170 = vpop.f32.mrb[0].mxu0
        %v3171 = vadd.f32 0.0, %v3170
        %v3172 = vpop.f32.mrb[0].mxu0
        %v3173 = vpop.f32.mrb[0].mxu0
        %v3174 = vadd.f32 0.0, %v3173
        %v3175 = vpop.f32.mrb[0].mxu0
        %3176 = vmatprep.mubr.bf16.mxu0 0
        %3177 = vmatmul.mubr.bf16.gmra.mrb[0].mxu0 %v3134
        %v3178 = vpop.f32.mrb[0].mxu0
        %v3179 = vadd.f32 0.0, %v3178
        %v3180 = vpop.f32.mrb[0].mxu0
        %v3181 = vpop.f32.mrb[0].mxu0
        %v3182 = vpop.f32.mrb[0].mxu0
        %3183 = vdwg.mxu0
        %v3185 = vsel %vm1356, %v2885, 0
        %v3188 = vsel %vm1356, %v2886, 0
        %3190 = vmatprep.subr.bf16.mxu0 0
        %3191 = vmatpush1.bf16.msra.mxu0 %v2591
        %3192 = vmatprep.subr.bf16.mxu0 0
        %3193 = vmatpush1.bf16.msra.mxu0 0
        %3194 = vmatprep.subr.bf16.mxu0 0
        %3195 = vmatpush1.bf16.msra.mxu0 0
        %3196 = vmatprep.subr.bf16.mxu0 0
        %3197 = vmatpush1.bf16.msra.mxu0 0
        %3198 = vmatprep.subr.bf16.mxu0 0
        %3199 = vmatpush1.bf16.msra.mxu0 0
        %3200 = vmatprep.subr.bf16.mxu0 0
        %3201 = vmatpush1.bf16.msra.mxu0 0
        %3202 = vmatprep.subr.bf16.mxu0 0
        %3203 = vmatpush1.bf16.msra.mxu0 0
        %3204 = vmatprep.subr.bf16.mxu0 0
        %3205 = vmatpush1.bf16.msra.mxu0 0
        %3206 = vmatprep.subr.bf16.mxu0 0
        %3207 = vmatpush1.bf16.msra.mxu0 0
        %3208 = vmatprep.subr.bf16.mxu0 0
        %3209 = vmatpush1.bf16.msra.mxu0 0
        %3210 = vmatprep.subr.bf16.mxu0 0
        %3211 = vmatpush1.bf16.msra.mxu0 0
        %3212 = vmatprep.subr.bf16.mxu0 0
        %3213 = vmatpush1.bf16.msra.mxu0 0
        %3214 = vmatprep.subr.bf16.mxu0 0
        %3215 = vmatpush1.bf16.msra.mxu0 0
        %3216 = vmatprep.subr.bf16.mxu0 0
        %3217 = vmatpush1.bf16.msra.mxu0 0
        %3218 = vmatprep.subr.bf16.mxu0 0
        %3219 = vmatpush1.bf16.msra.mxu0 0
        %3220 = vmatprep.subr.bf16.mxu0 0
        %3221 = vmatpush1.bf16.msra.mxu0 0
        %3222 = vmatprep.mubr.bf16.mxu0 0
        %3223 = vmatmul.mubr.bf16.gmra.mrb[0].mxu0 %v3185
        %v3224 = vpop.f32.mrb[0].mxu0
        %v3225 = vadd.f32 %v3171, %v3224
        %v3226 = vpop.f32.mrb[0].mxu0
        %v3227 = vpop.f32.mrb[0].mxu0
        %v3228 = vadd.f32 %v3174, %v3227
        %v3229 = vpop.f32.mrb[0].mxu0
        %3230 = vmatprep.mubr.bf16.mxu0 0
        %3231 = vmatmul.mubr.bf16.gmra.mrb[0].mxu0 %v3188
        %v3232 = vpop.f32.mrb[0].mxu0
        %v3233 = vadd.f32 %v3179, %v3232
        %v3234 = vpop.f32.mrb[0].mxu0
        %v3235 = vpop.f32.mrb[0].mxu0
        %v3236 = vpop.f32.mrb[0].mxu0
        %3237 = vdwg.mxu0
        %v3238 = vld [vmem:[%s45] sm:$0x1]
        %v3240 = vlaneseq
        %v3241 = vshrl.u32 %v3240, 7
        %v3242 = vsub.s32 0, %v3241
        %v3243 = vrot.slane %v3238, %v3242
        %v3245 = vadd.f32 %v2634, %v3243
        %v3246 = vadd.f32 %v2637, %v3243
        %v3247 = vadd.f32 %v2642, %v3243
        %v3248 = vadd.f32 %v3225, %v3243
        %v3249 = vadd.f32 %v3228, %v3243
        %v3250 = vadd.f32 %v3233, %v3243
        %v3251 = vadd.f32 %v1937, %v3245
        %v3252 = vadd.f32 %v1938, %v3246
        %v3253 = vadd.f32 %v1939, %v3247
        %v3254 = vadd.f32 %v1940, %v3248
        %v3255 = vadd.f32 %v1941, %v3249
        %v3256 = vadd.f32 %v1942, %v3250
        %v3257 = vld [vmem:[%s47] sm:$0x1]
        %v3258 = vld [vmem:[%s49] sm:$0x1]
        %v3259 = vsel %vm1839, %v3251, 0.0
        %3260 = vadd.xlane.f32.xlu0 %v3259
        %v3261 = vpop.xlane.xlu0 %3260
        %v3262 = vsel %vm1839, %v3252, 0.0
        %3263 = vadd.xlane.f32.xlu0 %v3262
        %v3264 = vpop.xlane.xlu0 %3263
        %v3265 = vsel %vm1839, %v3253, 0.0
        %3266 = vadd.xlane.f32.xlu0 %v3265
        %v3267 = vpop.xlane.xlu0 %3266
        %v3268 = vsel %vm1839, %v3254, 0.0
        %3269 = vadd.xlane.f32.xlu0 %v3268
        %v3270 = vpop.xlane.xlu0 %3269
        %v3271 = vsel %vm1839, %v3255, 0.0
        %3272 = vadd.xlane.f32.xlu0 %v3271
        %v3273 = vpop.xlane.xlu0 %3272
        %v3274 = vsel %vm1839, %v3256, 0.0
        %3275 = vadd.xlane.f32.xlu0 %v3274
        %v3276 = vpop.xlane.xlu0 %3275
        %v3277 = vmul.f32 %v3261, %v1858
        %v3278 = vmul.f32 %v3264, %v1858
        %v3279 = vmul.f32 %v3267, %v1858
        %v3280 = vmul.f32 %v3270, %v1858
        %v3281 = vmul.f32 %v3273, %v1858
        %v3282 = vmul.f32 %v3276, %v1858
        %v3283 = vsub.f32 %v3251, %v3277
        %v3284 = vsub.f32 %v3252, %v3278
        %v3285 = vsub.f32 %v3253, %v3279
        %v3286 = vsub.f32 %v3254, %v3280
        %v3287 = vsub.f32 %v3255, %v3281
        %v3288 = vsub.f32 %v3256, %v3282
        %v3289 = vmul.f32 %v3283, %v3283
        %v3290 = vmul.f32 %v3284, %v3284
        %v3291 = vmul.f32 %v3285, %v3285
        %v3292 = vmul.f32 %v3286, %v3286
        %v3293 = vmul.f32 %v3287, %v3287
        %v3294 = vmul.f32 %v3288, %v3288
        %v3295 = vsel %vm1839, %v3289, 0.0
        %3296 = vadd.xlane.f32.xlu0 %v3295
        %v3297 = vpop.xlane.xlu0 %3296
        %v3298 = vsel %vm1839, %v3290, 0.0
        %3299 = vadd.xlane.f32.xlu0 %v3298
        %v3300 = vpop.xlane.xlu0 %3299
        %v3301 = vsel %vm1839, %v3291, 0.0
        %3302 = vadd.xlane.f32.xlu0 %v3301
        %v3303 = vpop.xlane.xlu0 %3302
        %v3304 = vsel %vm1839, %v3292, 0.0
        %3305 = vadd.xlane.f32.xlu0 %v3304
        %v3306 = vpop.xlane.xlu0 %3305
        %v3307 = vsel %vm1839, %v3293, 0.0
        %3308 = vadd.xlane.f32.xlu0 %v3307
        %v3309 = vpop.xlane.xlu0 %3308
        %v3310 = vsel %vm1839, %v3294, 0.0
        %3311 = vadd.xlane.f32.xlu0 %v3310
        %v3312 = vpop.xlane.xlu0 %3311
        %v3313 = vmul.f32 %v3297, %v1858
        %v3314 = vmul.f32 %v3300, %v1858
        %v3315 = vmul.f32 %v3303, %v1858
        %v3316 = vmul.f32 %v3306, %v1858
        %v3317 = vmul.f32 %v3309, %v1858
        %v3318 = vmul.f32 %v3312, %v1858
        %v3319 = vadd.f32 %v3313, 1e-05
        %v3320 = vadd.f32 %v3314, 1e-05
        %v3321 = vadd.f32 %v3315, 1e-05
        %v3322 = vadd.f32 %v3316, 1e-05
        %v3323 = vadd.f32 %v3317, 1e-05
        %v3324 = vadd.f32 %v3318, 1e-05
        %v3325 = vrsqrt.pop %v3319
        %v3326 = vrsqrt.pop %v3320
        %v3327 = vrsqrt.pop %v3321
        %v3328 = vrsqrt.pop %v3322
        %v3329 = vrsqrt.pop %v3323
        %v3330 = vrsqrt.pop %v3324
        %v3331 = vmul.f32 %v3283, %v3325
        %v3332 = vmul.f32 %v3284, %v3326
        %v3333 = vmul.f32 %v3285, %v3327
        %v3334 = vmul.f32 %v3286, %v3328
        %v3335 = vmul.f32 %v3287, %v3329
        %v3336 = vmul.f32 %v3288, %v3330
        %v3338 = vlaneseq
        %v3339 = vshrl.u32 %v3338, 7
        %v3340 = vsub.s32 0, %v3339
        %v3341 = vrot.slane %v3257, %v3340
        %v3343 = vmul.f32 %v3331, %v3341
        %v3344 = vmul.f32 %v3332, %v3341
        %v3345 = vmul.f32 %v3333, %v3341
        %v3346 = vmul.f32 %v3334, %v3341
        %v3347 = vmul.f32 %v3335, %v3341
        %v3348 = vmul.f32 %v3336, %v3341
        %v3350 = vlaneseq
        %v3351 = vshrl.u32 %v3350, 7
        %v3352 = vsub.s32 0, %v3351
        %v3353 = vrot.slane %v3258, %v3352
        %v3355 = vadd.f32 %v3343, %v3353
        %v3356 = vadd.f32 %v3344, %v3353
        %v3357 = vadd.f32 %v3345, %v3353
        %v3358 = vadd.f32 %v3346, %v3353
        %v3359 = vadd.f32 %v3347, %v3353
        %v3360 = vadd.f32 %v3348, %v3353
        %v3361 = vpack.c.bf16 %v3356, %v3355
        %v3362 = vpack.c.bf16 %v3358, %v3357
        %v3363 = vpack.c.bf16 %v3360, %v3359
        %v3364 = vld [vmem:[%s51] sm:$0xf]
        %v3365 = vld [vmem:[%s51 + $0x4] sm:$0xf]
        %v3366 = vld [vmem:[%s51 + $0x8] sm:$0xf]
        %v3367 = vld [vmem:[%s51 + $0xc] sm:$0xf]
        %v3368 = vld [vmem:[%s53] sm:$0x1]
        %v3370 = vlaneseq
        %v3371 = vshrl.u32 %v3370, 7
        %v3372 = vsub.s32 0, %v3371
        %v3373 = vrot.slane %v3368, %v3372
        %v3379 = vunpack.c.l.b16 %v3364
        %v3380 = vunpack.c.l.b16 %v3365
        %v3381 = vunpack.c.l.b16 %v3366
        %v3382 = vunpack.c.l.b16 %v3367
        %v3383 = vpack.c.b16 %v3380, %v3379
        %v3384 = vpack.c.b16 %v3382, %v3381
        %v3388 = vsel %vm1839, %v3361, 0
        %v3391 = vsel %vm1839, %v3362, 0
        %v3394 = vsel %vm1839, %v3363, 0
        %3396 = vmatprep.subr.bf16.mxu0 0
        %3397 = vmatpush1.bf16.msra.mxu0 %v3383
        %3398 = vmatprep.subr.bf16.mxu0 0
        %3399 = vmatpush1.bf16.msra.mxu0 %v3384
        %3400 = vmatprep.subr.bf16.mxu0 0
        %3401 = vmatpush1.bf16.msra.mxu0 0
        %3402 = vmatprep.subr.bf16.mxu0 0
        %3403 = vmatpush1.bf16.msra.mxu0 0
        %3404 = vmatprep.subr.bf16.mxu0 0
        %3405 = vmatpush1.bf16.msra.mxu0 0
        %3406 = vmatprep.subr.bf16.mxu0 0
        %3407 = vmatpush1.bf16.msra.mxu0 0
        %3408 = vmatprep.subr.bf16.mxu0 0
        %3409 = vmatpush1.bf16.msra.mxu0 0
        %3410 = vmatprep.subr.bf16.mxu0 0
        %3411 = vmatpush1.bf16.msra.mxu0 0
        %3412 = vmatprep.subr.bf16.mxu0 0
        %3413 = vmatpush1.bf16.msra.mxu0 0
        %3414 = vmatprep.subr.bf16.mxu0 0
        %3415 = vmatpush1.bf16.msra.mxu0 0
        %3416 = vmatprep.subr.bf16.mxu0 0
        %3417 = vmatpush1.bf16.msra.mxu0 0
        %3418 = vmatprep.subr.bf16.mxu0 0
        %3419 = vmatpush1.bf16.msra.mxu0 0
        %3420 = vmatprep.subr.bf16.mxu0 0
        %3421 = vmatpush1.bf16.msra.mxu0 0
        %3422 = vmatprep.subr.bf16.mxu0 0
        %3423 = vmatpush1.bf16.msra.mxu0 0
        %3424 = vmatprep.subr.bf16.mxu0 0
        %3425 = vmatpush1.bf16.msra.mxu0 0
        %3426 = vmatprep.subr.bf16.mxu0 0
        %3427 = vmatpush1.bf16.msra.mxu0 0
        %3428 = vmatprep.mubr.bf16.mxu0 0
        %3429 = vmatmul.mubr.bf16.gmra.mrb[0].mxu0 %v3388
        %v3430 = vpop.f32.mrb[0].mxu0
        %v3431 = vadd.f32 %v3373, %v3430
        %v3432 = vpop.f32.mrb[0].mxu0
        %v3433 = vpop.f32.mrb[0].mxu0
        %v3434 = vadd.f32 %v3373, %v3433
        %v3435 = vpop.f32.mrb[0].mxu0
        %3436 = vmatprep.mubr.bf16.mxu0 0
        %3437 = vmatmul.mubr.bf16.gmra.mrb[0].mxu0 %v3391
        %v3438 = vpop.f32.mrb[0].mxu0
        %v3439 = vadd.f32 %v3373, %v3438
        %v3440 = vpop.f32.mrb[0].mxu0
        %v3441 = vpop.f32.mrb[0].mxu0
        %v3442 = vadd.f32 %v3373, %v3441
        %v3443 = vpop.f32.mrb[0].mxu0
        %3444 = vmatprep.mubr.bf16.mxu0 0
        %3445 = vmatmul.mubr.bf16.gmra.mrb[0].mxu0 %v3394
        %v3446 = vpop.f32.mrb[0].mxu0
        %v3447 = vadd.f32 %v3373, %v3446
        %v3448 = vpop.f32.mrb[0].mxu0
        %v3449 = vpop.f32.mrb[0].mxu0
        %v3450 = vadd.f32 %v3373, %v3449
        %v3451 = vpop.f32.mrb[0].mxu0
        %3452 = vdwg.mxu0
        %v3453 = vmul.f32 %v3431, 0.5
        %v3454 = vmul.f32 %v3434, 0.5
        %v3455 = vmul.f32 %v3439, 0.5
        %v3456 = vmul.f32 %v3442, 0.5
        %v3457 = vmul.f32 %v3447, 0.5
        %v3458 = vmul.f32 %v3450, 0.5
        %v3459 = vmul.f32 %v3431, 0.70710677
        %v3460 = vmul.f32 %v3434, 0.70710677
        %v3461 = vmul.f32 %v3439, 0.70710677
        %v3462 = vmul.f32 %v3442, 0.70710677
        %v3463 = vmul.f32 %v3447, 0.70710677
        %v3464 = vmul.f32 %v3450, 0.70710677
        %v3465 = vand.u32 2147483647, %v3459
        %v3466 = vand.u32 2147483647, %v3460
        %v3467 = vand.u32 2147483647, %v3461
        %v3468 = vand.u32 2147483647, %v3462
        %v3469 = vand.u32 2147483647, %v3463
        %v3470 = vand.u32 2147483647, %v3464
        %v3471 = vmul.f32 %v3465, 0.3275911
        %v3472 = vmul.f32 %v3466, 0.3275911
        %v3473 = vmul.f32 %v3467, 0.3275911
        %v3474 = vmul.f32 %v3468, 0.3275911
        %v3475 = vmul.f32 %v3469, 0.3275911
        %v3476 = vmul.f32 %v3470, 0.3275911
        %v3477 = vadd.f32 %v3471, 1.0
        %v3478 = vadd.f32 %v3472, 1.0
        %v3479 = vadd.f32 %v3473, 1.0
        %v3480 = vadd.f32 %v3474, 1.0
        %v3481 = vadd.f32 %v3475, 1.0
        %v3482 = vadd.f32 %v3476, 1.0
        %v3483 = vrcp.pop %v3477
        %v3484 = vmul.f32 1.0, %v3483
        %v3485 = vrcp.pop %v3478
        %v3486 = vmul.f32 1.0, %v3485
        %v3487 = vrcp.pop %v3479
        %v3488 = vmul.f32 1.0, %v3487
        %v3489 = vrcp.pop %v3480
        %v3490 = vmul.f32 1.0, %v3489
        %v3491 = vrcp.pop %v3481
        %v3492 = vmul.f32 1.0, %v3491
        %v3493 = vrcp.pop %v3482
        %v3494 = vmul.f32 1.0, %v3493
        %v3495 = vmul.f32 %v3484, 1.0614054
        %v3496 = vmul.f32 %v3486, 1.0614054
        %v3497 = vmul.f32 %v3488, 1.0614054
        %v3498 = vmul.f32 %v3490, 1.0614054
        %v3499 = vmul.f32 %v3492, 1.0614054
        %v3500 = vmul.f32 %v3494, 1.0614054
        %v3501 = vadd.f32 %v3495, -1.4531521
        %v3502 = vadd.f32 %v3496, -1.4531521
        %v3503 = vadd.f32 %v3497, -1.4531521
        %v3504 = vadd.f32 %v3498, -1.4531521
        %v3505 = vadd.f32 %v3499, -1.4531521
        %v3506 = vadd.f32 %v3500, -1.4531521
        %v3507 = vmul.f32 %v3501, %v3484
        %v3508 = vmul.f32 %v3502, %v3486
        %v3509 = vmul.f32 %v3503, %v3488
        %v3510 = vmul.f32 %v3504, %v3490
        %v3511 = vmul.f32 %v3505, %v3492
        %v3512 = vmul.f32 %v3506, %v3494
        %v3513 = vadd.f32 %v3507, 1.4214138
        %v3514 = vadd.f32 %v3508, 1.4214138
        %v3515 = vadd.f32 %v3509, 1.4214138
        %v3516 = vadd.f32 %v3510, 1.4214138
        %v3517 = vadd.f32 %v3511, 1.4214138
        %v3518 = vadd.f32 %v3512, 1.4214138
        %v3519 = vmul.f32 %v3513, %v3484
        %v3520 = vmul.f32 %v3514, %v3486
        %v3521 = vmul.f32 %v3515, %v3488
        %v3522 = vmul.f32 %v3516, %v3490
        %v3523 = vmul.f32 %v3517, %v3492
        %v3524 = vmul.f32 %v3518, %v3494
        %v3525 = vadd.f32 %v3519, -0.28449672
        %v3526 = vadd.f32 %v3520, -0.28449672
        %v3527 = vadd.f32 %v3521, -0.28449672
        %v3528 = vadd.f32 %v3522, -0.28449672
        %v3529 = vadd.f32 %v3523, -0.28449672
        %v3530 = vadd.f32 %v3524, -0.28449672
        %v3531 = vmul.f32 %v3525, %v3484
        %v3532 = vmul.f32 %v3526, %v3486
        %v3533 = vmul.f32 %v3527, %v3488
        %v3534 = vmul.f32 %v3528, %v3490
        %v3535 = vmul.f32 %v3529, %v3492
        %v3536 = vmul.f32 %v3530, %v3494
        %v3537 = vadd.f32 %v3531, 0.2548296
        %v3538 = vadd.f32 %v3532, 0.2548296
        %v3539 = vadd.f32 %v3533, 0.2548296
        %v3540 = vadd.f32 %v3534, 0.2548296
        %v3541 = vadd.f32 %v3535, 0.2548296
        %v3542 = vadd.f32 %v3536, 0.2548296
        %v3543 = vmul.f32 %v3537, %v3484
        %v3544 = vmul.f32 %v3538, %v3486
        %v3545 = vmul.f32 %v3539, %v3488
        %v3546 = vmul.f32 %v3540, %v3490
        %v3547 = vmul.f32 %v3541, %v3492
        %v3548 = vmul.f32 %v3542, %v3494
        %v3549 = vsub.f32 0.0, %v3465
        %v3550 = vsub.f32 0.0, %v3466
        %v3551 = vsub.f32 0.0, %v3467
        %v3552 = vsub.f32 0.0, %v3468
        %v3553 = vsub.f32 0.0, %v3469
        %v3554 = vsub.f32 0.0, %v3470
        %v3555 = vmul.f32 %v3549, %v3465
        %v3556 = vmul.f32 %v3550, %v3466
        %v3557 = vmul.f32 %v3551, %v3467
        %v3558 = vmul.f32 %v3552, %v3468
        %v3559 = vmul.f32 %v3553, %v3469
        %v3560 = vmul.f32 %v3554, %v3470
        %v3561 = vmul.f32 %v3555, 1.442695
        %v3562 = vpow.pop %v3561
        %v3563 = vmul.f32 %v3556, 1.442695
        %v3564 = vpow.pop %v3563
        %v3565 = vmul.f32 %v3557, 1.442695
        %v3566 = vpow.pop %v3565
        %v3567 = vmul.f32 %v3558, 1.442695
        %v3568 = vpow.pop %v3567
        %v3569 = vmul.f32 %v3559, 1.442695
        %v3570 = vpow.pop %v3569
        %v3571 = vmul.f32 %v3560, 1.442695
        %v3572 = vpow.pop %v3571
        %v3573 = vmul.f32 %v3543, %v3562
        %v3574 = vmul.f32 %v3544, %v3564
        %v3575 = vmul.f32 %v3545, %v3566
        %v3576 = vmul.f32 %v3546, %v3568
        %v3577 = vmul.f32 %v3547, %v3570
        %v3578 = vmul.f32 %v3548, %v3572
        %v3579 = vsub.f32 1.0, %v3573
        %v3580 = vsub.f32 1.0, %v3574
        %v3581 = vsub.f32 1.0, %v3575
        %v3582 = vsub.f32 1.0, %v3576
        %v3583 = vsub.f32 1.0, %v3577
        %v3584 = vsub.f32 1.0, %v3578
        %vm3585 = vcmp.lt.f32.partialorder %v3459, 0.0
        %vm3586 = vcmp.lt.f32.partialorder %v3460, 0.0
        %vm3587 = vcmp.lt.f32.partialorder %v3461, 0.0
        %vm3588 = vcmp.lt.f32.partialorder %v3462, 0.0
        %vm3589 = vcmp.lt.f32.partialorder %v3463, 0.0
        %vm3590 = vcmp.lt.f32.partialorder %v3464, 0.0
        %v3591 = vsub.f32 0.0, %v3579
        %v3592 = vsub.f32 0.0, %v3580
        %v3593 = vsub.f32 0.0, %v3581
        %v3594 = vsub.f32 0.0, %v3582
        %v3595 = vsub.f32 0.0, %v3583
        %v3596 = vsub.f32 0.0, %v3584
        %v3597 = vsel %vm3585, %v3591, %v3579
        %v3598 = vsel %vm3586, %v3592, %v3580
        %v3599 = vsel %vm3587, %v3593, %v3581
        %v3600 = vsel %vm3588, %v3594, %v3582
        %v3601 = vsel %vm3589, %v3595, %v3583
        %v3602 = vsel %vm3590, %v3596, %v3584
        %v3603 = vadd.f32 %v3597, 1.0
        %v3604 = vadd.f32 %v3598, 1.0
        %v3605 = vadd.f32 %v3599, 1.0
        %v3606 = vadd.f32 %v3600, 1.0
        %v3607 = vadd.f32 %v3601, 1.0
        %v3608 = vadd.f32 %v3602, 1.0
        %v3609 = vmul.f32 %v3453, %v3603
        %v3610 = vmul.f32 %v3454, %v3604
        %v3611 = vmul.f32 %v3455, %v3605
        %v3612 = vmul.f32 %v3456, %v3606
        %v3613 = vmul.f32 %v3457, %v3607
        %v3614 = vmul.f32 %v3458, %v3608
        %v3615 = vpack.c.bf16 %v3610, %v3609
        %v3616 = vpack.c.bf16 %v3612, %v3611
        %v3617 = vpack.c.bf16 %v3614, %v3613
        %v3618 = vld [vmem:[%s55] sm:$0xf]
        %v3619 = vld [vmem:[%s55 + $0x4] sm:$0xf]
        %v3620 = vld [vmem:[%s55 + $0x8] sm:$0xf]
        %v3621 = vld [vmem:[%s55 + $0xc] sm:$0xf]
        %v3622 = vld [vmem:[%s55 + $0x10] sm:$0xf]
        %v3623 = vld [vmem:[%s55 + $0x14] sm:$0xf]
        %v3624 = vld [vmem:[%s55 + $0x18] sm:$0xf]
        %v3625 = vld [vmem:[%s55 + $0x1c] sm:$0xf]
        %v3626 = vld [vmem:[%s55 + $0x20] sm:$0xf]
        %v3627 = vld [vmem:[%s55 + $0x24] sm:$0xf]
        %v3628 = vld [vmem:[%s55 + $0x28] sm:$0xf]
        %v3629 = vld [vmem:[%s55 + $0x2c] sm:$0xf]
        %v3630 = vld [vmem:[%s55 + $0x30] sm:$0xf]
        %v3631 = vld [vmem:[%s55 + $0x34] sm:$0xf]
        %v3632 = vld [vmem:[%s55 + $0x38] sm:$0xf]
        %v3633 = vld [vmem:[%s55 + $0x3c] sm:$0xf]
        %v3634 = vld [vmem:[%s57] sm:$0x1]
        %v3636 = vlaneseq
        %v3637 = vshrl.u32 %v3636, 7
        %v3638 = vsub.s32 0, %v3637
        %v3639 = vrot.slane %v3634, %v3638
        %v3657 = vunpack.c.l.b16 %v3618
        %v3658 = vunpack.c.l.b16 %v3619
        %v3659 = vunpack.c.l.b16 %v3620
        %v3660 = vunpack.c.l.b16 %v3621
        %v3661 = vunpack.c.l.b16 %v3622
        %v3662 = vunpack.c.l.b16 %v3623
        %v3663 = vunpack.c.l.b16 %v3624
        %v3664 = vunpack.c.l.b16 %v3625
        %v3665 = vunpack.c.l.b16 %v3626
        %v3666 = vunpack.c.l.b16 %v3627
        %v3667 = vunpack.c.l.b16 %v3628
        %v3668 = vunpack.c.l.b16 %v3629
        %v3669 = vunpack.c.l.b16 %v3630
        %v3670 = vunpack.c.l.b16 %v3631
        %v3671 = vunpack.c.l.b16 %v3632
        %v3672 = vunpack.c.l.b16 %v3633
        %v3673 = vpack.c.b16 %v3658, %v3657
        %v3674 = vpack.c.b16 %v3660, %v3659
        %v3675 = vpack.c.b16 %v3662, %v3661
        %v3676 = vpack.c.b16 %v3664, %v3663
        %v3677 = vpack.c.b16 %v3666, %v3665
        %v3678 = vpack.c.b16 %v3668, %v3667
        %v3679 = vpack.c.b16 %v3670, %v3669
        %v3680 = vpack.c.b16 %v3672, %v3671
        %3689 = vmatprep.subr.bf16.mxu0 0
        %3690 = vmatpush1.bf16.msra.mxu0 %v3673
        %3691 = vmatprep.subr.bf16.mxu0 0
        %3692 = vmatpush1.bf16.msra.mxu0 %v3674
        %3693 = vmatprep.subr.bf16.mxu0 0
        %3694 = vmatpush1.bf16.msra.mxu0 %v3675
        %3695 = vmatprep.subr.bf16.mxu0 0
        %3696 = vmatpush1.bf16.msra.mxu0 %v3676
        %3697 = vmatprep.subr.bf16.mxu0 0
        %3698 = vmatpush1.bf16.msra.mxu0 %v3677
        %3699 = vmatprep.subr.bf16.mxu0 0
        %3700 = vmatpush1.bf16.msra.mxu0 %v3678
        %3701 = vmatprep.subr.bf16.mxu0 0
        %3702 = vmatpush1.bf16.msra.mxu0 %v3679
        %3703 = vmatprep.subr.bf16.mxu0 0
        %3704 = vmatpush1.bf16.msra.mxu0 %v3680
        %3705 = vmatprep.subr.bf16.mxu0 0
        %3706 = vmatpush1.bf16.msra.mxu0 0
        %3707 = vmatprep.subr.bf16.mxu0 0
        %3708 = vmatpush1.bf16.msra.mxu0 0
        %3709 = vmatprep.subr.bf16.mxu0 0
        %3710 = vmatpush1.bf16.msra.mxu0 0
        %3711 = vmatprep.subr.bf16.mxu0 0
        %3712 = vmatpush1.bf16.msra.mxu0 0
        %3713 = vmatprep.subr.bf16.mxu0 0
        %3714 = vmatpush1.bf16.msra.mxu0 0
        %3715 = vmatprep.subr.bf16.mxu0 0
        %3716 = vmatpush1.bf16.msra.mxu0 0
        %3717 = vmatprep.subr.bf16.mxu0 0
        %3718 = vmatpush1.bf16.msra.mxu0 0
        %3719 = vmatprep.subr.bf16.mxu0 0
        %3720 = vmatpush1.bf16.msra.mxu0 0
        %3721 = vmatprep.mubr.bf16.mxu0 0
        %3722 = vmatmul.mubr.bf16.gmra.mrb[0].mxu0 %v3615
        %v3723 = vpop.f32.mrb[0].mxu0
        %v3724 = vadd.f32 %v3639, %v3723
        %v3725 = vpop.f32.mrb[0].mxu0
        %v3726 = vpop.f32.mrb[0].mxu0
        %v3727 = vadd.f32 %v3639, %v3726
        %v3728 = vpop.f32.mrb[0].mxu0
        %3729 = vmatprep.mubr.bf16.mxu0 0
        %3730 = vmatmul.mubr.bf16.gmra.mrb[0].mxu0 %v3616
        %v3731 = vpop.f32.mrb[0].mxu0
        %v3732 = vadd.f32 %v3639, %v3731
        %v3733 = vpop.f32.mrb[0].mxu0
        %v3734 = vpop.f32.mrb[0].mxu0
        %v3735 = vadd.f32 %v3639, %v3734
        %v3736 = vpop.f32.mrb[0].mxu0
        %3737 = vmatprep.mubr.bf16.mxu0 0
        %3738 = vmatmul.mubr.bf16.gmra.mrb[0].mxu0 %v3617
        %v3739 = vpop.f32.mrb[0].mxu0
        %v3740 = vadd.f32 %v3639, %v3739
        %v3741 = vpop.f32.mrb[0].mxu0
        %v3742 = vpop.f32.mrb[0].mxu0
        %v3743 = vadd.f32 %v3639, %v3742
        %v3744 = vpop.f32.mrb[0].mxu0
        %3745 = vdwg.mxu0
        %v3746 = vadd.f32 %v3355, %v3724
        %v3747 = vadd.f32 %v3356, %v3727
        %v3748 = vadd.f32 %v3357, %v3732
        %v3749 = vadd.f32 %v3358, %v3735
        %v3750 = vadd.f32 %v3359, %v3740
        %v3751 = vadd.f32 %v3360, %v3743
        %v3752 = vld [vmem:[%s59] sm:$0x1]
        %v3753 = vld [vmem:[%s61] sm:$0x1]
        %v3754 = vsel %vm1839, %v3746, 0.0
        %3755 = vadd.xlane.f32.xlu0 %v3754
        %v3756 = vpop.xlane.xlu0 %3755
        %v3757 = vsel %vm1839, %v3747, 0.0
        %3758 = vadd.xlane.f32.xlu0 %v3757
        %v3759 = vpop.xlane.xlu0 %3758
        %v3760 = vsel %vm1839, %v3748, 0.0
        %3761 = vadd.xlane.f32.xlu0 %v3760
        %v3762 = vpop.xlane.xlu0 %3761
        %v3763 = vsel %vm1839, %v3749, 0.0
        %3764 = vadd.xlane.f32.xlu0 %v3763
        %v3765 = vpop.xlane.xlu0 %3764
        %v3766 = vsel %vm1839, %v3750, 0.0
        %3767 = vadd.xlane.f32.xlu0 %v3766
        %v3768 = vpop.xlane.xlu0 %3767
        %v3769 = vsel %vm1839, %v3751, 0.0
        %3770 = vadd.xlane.f32.xlu0 %v3769
        %v3771 = vpop.xlane.xlu0 %3770
        %v3772 = vmul.f32 %v3756, %v1858
        %v3773 = vmul.f32 %v3759, %v1858
        %v3774 = vmul.f32 %v3762, %v1858
        %v3775 = vmul.f32 %v3765, %v1858
        %v3776 = vmul.f32 %v3768, %v1858
        %v3777 = vmul.f32 %v3771, %v1858
        %v3778 = vsub.f32 %v3746, %v3772
        %v3779 = vsub.f32 %v3747, %v3773
        %v3780 = vsub.f32 %v3748, %v3774
        %v3781 = vsub.f32 %v3749, %v3775
        %v3782 = vsub.f32 %v3750, %v3776
        %v3783 = vsub.f32 %v3751, %v3777
        %v3784 = vmul.f32 %v3778, %v3778
        %v3785 = vmul.f32 %v3779, %v3779
        %v3786 = vmul.f32 %v3780, %v3780
        %v3787 = vmul.f32 %v3781, %v3781
        %v3788 = vmul.f32 %v3782, %v3782
        %v3789 = vmul.f32 %v3783, %v3783
        %v3790 = vsel %vm1839, %v3784, 0.0
        %3791 = vadd.xlane.f32.xlu0 %v3790
        %v3792 = vpop.xlane.xlu0 %3791
        %v3793 = vsel %vm1839, %v3785, 0.0
        %3794 = vadd.xlane.f32.xlu0 %v3793
        %v3795 = vpop.xlane.xlu0 %3794
        %v3796 = vsel %vm1839, %v3786, 0.0
        %3797 = vadd.xlane.f32.xlu0 %v3796
        %v3798 = vpop.xlane.xlu0 %3797
        %v3799 = vsel %vm1839, %v3787, 0.0
        %3800 = vadd.xlane.f32.xlu0 %v3799
        %v3801 = vpop.xlane.xlu0 %3800
        %v3802 = vsel %vm1839, %v3788, 0.0
        %3803 = vadd.xlane.f32.xlu0 %v3802
        %v3804 = vpop.xlane.xlu0 %3803
        %v3805 = vsel %vm1839, %v3789, 0.0
        %3806 = vadd.xlane.f32.xlu0 %v3805
        %v3807 = vpop.xlane.xlu0 %3806
        %v3808 = vmul.f32 %v3792, %v1858
        %v3809 = vmul.f32 %v3795, %v1858
        %v3810 = vmul.f32 %v3798, %v1858
        %v3811 = vmul.f32 %v3801, %v1858
        %v3812 = vmul.f32 %v3804, %v1858
        %v3813 = vmul.f32 %v3807, %v1858
        %v3814 = vadd.f32 %v3808, 1e-05
        %v3815 = vadd.f32 %v3809, 1e-05
        %v3816 = vadd.f32 %v3810, 1e-05
        %v3817 = vadd.f32 %v3811, 1e-05
        %v3818 = vadd.f32 %v3812, 1e-05
        %v3819 = vadd.f32 %v3813, 1e-05
        %v3820 = vrsqrt.pop %v3814
        %v3821 = vrsqrt.pop %v3815
        %v3822 = vrsqrt.pop %v3816
        %v3823 = vrsqrt.pop %v3817
        %v3824 = vrsqrt.pop %v3818
        %v3825 = vrsqrt.pop %v3819
        %v3826 = vmul.f32 %v3778, %v3820
        %v3827 = vmul.f32 %v3779, %v3821
        %v3828 = vmul.f32 %v3780, %v3822
        %v3829 = vmul.f32 %v3781, %v3823
        %v3830 = vmul.f32 %v3782, %v3824
        %v3831 = vmul.f32 %v3783, %v3825
        %v3833 = vlaneseq
        %v3834 = vshrl.u32 %v3833, 7
        %v3835 = vsub.s32 0, %v3834
        %v3836 = vrot.slane %v3752, %v3835
        %v3838 = vmul.f32 %v3826, %v3836
        %v3839 = vmul.f32 %v3827, %v3836
        %v3840 = vmul.f32 %v3828, %v3836
        %v3841 = vmul.f32 %v3829, %v3836
        %v3842 = vmul.f32 %v3830, %v3836
        %v3843 = vmul.f32 %v3831, %v3836
        %v3845 = vlaneseq
        %v3846 = vshrl.u32 %v3845, 7
        %v3847 = vsub.s32 0, %v3846
        %v3848 = vrot.slane %v3753, %v3847
        %v3850 = vadd.f32 %v3838, %v3848
        %v3851 = vadd.f32 %v3839, %v3848
        %v3852 = vadd.f32 %v3840, %v3848
        %v3853 = vadd.f32 %v3841, %v3848
        %v3854 = vadd.f32 %v3842, %v3848
        %v3855 = vadd.f32 %v3843, %v3848
        %v3856 = vpack.c.bf16 %v3851, %v3850
        %v3857 = vpack.c.bf16 %v3853, %v3852
        %v3858 = vpack.c.bf16 %v3855, %v3854
        %s3859 = scalar_lea.vmem %s39, 16
        %v3860 = vld [vmem:[%s3859] sm:$0xf]
        %v3861 = vld [vmem:[%s3859 + $0x4] sm:$0xf]
        %v3862 = vld [vmem:[%s3859 + $0x8] sm:$0xf]
        %v3863 = vld [vmem:[%s3859 + $0xc] sm:$0xf]
        %s3864 = scalar_lea.vmem %s41, 1
        %v3865 = vld [vmem:[%s3864] sm:$0x1]
        %v3867 = vlaneseq
        %v3868 = vshrl.u32 %v3867, 7
        %v3869 = vsub.s32 0, %v3868
        %v3870 = vrot.slane %v3865, %v3869
        %v3876 = vunpack.c.l.b16 %v3860
        %v3877 = vunpack.c.l.b16 %v3861
        %v3878 = vunpack.c.l.b16 %v3862
        %v3879 = vunpack.c.l.b16 %v3863
        %v3880 = vpack.c.b16 %v3877, %v3876
        %v3881 = vpack.c.b16 %v3879, %v3878
        %v3885 = vsel %vm1839, %v3856, 0
        %v3888 = vsel %vm1839, %v3857, 0
        %v3891 = vsel %vm1839, %v3858, 0
        %3893 = vmatprep.subr.bf16.mxu0 0
        %3894 = vmatpush1.bf16.msra.mxu0 %v3880
        %3895 = vmatprep.subr.bf16.mxu0 0
        %3896 = vmatpush1.bf16.msra.mxu0 %v3881
        %3897 = vmatprep.subr.bf16.mxu0 0
        %3898 = vmatpush1.bf16.msra.mxu0 0
        %3899 = vmatprep.subr.bf16.mxu0 0
        %3900 = vmatpush1.bf16.msra.mxu0 0
        %3901 = vmatprep.subr.bf16.mxu0 0
        %3902 = vmatpush1.bf16.msra.mxu0 0
        %3903 = vmatprep.subr.bf16.mxu0 0
        %3904 = vmatpush1.bf16.msra.mxu0 0
        %3905 = vmatprep.subr.bf16.mxu0 0
        %3906 = vmatpush1.bf16.msra.mxu0 0
        %3907 = vmatprep.subr.bf16.mxu0 0
        %3908 = vmatpush1.bf16.msra.mxu0 0
        %3909 = vmatprep.subr.bf16.mxu0 0
        %3910 = vmatpush1.bf16.msra.mxu0 0
        %3911 = vmatprep.subr.bf16.mxu0 0
        %3912 = vmatpush1.bf16.msra.mxu0 0
        %3913 = vmatprep.subr.bf16.mxu0 0
        %3914 = vmatpush1.bf16.msra.mxu0 0
        %3915 = vmatprep.subr.bf16.mxu0 0
        %3916 = vmatpush1.bf16.msra.mxu0 0
        %3917 = vmatprep.subr.bf16.mxu0 0
        %3918 = vmatpush1.bf16.msra.mxu0 0
        %3919 = vmatprep.subr.bf16.mxu0 0
        %3920 = vmatpush1.bf16.msra.mxu0 0
        %3921 = vmatprep.subr.bf16.mxu0 0
        %3922 = vmatpush1.bf16.msra.mxu0 0
        %3923 = vmatprep.subr.bf16.mxu0 0
        %3924 = vmatpush1.bf16.msra.mxu0 0
        %3925 = vmatprep.mubr.bf16.mxu0 0
        %3926 = vmatmul.mubr.bf16.gmra.mrb[0].mxu0 %v3885
        %v3927 = vpop.f32.mrb[0].mxu0
        %v3928 = vadd.f32 %v3870, %v3927
        %v3929 = vpop.f32.mrb[0].mxu0
        %v3930 = vpop.f32.mrb[0].mxu0
        %v3931 = vadd.f32 %v3870, %v3930
        %v3932 = vpop.f32.mrb[0].mxu0
        %3933 = vmatprep.mubr.bf16.mxu0 0
        %3934 = vmatmul.mubr.bf16.gmra.mrb[0].mxu0 %v3888
        %v3935 = vpop.f32.mrb[0].mxu0
        %v3936 = vadd.f32 %v3870, %v3935
        %v3937 = vpop.f32.mrb[0].mxu0
        %v3938 = vpop.f32.mrb[0].mxu0
        %v3939 = vadd.f32 %v3870, %v3938
        %v3940 = vpop.f32.mrb[0].mxu0
        %3941 = vmatprep.mubr.bf16.mxu0 0
        %3942 = vmatmul.mubr.bf16.gmra.mrb[0].mxu0 %v3891
        %v3943 = vpop.f32.mrb[0].mxu0
        %v3944 = vadd.f32 %v3870, %v3943
        %v3945 = vpop.f32.mrb[0].mxu0
        %v3946 = vpop.f32.mrb[0].mxu0
        %v3947 = vadd.f32 %v3870, %v3946
        %v3948 = vpop.f32.mrb[0].mxu0
        %3949 = vdwg.mxu0
        %3953 = vrot.lane.b32.xlu0 %v3928, 96
        %v3954 = vpop.permute.xlu0 %3953
        %3955 = vrot.lane.b32.xlu0 %v3931, 96
        %v3956 = vpop.permute.xlu0 %3955
        %3957 = vrot.lane.b32.xlu0 %v3936, 96
        %v3958 = vpop.permute.xlu0 %3957
        %v3959 = vsel %vm1356, %v3928, 0
        %v3961 = vsel %vm1356, %v3931, 0
        %v3963 = vsel %vm1356, %v3936, 0
        %v3965 = vsel %vm1356, %v3954, 0
        %v3967 = vsel %vm1356, %v3956, 0
        %v3969 = vsel %vm1356, %v3958, 0
        %3971 = vmatprep.subr.mxu0 0.0
        %3972 = vmatpush1.xpose.msra.mxu0 %v3965
        %3973 = vmatprep.subr.mxu0 0.0
        %3974 = vmatpush1.xpose.msra.mxu0 %v3967
        %3975 = vmatprep.subr.mxu0 0.0
        %3976 = vmatpush1.xpose.msra.mxu0 %v3969
        %3977 = vmatprep.subr.mxu0 0.0
        %3978 = vmatpush1.xpose.msra.mxu0 0.0
        %3979 = vmatprep.subr.mxu0 0.0
        %3980 = vmatpush1.xpose.msra.mxu0 0.0
        %3981 = vmatprep.subr.mxu0 0.0
        %3982 = vmatpush1.xpose.msra.mxu0 0.0
        %3983 = vmatprep.subr.mxu0 0.0
        %3984 = vmatpush1.xpose.msra.mxu0 0.0
        %3985 = vmatprep.subr.mxu0 0.0
        %3986 = vmatpush1.xpose.msra.mxu0 0.0
        %3987 = vmatprep.subr.mxu0 0.0
        %3988 = vmatpush1.xpose.msra.mxu0 0.0
        %3989 = vmatprep.subr.mxu0 0.0
        %3990 = vmatpush1.xpose.msra.mxu0 0.0
        %3991 = vmatprep.subr.mxu0 0.0
        %3992 = vmatpush1.xpose.msra.mxu0 0.0
        %3993 = vmatprep.subr.mxu0 0.0
        %3994 = vmatpush1.xpose.msra.mxu0 0.0
        %3995 = vmatprep.subr.mxu0 0.0
        %3996 = vmatpush1.xpose.msra.mxu0 0.0
        %3997 = vmatprep.subr.mxu0 0.0
        %3998 = vmatpush1.xpose.msra.mxu0 0.0
        %3999 = vmatprep.subr.mxu0 0.0
        %4000 = vmatpush1.xpose.msra.mxu0 0.0
        %4001 = vmatprep.subr.mxu0 0.0
        %4002 = vmatpush1.xpose.msra.mxu0 0.0
        %4003 = vmatprep.subr.mxu0 0.0
        %4004 = vmatpush1.xpose.msra.mxu0 0.0
        %4005 = vmatprep.subr.mxu0 0.0
        %4006 = vmatpush1.xpose.msra.mxu0 0.0
        %4007 = vmatprep.subr.mxu0 0.0
        %4008 = vmatpush1.xpose.msra.mxu0 0.0
        %4009 = vmatprep.subr.mxu0 0.0
        %4010 = vmatpush1.xpose.msra.mxu0 0.0
        %4011 = vmatprep.subr.mxu0 0.0
        %4012 = vmatpush1.xpose.msra.mxu0 0.0
        %4013 = vmatprep.subr.mxu0 0.0
        %4014 = vmatpush1.xpose.msra.mxu0 0.0
        %4015 = vmatprep.subr.mxu0 0.0
        %4016 = vmatpush1.xpose.msra.mxu0 0.0
        %4017 = vmatprep.subr.mxu0 0.0
        %4018 = vmatpush1.xpose.msra.mxu0 0.0
        %4019 = vmatprep.subr.mxu0 0.0
        %4020 = vmatpush1.xpose.msra.mxu0 0.0
        %4021 = vmatprep.subr.mxu0 0.0
        %4022 = vmatpush1.xpose.msra.mxu0 0.0
        %4023 = vmatprep.subr.mxu0 0.0
        %4024 = vmatpush1.xpose.msra.mxu0 0.0
        %4025 = vmatprep.subr.mxu0 0.0
        %4026 = vmatpush1.xpose.msra.mxu0 0.0
        %4027 = vmatprep.subr.mxu0 0.0
        %4028 = vmatpush1.xpose.msra.mxu0 0.0
        %4029 = vmatprep.subr.mxu0 0.0
        %4030 = vmatpush1.xpose.msra.mxu0 0.0
        %4031 = vmatprep.subr.mxu0 0.0
        %4032 = vmatpush1.xpose.msra.mxu0 0.0
        %4033 = vmatprep.subr.mxu0 0.0
        %4034 = vmatpush1.xpose.msra.mxu0 0.0
        %4035 = vmatprep.mubr.f32.mxu0 0.0
        %4036 = vmatmul.mubr.f32.gmra.mrb[0].mxu0 %v3959
        %v4037 = vpop.f32.mrb[0].mxu0
        %v4038 = vadd.f32 0.0, %v4037
        %v4039 = vpop.f32.mrb[0].mxu0
        %4040 = vmatprep.mubr.f32.mxu0 0.0
        %4041 = vmatmul.mubr.f32.gmra.mrb[0].mxu0 %v3961
        %v4042 = vpop.f32.mrb[0].mxu0
        %v4043 = vadd.f32 0.0, %v4042
        %v4044 = vpop.f32.mrb[0].mxu0
        %4045 = vmatprep.mubr.f32.mxu0 0.0
        %4046 = vmatmul.mubr.f32.gmra.mrb[0].mxu0 %v3963
        %v4047 = vpop.f32.mrb[0].mxu0
        %v4048 = vadd.f32 0.0, %v4047
        %v4049 = vpop.f32.mrb[0].mxu0
        %4050 = vdwg.mxu0
        %v4051 = vmul.f32 %v4038, 0.25
        %v4052 = vmul.f32 %v4043, 0.25
        %v4053 = vmul.f32 %v4048, 0.25
        %v4054 = vadd.f32 %v4051, %v1943
        %v4055 = vadd.f32 %v4052, %v1944
        %v4056 = vadd.f32 %v4053, %v1945
        %v4057 = vsel %vm2145, %v4054, -inf
        %4058 = vmax.xlane.f32.xlu0 %v4057
        %v4059 = vpop.xlane.xlu0 %4058
        %v4060 = vsel %vm2145, %v4055, -inf
        %4061 = vmax.xlane.f32.xlu0 %v4060
        %v4062 = vpop.xlane.xlu0 %4061
        %v4063 = vsel %vm2145, %v4056, -inf
        %4064 = vmax.xlane.f32.xlu0 %v4063
        %v4065 = vpop.xlane.xlu0 %4064
        %v4066 = vsub.f32 %v4054, %v4059
        %v4067 = vsub.f32 %v4055, %v4062
        %v4068 = vsub.f32 %v4056, %v4065
        %v4069 = vmul.f32 %v4066, 1.442695
        %v4070 = vpow.pop %v4069
        %v4071 = vmul.f32 %v4067, 1.442695
        %v4072 = vpow.pop %v4071
        %v4073 = vmul.f32 %v4068, 1.442695
        %v4074 = vpow.pop %v4073
        %v4075 = vsel %vm2145, %v4070, 0.0
        %4076 = vadd.xlane.f32.xlu0 %v4075
        %v4077 = vpop.xlane.xlu0 %4076
        %v4078 = vsel %vm2145, %v4072, 0.0
        %4079 = vadd.xlane.f32.xlu0 %v4078
        %v4080 = vpop.xlane.xlu0 %4079
        %v4081 = vsel %vm2145, %v4074, 0.0
        %4082 = vadd.xlane.f32.xlu0 %v4081
        %v4083 = vpop.xlane.xlu0 %4082
        %v4084 = vrcp.pop %v4077
        %v4085 = vrcp.pop %v4080
        %v4086 = vrcp.pop %v4083
        %v4087 = vmul.f32 %v4070, %v4084
        %v4088 = vmul.f32 %v4072, %v4085
        %v4089 = vmul.f32 %v4074, %v4086
        %4090 = vrot.lane.b32.xlu0 %v3928, 64
        %v4091 = vpop.permute.xlu0 %4090
        %4092 = vrot.lane.b32.xlu0 %v3931, 64
        %v4093 = vpop.permute.xlu0 %4092
        %4094 = vrot.lane.b32.xlu0 %v3936, 64
        %v4095 = vpop.permute.xlu0 %4094
        %v4100 = vsel %vm2145, %v4087, 0
        %v4103 = vsel %vm2145, %v4088, 0
        %v4106 = vsel %vm2145, %v4089, 0
        %4108 = vmatprep.subr.mxu0 0.0
        %4109 = vmatpush1.msra.mxu0 %v4091
        %4110 = vmatprep.subr.mxu0 0.0
        %4111 = vmatpush1.msra.mxu0 %v4093
        %4112 = vmatprep.subr.mxu0 0.0
        %4113 = vmatpush1.msra.mxu0 %v4095
        %4114 = vmatprep.subr.mxu0 0.0
        %4115 = vmatpush1.msra.mxu0 0.0
        %4116 = vmatprep.subr.mxu0 0.0
        %4117 = vmatpush1.msra.mxu0 0.0
        %4118 = vmatprep.subr.mxu0 0.0
        %4119 = vmatpush1.msra.mxu0 0.0
        %4120 = vmatprep.subr.mxu0 0.0
        %4121 = vmatpush1.msra.mxu0 0.0
        %4122 = vmatprep.subr.mxu0 0.0
        %4123 = vmatpush1.msra.mxu0 0.0
        %4124 = vmatprep.subr.mxu0 0.0
        %4125 = vmatpush1.msra.mxu0 0.0
        %4126 = vmatprep.subr.mxu0 0.0
        %4127 = vmatpush1.msra.mxu0 0.0
        %4128 = vmatprep.subr.mxu0 0.0
        %4129 = vmatpush1.msra.mxu0 0.0
        %4130 = vmatprep.subr.mxu0 0.0
        %4131 = vmatpush1.msra.mxu0 0.0
        %4132 = vmatprep.subr.mxu0 0.0
        %4133 = vmatpush1.msra.mxu0 0.0
        %4134 = vmatprep.subr.mxu0 0.0
        %4135 = vmatpush1.msra.mxu0 0.0
        %4136 = vmatprep.subr.mxu0 0.0
        %4137 = vmatpush1.msra.mxu0 0.0
        %4138 = vmatprep.subr.mxu0 0.0
        %4139 = vmatpush1.msra.mxu0 0.0
        %4140 = vmatprep.subr.mxu0 0.0
        %4141 = vmatpush1.msra.mxu0 0.0
        %4142 = vmatprep.subr.mxu0 0.0
        %4143 = vmatpush1.msra.mxu0 0.0
        %4144 = vmatprep.subr.mxu0 0.0
        %4145 = vmatpush1.msra.mxu0 0.0
        %4146 = vmatprep.subr.mxu0 0.0
        %4147 = vmatpush1.msra.mxu0 0.0
        %4148 = vmatprep.subr.mxu0 0.0
        %4149 = vmatpush1.msra.mxu0 0.0
        %4150 = vmatprep.subr.mxu0 0.0
        %4151 = vmatpush1.msra.mxu0 0.0
        %4152 = vmatprep.subr.mxu0 0.0
        %4153 = vmatpush1.msra.mxu0 0.0
        %4154 = vmatprep.subr.mxu0 0.0
        %4155 = vmatpush1.msra.mxu0 0.0
        %4156 = vmatprep.subr.mxu0 0.0
        %4157 = vmatpush1.msra.mxu0 0.0
        %4158 = vmatprep.subr.mxu0 0.0
        %4159 = vmatpush1.msra.mxu0 0.0
        %4160 = vmatprep.subr.mxu0 0.0
        %4161 = vmatpush1.msra.mxu0 0.0
        %4162 = vmatprep.subr.mxu0 0.0
        %4163 = vmatpush1.msra.mxu0 0.0
        %4164 = vmatprep.subr.mxu0 0.0
        %4165 = vmatpush1.msra.mxu0 0.0
        %4166 = vmatprep.subr.mxu0 0.0
        %4167 = vmatpush1.msra.mxu0 0.0
        %4168 = vmatprep.subr.mxu0 0.0
        %4169 = vmatpush1.msra.mxu0 0.0
        %4170 = vmatprep.subr.mxu0 0.0
        %4171 = vmatpush1.msra.mxu0 0.0
        %4172 = vmatprep.mubr.f32.mxu0 0.0
        %4173 = vmatmul.mubr.f32.gmra.mrb[0].mxu0 %v4100
        %v4174 = vpop.f32.mrb[0].mxu0
        %v4175 = vadd.f32 0.0, %v4174
        %v4176 = vpop.f32.mrb[0].mxu0
        %4177 = vmatprep.mubr.f32.mxu0 0.0
        %4178 = vmatmul.mubr.f32.gmra.mrb[0].mxu0 %v4103
        %v4179 = vpop.f32.mrb[0].mxu0
        %v4180 = vadd.f32 0.0, %v4179
        %v4181 = vpop.f32.mrb[0].mxu0
        %4182 = vmatprep.mubr.f32.mxu0 0.0
        %4183 = vmatmul.mubr.f32.gmra.mrb[0].mxu0 %v4106
        %v4184 = vpop.f32.mrb[0].mxu0
        %v4185 = vadd.f32 0.0, %v4184
        %v4186 = vpop.f32.mrb[0].mxu0
        %4187 = vdwg.mxu0
        %v4188 = vpack.c.bf16 %v4180, %v4175
        %v4189 = vpack.c.bf16 %v4185, %v4185
        %s4190 = scalar_lea.vmem %s43, 16
        %v4191 = vld [vmem:[%s4190] sm:$0xf]
        %v4192 = vld [vmem:[%s4190 + $0x4] sm:$0xf]
        %4193 = vrot.lane.b32.xlu0 %v3928, 112
        %v4194 = vpop.permute.xlu0 %4193
        %4195 = vrot.lane.b32.xlu0 %v3931, 112
        %v4196 = vpop.permute.xlu0 %4195
        %4197 = vrot.lane.b32.xlu0 %v3936, 112
        %v4198 = vpop.permute.xlu0 %4197
        %4199 = vrot.lane.b32.xlu0 %v3928, 80
        %v4200 = vpop.permute.xlu0 %4199
        %4201 = vrot.lane.b32.xlu0 %v3931, 80
        %v4202 = vpop.permute.xlu0 %4201
        %4203 = vrot.lane.b32.xlu0 %v3936, 80
        %v4204 = vpop.permute.xlu0 %4203
        %v4205 = vsel %vm1356, %v4194, 0
        %v4207 = vsel %vm1356, %v4196, 0
        %v4209 = vsel %vm1356, %v4198, 0
        %v4211 = vsel %vm1356, %v4200, 0
        %v4213 = vsel %vm1356, %v4202, 0
        %v4215 = vsel %vm1356, %v4204, 0
        %4217 = vmatprep.subr.mxu0 0.0
        %4218 = vmatpush1.xpose.msra.mxu0 %v4211
        %4219 = vmatprep.subr.mxu0 0.0
        %4220 = vmatpush1.xpose.msra.mxu0 %v4213
        %4221 = vmatprep.subr.mxu0 0.0
        %4222 = vmatpush1.xpose.msra.mxu0 %v4215
        %4223 = vmatprep.subr.mxu0 0.0
        %4224 = vmatpush1.xpose.msra.mxu0 0.0
        %4225 = vmatprep.subr.mxu0 0.0
        %4226 = vmatpush1.xpose.msra.mxu0 0.0
        %4227 = vmatprep.subr.mxu0 0.0
        %4228 = vmatpush1.xpose.msra.mxu0 0.0
        %4229 = vmatprep.subr.mxu0 0.0
        %4230 = vmatpush1.xpose.msra.mxu0 0.0
        %4231 = vmatprep.subr.mxu0 0.0
        %4232 = vmatpush1.xpose.msra.mxu0 0.0
        %4233 = vmatprep.subr.mxu0 0.0
        %4234 = vmatpush1.xpose.msra.mxu0 0.0
        %4235 = vmatprep.subr.mxu0 0.0
        %4236 = vmatpush1.xpose.msra.mxu0 0.0
        %4237 = vmatprep.subr.mxu0 0.0
        %4238 = vmatpush1.xpose.msra.mxu0 0.0
        %4239 = vmatprep.subr.mxu0 0.0
        %4240 = vmatpush1.xpose.msra.mxu0 0.0
        %4241 = vmatprep.subr.mxu0 0.0
        %4242 = vmatpush1.xpose.msra.mxu0 0.0
        %4243 = vmatprep.subr.mxu0 0.0
        %4244 = vmatpush1.xpose.msra.mxu0 0.0
        %4245 = vmatprep.subr.mxu0 0.0
        %4246 = vmatpush1.xpose.msra.mxu0 0.0
        %4247 = vmatprep.subr.mxu0 0.0
        %4248 = vmatpush1.xpose.msra.mxu0 0.0
        %4249 = vmatprep.subr.mxu0 0.0
        %4250 = vmatpush1.xpose.msra.mxu0 0.0
        %4251 = vmatprep.subr.mxu0 0.0
        %4252 = vmatpush1.xpose.msra.mxu0 0.0
        %4253 = vmatprep.subr.mxu0 0.0
        %4254 = vmatpush1.xpose.msra.mxu0 0.0
        %4255 = vmatprep.subr.mxu0 0.0
        %4256 = vmatpush1.xpose.msra.mxu0 0.0
        %4257 = vmatprep.subr.mxu0 0.0
        %4258 = vmatpush1.xpose.msra.mxu0 0.0
        %4259 = vmatprep.subr.mxu0 0.0
        %4260 = vmatpush1.xpose.msra.mxu0 0.0
        %4261 = vmatprep.subr.mxu0 0.0
        %4262 = vmatpush1.xpose.msra.mxu0 0.0
        %4263 = vmatprep.subr.mxu0 0.0
        %4264 = vmatpush1.xpose.msra.mxu0 0.0
        %4265 = vmatprep.subr.mxu0 0.0
        %4266 = vmatpush1.xpose.msra.mxu0 0.0
        %4267 = vmatprep.subr.mxu0 0.0
        %4268 = vmatpush1.xpose.msra.mxu0 0.0
        %4269 = vmatprep.subr.mxu0 0.0
        %4270 = vmatpush1.xpose.msra.mxu0 0.0
        %4271 = vmatprep.subr.mxu0 0.0
        %4272 = vmatpush1.xpose.msra.mxu0 0.0
        %4273 = vmatprep.subr.mxu0 0.0
        %4274 = vmatpush1.xpose.msra.mxu0 0.0
        %4275 = vmatprep.subr.mxu0 0.0
        %4276 = vmatpush1.xpose.msra.mxu0 0.0
        %4277 = vmatprep.subr.mxu0 0.0
        %4278 = vmatpush1.xpose.msra.mxu0 0.0
        %4279 = vmatprep.subr.mxu0 0.0
        %4280 = vmatpush1.xpose.msra.mxu0 0.0
        %4281 = vmatprep.mubr.f32.mxu0 0.0
        %4282 = vmatmul.mubr.f32.gmra.mrb[0].mxu0 %v4205
        %v4283 = vpop.f32.mrb[0].mxu0
        %v4284 = vadd.f32 0.0, %v4283
        %v4285 = vpop.f32.mrb[0].mxu0
        %4286 = vmatprep.mubr.f32.mxu0 0.0
        %4287 = vmatmul.mubr.f32.gmra.mrb[0].mxu0 %v4207
        %v4288 = vpop.f32.mrb[0].mxu0
        %v4289 = vadd.f32 0.0, %v4288
        %v4290 = vpop.f32.mrb[0].mxu0
        %4291 = vmatprep.mubr.f32.mxu0 0.0
        %4292 = vmatmul.mubr.f32.gmra.mrb[0].mxu0 %v4209
        %v4293 = vpop.f32.mrb[0].mxu0
        %v4294 = vadd.f32 0.0, %v4293
        %v4295 = vpop.f32.mrb[0].mxu0
        %4296 = vdwg.mxu0
        %v4297 = vmul.f32 %v4284, 0.25
        %v4298 = vmul.f32 %v4289, 0.25
        %v4299 = vmul.f32 %v4294, 0.25
        %v4300 = vadd.f32 %v4297, %v1943
        %v4301 = vadd.f32 %v4298, %v1944
        %v4302 = vadd.f32 %v4299, %v1945
        %v4303 = vsel %vm2145, %v4300, -inf
        %4304 = vmax.xlane.f32.xlu0 %v4303
        %v4305 = vpop.xlane.xlu0 %4304
        %v4306 = vsel %vm2145, %v4301, -inf
        %4307 = vmax.xlane.f32.xlu0 %v4306
        %v4308 = vpop.xlane.xlu0 %4307
        %v4309 = vsel %vm2145, %v4302, -inf
        %4310 = vmax.xlane.f32.xlu0 %v4309
        %v4311 = vpop.xlane.xlu0 %4310
        %v4312 = vsub.f32 %v4300, %v4305
        %v4313 = vsub.f32 %v4301, %v4308
        %v4314 = vsub.f32 %v4302, %v4311
        %v4315 = vmul.f32 %v4312, 1.442695
        %v4316 = vpow.pop %v4315
        %v4317 = vmul.f32 %v4313, 1.442695
        %v4318 = vpow.pop %v4317
        %v4319 = vmul.f32 %v4314, 1.442695
        %v4320 = vpow.pop %v4319
        %v4321 = vsel %vm2145, %v4316, 0.0
        %4322 = vadd.xlane.f32.xlu0 %v4321
        %v4323 = vpop.xlane.xlu0 %4322
        %v4324 = vsel %vm2145, %v4318, 0.0
        %4325 = vadd.xlane.f32.xlu0 %v4324
        %v4326 = vpop.xlane.xlu0 %4325
        %v4327 = vsel %vm2145, %v4320, 0.0
        %4328 = vadd.xlane.f32.xlu0 %v4327
        %v4329 = vpop.xlane.xlu0 %4328
        %v4330 = vrcp.pop %v4323
        %v4331 = vrcp.pop %v4326
        %v4332 = vrcp.pop %v4329
        %v4333 = vmul.f32 %v4316, %v4330
        %v4334 = vmul.f32 %v4318, %v4331
        %v4335 = vmul.f32 %v4320, %v4332
        %4336 = vrot.lane.b32.xlu0 %v3928, 48
        %v4337 = vpop.permute.xlu0 %4336
        %4338 = vrot.lane.b32.xlu0 %v3931, 48
        %v4339 = vpop.permute.xlu0 %4338
        %4340 = vrot.lane.b32.xlu0 %v3936, 48
        %v4341 = vpop.permute.xlu0 %4340
        %v4346 = vsel %vm2145, %v4333, 0
        %v4349 = vsel %vm2145, %v4334, 0
        %v4352 = vsel %vm2145, %v4335, 0
        %4354 = vmatprep.subr.mxu0 0.0
        %4355 = vmatpush1.msra.mxu0 %v4337
        %4356 = vmatprep.subr.mxu0 0.0
        %4357 = vmatpush1.msra.mxu0 %v4339
        %4358 = vmatprep.subr.mxu0 0.0
        %4359 = vmatpush1.msra.mxu0 %v4341
        %4360 = vmatprep.subr.mxu0 0.0
        %4361 = vmatpush1.msra.mxu0 0.0
        %4362 = vmatprep.subr.mxu0 0.0
        %4363 = vmatpush1.msra.mxu0 0.0
        %4364 = vmatprep.subr.mxu0 0.0
        %4365 = vmatpush1.msra.mxu0 0.0
        %4366 = vmatprep.subr.mxu0 0.0
        %4367 = vmatpush1.msra.mxu0 0.0
        %4368 = vmatprep.subr.mxu0 0.0
        %4369 = vmatpush1.msra.mxu0 0.0
        %4370 = vmatprep.subr.mxu0 0.0
        %4371 = vmatpush1.msra.mxu0 0.0
        %4372 = vmatprep.subr.mxu0 0.0
        %4373 = vmatpush1.msra.mxu0 0.0
        %4374 = vmatprep.subr.mxu0 0.0
        %4375 = vmatpush1.msra.mxu0 0.0
        %4376 = vmatprep.subr.mxu0 0.0
        %4377 = vmatpush1.msra.mxu0 0.0
        %4378 = vmatprep.subr.mxu0 0.0
        %4379 = vmatpush1.msra.mxu0 0.0
        %4380 = vmatprep.subr.mxu0 0.0
        %4381 = vmatpush1.msra.mxu0 0.0
        %4382 = vmatprep.subr.mxu0 0.0
        %4383 = vmatpush1.msra.mxu0 0.0
        %4384 = vmatprep.subr.mxu0 0.0
        %4385 = vmatpush1.msra.mxu0 0.0
        %4386 = vmatprep.subr.mxu0 0.0
        %4387 = vmatpush1.msra.mxu0 0.0
        %4388 = vmatprep.subr.mxu0 0.0
        %4389 = vmatpush1.msra.mxu0 0.0
        %4390 = vmatprep.subr.mxu0 0.0
        %4391 = vmatpush1.msra.mxu0 0.0
        %4392 = vmatprep.subr.mxu0 0.0
        %4393 = vmatpush1.msra.mxu0 0.0
        %4394 = vmatprep.subr.mxu0 0.0
        %4395 = vmatpush1.msra.mxu0 0.0
        %4396 = vmatprep.subr.mxu0 0.0
        %4397 = vmatpush1.msra.mxu0 0.0
        %4398 = vmatprep.subr.mxu0 0.0
        %4399 = vmatpush1.msra.mxu0 0.0
        %4400 = vmatprep.subr.mxu0 0.0
        %4401 = vmatpush1.msra.mxu0 0.0
        %4402 = vmatprep.subr.mxu0 0.0
        %4403 = vmatpush1.msra.mxu0 0.0
        %4404 = vmatprep.subr.mxu0 0.0
        %4405 = vmatpush1.msra.mxu0 0.0
        %4406 = vmatprep.subr.mxu0 0.0
        %4407 = vmatpush1.msra.mxu0 0.0
        %4408 = vmatprep.subr.mxu0 0.0
        %4409 = vmatpush1.msra.mxu0 0.0
        %4410 = vmatprep.subr.mxu0 0.0
        %4411 = vmatpush1.msra.mxu0 0.0
        %4412 = vmatprep.subr.mxu0 0.0
        %4413 = vmatpush1.msra.mxu0 0.0
        %4414 = vmatprep.subr.mxu0 0.0
        %4415 = vmatpush1.msra.mxu0 0.0
        %4416 = vmatprep.subr.mxu0 0.0
        %4417 = vmatpush1.msra.mxu0 0.0
        %4418 = vmatprep.mubr.f32.mxu0 0.0
        %4419 = vmatmul.mubr.f32.gmra.mrb[0].mxu0 %v4346
        %v4420 = vpop.f32.mrb[0].mxu0
        %v4421 = vadd.f32 0.0, %v4420
        %v4422 = vpop.f32.mrb[0].mxu0
        %4423 = vmatprep.mubr.f32.mxu0 0.0
        %4424 = vmatmul.mubr.f32.gmra.mrb[0].mxu0 %v4349
        %v4425 = vpop.f32.mrb[0].mxu0
        %v4426 = vadd.f32 0.0, %v4425
        %v4427 = vpop.f32.mrb[0].mxu0
        %4428 = vmatprep.mubr.f32.mxu0 0.0
        %4429 = vmatmul.mubr.f32.gmra.mrb[0].mxu0 %v4352
        %v4430 = vpop.f32.mrb[0].mxu0
        %v4431 = vadd.f32 0.0, %v4430
        %v4432 = vpop.f32.mrb[0].mxu0
        %4433 = vdwg.mxu0
        %v4434 = vpack.c.bf16 %v4426, %v4421
        %v4435 = vpack.c.bf16 %v4431, %v4431
        %s4436 = scalar_lea.vmem %s43, 24
        %v4437 = vld [vmem:[%s4436] sm:$0xf]
        %v4438 = vld [vmem:[%s4436 + $0x4] sm:$0xf]
        %v4441 = vunpack.c.l.b16 %v4437
        %v4442 = vunpack.c.l.b16 %v4438
        %v4443 = vpack.c.b16 %v4442, %v4441
        %v4446 = vsel %vm1356, %v4434, 0
        %v4449 = vsel %vm1356, %v4435, 0
        %4451 = vmatprep.subr.bf16.mxu0 0
        %4452 = vmatpush1.bf16.msra.mxu0 %v4443
        %4453 = vmatprep.subr.bf16.mxu0 0
        %4454 = vmatpush1.bf16.msra.mxu0 0
        %4455 = vmatprep.subr.bf16.mxu0 0
        %4456 = vmatpush1.bf16.msra.mxu0 0
        %4457 = vmatprep.subr.bf16.mxu0 0
        %4458 = vmatpush1.bf16.msra.mxu0 0
        %4459 = vmatprep.subr.bf16.mxu0 0
        %4460 = vmatpush1.bf16.msra.mxu0 0
        %4461 = vmatprep.subr.bf16.mxu0 0
        %4462 = vmatpush1.bf16.msra.mxu0 0
        %4463 = vmatprep.subr.bf16.mxu0 0
        %4464 = vmatpush1.bf16.msra.mxu0 0
        %4465 = vmatprep.subr.bf16.mxu0 0
        %4466 = vmatpush1.bf16.msra.mxu0 0
        %4467 = vmatprep.subr.bf16.mxu0 0
        %4468 = vmatpush1.bf16.msra.mxu0 0
        %4469 = vmatprep.subr.bf16.mxu0 0
        %4470 = vmatpush1.bf16.msra.mxu0 0
        %4471 = vmatprep.subr.bf16.mxu0 0
        %4472 = vmatpush1.bf16.msra.mxu0 0
        %4473 = vmatprep.subr.bf16.mxu0 0
        %4474 = vmatpush1.bf16.msra.mxu0 0
        %4475 = vmatprep.subr.bf16.mxu0 0
        %4476 = vmatpush1.bf16.msra.mxu0 0
        %4477 = vmatprep.subr.bf16.mxu0 0
        %4478 = vmatpush1.bf16.msra.mxu0 0
        %4479 = vmatprep.subr.bf16.mxu0 0
        %4480 = vmatpush1.bf16.msra.mxu0 0
        %4481 = vmatprep.subr.bf16.mxu0 0
        %4482 = vmatpush1.bf16.msra.mxu0 0
        %4483 = vmatprep.mubr.bf16.mxu0 0
        %4484 = vmatmul.mubr.bf16.gmra.mrb[0].mxu0 %v4446
        %v4485 = vpop.f32.mrb[0].mxu0
        %v4486 = vadd.f32 0.0, %v4485
        %v4487 = vpop.f32.mrb[0].mxu0
        %v4488 = vpop.f32.mrb[0].mxu0
        %v4489 = vadd.f32 0.0, %v4488
        %v4490 = vpop.f32.mrb[0].mxu0
        %4491 = vmatprep.mubr.bf16.mxu0 0
        %4492 = vmatmul.mubr.bf16.gmra.mrb[0].mxu0 %v4449
        %v4493 = vpop.f32.mrb[0].mxu0
        %v4494 = vadd.f32 0.0, %v4493
        %v4495 = vpop.f32.mrb[0].mxu0
        %v4496 = vpop.f32.mrb[0].mxu0
        %v4497 = vpop.f32.mrb[0].mxu0
        %4498 = vdwg.mxu0
        %v4501 = vunpack.c.l.b16 %v4191
        %v4502 = vunpack.c.l.b16 %v4192
        %v4503 = vpack.c.b16 %v4502, %v4501
        %v4506 = vsel %vm1356, %v4188, 0
        %v4509 = vsel %vm1356, %v4189, 0
        %4511 = vmatprep.subr.bf16.mxu0 0
        %4512 = vmatpush1.bf16.msra.mxu0 %v4503
        %4513 = vmatprep.subr.bf16.mxu0 0
        %4514 = vmatpush1.bf16.msra.mxu0 0
        %4515 = vmatprep.subr.bf16.mxu0 0
        %4516 = vmatpush1.bf16.msra.mxu0 0
        %4517 = vmatprep.subr.bf16.mxu0 0
        %4518 = vmatpush1.bf16.msra.mxu0 0
        %4519 = vmatprep.subr.bf16.mxu0 0
        %4520 = vmatpush1.bf16.msra.mxu0 0
        %4521 = vmatprep.subr.bf16.mxu0 0
        %4522 = vmatpush1.bf16.msra.mxu0 0
        %4523 = vmatprep.subr.bf16.mxu0 0
        %4524 = vmatpush1.bf16.msra.mxu0 0
        %4525 = vmatprep.subr.bf16.mxu0 0
        %4526 = vmatpush1.bf16.msra.mxu0 0
        %4527 = vmatprep.subr.bf16.mxu0 0
        %4528 = vmatpush1.bf16.msra.mxu0 0
        %4529 = vmatprep.subr.bf16.mxu0 0
        %4530 = vmatpush1.bf16.msra.mxu0 0
        %4531 = vmatprep.subr.bf16.mxu0 0
        %4532 = vmatpush1.bf16.msra.mxu0 0
        %4533 = vmatprep.subr.bf16.mxu0 0
        %4534 = vmatpush1.bf16.msra.mxu0 0
        %4535 = vmatprep.subr.bf16.mxu0 0
        %4536 = vmatpush1.bf16.msra.mxu0 0
        %4537 = vmatprep.subr.bf16.mxu0 0
        %4538 = vmatpush1.bf16.msra.mxu0 0
        %4539 = vmatprep.subr.bf16.mxu0 0
        %4540 = vmatpush1.bf16.msra.mxu0 0
        %4541 = vmatprep.subr.bf16.mxu0 0
        %4542 = vmatpush1.bf16.msra.mxu0 0
        %4543 = vmatprep.mubr.bf16.mxu0 0
        %4544 = vmatmul.mubr.bf16.gmra.mrb[0].mxu0 %v4506
        %v4545 = vpop.f32.mrb[0].mxu0
        %v4546 = vadd.f32 %v4486, %v4545
        %v4547 = vpop.f32.mrb[0].mxu0
        %v4548 = vpop.f32.mrb[0].mxu0
        %v4549 = vadd.f32 %v4489, %v4548
        %v4550 = vpop.f32.mrb[0].mxu0
        %4551 = vmatprep.mubr.bf16.mxu0 0
        %4552 = vmatmul.mubr.bf16.gmra.mrb[0].mxu0 %v4509
        %v4553 = vpop.f32.mrb[0].mxu0
        %v4554 = vadd.f32 %v4494, %v4553
        %v4555 = vpop.f32.mrb[0].mxu0
        %v4556 = vpop.f32.mrb[0].mxu0
        %v4557 = vpop.f32.mrb[0].mxu0
        %4558 = vdwg.mxu0
        %4562 = vrot.lane.b32.xlu0 %v3939, 96
        %v4563 = vpop.permute.xlu0 %4562
        %4564 = vrot.lane.b32.xlu0 %v3944, 96
        %v4565 = vpop.permute.xlu0 %4564
        %4566 = vrot.lane.b32.xlu0 %v3947, 96
        %v4567 = vpop.permute.xlu0 %4566
        %v4568 = vsel %vm1356, %v3939, 0
        %v4570 = vsel %vm1356, %v3944, 0
        %v4572 = vsel %vm1356, %v3947, 0
        %v4574 = vsel %vm1356, %v4563, 0
        %v4576 = vsel %vm1356, %v4565, 0
        %v4578 = vsel %vm1356, %v4567, 0
        %4580 = vmatprep.subr.mxu0 0.0
        %4581 = vmatpush1.xpose.msra.mxu0 %v4574
        %4582 = vmatprep.subr.mxu0 0.0
        %4583 = vmatpush1.xpose.msra.mxu0 %v4576
        %4584 = vmatprep.subr.mxu0 0.0
        %4585 = vmatpush1.xpose.msra.mxu0 %v4578
        %4586 = vmatprep.subr.mxu0 0.0
        %4587 = vmatpush1.xpose.msra.mxu0 0.0
        %4588 = vmatprep.subr.mxu0 0.0
        %4589 = vmatpush1.xpose.msra.mxu0 0.0
        %4590 = vmatprep.subr.mxu0 0.0
        %4591 = vmatpush1.xpose.msra.mxu0 0.0
        %4592 = vmatprep.subr.mxu0 0.0
        %4593 = vmatpush1.xpose.msra.mxu0 0.0
        %4594 = vmatprep.subr.mxu0 0.0
        %4595 = vmatpush1.xpose.msra.mxu0 0.0
        %4596 = vmatprep.subr.mxu0 0.0
        %4597 = vmatpush1.xpose.msra.mxu0 0.0
        %4598 = vmatprep.subr.mxu0 0.0
        %4599 = vmatpush1.xpose.msra.mxu0 0.0
        %4600 = vmatprep.subr.mxu0 0.0
        %4601 = vmatpush1.xpose.msra.mxu0 0.0
        %4602 = vmatprep.subr.mxu0 0.0
        %4603 = vmatpush1.xpose.msra.mxu0 0.0
        %4604 = vmatprep.subr.mxu0 0.0
        %4605 = vmatpush1.xpose.msra.mxu0 0.0
        %4606 = vmatprep.subr.mxu0 0.0
        %4607 = vmatpush1.xpose.msra.mxu0 0.0
        %4608 = vmatprep.subr.mxu0 0.0
        %4609 = vmatpush1.xpose.msra.mxu0 0.0
        %4610 = vmatprep.subr.mxu0 0.0
        %4611 = vmatpush1.xpose.msra.mxu0 0.0
        %4612 = vmatprep.subr.mxu0 0.0
        %4613 = vmatpush1.xpose.msra.mxu0 0.0
        %4614 = vmatprep.subr.mxu0 0.0
        %4615 = vmatpush1.xpose.msra.mxu0 0.0
        %4616 = vmatprep.subr.mxu0 0.0
        %4617 = vmatpush1.xpose.msra.mxu0 0.0
        %4618 = vmatprep.subr.mxu0 0.0
        %4619 = vmatpush1.xpose.msra.mxu0 0.0
        %4620 = vmatprep.subr.mxu0 0.0
        %4621 = vmatpush1.xpose.msra.mxu0 0.0
        %4622 = vmatprep.subr.mxu0 0.0
        %4623 = vmatpush1.xpose.msra.mxu0 0.0
        %4624 = vmatprep.subr.mxu0 0.0
        %4625 = vmatpush1.xpose.msra.mxu0 0.0
        %4626 = vmatprep.subr.mxu0 0.0
        %4627 = vmatpush1.xpose.msra.mxu0 0.0
        %4628 = vmatprep.subr.mxu0 0.0
        %4629 = vmatpush1.xpose.msra.mxu0 0.0
        %4630 = vmatprep.subr.mxu0 0.0
        %4631 = vmatpush1.xpose.msra.mxu0 0.0
        %4632 = vmatprep.subr.mxu0 0.0
        %4633 = vmatpush1.xpose.msra.mxu0 0.0
        %4634 = vmatprep.subr.mxu0 0.0
        %4635 = vmatpush1.xpose.msra.mxu0 0.0
        %4636 = vmatprep.subr.mxu0 0.0
        %4637 = vmatpush1.xpose.msra.mxu0 0.0
        %4638 = vmatprep.subr.mxu0 0.0
        %4639 = vmatpush1.xpose.msra.mxu0 0.0
        %4640 = vmatprep.subr.mxu0 0.0
        %4641 = vmatpush1.xpose.msra.mxu0 0.0
        %4642 = vmatprep.subr.mxu0 0.0
        %4643 = vmatpush1.xpose.msra.mxu0 0.0
        %4644 = vmatprep.mubr.f32.mxu0 0.0
        %4645 = vmatmul.mubr.f32.gmra.mrb[0].mxu0 %v4568
        %v4646 = vpop.f32.mrb[0].mxu0
        %v4647 = vadd.f32 0.0, %v4646
        %v4648 = vpop.f32.mrb[0].mxu0
        %4649 = vmatprep.mubr.f32.mxu0 0.0
        %4650 = vmatmul.mubr.f32.gmra.mrb[0].mxu0 %v4570
        %v4651 = vpop.f32.mrb[0].mxu0
        %v4652 = vadd.f32 0.0, %v4651
        %v4653 = vpop.f32.mrb[0].mxu0
        %4654 = vmatprep.mubr.f32.mxu0 0.0
        %4655 = vmatmul.mubr.f32.gmra.mrb[0].mxu0 %v4572
        %v4656 = vpop.f32.mrb[0].mxu0
        %v4657 = vadd.f32 0.0, %v4656
        %v4658 = vpop.f32.mrb[0].mxu0
        %4659 = vdwg.mxu0
        %v4660 = vmul.f32 %v4647, 0.25
        %v4661 = vmul.f32 %v4652, 0.25
        %v4662 = vmul.f32 %v4657, 0.25
        %v4663 = vadd.f32 %v4660, %v1943
        %v4664 = vadd.f32 %v4661, %v1944
        %v4665 = vadd.f32 %v4662, %v1945
        %v4666 = vsel %vm2145, %v4663, -inf
        %4667 = vmax.xlane.f32.xlu0 %v4666
        %v4668 = vpop.xlane.xlu0 %4667
        %v4669 = vsel %vm2145, %v4664, -inf
        %4670 = vmax.xlane.f32.xlu0 %v4669
        %v4671 = vpop.xlane.xlu0 %4670
        %v4672 = vsel %vm2145, %v4665, -inf
        %4673 = vmax.xlane.f32.xlu0 %v4672
        %v4674 = vpop.xlane.xlu0 %4673
        %v4675 = vsub.f32 %v4663, %v4668
        %v4676 = vsub.f32 %v4664, %v4671
        %v4677 = vsub.f32 %v4665, %v4674
        %v4678 = vmul.f32 %v4675, 1.442695
        %v4679 = vpow.pop %v4678
        %v4680 = vmul.f32 %v4676, 1.442695
        %v4681 = vpow.pop %v4680
        %v4682 = vmul.f32 %v4677, 1.442695
        %v4683 = vpow.pop %v4682
        %v4684 = vsel %vm2145, %v4679, 0.0
        %4685 = vadd.xlane.f32.xlu0 %v4684
        %v4686 = vpop.xlane.xlu0 %4685
        %v4687 = vsel %vm2145, %v4681, 0.0
        %4688 = vadd.xlane.f32.xlu0 %v4687
        %v4689 = vpop.xlane.xlu0 %4688
        %v4690 = vsel %vm2145, %v4683, 0.0
        %4691 = vadd.xlane.f32.xlu0 %v4690
        %v4692 = vpop.xlane.xlu0 %4691
        %v4693 = vrcp.pop %v4686
        %v4694 = vrcp.pop %v4689
        %v4695 = vrcp.pop %v4692
        %v4696 = vmul.f32 %v4679, %v4693
        %v4697 = vmul.f32 %v4681, %v4694
        %v4698 = vmul.f32 %v4683, %v4695
        %4699 = vrot.lane.b32.xlu0 %v3939, 64
        %v4700 = vpop.permute.xlu0 %4699
        %4701 = vrot.lane.b32.xlu0 %v3944, 64
        %v4702 = vpop.permute.xlu0 %4701
        %4703 = vrot.lane.b32.xlu0 %v3947, 64
        %v4704 = vpop.permute.xlu0 %4703
        %v4709 = vsel %vm2145, %v4696, 0
        %v4712 = vsel %vm2145, %v4697, 0
        %v4715 = vsel %vm2145, %v4698, 0
        %4717 = vmatprep.subr.mxu0 0.0
        %4718 = vmatpush1.msra.mxu0 %v4700
        %4719 = vmatprep.subr.mxu0 0.0
        %4720 = vmatpush1.msra.mxu0 %v4702
        %4721 = vmatprep.subr.mxu0 0.0
        %4722 = vmatpush1.msra.mxu0 %v4704
        %4723 = vmatprep.subr.mxu0 0.0
        %4724 = vmatpush1.msra.mxu0 0.0
        %4725 = vmatprep.subr.mxu0 0.0
        %4726 = vmatpush1.msra.mxu0 0.0
        %4727 = vmatprep.subr.mxu0 0.0
        %4728 = vmatpush1.msra.mxu0 0.0
        %4729 = vmatprep.subr.mxu0 0.0
        %4730 = vmatpush1.msra.mxu0 0.0
        %4731 = vmatprep.subr.mxu0 0.0
        %4732 = vmatpush1.msra.mxu0 0.0
        %4733 = vmatprep.subr.mxu0 0.0
        %4734 = vmatpush1.msra.mxu0 0.0
        %4735 = vmatprep.subr.mxu0 0.0
        %4736 = vmatpush1.msra.mxu0 0.0
        %4737 = vmatprep.subr.mxu0 0.0
        %4738 = vmatpush1.msra.mxu0 0.0
        %4739 = vmatprep.subr.mxu0 0.0
        %4740 = vmatpush1.msra.mxu0 0.0
        %4741 = vmatprep.subr.mxu0 0.0
        %4742 = vmatpush1.msra.mxu0 0.0
        %4743 = vmatprep.subr.mxu0 0.0
        %4744 = vmatpush1.msra.mxu0 0.0
        %4745 = vmatprep.subr.mxu0 0.0
        %4746 = vmatpush1.msra.mxu0 0.0
        %4747 = vmatprep.subr.mxu0 0.0
        %4748 = vmatpush1.msra.mxu0 0.0
        %4749 = vmatprep.subr.mxu0 0.0
        %4750 = vmatpush1.msra.mxu0 0.0
        %4751 = vmatprep.subr.mxu0 0.0
        %4752 = vmatpush1.msra.mxu0 0.0
        %4753 = vmatprep.subr.mxu0 0.0
        %4754 = vmatpush1.msra.mxu0 0.0
        %4755 = vmatprep.subr.mxu0 0.0
        %4756 = vmatpush1.msra.mxu0 0.0
        %4757 = vmatprep.subr.mxu0 0.0
        %4758 = vmatpush1.msra.mxu0 0.0
        %4759 = vmatprep.subr.mxu0 0.0
        %4760 = vmatpush1.msra.mxu0 0.0
        %4761 = vmatprep.subr.mxu0 0.0
        %4762 = vmatpush1.msra.mxu0 0.0
        %4763 = vmatprep.subr.mxu0 0.0
        %4764 = vmatpush1.msra.mxu0 0.0
        %4765 = vmatprep.subr.mxu0 0.0
        %4766 = vmatpush1.msra.mxu0 0.0
        %4767 = vmatprep.subr.mxu0 0.0
        %4768 = vmatpush1.msra.mxu0 0.0
        %4769 = vmatprep.subr.mxu0 0.0
        %4770 = vmatpush1.msra.mxu0 0.0
        %4771 = vmatprep.subr.mxu0 0.0
        %4772 = vmatpush1.msra.mxu0 0.0
        %4773 = vmatprep.subr.mxu0 0.0
        %4774 = vmatpush1.msra.mxu0 0.0
        %4775 = vmatprep.subr.mxu0 0.0
        %4776 = vmatpush1.msra.mxu0 0.0
        %4777 = vmatprep.subr.mxu0 0.0
        %4778 = vmatpush1.msra.mxu0 0.0
        %4779 = vmatprep.subr.mxu0 0.0
        %4780 = vmatpush1.msra.mxu0 0.0
        %4781 = vmatprep.mubr.f32.mxu0 0.0
        %4782 = vmatmul.mubr.f32.gmra.mrb[0].mxu0 %v4709
        %v4783 = vpop.f32.mrb[0].mxu0
        %v4784 = vadd.f32 0.0, %v4783
        %v4785 = vpop.f32.mrb[0].mxu0
        %4786 = vmatprep.mubr.f32.mxu0 0.0
        %4787 = vmatmul.mubr.f32.gmra.mrb[0].mxu0 %v4712
        %v4788 = vpop.f32.mrb[0].mxu0
        %v4789 = vadd.f32 0.0, %v4788
        %v4790 = vpop.f32.mrb[0].mxu0
        %4791 = vmatprep.mubr.f32.mxu0 0.0
        %4792 = vmatmul.mubr.f32.gmra.mrb[0].mxu0 %v4715
        %v4793 = vpop.f32.mrb[0].mxu0
        %v4794 = vadd.f32 0.0, %v4793
        %v4795 = vpop.f32.mrb[0].mxu0
        %4796 = vdwg.mxu0
        %v4797 = vpack.c.bf16 %v4789, %v4784
        %v4798 = vpack.c.bf16 %v4794, %v4794
        %4799 = vrot.lane.b32.xlu0 %v3939, 112
        %v4800 = vpop.permute.xlu0 %4799
        %4801 = vrot.lane.b32.xlu0 %v3944, 112
        %v4802 = vpop.permute.xlu0 %4801
        %4803 = vrot.lane.b32.xlu0 %v3947, 112
        %v4804 = vpop.permute.xlu0 %4803
        %4805 = vrot.lane.b32.xlu0 %v3939, 80
        %v4806 = vpop.permute.xlu0 %4805
        %4807 = vrot.lane.b32.xlu0 %v3944, 80
        %v4808 = vpop.permute.xlu0 %4807
        %4809 = vrot.lane.b32.xlu0 %v3947, 80
        %v4810 = vpop.permute.xlu0 %4809
        %v4811 = vsel %vm1356, %v4800, 0
        %v4813 = vsel %vm1356, %v4802, 0
        %v4815 = vsel %vm1356, %v4804, 0
        %v4817 = vsel %vm1356, %v4806, 0
        %v4819 = vsel %vm1356, %v4808, 0
        %v4821 = vsel %vm1356, %v4810, 0
        %4823 = vmatprep.subr.mxu0 0.0
        %4824 = vmatpush1.xpose.msra.mxu0 %v4817
        %4825 = vmatprep.subr.mxu0 0.0
        %4826 = vmatpush1.xpose.msra.mxu0 %v4819
        %4827 = vmatprep.subr.mxu0 0.0
        %4828 = vmatpush1.xpose.msra.mxu0 %v4821
        %4829 = vmatprep.subr.mxu0 0.0
        %4830 = vmatpush1.xpose.msra.mxu0 0.0
        %4831 = vmatprep.subr.mxu0 0.0
        %4832 = vmatpush1.xpose.msra.mxu0 0.0
        %4833 = vmatprep.subr.mxu0 0.0
        %4834 = vmatpush1.xpose.msra.mxu0 0.0
        %4835 = vmatprep.subr.mxu0 0.0
        %4836 = vmatpush1.xpose.msra.mxu0 0.0
        %4837 = vmatprep.subr.mxu0 0.0
        %4838 = vmatpush1.xpose.msra.mxu0 0.0
        %4839 = vmatprep.subr.mxu0 0.0
        %4840 = vmatpush1.xpose.msra.mxu0 0.0
        %4841 = vmatprep.subr.mxu0 0.0
        %4842 = vmatpush1.xpose.msra.mxu0 0.0
        %4843 = vmatprep.subr.mxu0 0.0
        %4844 = vmatpush1.xpose.msra.mxu0 0.0
        %4845 = vmatprep.subr.mxu0 0.0
        %4846 = vmatpush1.xpose.msra.mxu0 0.0
        %4847 = vmatprep.subr.mxu0 0.0
        %4848 = vmatpush1.xpose.msra.mxu0 0.0
        %4849 = vmatprep.subr.mxu0 0.0
        %4850 = vmatpush1.xpose.msra.mxu0 0.0
        %4851 = vmatprep.subr.mxu0 0.0
        %4852 = vmatpush1.xpose.msra.mxu0 0.0
        %4853 = vmatprep.subr.mxu0 0.0
        %4854 = vmatpush1.xpose.msra.mxu0 0.0
        %4855 = vmatprep.subr.mxu0 0.0
        %4856 = vmatpush1.xpose.msra.mxu0 0.0
        %4857 = vmatprep.subr.mxu0 0.0
        %4858 = vmatpush1.xpose.msra.mxu0 0.0
        %4859 = vmatprep.subr.mxu0 0.0
        %4860 = vmatpush1.xpose.msra.mxu0 0.0
        %4861 = vmatprep.subr.mxu0 0.0
        %4862 = vmatpush1.xpose.msra.mxu0 0.0
        %4863 = vmatprep.subr.mxu0 0.0
        %4864 = vmatpush1.xpose.msra.mxu0 0.0
        %4865 = vmatprep.subr.mxu0 0.0
        %4866 = vmatpush1.xpose.msra.mxu0 0.0
        %4867 = vmatprep.subr.mxu0 0.0
        %4868 = vmatpush1.xpose.msra.mxu0 0.0
        %4869 = vmatprep.subr.mxu0 0.0
        %4870 = vmatpush1.xpose.msra.mxu0 0.0
        %4871 = vmatprep.subr.mxu0 0.0
        %4872 = vmatpush1.xpose.msra.mxu0 0.0
        %4873 = vmatprep.subr.mxu0 0.0
        %4874 = vmatpush1.xpose.msra.mxu0 0.0
        %4875 = vmatprep.subr.mxu0 0.0
        %4876 = vmatpush1.xpose.msra.mxu0 0.0
        %4877 = vmatprep.subr.mxu0 0.0
        %4878 = vmatpush1.xpose.msra.mxu0 0.0
        %4879 = vmatprep.subr.mxu0 0.0
        %4880 = vmatpush1.xpose.msra.mxu0 0.0
        %4881 = vmatprep.subr.mxu0 0.0
        %4882 = vmatpush1.xpose.msra.mxu0 0.0
        %4883 = vmatprep.subr.mxu0 0.0
        %4884 = vmatpush1.xpose.msra.mxu0 0.0
        %4885 = vmatprep.subr.mxu0 0.0
        %4886 = vmatpush1.xpose.msra.mxu0 0.0
        %4887 = vmatprep.mubr.f32.mxu0 0.0
        %4888 = vmatmul.mubr.f32.gmra.mrb[0].mxu0 %v4811
        %v4889 = vpop.f32.mrb[0].mxu0
        %v4890 = vadd.f32 0.0, %v4889
        %v4891 = vpop.f32.mrb[0].mxu0
        %4892 = vmatprep.mubr.f32.mxu0 0.0
        %4893 = vmatmul.mubr.f32.gmra.mrb[0].mxu0 %v4813
        %v4894 = vpop.f32.mrb[0].mxu0
        %v4895 = vadd.f32 0.0, %v4894
        %v4896 = vpop.f32.mrb[0].mxu0
        %4897 = vmatprep.mubr.f32.mxu0 0.0
        %4898 = vmatmul.mubr.f32.gmra.mrb[0].mxu0 %v4815
        %v4899 = vpop.f32.mrb[0].mxu0
        %v4900 = vadd.f32 0.0, %v4899
        %v4901 = vpop.f32.mrb[0].mxu0
        %4902 = vdwg.mxu0
        %v4903 = vmul.f32 %v4890, 0.25
        %v4904 = vmul.f32 %v4895, 0.25
        %v4905 = vmul.f32 %v4900, 0.25
        %v4906 = vadd.f32 %v4903, %v1943
        %v4907 = vadd.f32 %v4904, %v1944
        %v4908 = vadd.f32 %v4905, %v1945
        %v4909 = vsel %vm2145, %v4906, -inf
        %4910 = vmax.xlane.f32.xlu0 %v4909
        %v4911 = vpop.xlane.xlu0 %4910
        %v4912 = vsel %vm2145, %v4907, -inf
        %4913 = vmax.xlane.f32.xlu0 %v4912
        %v4914 = vpop.xlane.xlu0 %4913
        %v4915 = vsel %vm2145, %v4908, -inf
        %4916 = vmax.xlane.f32.xlu0 %v4915
        %v4917 = vpop.xlane.xlu0 %4916
        %v4918 = vsub.f32 %v4906, %v4911
        %v4919 = vsub.f32 %v4907, %v4914
        %v4920 = vsub.f32 %v4908, %v4917
        %v4921 = vmul.f32 %v4918, 1.442695
        %v4922 = vpow.pop %v4921
        %v4923 = vmul.f32 %v4919, 1.442695
        %v4924 = vpow.pop %v4923
        %v4925 = vmul.f32 %v4920, 1.442695
        %v4926 = vpow.pop %v4925
        %v4927 = vsel %vm2145, %v4922, 0.0
        %4928 = vadd.xlane.f32.xlu0 %v4927
        %v4929 = vpop.xlane.xlu0 %4928
        %v4930 = vsel %vm2145, %v4924, 0.0
        %4931 = vadd.xlane.f32.xlu0 %v4930
        %v4932 = vpop.xlane.xlu0 %4931
        %v4933 = vsel %vm2145, %v4926, 0.0
        %4934 = vadd.xlane.f32.xlu0 %v4933
        %v4935 = vpop.xlane.xlu0 %4934
        %v4936 = vrcp.pop %v4929
        %v4937 = vrcp.pop %v4932
        %v4938 = vrcp.pop %v4935
        %v4939 = vmul.f32 %v4922, %v4936
        %v4940 = vmul.f32 %v4924, %v4937
        %v4941 = vmul.f32 %v4926, %v4938
        %4942 = vrot.lane.b32.xlu0 %v3939, 48
        %v4943 = vpop.permute.xlu0 %4942
        %4944 = vrot.lane.b32.xlu0 %v3944, 48
        %v4945 = vpop.permute.xlu0 %4944
        %4946 = vrot.lane.b32.xlu0 %v3947, 48
        %v4947 = vpop.permute.xlu0 %4946
        %v4952 = vsel %vm2145, %v4939, 0
        %v4955 = vsel %vm2145, %v4940, 0
        %v4958 = vsel %vm2145, %v4941, 0
        %4960 = vmatprep.subr.mxu0 0.0
        %4961 = vmatpush1.msra.mxu0 %v4943
        %4962 = vmatprep.subr.mxu0 0.0
        %4963 = vmatpush1.msra.mxu0 %v4945
        %4964 = vmatprep.subr.mxu0 0.0
        %4965 = vmatpush1.msra.mxu0 %v4947
        %4966 = vmatprep.subr.mxu0 0.0
        %4967 = vmatpush1.msra.mxu0 0.0
        %4968 = vmatprep.subr.mxu0 0.0
        %4969 = vmatpush1.msra.mxu0 0.0
        %4970 = vmatprep.subr.mxu0 0.0
        %4971 = vmatpush1.msra.mxu0 0.0
        %4972 = vmatprep.subr.mxu0 0.0
        %4973 = vmatpush1.msra.mxu0 0.0
        %4974 = vmatprep.subr.mxu0 0.0
        %4975 = vmatpush1.msra.mxu0 0.0
        %4976 = vmatprep.subr.mxu0 0.0
        %4977 = vmatpush1.msra.mxu0 0.0
        %4978 = vmatprep.subr.mxu0 0.0
        %4979 = vmatpush1.msra.mxu0 0.0
        %4980 = vmatprep.subr.mxu0 0.0
        %4981 = vmatpush1.msra.mxu0 0.0
        %4982 = vmatprep.subr.mxu0 0.0
        %4983 = vmatpush1.msra.mxu0 0.0
        %4984 = vmatprep.subr.mxu0 0.0
        %4985 = vmatpush1.msra.mxu0 0.0
        %4986 = vmatprep.subr.mxu0 0.0
        %4987 = vmatpush1.msra.mxu0 0.0
        %4988 = vmatprep.subr.mxu0 0.0
        %4989 = vmatpush1.msra.mxu0 0.0
        %4990 = vmatprep.subr.mxu0 0.0
        %4991 = vmatpush1.msra.mxu0 0.0
        %4992 = vmatprep.subr.mxu0 0.0
        %4993 = vmatpush1.msra.mxu0 0.0
        %4994 = vmatprep.subr.mxu0 0.0
        %4995 = vmatpush1.msra.mxu0 0.0
        %4996 = vmatprep.subr.mxu0 0.0
        %4997 = vmatpush1.msra.mxu0 0.0
        %4998 = vmatprep.subr.mxu0 0.0
        %4999 = vmatpush1.msra.mxu0 0.0
        %5000 = vmatprep.subr.mxu0 0.0
        %5001 = vmatpush1.msra.mxu0 0.0
        %5002 = vmatprep.subr.mxu0 0.0
        %5003 = vmatpush1.msra.mxu0 0.0
        %5004 = vmatprep.subr.mxu0 0.0
        %5005 = vmatpush1.msra.mxu0 0.0
        %5006 = vmatprep.subr.mxu0 0.0
        %5007 = vmatpush1.msra.mxu0 0.0
        %5008 = vmatprep.subr.mxu0 0.0
        %5009 = vmatpush1.msra.mxu0 0.0
        %5010 = vmatprep.subr.mxu0 0.0
        %5011 = vmatpush1.msra.mxu0 0.0
        %5012 = vmatprep.subr.mxu0 0.0
        %5013 = vmatpush1.msra.mxu0 0.0
        %5014 = vmatprep.subr.mxu0 0.0
        %5015 = vmatpush1.msra.mxu0 0.0
        %5016 = vmatprep.subr.mxu0 0.0
        %5017 = vmatpush1.msra.mxu0 0.0
        %5018 = vmatprep.subr.mxu0 0.0
        %5019 = vmatpush1.msra.mxu0 0.0
        %5020 = vmatprep.subr.mxu0 0.0
        %5021 = vmatpush1.msra.mxu0 0.0
        %5022 = vmatprep.subr.mxu0 0.0
        %5023 = vmatpush1.msra.mxu0 0.0
        %5024 = vmatprep.mubr.f32.mxu0 0.0
        %5025 = vmatmul.mubr.f32.gmra.mrb[0].mxu0 %v4952
        %v5026 = vpop.f32.mrb[0].mxu0
        %v5027 = vadd.f32 0.0, %v5026
        %v5028 = vpop.f32.mrb[0].mxu0
        %5029 = vmatprep.mubr.f32.mxu0 0.0
        %5030 = vmatmul.mubr.f32.gmra.mrb[0].mxu0 %v4955
        %v5031 = vpop.f32.mrb[0].mxu0
        %v5032 = vadd.f32 0.0, %v5031
        %v5033 = vpop.f32.mrb[0].mxu0
        %5034 = vmatprep.mubr.f32.mxu0 0.0
        %5035 = vmatmul.mubr.f32.gmra.mrb[0].mxu0 %v4958
        %v5036 = vpop.f32.mrb[0].mxu0
        %v5037 = vadd.f32 0.0, %v5036
        %v5038 = vpop.f32.mrb[0].mxu0
        %5039 = vdwg.mxu0
        %v5040 = vpack.c.bf16 %v5032, %v5027
        %v5041 = vpack.c.bf16 %v5037, %v5037
        %v5043 = vsel %vm1356, %v5040, 0
        %v5046 = vsel %vm1356, %v5041, 0
        %5048 = vmatprep.subr.bf16.mxu0 0
        %5049 = vmatpush1.bf16.msra.mxu0 %v4443
        %5050 = vmatprep.subr.bf16.mxu0 0
        %5051 = vmatpush1.bf16.msra.mxu0 0
        %5052 = vmatprep.subr.bf16.mxu0 0
        %5053 = vmatpush1.bf16.msra.mxu0 0
        %5054 = vmatprep.subr.bf16.mxu0 0
        %5055 = vmatpush1.bf16.msra.mxu0 0
        %5056 = vmatprep.subr.bf16.mxu0 0
        %5057 = vmatpush1.bf16.msra.mxu0 0
        %5058 = vmatprep.subr.bf16.mxu0 0
        %5059 = vmatpush1.bf16.msra.mxu0 0
        %5060 = vmatprep.subr.bf16.mxu0 0
        %5061 = vmatpush1.bf16.msra.mxu0 0
        %5062 = vmatprep.subr.bf16.mxu0 0
        %5063 = vmatpush1.bf16.msra.mxu0 0
        %5064 = vmatprep.subr.bf16.mxu0 0
        %5065 = vmatpush1.bf16.msra.mxu0 0
        %5066 = vmatprep.subr.bf16.mxu0 0
        %5067 = vmatpush1.bf16.msra.mxu0 0
        %5068 = vmatprep.subr.bf16.mxu0 0
        %5069 = vmatpush1.bf16.msra.mxu0 0
        %5070 = vmatprep.subr.bf16.mxu0 0
        %5071 = vmatpush1.bf16.msra.mxu0 0
        %5072 = vmatprep.subr.bf16.mxu0 0
        %5073 = vmatpush1.bf16.msra.mxu0 0
        %5074 = vmatprep.subr.bf16.mxu0 0
        %5075 = vmatpush1.bf16.msra.mxu0 0
        %5076 = vmatprep.subr.bf16.mxu0 0
        %5077 = vmatpush1.bf16.msra.mxu0 0
        %5078 = vmatprep.subr.bf16.mxu0 0
        %5079 = vmatpush1.bf16.msra.mxu0 0
        %5080 = vmatprep.mubr.bf16.mxu0 0
        %5081 = vmatmul.mubr.bf16.gmra.mrb[0].mxu0 %v5043
        %v5082 = vpop.f32.mrb[0].mxu0
        %v5083 = vadd.f32 0.0, %v5082
        %v5084 = vpop.f32.mrb[0].mxu0
        %v5085 = vpop.f32.mrb[0].mxu0
        %v5086 = vadd.f32 0.0, %v5085
        %v5087 = vpop.f32.mrb[0].mxu0
        %5088 = vmatprep.mubr.bf16.mxu0 0
        %5089 = vmatmul.mubr.bf16.gmra.mrb[0].mxu0 %v5046
        %v5090 = vpop.f32.mrb[0].mxu0
        %v5091 = vadd.f32 0.0, %v5090
        %v5092 = vpop.f32.mrb[0].mxu0
        %v5093 = vpop.f32.mrb[0].mxu0
        %v5094 = vpop.f32.mrb[0].mxu0
        %5095 = vdwg.mxu0
        %v5097 = vsel %vm1356, %v4797, 0
        %v5100 = vsel %vm1356, %v4798, 0
        %5102 = vmatprep.subr.bf16.mxu0 0
        %5103 = vmatpush1.bf16.msra.mxu0 %v4503
        %5104 = vmatprep.subr.bf16.mxu0 0
        %5105 = vmatpush1.bf16.msra.mxu0 0
        %5106 = vmatprep.subr.bf16.mxu0 0
        %5107 = vmatpush1.bf16.msra.mxu0 0
        %5108 = vmatprep.subr.bf16.mxu0 0
        %5109 = vmatpush1.bf16.msra.mxu0 0
        %5110 = vmatprep.subr.bf16.mxu0 0
        %5111 = vmatpush1.bf16.msra.mxu0 0
        %5112 = vmatprep.subr.bf16.mxu0 0
        %5113 = vmatpush1.bf16.msra.mxu0 0
        %5114 = vmatprep.subr.bf16.mxu0 0
        %5115 = vmatpush1.bf16.msra.mxu0 0
        %5116 = vmatprep.subr.bf16.mxu0 0
        %5117 = vmatpush1.bf16.msra.mxu0 0
        %5118 = vmatprep.subr.bf16.mxu0 0
        %5119 = vmatpush1.bf16.msra.mxu0 0
        %5120 = vmatprep.subr.bf16.mxu0 0
        %5121 = vmatpush1.bf16.msra.mxu0 0
        %5122 = vmatprep.subr.bf16.mxu0 0
        %5123 = vmatpush1.bf16.msra.mxu0 0
        %5124 = vmatprep.subr.bf16.mxu0 0
        %5125 = vmatpush1.bf16.msra.mxu0 0
        %5126 = vmatprep.subr.bf16.mxu0 0
        %5127 = vmatpush1.bf16.msra.mxu0 0
        %5128 = vmatprep.subr.bf16.mxu0 0
        %5129 = vmatpush1.bf16.msra.mxu0 0
        %5130 = vmatprep.subr.bf16.mxu0 0
        %5131 = vmatpush1.bf16.msra.mxu0 0
        %5132 = vmatprep.subr.bf16.mxu0 0
        %5133 = vmatpush1.bf16.msra.mxu0 0
        %5134 = vmatprep.mubr.bf16.mxu0 0
        %5135 = vmatmul.mubr.bf16.gmra.mrb[0].mxu0 %v5097
        %v5136 = vpop.f32.mrb[0].mxu0
        %v5137 = vadd.f32 %v5083, %v5136
        %v5138 = vpop.f32.mrb[0].mxu0
        %v5139 = vpop.f32.mrb[0].mxu0
        %v5140 = vadd.f32 %v5086, %v5139
        %v5141 = vpop.f32.mrb[0].mxu0
        %5142 = vmatprep.mubr.bf16.mxu0 0
        %5143 = vmatmul.mubr.bf16.gmra.mrb[0].mxu0 %v5100
        %v5144 = vpop.f32.mrb[0].mxu0
        %v5145 = vadd.f32 %v5091, %v5144
        %v5146 = vpop.f32.mrb[0].mxu0
        %v5147 = vpop.f32.mrb[0].mxu0
        %v5148 = vpop.f32.mrb[0].mxu0
        %5149 = vdwg.mxu0
        %s5150 = scalar_lea.vmem %s45, 1
        %v5151 = vld [vmem:[%s5150] sm:$0x1]
        %v5153 = vlaneseq
        %v5154 = vshrl.u32 %v5153, 7
        %v5155 = vsub.s32 0, %v5154
        %v5156 = vrot.slane %v5151, %v5155
        %v5158 = vadd.f32 %v4546, %v5156
        %v5159 = vadd.f32 %v4549, %v5156
        %v5160 = vadd.f32 %v4554, %v5156
        %v5161 = vadd.f32 %v5137, %v5156
        %v5162 = vadd.f32 %v5140, %v5156
        %v5163 = vadd.f32 %v5145, %v5156
        %v5164 = vadd.f32 %v3850, %v5158
        %v5165 = vadd.f32 %v3851, %v5159
        %v5166 = vadd.f32 %v3852, %v5160
        %v5167 = vadd.f32 %v3853, %v5161
        %v5168 = vadd.f32 %v3854, %v5162
        %v5169 = vadd.f32 %v3855, %v5163
        %s5170 = scalar_lea.vmem %s47, 1
        %v5171 = vld [vmem:[%s5170] sm:$0x1]
        %s5172 = scalar_lea.vmem %s49, 1
        %v5173 = vld [vmem:[%s5172] sm:$0x1]
        %v5174 = vsel %vm1839, %v5164, 0.0
        %5175 = vadd.xlane.f32.xlu0 %v5174
        %v5176 = vpop.xlane.xlu0 %5175
        %v5177 = vsel %vm1839, %v5165, 0.0
        %5178 = vadd.xlane.f32.xlu0 %v5177
        %v5179 = vpop.xlane.xlu0 %5178
        %v5180 = vsel %vm1839, %v5166, 0.0
        %5181 = vadd.xlane.f32.xlu0 %v5180
        %v5182 = vpop.xlane.xlu0 %5181
        %v5183 = vsel %vm1839, %v5167, 0.0
        %5184 = vadd.xlane.f32.xlu0 %v5183
        %v5185 = vpop.xlane.xlu0 %5184
        %v5186 = vsel %vm1839, %v5168, 0.0
        %5187 = vadd.xlane.f32.xlu0 %v5186
        %v5188 = vpop.xlane.xlu0 %5187
        %v5189 = vsel %vm1839, %v5169, 0.0
        %5190 = vadd.xlane.f32.xlu0 %v5189
        %v5191 = vpop.xlane.xlu0 %5190
        %v5192 = vmul.f32 %v5176, %v1858
        %v5193 = vmul.f32 %v5179, %v1858
        %v5194 = vmul.f32 %v5182, %v1858
        %v5195 = vmul.f32 %v5185, %v1858
        %v5196 = vmul.f32 %v5188, %v1858
        %v5197 = vmul.f32 %v5191, %v1858
        %v5198 = vsub.f32 %v5164, %v5192
        %v5199 = vsub.f32 %v5165, %v5193
        %v5200 = vsub.f32 %v5166, %v5194
        %v5201 = vsub.f32 %v5167, %v5195
        %v5202 = vsub.f32 %v5168, %v5196
        %v5203 = vsub.f32 %v5169, %v5197
        %v5204 = vmul.f32 %v5198, %v5198
        %v5205 = vmul.f32 %v5199, %v5199
        %v5206 = vmul.f32 %v5200, %v5200
        %v5207 = vmul.f32 %v5201, %v5201
        %v5208 = vmul.f32 %v5202, %v5202
        %v5209 = vmul.f32 %v5203, %v5203
        %v5210 = vsel %vm1839, %v5204, 0.0
        %5211 = vadd.xlane.f32.xlu0 %v5210
        %v5212 = vpop.xlane.xlu0 %5211
        %v5213 = vsel %vm1839, %v5205, 0.0
        %5214 = vadd.xlane.f32.xlu0 %v5213
        %v5215 = vpop.xlane.xlu0 %5214
        %v5216 = vsel %vm1839, %v5206, 0.0
        %5217 = vadd.xlane.f32.xlu0 %v5216
        %v5218 = vpop.xlane.xlu0 %5217
        %v5219 = vsel %vm1839, %v5207, 0.0
        %5220 = vadd.xlane.f32.xlu0 %v5219
        %v5221 = vpop.xlane.xlu0 %5220
        %v5222 = vsel %vm1839, %v5208, 0.0
        %5223 = vadd.xlane.f32.xlu0 %v5222
        %v5224 = vpop.xlane.xlu0 %5223
        %v5225 = vsel %vm1839, %v5209, 0.0
        %5226 = vadd.xlane.f32.xlu0 %v5225
        %v5227 = vpop.xlane.xlu0 %5226
        %v5228 = vmul.f32 %v5212, %v1858
        %v5229 = vmul.f32 %v5215, %v1858
        %v5230 = vmul.f32 %v5218, %v1858
        %v5231 = vmul.f32 %v5221, %v1858
        %v5232 = vmul.f32 %v5224, %v1858
        %v5233 = vmul.f32 %v5227, %v1858
        %v5234 = vadd.f32 %v5228, 1e-05
        %v5235 = vadd.f32 %v5229, 1e-05
        %v5236 = vadd.f32 %v5230, 1e-05
        %v5237 = vadd.f32 %v5231, 1e-05
        %v5238 = vadd.f32 %v5232, 1e-05
        %v5239 = vadd.f32 %v5233, 1e-05
        %v5240 = vrsqrt.pop %v5234
        %v5241 = vrsqrt.pop %v5235
        %v5242 = vrsqrt.pop %v5236
        %v5243 = vrsqrt.pop %v5237
        %v5244 = vrsqrt.pop %v5238
        %v5245 = vrsqrt.pop %v5239
        %v5246 = vmul.f32 %v5198, %v5240
        %v5247 = vmul.f32 %v5199, %v5241
        %v5248 = vmul.f32 %v5200, %v5242
        %v5249 = vmul.f32 %v5201, %v5243
        %v5250 = vmul.f32 %v5202, %v5244
        %v5251 = vmul.f32 %v5203, %v5245
        %v5253 = vlaneseq
        %v5254 = vshrl.u32 %v5253, 7
        %v5255 = vsub.s32 0, %v5254
        %v5256 = vrot.slane %v5171, %v5255
        %v5258 = vmul.f32 %v5246, %v5256
        %v5259 = vmul.f32 %v5247, %v5256
        %v5260 = vmul.f32 %v5248, %v5256
        %v5261 = vmul.f32 %v5249, %v5256
        %v5262 = vmul.f32 %v5250, %v5256
        %v5263 = vmul.f32 %v5251, %v5256
        %v5265 = vlaneseq
        %v5266 = vshrl.u32 %v5265, 7
        %v5267 = vsub.s32 0, %v5266
        %v5268 = vrot.slane %v5173, %v5267
        %v5270 = vadd.f32 %v5258, %v5268
        %v5271 = vadd.f32 %v5259, %v5268
        %v5272 = vadd.f32 %v5260, %v5268
        %v5273 = vadd.f32 %v5261, %v5268
        %v5274 = vadd.f32 %v5262, %v5268
        %v5275 = vadd.f32 %v5263, %v5268
        %v5276 = vpack.c.bf16 %v5271, %v5270
        %v5277 = vpack.c.bf16 %v5273, %v5272
        %v5278 = vpack.c.bf16 %v5275, %v5274
        %s5279 = scalar_lea.vmem %s51, 16
        %v5280 = vld [vmem:[%s5279] sm:$0xf]
        %v5281 = vld [vmem:[%s5279 + $0x4] sm:$0xf]
        %v5282 = vld [vmem:[%s5279 + $0x8] sm:$0xf]
        %v5283 = vld [vmem:[%s5279 + $0xc] sm:$0xf]
        %s5284 = scalar_lea.vmem %s53, 1
        %v5285 = vld [vmem:[%s5284] sm:$0x1]
        %v5287 = vlaneseq
        %v5288 = vshrl.u32 %v5287, 7
        %v5289 = vsub.s32 0, %v5288
        %v5290 = vrot.slane %v5285, %v5289
        %v5296 = vunpack.c.l.b16 %v5280
        %v5297 = vunpack.c.l.b16 %v5281
        %v5298 = vunpack.c.l.b16 %v5282
        %v5299 = vunpack.c.l.b16 %v5283
        %v5300 = vpack.c.b16 %v5297, %v5296
        %v5301 = vpack.c.b16 %v5299, %v5298
        %v5305 = vsel %vm1839, %v5276, 0
        %v5308 = vsel %vm1839, %v5277, 0
        %v5311 = vsel %vm1839, %v5278, 0
        %5313 = vmatprep.subr.bf16.mxu0 0
        %5314 = vmatpush1.bf16.msra.mxu0 %v5300
        %5315 = vmatprep.subr.bf16.mxu0 0
        %5316 = vmatpush1.bf16.msra.mxu0 %v5301
        %5317 = vmatprep.subr.bf16.mxu0 0
        %5318 = vmatpush1.bf16.msra.mxu0 0
        %5319 = vmatprep.subr.bf16.mxu0 0
        %5320 = vmatpush1.bf16.msra.mxu0 0
        %5321 = vmatprep.subr.bf16.mxu0 0
        %5322 = vmatpush1.bf16.msra.mxu0 0
        %5323 = vmatprep.subr.bf16.mxu0 0
        %5324 = vmatpush1.bf16.msra.mxu0 0
        %5325 = vmatprep.subr.bf16.mxu0 0
        %5326 = vmatpush1.bf16.msra.mxu0 0
        %5327 = vmatprep.subr.bf16.mxu0 0
        %5328 = vmatpush1.bf16.msra.mxu0 0
        %5329 = vmatprep.subr.bf16.mxu0 0
        %5330 = vmatpush1.bf16.msra.mxu0 0
        %5331 = vmatprep.subr.bf16.mxu0 0
        %5332 = vmatpush1.bf16.msra.mxu0 0
        %5333 = vmatprep.subr.bf16.mxu0 0
        %5334 = vmatpush1.bf16.msra.mxu0 0
        %5335 = vmatprep.subr.bf16.mxu0 0
        %5336 = vmatpush1.bf16.msra.mxu0 0
        %5337 = vmatprep.subr.bf16.mxu0 0
        %5338 = vmatpush1.bf16.msra.mxu0 0
        %5339 = vmatprep.subr.bf16.mxu0 0
        %5340 = vmatpush1.bf16.msra.mxu0 0
        %5341 = vmatprep.subr.bf16.mxu0 0
        %5342 = vmatpush1.bf16.msra.mxu0 0
        %5343 = vmatprep.subr.bf16.mxu0 0
        %5344 = vmatpush1.bf16.msra.mxu0 0
        %5345 = vmatprep.mubr.bf16.mxu0 0
        %5346 = vmatmul.mubr.bf16.gmra.mrb[0].mxu0 %v5305
        %v5347 = vpop.f32.mrb[0].mxu0
        %v5348 = vadd.f32 %v5290, %v5347
        %v5349 = vpop.f32.mrb[0].mxu0
        %v5350 = vpop.f32.mrb[0].mxu0
        %v5351 = vadd.f32 %v5290, %v5350
        %v5352 = vpop.f32.mrb[0].mxu0
        %5353 = vmatprep.mubr.bf16.mxu0 0
        %5354 = vmatmul.mubr.bf16.gmra.mrb[0].mxu0 %v5308
        %v5355 = vpop.f32.mrb[0].mxu0
        %v5356 = vadd.f32 %v5290, %v5355
        %v5357 = vpop.f32.mrb[0].mxu0
        %v5358 = vpop.f32.mrb[0].mxu0
        %v5359 = vadd.f32 %v5290, %v5358
        %v5360 = vpop.f32.mrb[0].mxu0
        %5361 = vmatprep.mubr.bf16.mxu0 0
        %5362 = vmatmul.mubr.bf16.gmra.mrb[0].mxu0 %v5311
        %v5363 = vpop.f32.mrb[0].mxu0
        %v5364 = vadd.f32 %v5290, %v5363
        %v5365 = vpop.f32.mrb[0].mxu0
        %v5366 = vpop.f32.mrb[0].mxu0
        %v5367 = vadd.f32 %v5290, %v5366
        %v5368 = vpop.f32.mrb[0].mxu0
        %5369 = vdwg.mxu0
        %v5370 = vmul.f32 %v5348, 0.5
        %v5371 = vmul.f32 %v5351, 0.5
        %v5372 = vmul.f32 %v5356, 0.5
        %v5373 = vmul.f32 %v5359, 0.5
        %v5374 = vmul.f32 %v5364, 0.5
        %v5375 = vmul.f32 %v5367, 0.5
        %v5376 = vmul.f32 %v5348, 0.70710677
        %v5377 = vmul.f32 %v5351, 0.70710677
        %v5378 = vmul.f32 %v5356, 0.70710677
        %v5379 = vmul.f32 %v5359, 0.70710677
        %v5380 = vmul.f32 %v5364, 0.70710677
        %v5381 = vmul.f32 %v5367, 0.70710677
        %v5382 = vand.u32 2147483647, %v5376
        %v5383 = vand.u32 2147483647, %v5377
        %v5384 = vand.u32 2147483647, %v5378
        %v5385 = vand.u32 2147483647, %v5379
        %v5386 = vand.u32 2147483647, %v5380
        %v5387 = vand.u32 2147483647, %v5381
        %v5388 = vmul.f32 %v5382, 0.3275911
        %v5389 = vmul.f32 %v5383, 0.3275911
        %v5390 = vmul.f32 %v5384, 0.3275911
        %v5391 = vmul.f32 %v5385, 0.3275911
        %v5392 = vmul.f32 %v5386, 0.3275911
        %v5393 = vmul.f32 %v5387, 0.3275911
        %v5394 = vadd.f32 %v5388, 1.0
        %v5395 = vadd.f32 %v5389, 1.0
        %v5396 = vadd.f32 %v5390, 1.0
        %v5397 = vadd.f32 %v5391, 1.0
        %v5398 = vadd.f32 %v5392, 1.0
        %v5399 = vadd.f32 %v5393, 1.0
        %v5400 = vrcp.pop %v5394
        %v5401 = vmul.f32 1.0, %v5400
        %v5402 = vrcp.pop %v5395
        %v5403 = vmul.f32 1.0, %v5402
        %v5404 = vrcp.pop %v5396
        %v5405 = vmul.f32 1.0, %v5404
        %v5406 = vrcp.pop %v5397
        %v5407 = vmul.f32 1.0, %v5406
        %v5408 = vrcp.pop %v5398
        %v5409 = vmul.f32 1.0, %v5408
        %v5410 = vrcp.pop %v5399
        %v5411 = vmul.f32 1.0, %v5410
        %v5412 = vmul.f32 %v5401, 1.0614054
        %v5413 = vmul.f32 %v5403, 1.0614054
        %v5414 = vmul.f32 %v5405, 1.0614054
        %v5415 = vmul.f32 %v5407, 1.0614054
        %v5416 = vmul.f32 %v5409, 1.0614054
        %v5417 = vmul.f32 %v5411, 1.0614054
        %v5418 = vadd.f32 %v5412, -1.4531521
        %v5419 = vadd.f32 %v5413, -1.4531521
        %v5420 = vadd.f32 %v5414, -1.4531521
        %v5421 = vadd.f32 %v5415, -1.4531521
        %v5422 = vadd.f32 %v5416, -1.4531521
        %v5423 = vadd.f32 %v5417, -1.4531521
        %v5424 = vmul.f32 %v5418, %v5401
        %v5425 = vmul.f32 %v5419, %v5403
        %v5426 = vmul.f32 %v5420, %v5405
        %v5427 = vmul.f32 %v5421, %v5407
        %v5428 = vmul.f32 %v5422, %v5409
        %v5429 = vmul.f32 %v5423, %v5411
        %v5430 = vadd.f32 %v5424, 1.4214138
        %v5431 = vadd.f32 %v5425, 1.4214138
        %v5432 = vadd.f32 %v5426, 1.4214138
        %v5433 = vadd.f32 %v5427, 1.4214138
        %v5434 = vadd.f32 %v5428, 1.4214138
        %v5435 = vadd.f32 %v5429, 1.4214138
        %v5436 = vmul.f32 %v5430, %v5401
        %v5437 = vmul.f32 %v5431, %v5403
        %v5438 = vmul.f32 %v5432, %v5405
        %v5439 = vmul.f32 %v5433, %v5407
        %v5440 = vmul.f32 %v5434, %v5409
        %v5441 = vmul.f32 %v5435, %v5411
        %v5442 = vadd.f32 %v5436, -0.28449672
        %v5443 = vadd.f32 %v5437, -0.28449672
        %v5444 = vadd.f32 %v5438, -0.28449672
        %v5445 = vadd.f32 %v5439, -0.28449672
        %v5446 = vadd.f32 %v5440, -0.28449672
        %v5447 = vadd.f32 %v5441, -0.28449672
        %v5448 = vmul.f32 %v5442, %v5401
        %v5449 = vmul.f32 %v5443, %v5403
        %v5450 = vmul.f32 %v5444, %v5405
        %v5451 = vmul.f32 %v5445, %v5407
        %v5452 = vmul.f32 %v5446, %v5409
        %v5453 = vmul.f32 %v5447, %v5411
        %v5454 = vadd.f32 %v5448, 0.2548296
        %v5455 = vadd.f32 %v5449, 0.2548296
        %v5456 = vadd.f32 %v5450, 0.2548296
        %v5457 = vadd.f32 %v5451, 0.2548296
        %v5458 = vadd.f32 %v5452, 0.2548296
        %v5459 = vadd.f32 %v5453, 0.2548296
        %v5460 = vmul.f32 %v5454, %v5401
        %v5461 = vmul.f32 %v5455, %v5403
        %v5462 = vmul.f32 %v5456, %v5405
        %v5463 = vmul.f32 %v5457, %v5407
        %v5464 = vmul.f32 %v5458, %v5409
        %v5465 = vmul.f32 %v5459, %v5411
        %v5466 = vsub.f32 0.0, %v5382
        %v5467 = vsub.f32 0.0, %v5383
        %v5468 = vsub.f32 0.0, %v5384
        %v5469 = vsub.f32 0.0, %v5385
        %v5470 = vsub.f32 0.0, %v5386
        %v5471 = vsub.f32 0.0, %v5387
        %v5472 = vmul.f32 %v5466, %v5382
        %v5473 = vmul.f32 %v5467, %v5383
        %v5474 = vmul.f32 %v5468, %v5384
        %v5475 = vmul.f32 %v5469, %v5385
        %v5476 = vmul.f32 %v5470, %v5386
        %v5477 = vmul.f32 %v5471, %v5387
        %v5478 = vmul.f32 %v5472, 1.442695
        %v5479 = vpow.pop %v5478
        %v5480 = vmul.f32 %v5473, 1.442695
        %v5481 = vpow.pop %v5480
        %v5482 = vmul.f32 %v5474, 1.442695
        %v5483 = vpow.pop %v5482
        %v5484 = vmul.f32 %v5475, 1.442695
        %v5485 = vpow.pop %v5484
        %v5486 = vmul.f32 %v5476, 1.442695
        %v5487 = vpow.pop %v5486
        %v5488 = vmul.f32 %v5477, 1.442695
        %v5489 = vpow.pop %v5488
        %v5490 = vmul.f32 %v5460, %v5479
        %v5491 = vmul.f32 %v5461, %v5481
        %v5492 = vmul.f32 %v5462, %v5483
        %v5493 = vmul.f32 %v5463, %v5485
        %v5494 = vmul.f32 %v5464, %v5487
        %v5495 = vmul.f32 %v5465, %v5489
        %v5496 = vsub.f32 1.0, %v5490
        %v5497 = vsub.f32 1.0, %v5491
        %v5498 = vsub.f32 1.0, %v5492
        %v5499 = vsub.f32 1.0, %v5493
        %v5500 = vsub.f32 1.0, %v5494
        %v5501 = vsub.f32 1.0, %v5495
        %vm5502 = vcmp.lt.f32.partialorder %v5376, 0.0
        %vm5503 = vcmp.lt.f32.partialorder %v5377, 0.0
        %vm5504 = vcmp.lt.f32.partialorder %v5378, 0.0
        %vm5505 = vcmp.lt.f32.partialorder %v5379, 0.0
        %vm5506 = vcmp.lt.f32.partialorder %v5380, 0.0
        %vm5507 = vcmp.lt.f32.partialorder %v5381, 0.0
        %v5508 = vsub.f32 0.0, %v5496
        %v5509 = vsub.f32 0.0, %v5497
        %v5510 = vsub.f32 0.0, %v5498
        %v5511 = vsub.f32 0.0, %v5499
        %v5512 = vsub.f32 0.0, %v5500
        %v5513 = vsub.f32 0.0, %v5501
        %v5514 = vsel %vm5502, %v5508, %v5496
        %v5515 = vsel %vm5503, %v5509, %v5497
        %v5516 = vsel %vm5504, %v5510, %v5498
        %v5517 = vsel %vm5505, %v5511, %v5499
        %v5518 = vsel %vm5506, %v5512, %v5500
        %v5519 = vsel %vm5507, %v5513, %v5501
        %v5520 = vadd.f32 %v5514, 1.0
        %v5521 = vadd.f32 %v5515, 1.0
        %v5522 = vadd.f32 %v5516, 1.0
        %v5523 = vadd.f32 %v5517, 1.0
        %v5524 = vadd.f32 %v5518, 1.0
        %v5525 = vadd.f32 %v5519, 1.0
        %v5526 = vmul.f32 %v5370, %v5520
        %v5527 = vmul.f32 %v5371, %v5521
        %v5528 = vmul.f32 %v5372, %v5522
        %v5529 = vmul.f32 %v5373, %v5523
        %v5530 = vmul.f32 %v5374, %v5524
        %v5531 = vmul.f32 %v5375, %v5525
        %v5532 = vpack.c.bf16 %v5527, %v5526
        %v5533 = vpack.c.bf16 %v5529, %v5528
        %v5534 = vpack.c.bf16 %v5531, %v5530
        %s5535 = scalar_lea.vmem %s55, 64
        %v5536 = vld [vmem:[%s5535] sm:$0xf]
        %v5537 = vld [vmem:[%s5535 + $0x4] sm:$0xf]
        %v5538 = vld [vmem:[%s5535 + $0x8] sm:$0xf]
        %v5539 = vld [vmem:[%s5535 + $0xc] sm:$0xf]
        %v5540 = vld [vmem:[%s5535 + $0x10] sm:$0xf]
        %v5541 = vld [vmem:[%s5535 + $0x14] sm:$0xf]
        %v5542 = vld [vmem:[%s5535 + $0x18] sm:$0xf]
        %v5543 = vld [vmem:[%s5535 + $0x1c] sm:$0xf]
        %v5544 = vld [vmem:[%s5535 + $0x20] sm:$0xf]
        %v5545 = vld [vmem:[%s5535 + $0x24] sm:$0xf]
        %v5546 = vld [vmem:[%s5535 + $0x28] sm:$0xf]
        %v5547 = vld [vmem:[%s5535 + $0x2c] sm:$0xf]
        %v5548 = vld [vmem:[%s5535 + $0x30] sm:$0xf]
        %v5549 = vld [vmem:[%s5535 + $0x34] sm:$0xf]
        %v5550 = vld [vmem:[%s5535 + $0x38] sm:$0xf]
        %v5551 = vld [vmem:[%s5535 + $0x3c] sm:$0xf]
        %s5552 = scalar_lea.vmem %s57, 1
        %v5553 = vld [vmem:[%s5552] sm:$0x1]
        %v5555 = vlaneseq
        %v5556 = vshrl.u32 %v5555, 7
        %v5557 = vsub.s32 0, %v5556
        %v5558 = vrot.slane %v5553, %v5557
        %v5576 = vunpack.c.l.b16 %v5536
        %v5577 = vunpack.c.l.b16 %v5537
        %v5578 = vunpack.c.l.b16 %v5538
        %v5579 = vunpack.c.l.b16 %v5539
        %v5580 = vunpack.c.l.b16 %v5540
        %v5581 = vunpack.c.l.b16 %v5541
        %v5582 = vunpack.c.l.b16 %v5542
        %v5583 = vunpack.c.l.b16 %v5543
        %v5584 = vunpack.c.l.b16 %v5544
        %v5585 = vunpack.c.l.b16 %v5545
        %v5586 = vunpack.c.l.b16 %v5546
        %v5587 = vunpack.c.l.b16 %v5547
        %v5588 = vunpack.c.l.b16 %v5548
        %v5589 = vunpack.c.l.b16 %v5549
        %v5590 = vunpack.c.l.b16 %v5550
        %v5591 = vunpack.c.l.b16 %v5551
        %v5592 = vpack.c.b16 %v5577, %v5576
        %v5593 = vpack.c.b16 %v5579, %v5578
        %v5594 = vpack.c.b16 %v5581, %v5580
        %v5595 = vpack.c.b16 %v5583, %v5582
        %v5596 = vpack.c.b16 %v5585, %v5584
        %v5597 = vpack.c.b16 %v5587, %v5586
        %v5598 = vpack.c.b16 %v5589, %v5588
        %v5599 = vpack.c.b16 %v5591, %v5590
        %5608 = vmatprep.subr.bf16.mxu0 0
        %5609 = vmatpush1.bf16.msra.mxu0 %v5592
        %5610 = vmatprep.subr.bf16.mxu0 0
        %5611 = vmatpush1.bf16.msra.mxu0 %v5593
        %5612 = vmatprep.subr.bf16.mxu0 0
        %5613 = vmatpush1.bf16.msra.mxu0 %v5594
        %5614 = vmatprep.subr.bf16.mxu0 0
        %5615 = vmatpush1.bf16.msra.mxu0 %v5595
        %5616 = vmatprep.subr.bf16.mxu0 0
        %5617 = vmatpush1.bf16.msra.mxu0 %v5596
        %5618 = vmatprep.subr.bf16.mxu0 0
        %5619 = vmatpush1.bf16.msra.mxu0 %v5597
        %5620 = vmatprep.subr.bf16.mxu0 0
        %5621 = vmatpush1.bf16.msra.mxu0 %v5598
        %5622 = vmatprep.subr.bf16.mxu0 0
        %5623 = vmatpush1.bf16.msra.mxu0 %v5599
        %5624 = vmatprep.subr.bf16.mxu0 0
        %5625 = vmatpush1.bf16.msra.mxu0 0
        %5626 = vmatprep.subr.bf16.mxu0 0
        %5627 = vmatpush1.bf16.msra.mxu0 0
        %5628 = vmatprep.subr.bf16.mxu0 0
        %5629 = vmatpush1.bf16.msra.mxu0 0
        %5630 = vmatprep.subr.bf16.mxu0 0
        %5631 = vmatpush1.bf16.msra.mxu0 0
        %5632 = vmatprep.subr.bf16.mxu0 0
        %5633 = vmatpush1.bf16.msra.mxu0 0
        %5634 = vmatprep.subr.bf16.mxu0 0
        %5635 = vmatpush1.bf16.msra.mxu0 0
        %5636 = vmatprep.subr.bf16.mxu0 0
        %5637 = vmatpush1.bf16.msra.mxu0 0
        %5638 = vmatprep.subr.bf16.mxu0 0
        %5639 = vmatpush1.bf16.msra.mxu0 0
        %5640 = vmatprep.mubr.bf16.mxu0 0
        %5641 = vmatmul.mubr.bf16.gmra.mrb[0].mxu0 %v5532
        %v5642 = vpop.f32.mrb[0].mxu0
        %v5643 = vadd.f32 %v5558, %v5642
        %v5644 = vpop.f32.mrb[0].mxu0
        %v5645 = vpop.f32.mrb[0].mxu0
        %v5646 = vadd.f32 %v5558, %v5645
        %v5647 = vpop.f32.mrb[0].mxu0
        %5648 = vmatprep.mubr.bf16.mxu0 0
        %5649 = vmatmul.mubr.bf16.gmra.mrb[0].mxu0 %v5533
        %v5650 = vpop.f32.mrb[0].mxu0
        %v5651 = vadd.f32 %v5558, %v5650
        %v5652 = vpop.f32.mrb[0].mxu0
        %v5653 = vpop.f32.mrb[0].mxu0
        %v5654 = vadd.f32 %v5558, %v5653
        %v5655 = vpop.f32.mrb[0].mxu0
        %5656 = vmatprep.mubr.bf16.mxu0 0
        %5657 = vmatmul.mubr.bf16.gmra.mrb[0].mxu0 %v5534
        %v5658 = vpop.f32.mrb[0].mxu0
        %v5659 = vadd.f32 %v5558, %v5658
        %v5660 = vpop.f32.mrb[0].mxu0
        %v5661 = vpop.f32.mrb[0].mxu0
        %v5662 = vadd.f32 %v5558, %v5661
        %v5663 = vpop.f32.mrb[0].mxu0
        %5664 = vdwg.mxu0
        %v5665 = vadd.f32 %v5270, %v5643
        %v5666 = vadd.f32 %v5271, %v5646
        %v5667 = vadd.f32 %v5272, %v5651
        %v5668 = vadd.f32 %v5273, %v5654
        %v5669 = vadd.f32 %v5274, %v5659
        %v5670 = vadd.f32 %v5275, %v5662
        %s5671 = scalar_lea.vmem %s59, 1
        %v5672 = vld [vmem:[%s5671] sm:$0x1]
        %s5673 = scalar_lea.vmem %s61, 1
        %v5674 = vld [vmem:[%s5673] sm:$0x1]
        %v5675 = vsel %vm1839, %v5665, 0.0
        %5676 = vadd.xlane.f32.xlu0 %v5675
        %v5677 = vpop.xlane.xlu0 %5676
        %v5678 = vsel %vm1839, %v5666, 0.0
        %5679 = vadd.xlane.f32.xlu0 %v5678
        %v5680 = vpop.xlane.xlu0 %5679
        %v5681 = vsel %vm1839, %v5667, 0.0
        %5682 = vadd.xlane.f32.xlu0 %v5681
        %v5683 = vpop.xlane.xlu0 %5682
        %v5684 = vsel %vm1839, %v5668, 0.0
        %5685 = vadd.xlane.f32.xlu0 %v5684
        %v5686 = vpop.xlane.xlu0 %5685
        %v5687 = vsel %vm1839, %v5669, 0.0
        %5688 = vadd.xlane.f32.xlu0 %v5687
        %v5689 = vpop.xlane.xlu0 %5688
        %v5690 = vsel %vm1839, %v5670, 0.0
        %5691 = vadd.xlane.f32.xlu0 %v5690
        %v5692 = vpop.xlane.xlu0 %5691
        %v5693 = vmul.f32 %v5677, %v1858
        %v5694 = vmul.f32 %v5680, %v1858
        %v5695 = vmul.f32 %v5683, %v1858
        %v5696 = vmul.f32 %v5686, %v1858
        %v5697 = vmul.f32 %v5689, %v1858
        %v5698 = vmul.f32 %v5692, %v1858
        %v5699 = vsub.f32 %v5665, %v5693
        %v5700 = vsub.f32 %v5666, %v5694
        %v5701 = vsub.f32 %v5667, %v5695
        %v5702 = vsub.f32 %v5668, %v5696
        %v5703 = vsub.f32 %v5669, %v5697
        %v5704 = vsub.f32 %v5670, %v5698
        %v5705 = vmul.f32 %v5699, %v5699
        %v5706 = vmul.f32 %v5700, %v5700
        %v5707 = vmul.f32 %v5701, %v5701
        %v5708 = vmul.f32 %v5702, %v5702
        %v5709 = vmul.f32 %v5703, %v5703
        %v5710 = vmul.f32 %v5704, %v5704
        %v5711 = vsel %vm1839, %v5705, 0.0
        %5712 = vadd.xlane.f32.xlu0 %v5711
        %v5713 = vpop.xlane.xlu0 %5712
        %v5714 = vsel %vm1839, %v5706, 0.0
        %5715 = vadd.xlane.f32.xlu0 %v5714
        %v5716 = vpop.xlane.xlu0 %5715
        %v5717 = vsel %vm1839, %v5707, 0.0
        %5718 = vadd.xlane.f32.xlu0 %v5717
        %v5719 = vpop.xlane.xlu0 %5718
        %v5720 = vsel %vm1839, %v5708, 0.0
        %5721 = vadd.xlane.f32.xlu0 %v5720
        %v5722 = vpop.xlane.xlu0 %5721
        %v5723 = vsel %vm1839, %v5709, 0.0
        %5724 = vadd.xlane.f32.xlu0 %v5723
        %v5725 = vpop.xlane.xlu0 %5724
        %v5726 = vsel %vm1839, %v5710, 0.0
        %5727 = vadd.xlane.f32.xlu0 %v5726
        %v5728 = vpop.xlane.xlu0 %5727
        %v5729 = vmul.f32 %v5713, %v1858
        %v5730 = vmul.f32 %v5716, %v1858
        %v5731 = vmul.f32 %v5719, %v1858
        %v5732 = vmul.f32 %v5722, %v1858
        %v5733 = vmul.f32 %v5725, %v1858
        %v5734 = vmul.f32 %v5728, %v1858
        %v5735 = vadd.f32 %v5729, 1e-05
        %v5736 = vadd.f32 %v5730, 1e-05
        %v5737 = vadd.f32 %v5731, 1e-05
        %v5738 = vadd.f32 %v5732, 1e-05
        %v5739 = vadd.f32 %v5733, 1e-05
        %v5740 = vadd.f32 %v5734, 1e-05
        %v5741 = vrsqrt.pop %v5735
        %v5742 = vrsqrt.pop %v5736
        %v5743 = vrsqrt.pop %v5737
        %v5744 = vrsqrt.pop %v5738
        %v5745 = vrsqrt.pop %v5739
        %v5746 = vrsqrt.pop %v5740
        %v5747 = vmul.f32 %v5699, %v5741
        %v5748 = vmul.f32 %v5700, %v5742
        %v5749 = vmul.f32 %v5701, %v5743
        %v5750 = vmul.f32 %v5702, %v5744
        %v5751 = vmul.f32 %v5703, %v5745
        %v5752 = vmul.f32 %v5704, %v5746
        %v5754 = vlaneseq
        %v5755 = vshrl.u32 %v5754, 7
        %v5756 = vsub.s32 0, %v5755
        %v5757 = vrot.slane %v5672, %v5756
        %v5759 = vmul.f32 %v5747, %v5757
        %v5760 = vmul.f32 %v5748, %v5757
        %v5761 = vmul.f32 %v5749, %v5757
        %v5762 = vmul.f32 %v5750, %v5757
        %v5763 = vmul.f32 %v5751, %v5757
        %v5764 = vmul.f32 %v5752, %v5757
        %v5766 = vlaneseq
        %v5767 = vshrl.u32 %v5766, 7
        %v5768 = vsub.s32 0, %v5767
        %v5769 = vrot.slane %v5674, %v5768
        %v5771 = vadd.f32 %v5759, %v5769
        %v5772 = vadd.f32 %v5760, %v5769
        %v5773 = vadd.f32 %v5761, %v5769
        %v5774 = vadd.f32 %v5762, %v5769
        %v5775 = vadd.f32 %v5763, %v5769
        %v5776 = vadd.f32 %v5764, %v5769
        %v5777 = vld [vmem:[%s17] sm:$0xff]
        %v5778 = vld [vmem:[%s17 + $0x8] sm:$0xff]
        %vm5779 = vcmask 392192
        %v5781 = vsel %vm5779, %v5777, 0
        %v5784 = vsel %vm5779, %v5778, 0
        %5786 = vmatprep.subr.mxu0 0.0
        %5787 = vmatpush1.msra.mxu0 %v5771
        %5788 = vmatprep.subr.mxu0 0.0
        %5789 = vmatpush1.msra.mxu0 %v5772
        %5790 = vmatprep.subr.mxu0 0.0
        %5791 = vmatpush1.msra.mxu0 %v5773
        %5792 = vmatprep.subr.mxu0 0.0
        %5793 = vmatpush1.msra.mxu0 %v5774
        %5794 = vmatprep.subr.mxu0 0.0
        %5795 = vmatpush1.msra.mxu0 %v5775
        %5796 = vmatprep.subr.mxu0 0.0
        %5797 = vmatpush1.msra.mxu0 %v5776
        %5798 = vmatprep.subr.mxu0 0.0
        %5799 = vmatpush1.msra.mxu0 0.0
        %5800 = vmatprep.subr.mxu0 0.0
        %5801 = vmatpush1.msra.mxu0 0.0
        %5802 = vmatprep.subr.mxu0 0.0
        %5803 = vmatpush1.msra.mxu0 0.0
        %5804 = vmatprep.subr.mxu0 0.0
        %5805 = vmatpush1.msra.mxu0 0.0
        %5806 = vmatprep.subr.mxu0 0.0
        %5807 = vmatpush1.msra.mxu0 0.0
        %5808 = vmatprep.subr.mxu0 0.0
        %5809 = vmatpush1.msra.mxu0 0.0
        %5810 = vmatprep.subr.mxu0 0.0
        %5811 = vmatpush1.msra.mxu0 0.0
        %5812 = vmatprep.subr.mxu0 0.0
        %5813 = vmatpush1.msra.mxu0 0.0
        %5814 = vmatprep.subr.mxu0 0.0
        %5815 = vmatpush1.msra.mxu0 0.0
        %5816 = vmatprep.subr.mxu0 0.0
        %5817 = vmatpush1.msra.mxu0 0.0
        %5818 = vmatprep.subr.mxu0 0.0
        %5819 = vmatpush1.msra.mxu0 0.0
        %5820 = vmatprep.subr.mxu0 0.0
        %5821 = vmatpush1.msra.mxu0 0.0
        %5822 = vmatprep.subr.mxu0 0.0
        %5823 = vmatpush1.msra.mxu0 0.0
        %5824 = vmatprep.subr.mxu0 0.0
        %5825 = vmatpush1.msra.mxu0 0.0
        %5826 = vmatprep.subr.mxu0 0.0
        %5827 = vmatpush1.msra.mxu0 0.0
        %5828 = vmatprep.subr.mxu0 0.0
        %5829 = vmatpush1.msra.mxu0 0.0
        %5830 = vmatprep.subr.mxu0 0.0
        %5831 = vmatpush1.msra.mxu0 0.0
        %5832 = vmatprep.subr.mxu0 0.0
        %5833 = vmatpush1.msra.mxu0 0.0
        %5834 = vmatprep.subr.mxu0 0.0
        %5835 = vmatpush1.msra.mxu0 0.0
        %5836 = vmatprep.subr.mxu0 0.0
        %5837 = vmatpush1.msra.mxu0 0.0
        %5838 = vmatprep.subr.mxu0 0.0
        %5839 = vmatpush1.msra.mxu0 0.0
        %5840 = vmatprep.subr.mxu0 0.0
        %5841 = vmatpush1.msra.mxu0 0.0
        %5842 = vmatprep.subr.mxu0 0.0
        %5843 = vmatpush1.msra.mxu0 0.0
        %5844 = vmatprep.subr.mxu0 0.0
        %5845 = vmatpush1.msra.mxu0 0.0
        %5846 = vmatprep.subr.mxu0 0.0
        %5847 = vmatpush1.msra.mxu0 0.0
        %5848 = vmatprep.subr.mxu0 0.0
        %5849 = vmatpush1.msra.mxu0 0.0
        %5850 = vmatprep.mubr.f32.mxu0 0.0
        %5851 = vmatmul.mubr.f32.gmra.mrb[0].mxu0 %v5781
        %v5852 = vpop.f32.mrb[0].mxu0
        %v5853 = vadd.f32 0.0, %v5852
        %v5854 = vpop.f32.mrb[0].mxu0
        %5855 = vmatprep.mubr.f32.mxu0 0.0
        %5856 = vmatmul.mubr.f32.gmra.mrb[0].mxu0 %v5784
        %v5857 = vpop.f32.mrb[0].mxu0
        %v5858 = vadd.f32 0.0, %v5857
        %v5859 = vpop.f32.mrb[0].mxu0
        %5860 = vdwg.mxu0
        %v5861 = vld [vmem:[%s19] sm:$0xff]
        %v5862 = vld [vmem:[%s19 + $0x8] sm:$0xff]
        %v5864 = vsel %vm5779, %v5861, 0
        %v5867 = vsel %vm5779, %v5862, 0
        %5869 = vmatprep.subr.mxu0 0.0
        %5870 = vmatpush1.msra.mxu0 %v5771
        %5871 = vmatprep.subr.mxu0 0.0
        %5872 = vmatpush1.msra.mxu0 %v5772
        %5873 = vmatprep.subr.mxu0 0.0
        %5874 = vmatpush1.msra.mxu0 %v5773
        %5875 = vmatprep.subr.mxu0 0.0
        %5876 = vmatpush1.msra.mxu0 %v5774
        %5877 = vmatprep.subr.mxu0 0.0
        %5878 = vmatpush1.msra.mxu0 %v5775
        %5879 = vmatprep.subr.mxu0 0.0
        %5880 = vmatpush1.msra.mxu0 %v5776
        %5881 = vmatprep.subr.mxu0 0.0
        %5882 = vmatpush1.msra.mxu0 0.0
        %5883 = vmatprep.subr.mxu0 0.0
        %5884 = vmatpush1.msra.mxu0 0.0
        %5885 = vmatprep.subr.mxu0 0.0
        %5886 = vmatpush1.msra.mxu0 0.0
        %5887 = vmatprep.subr.mxu0 0.0
        %5888 = vmatpush1.msra.mxu0 0.0
        %5889 = vmatprep.subr.mxu0 0.0
        %5890 = vmatpush1.msra.mxu0 0.0
        %5891 = vmatprep.subr.mxu0 0.0
        %5892 = vmatpush1.msra.mxu0 0.0
        %5893 = vmatprep.subr.mxu0 0.0
        %5894 = vmatpush1.msra.mxu0 0.0
        %5895 = vmatprep.subr.mxu0 0.0
        %5896 = vmatpush1.msra.mxu0 0.0
        %5897 = vmatprep.subr.mxu0 0.0
        %5898 = vmatpush1.msra.mxu0 0.0
        %5899 = vmatprep.subr.mxu0 0.0
        %5900 = vmatpush1.msra.mxu0 0.0
        %5901 = vmatprep.subr.mxu0 0.0
        %5902 = vmatpush1.msra.mxu0 0.0
        %5903 = vmatprep.subr.mxu0 0.0
        %5904 = vmatpush1.msra.mxu0 0.0
        %5905 = vmatprep.subr.mxu0 0.0
        %5906 = vmatpush1.msra.mxu0 0.0
        %5907 = vmatprep.subr.mxu0 0.0
        %5908 = vmatpush1.msra.mxu0 0.0
        %5909 = vmatprep.subr.mxu0 0.0
        %5910 = vmatpush1.msra.mxu0 0.0
        %5911 = vmatprep.subr.mxu0 0.0
        %5912 = vmatpush1.msra.mxu0 0.0
        %5913 = vmatprep.subr.mxu0 0.0
        %5914 = vmatpush1.msra.mxu0 0.0
        %5915 = vmatprep.subr.mxu0 0.0
        %5916 = vmatpush1.msra.mxu0 0.0
        %5917 = vmatprep.subr.mxu0 0.0
        %5918 = vmatpush1.msra.mxu0 0.0
        %5919 = vmatprep.subr.mxu0 0.0
        %5920 = vmatpush1.msra.mxu0 0.0
        %5921 = vmatprep.subr.mxu0 0.0
        %5922 = vmatpush1.msra.mxu0 0.0
        %5923 = vmatprep.subr.mxu0 0.0
        %5924 = vmatpush1.msra.mxu0 0.0
        %5925 = vmatprep.subr.mxu0 0.0
        %5926 = vmatpush1.msra.mxu0 0.0
        %5927 = vmatprep.subr.mxu0 0.0
        %5928 = vmatpush1.msra.mxu0 0.0
        %5929 = vmatprep.subr.mxu0 0.0
        %5930 = vmatpush1.msra.mxu0 0.0
        %5931 = vmatprep.subr.mxu0 0.0
        %5932 = vmatpush1.msra.mxu0 0.0
        %5933 = vmatprep.mubr.f32.mxu0 0.0
        %5934 = vmatmul.mubr.f32.gmra.mrb[0].mxu0 %v5864
        %v5935 = vpop.f32.mrb[0].mxu0
        %v5936 = vadd.f32 0.0, %v5935
        %v5937 = vpop.f32.mrb[0].mxu0
        %5938 = vmatprep.mubr.f32.mxu0 0.0
        %5939 = vmatmul.mubr.f32.gmra.mrb[0].mxu0 %v5867
        %v5940 = vpop.f32.mrb[0].mxu0
        %v5941 = vadd.f32 0.0, %v5940
        %v5942 = vpop.f32.mrb[0].mxu0
        %5943 = vdwg.mxu0
        %v5944 = vpack.c.bf16 %v5941, %v5936
        %v5945 = vld [vmem:[%s63] sm:$0xf]
        %v5946 = vld [vmem:[%s63 + $0x4] sm:$0xf]
        %v5947 = vld [vmem:[%s63 + $0x8] sm:$0xf]
        %v5948 = vld [vmem:[%s63 + $0xc] sm:$0xf]
        %v5949 = vld [vmem:[%s65] sm:$0x1]
        %v5951 = vlaneseq
        %v5952 = vshrl.u32 %v5951, 7
        %v5953 = vsub.s32 0, %v5952
        %v5954 = vrot.slane %v5949, %v5953
        %v5960 = vunpack.c.l.b16 %v5945
        %v5961 = vunpack.c.l.b16 %v5946
        %v5962 = vunpack.c.l.b16 %v5947
        %v5963 = vunpack.c.l.b16 %v5948
        %v5964 = vpack.c.b16 %v5961, %v5960
        %v5965 = vpack.c.b16 %v5963, %v5962
        %v5969 = vsel %vm1839, %v5944, 0
        %5971 = vmatprep.subr.bf16.mxu0 0
        %5972 = vmatpush1.bf16.msra.mxu0 %v5964
        %5973 = vmatprep.subr.bf16.mxu0 0
        %5974 = vmatpush1.bf16.msra.mxu0 %v5965
        %5975 = vmatprep.subr.bf16.mxu0 0
        %5976 = vmatpush1.bf16.msra.mxu0 0
        %5977 = vmatprep.subr.bf16.mxu0 0
        %5978 = vmatpush1.bf16.msra.mxu0 0
        %5979 = vmatprep.subr.bf16.mxu0 0
        %5980 = vmatpush1.bf16.msra.mxu0 0
        %5981 = vmatprep.subr.bf16.mxu0 0
        %5982 = vmatpush1.bf16.msra.mxu0 0
        %5983 = vmatprep.subr.bf16.mxu0 0
        %5984 = vmatpush1.bf16.msra.mxu0 0
        %5985 = vmatprep.subr.bf16.mxu0 0
        %5986 = vmatpush1.bf16.msra.mxu0 0
        %5987 = vmatprep.subr.bf16.mxu0 0
        %5988 = vmatpush1.bf16.msra.mxu0 0
        %5989 = vmatprep.subr.bf16.mxu0 0
        %5990 = vmatpush1.bf16.msra.mxu0 0
        %5991 = vmatprep.subr.bf16.mxu0 0
        %5992 = vmatpush1.bf16.msra.mxu0 0
        %5993 = vmatprep.subr.bf16.mxu0 0
        %5994 = vmatpush1.bf16.msra.mxu0 0
        %5995 = vmatprep.subr.bf16.mxu0 0
        %5996 = vmatpush1.bf16.msra.mxu0 0
        %5997 = vmatprep.subr.bf16.mxu0 0
        %5998 = vmatpush1.bf16.msra.mxu0 0
        %5999 = vmatprep.subr.bf16.mxu0 0
        %6000 = vmatpush1.bf16.msra.mxu0 0
        %6001 = vmatprep.subr.bf16.mxu0 0
        %6002 = vmatpush1.bf16.msra.mxu0 0
        %6003 = vmatprep.mubr.bf16.mxu0 0
        %6004 = vmatmul.mubr.bf16.gmra.mrb[0].mxu0 %v5969
        %v6005 = vpop.f32.mrb[0].mxu0
        %v6006 = vadd.f32 %v5954, %v6005
        %v6007 = vpop.f32.mrb[0].mxu0
        %v6008 = vpop.f32.mrb[0].mxu0
        %v6009 = vadd.f32 %v5954, %v6008
        %v6010 = vpop.f32.mrb[0].mxu0
        %6011 = vdwg.mxu0
        %v6012 = vpack.c.bf16 %v5858, %v5853
        %v6013 = vld [vmem:[%s67] sm:$0xf]
        %v6014 = vld [vmem:[%s67 + $0x4] sm:$0xf]
        %v6015 = vld [vmem:[%s67 + $0x8] sm:$0xf]
        %v6016 = vld [vmem:[%s67 + $0xc] sm:$0xf]
        %v6017 = vld [vmem:[%s69] sm:$0x1]
        %v6019 = vlaneseq
        %v6020 = vshrl.u32 %v6019, 7
        %v6021 = vsub.s32 0, %v6020
        %v6022 = vrot.slane %v6017, %v6021
        %v6028 = vunpack.c.l.b16 %v6013
        %v6029 = vunpack.c.l.b16 %v6014
        %v6030 = vunpack.c.l.b16 %v6015
        %v6031 = vunpack.c.l.b16 %v6016
        %v6032 = vpack.c.b16 %v6029, %v6028
        %v6033 = vpack.c.b16 %v6031, %v6030
        %v6037 = vsel %vm1839, %v6012, 0
        %6039 = vmatprep.subr.bf16.mxu0 0
        %6040 = vmatpush1.bf16.msra.mxu0 %v6032
        %6041 = vmatprep.subr.bf16.mxu0 0
        %6042 = vmatpush1.bf16.msra.mxu0 %v6033
        %6043 = vmatprep.subr.bf16.mxu0 0
        %6044 = vmatpush1.bf16.msra.mxu0 0
        %6045 = vmatprep.subr.bf16.mxu0 0
        %6046 = vmatpush1.bf16.msra.mxu0 0
        %6047 = vmatprep.subr.bf16.mxu0 0
        %6048 = vmatpush1.bf16.msra.mxu0 0
        %6049 = vmatprep.subr.bf16.mxu0 0
        %6050 = vmatpush1.bf16.msra.mxu0 0
        %6051 = vmatprep.subr.bf16.mxu0 0
        %6052 = vmatpush1.bf16.msra.mxu0 0
        %6053 = vmatprep.subr.bf16.mxu0 0
        %6054 = vmatpush1.bf16.msra.mxu0 0
        %6055 = vmatprep.subr.bf16.mxu0 0
        %6056 = vmatpush1.bf16.msra.mxu0 0
        %6057 = vmatprep.subr.bf16.mxu0 0
        %6058 = vmatpush1.bf16.msra.mxu0 0
        %6059 = vmatprep.subr.bf16.mxu0 0
        %6060 = vmatpush1.bf16.msra.mxu0 0
        %6061 = vmatprep.subr.bf16.mxu0 0
        %6062 = vmatpush1.bf16.msra.mxu0 0
        %6063 = vmatprep.subr.bf16.mxu0 0
        %6064 = vmatpush1.bf16.msra.mxu0 0
        %6065 = vmatprep.subr.bf16.mxu0 0
        %6066 = vmatpush1.bf16.msra.mxu0 0
        %6067 = vmatprep.subr.bf16.mxu0 0
        %6068 = vmatpush1.bf16.msra.mxu0 0
        %6069 = vmatprep.subr.bf16.mxu0 0
        %6070 = vmatpush1.bf16.msra.mxu0 0
        %6071 = vmatprep.mubr.bf16.mxu0 0
        %6072 = vmatmul.mubr.bf16.gmra.mrb[0].mxu0 %v6037
        %v6073 = vpop.f32.mrb[0].mxu0
        %v6074 = vadd.f32 %v6022, %v6073
        %v6075 = vpop.f32.mrb[0].mxu0
        %v6076 = vpop.f32.mrb[0].mxu0
        %v6077 = vadd.f32 %v6022, %v6076
        %v6078 = vpop.f32.mrb[0].mxu0
        %6079 = vdwg.mxu0
        %v6080 = vtanh.pop %v6074
        %v6081 = vtanh.pop %v6077
        %v6082 = vadd.f32 %v6006, %v6080
        %v6083 = vadd.f32 %v6009, %v6081
        %6084 = vst [vmem:[%s1110] sm:$0xff] %v6082
        %6085 = vst [vmem:[%s1110 + $0x8] sm:$0xff] %v6083
        %s6086 = sand.u32 %s848, 1
        %s6087 = scalar_lea.sflag [#allocation3], %s6086
        %s6088 = sand.u32 %s848, 1
        %s6089 = smul.addr %s6088, 16
        %s6090 = scalar_lea.vmem [#allocation2], %s6089
        // Predicated region
        $region161: #{tpu_custom_call.1} parent=159 // pred_check
          %p6091 = pneg %p858
        $region162: #{tpu_custom_call.1} parent=159 // pred_check_branch
          %6093 = sbr.rel (%p6091) target = $region164
        $region163: #{tpu_custom_call.1} parent=159 // pred_region
          %s6094 = smul.u32 2, %s85
          %s6096 = ssub.s32 256, 256
          %6097 = vsyncadd %s6087, %s6096
          %s6098 = smul.addr %s6094, 128
          %s6099 = scalar_lea.hbm %s71, %s6098
          %s6100 = sshll.u32 %s6090, 4
          %s6101 = int_to_ptr.vmem [resolvable:$true] %s6100
          %6106 = dma.vmem_to_hbm [thread:$0]  %s6101, 256, %s6099, %s6087, 128, 128, 8
        $region164: #{tpu_custom_call.1} parent=159 // pred_fallthru
          _
      $region160: #{tpu_custom_call.1} parent=5 // pred_fallthru
        _
      %p6107 = scmp.le.s32.totalorder 2, %s80
      // Predicated region
      $region165: #{tpu_custom_call.1} parent=5 // pred_check
        %p6108 = pneg %p6107
      $region166: #{tpu_custom_call.1} parent=5 // pred_check_branch
        %6110 = sbr.rel (%p6108) target = $region168
      $region167: #{tpu_custom_call.1} parent=5 // pred_region
        %s6111 = ssub.s32 %s80, 2
        // Predicated region
        $region169: #{tpu_custom_call.1} parent=167 // pred_check
          %p6112 = pneg %p864
        $region170: #{tpu_custom_call.1} parent=167 // pred_check_branch
          %6114 = sbr.rel (%p6112) target = $region172
        $region171: #{tpu_custom_call.1} parent=167 // pred_region
          %s6115 = sand.u32 %s849, 1
          %s6116 = scalar_lea.sflag [#allocation3], %s6115
          %s6117 = sand.u32 %s849, 1
          %s6118 = smul.addr %s6117, 16
          %s6119 = scalar_lea.vmem [#allocation2], %s6118
          %6120 = dma.done %s6116, 256
        $region172: #{tpu_custom_call.1} parent=167 // pred_fallthru
          _
      $region168: #{tpu_custom_call.1} parent=5 // pred_fallthru
        _
    $region6: #{tpu_custom_call.1} parent=1 // loop_footer
      %s84 = sadd.s32 1, %s80
    $region7: #{tpu_custom_call.1} parent=1 // loop_footer_branch
      %79 = sbr.rel target = $region3
    $region8: #{tpu_custom_call.1} parent=1 // loop_exit
      _
    %6121 = vsyncpa [#allocation3], 1
    %s6122 = scalar_lea.sflag [#allocation3], 1
    %6123 = vsyncpa %s6122, 1

</llo_original>
